<compile_context>
chip_gen: v5e
topology: v5e:2x2
jax: 0.10.0
libtpu: 0.0.40
codegen_flags: <defaults>
</compile_context>

<pallas_src>
import functools

import jax
import jax.numpy as jnp
import numpy as np
from jax.experimental import pallas as pl
from jax.experimental.pallas import tpu as pltpu


def _round_up(x, m):
    return (x + m - 1) // m * m


def _default_vmem_limit():
    # Generation-aware VMEM budget: ~3/4 of physical VMEM, capped at 100 MiB
    # (=> ~48 MiB on v7x's 64 MiB, ~96-100 MiB on v5e/v6e's 128 MiB).
    try:
        info = pltpu.get_tpu_info()
        cap = getattr(info, "vmem_capacity_bytes", None)
        if cap:
            return int(min(cap * 3 // 4, 100 * 1024 * 1024))
    except Exception:
        pass
    return 32 * 1024 * 1024


_VMEM_LIMIT = _default_vmem_limit()
_LN_EPS = 1e-5


# --------------------------------------------------------------------------
# Linear kernel (tiled matmul, optional gelu / residual-add / LayerNorm epilogue)
# --------------------------------------------------------------------------
def _linear_kernel(*refs, act, has_res, has_ln, eps):
    # refs order: x, w, b, [res], [ln_g], [ln_b], o, acc
    idx = 0
    x_ref = refs[idx]; idx += 1
    w_ref = refs[idx]; idx += 1
    b_ref = refs[idx]; idx += 1
    res_ref = g_ref = beta_ref = None
    if has_res:
        res_ref = refs[idx]; idx += 1
    if has_ln:
        g_ref = refs[idx]; idx += 1
        beta_ref = refs[idx]; idx += 1
    o_ref = refs[idx]; idx += 1
    acc_ref = refs[idx]

    @pl.when(pl.program_id(2) == 0)
    def _():
        acc_ref[...] = jnp.zeros_like(acc_ref)

    acc_ref[...] += jnp.dot(x_ref[...], w_ref[...],
                            preferred_element_type=jnp.float32)

    @pl.when(pl.program_id(2) == pl.num_programs(2) - 1)
    def _():
        y = acc_ref[...] + b_ref[...]
        if act == "gelu":
            y = jax.nn.gelu(y)
        if has_res:
            y = y + res_ref[...].astype(jnp.float32)
        if has_ln:
            mean = jnp.mean(y, axis=-1, keepdims=True)
            var = jnp.mean(jnp.square(y - mean), axis=-1, keepdims=True)
            y = (y - mean) * jax.lax.rsqrt(var + eps)
            y = y * g_ref[...] + beta_ref[...]
        o_ref[...] = y.astype(o_ref.dtype)


def pallas_linear(x2d, w, b, *, act=None, residual=None, ln=None,
                  out_dtype=jnp.bfloat16, tm=256, tn=512, tk=512, eps=_LN_EPS):
    """y = epilogue(x @ w + b); bf16 MXU operands, f32 accumulation."""
    M, K = x2d.shape
    N = w.shape[1]
    has_res = residual is not None
    has_ln = ln is not None

    xo = x2d if x2d.dtype == jnp.bfloat16 else x2d.astype(jnp.bfloat16)
    wo = w if w.dtype == jnp.bfloat16 else w.astype(jnp.bfloat16)

    # M tile: 16-row granularity (bf16 sublane packing); aim for >=2 M-blocks
    # so the two v7x TensorCores both get work on the "parallel" axis.
    if M <= tm:
        tm = _round_up((M + 1) // 2, 16) if M >= 32 else _round_up(M, 16)
    tk = min(tk, _round_up(K, 128))
    if has_ln:
        assert N % 128 == 0, "fused LayerNorm needs lane-aligned full rows"
        tn = N                      # LN needs the whole output row in one tile
    else:
        tn = min(tn, _round_up(N, 128))

    Mp, Kp, Np = _round_up(M, tm), _round_up(K, tk), _round_up(N, tn)
    if (Mp, Kp) != (M, K):
        xo = jnp.pad(xo, ((0, Mp - M), (0, Kp - K)))
    if (Kp, Np) != (K, N):
        wo = jnp.pad(wo, ((0, Kp - K), (0, Np - N)))
    bo = b.astype(jnp.float32)
    if Np != N:
        bo = jnp.pad(bo, (0, Np - N))
    bo = bo.reshape(1, Np)

    operands = [xo, wo, bo]
    in_specs = [
        pl.BlockSpec((tm, tk), lambda i, j, k: (i, k)),
        pl.BlockSpec((tk, tn), lambda i, j, k: (k, j)),
        pl.BlockSpec((1, tn), lambda i, j, k: (0, j)),
    ]
    if has_res:
        ro = residual if residual.dtype == jnp.bfloat16 else residual.astype(jnp.bfloat16)
        if (Mp, Np) != (M, N):
            ro = jnp.pad(ro, ((0, Mp - M), (0, Np - N)))
        operands.append(ro)
        in_specs.append(pl.BlockSpec((tm, tn), lambda i, j, k: (i, j)))
    if has_ln:
        g, beta = ln
        operands += [g.astype(jnp.float32).reshape(1, N),
                     beta.astype(jnp.float32).reshape(1, N)]
        in_specs += [pl.BlockSpec((1, tn), lambda i, j, k: (0, j)),
                     pl.BlockSpec((1, tn), lambda i, j, k: (0, j))]

    out = pl.pallas_call(
        functools.partial(_linear_kernel, act=act, has_res=has_res,
                          has_ln=has_ln, eps=eps),
        out_shape=jax.ShapeDtypeStruct((Mp, Np), out_dtype),
        grid=(Mp // tm, Np // tn, Kp // tk),
        in_specs=in_specs,
        out_specs=pl.BlockSpec((tm, tn), lambda i, j, k: (i, j)),
        scratch_shapes=[pltpu.VMEM((tm, tn), jnp.float32)],
        compiler_params=pltpu.CompilerParams(
            dimension_semantics=("parallel", "parallel", "arbitrary"),
            vmem_limit_bytes=_VMEM_LIMIT),
    )(*operands)
    if (Mp, Np) != (M, N):
        out = out[:M, :N]
    return out


# --------------------------------------------------------------------------
# Fused attention kernel: scores -> softmax -> context -> O-proj -> +res -> LN
# --------------------------------------------------------------------------
def _attn_core(q, k, v, res, wo_ref, bo_ref, g_ref, beta_ref, o_ref, *,
               n_heads, causal, eps):
    Lq, H = q.shape
    Lk = k.shape[0]
    hd = H // n_heads

    if causal:
        row = jax.lax.broadcasted_iota(jnp.int32, (Lq, Lk), 0)
        col = jax.lax.broadcasted_iota(jnp.int32, (Lq, Lk), 1)
        neg = jnp.where(row >= col, 0.0, -1e30).astype(jnp.float32)

    acc = jnp.zeros((Lq, H), jnp.float32)
    # TODO(synk): static per-head loop (hd=32 tiles under-fill the MXU per
    # issue); switch to a head-batched dot_general + KV-tiled online softmax
    # once Lq/Lk/n_heads grow.
    for h in range(n_heads):
        sl = slice(h * hd, (h + 1) * hd)
        # 1/sqrt(hd) is folded into the Q projection weights at init time.
        s = jax.lax.dot_general(q[:, sl], k[:, sl], (((1,), (1,)), ((), ())),
                                preferred_element_type=jnp.float32)
        if causal:
            s = s + neg
        m = jnp.max(s, axis=-1, keepdims=True)
        p = jnp.exp(s - m)
        denom = jnp.sum(p, axis=-1, keepdims=True)
        attn = (p * pl.reciprocal(denom, approx=True)).astype(v.dtype)
        ctx = jnp.dot(attn, v[:, sl], preferred_element_type=jnp.float32)
        # fused output projection: this head's slice of W_o, accumulated in f32
        acc = acc + jnp.dot(ctx.astype(wo_ref.dtype), wo_ref[sl, :],
                            preferred_element_type=jnp.float32)
    # fused bias + residual add + LayerNorm epilogue (lane-dense (Lq,H) write)
    y = acc + bo_ref[...] + res.astype(jnp.float32)
    mean = jnp.mean(y, axis=-1, keepdims=True)
    var = jnp.mean(jnp.square(y - mean), axis=-1, keepdims=True)
    y = (y - mean) * jax.lax.rsqrt(var + eps)
    o_ref[0] = (y * g_ref[...] + beta_ref[...]).astype(o_ref.dtype)


def _self_attn_kernel(qkv_ref, res_ref, wo_ref, bo_ref, g_ref, beta_ref, o_ref,
                      *, n_heads, causal, eps):
    qkv = qkv_ref[0]                       # (L, 3H) bf16
    H = qkv.shape[-1] // 3
    # static 128-aligned lane slices of the fused QKV projection
    _attn_core(qkv[:, :H], qkv[:, H:2 * H], qkv[:, 2 * H:], res_ref[0],
               wo_ref, bo_ref, g_ref, beta_ref, o_ref,
               n_heads=n_heads, causal=causal, eps=eps)


def _cross_attn_kernel(q_ref, kv_ref, res_ref, wo_ref, bo_ref, g_ref, beta_ref,
                       o_ref, *, n_heads, eps):
    kv = kv_ref[0]                         # (Lk, 2H) bf16
    H = q_ref.shape[-1]
    _attn_core(q_ref[0], kv[:, :H], kv[:, H:], res_ref[0],
               wo_ref, bo_ref, g_ref, beta_ref, o_ref,
               n_heads=n_heads, causal=False, eps=eps)


def pallas_attn_self(qkv, x, wo, bo, g, beta, n_heads, causal, eps=_LN_EPS):
    # qkv: (B, L, 3H) bf16; x (residual): (B, L, H) bf16 -> LN(x + attn @ Wo + bo)
    # TODO(synk): non-flash attention (whole Lk per grid step); switch to an
    # online-softmax KV-tiled variant for long sequences (size against 64 MiB
    # VMEM on v7x).
    B, L, H3 = qkv.shape
    H = H3 // 3
    return pl.pallas_call(
        functools.partial(_self_attn_kernel, n_heads=n_heads, causal=causal,
                          eps=eps),
        out_shape=jax.ShapeDtypeStruct((B, L, H), jnp.bfloat16),
        grid=(B,),
        in_specs=[
            pl.BlockSpec((1, L, H3), lambda b: (b, 0, 0)),
            pl.BlockSpec((1, L, H), lambda b: (b, 0, 0)),
            pl.BlockSpec((H, H), lambda b: (0, 0)),
            pl.BlockSpec((1, H), lambda b: (0, 0)),
            pl.BlockSpec((1, H), lambda b: (0, 0)),
            pl.BlockSpec((1, H), lambda b: (0, 0)),
        ],
        out_specs=pl.BlockSpec((1, L, H), lambda b: (b, 0, 0)),
        compiler_params=pltpu.CompilerParams(
            dimension_semantics=("parallel",), vmem_limit_bytes=_VMEM_LIMIT),
    )(qkv, x, wo, bo.reshape(1, H).astype(jnp.float32),
      g.reshape(1, H).astype(jnp.float32), beta.reshape(1, H).astype(jnp.float32))


def pallas_attn_cross(q, kv, x, wo, bo, g, beta, n_heads, eps=_LN_EPS):
    # q: (B, Lq, H); kv: (B, Lk, 2H); x (residual): (B, Lq, H); all bf16
    B, Lq, H = q.shape
    Lk = kv.shape[1]
    return pl.pallas_call(
        functools.partial(_cross_attn_kernel, n_heads=n_heads, eps=eps),
        out_shape=jax.ShapeDtypeStruct((B, Lq, H), jnp.bfloat16),
        grid=(B,),
        in_specs=[
            pl.BlockSpec((1, Lq, H), lambda b: (b, 0, 0)),
            pl.BlockSpec((1, Lk, 2 * H), lambda b: (b, 0, 0)),
            pl.BlockSpec((1, Lq, H), lambda b: (b, 0, 0)),
            pl.BlockSpec((H, H), lambda b: (0, 0)),
            pl.BlockSpec((1, H), lambda b: (0, 0)),
            pl.BlockSpec((1, H), lambda b: (0, 0)),
            pl.BlockSpec((1, H), lambda b: (0, 0)),
        ],
        out_specs=pl.BlockSpec((1, Lq, H), lambda b: (b, 0, 0)),
        compiler_params=pltpu.CompilerParams(
            dimension_semantics=("parallel",), vmem_limit_bytes=_VMEM_LIMIT),
    )(q, kv, x, wo, bo.reshape(1, H).astype(jnp.float32),
      g.reshape(1, H).astype(jnp.float32), beta.reshape(1, H).astype(jnp.float32))


PALLAS_OPS = dict(linear=pallas_linear, attn_self=pallas_attn_self,
                  attn_cross=pallas_attn_cross)


# --------------------------------------------------------------------------
# Pure-JAX reference (matching bf16-operand / f32-accumulation numerics)
# --------------------------------------------------------------------------
def _ref_linear(x2d, w, b, *, act=None, residual=None, ln=None,
                out_dtype=jnp.bfloat16, eps=_LN_EPS):
    y = jnp.dot(x2d.astype(jnp.bfloat16), w.astype(jnp.bfloat16),
                preferred_element_type=jnp.float32) + b.astype(jnp.float32)[None, :]
    if act == "gelu":
        y = jax.nn.gelu(y)
    if residual is not None:
        y = y + residual.astype(jnp.float32)
    if ln is not None:
        g, beta = ln
        mean = jnp.mean(y, axis=-1, keepdims=True)
        var = jnp.mean(jnp.square(y - mean), axis=-1, keepdims=True)
        y = (y - mean) * jax.lax.rsqrt(var + eps) * g[None, :] + beta[None, :]
    return y.astype(out_dtype)


def _ref_attn_core(q, k, v, res, wo, bo, g, beta, n_heads, causal, eps=_LN_EPS):
    B, Lq, H = q.shape
    Lk = k.shape[1]
    hd = H // n_heads
    acc = jnp.zeros((B, Lq, H), jnp.float32)
    for h in range(n_heads):
        sl = slice(h * hd, (h + 1) * hd)
        s = jnp.einsum("bqd,bkd->bqk", q[..., sl], k[..., sl],
                       preferred_element_type=jnp.float32)
        if causal:
            mask = jnp.arange(Lq)[:, None] >= jnp.arange(Lk)[None, :]
            s = jnp.where(mask[None], s, -1e30)
        p = jax.nn.softmax(s, axis=-1).astype(jnp.bfloat16)
        ctx = jnp.einsum("bqk,bkd->bqd", p, v[..., sl],
                         preferred_element_type=jnp.float32)
        acc = acc + jnp.einsum("bqd,dh->bqh", ctx.astype(jnp.bfloat16),
                               wo[sl, :].astype(jnp.bfloat16),
                               preferred_element_type=jnp.float32)
    y = acc + bo.astype(jnp.float32)[None, None, :] + res.astype(jnp.float32)
    mean = jnp.mean(y, axis=-1, keepdims=True)
    var = jnp.mean(jnp.square(y - mean), axis=-1, keepdims=True)
    y = (y - mean) * jax.lax.rsqrt(var + eps) * g[None, None, :] + beta[None, None, :]
    return y.astype(jnp.bfloat16)


def _ref_attn_self(qkv, x, wo, bo, g, beta, n_heads, causal):
    H = qkv.shape[-1] // 3
    return _ref_attn_core(qkv[..., :H], qkv[..., H:2 * H], qkv[..., 2 * H:],
                          x, wo, bo, g, beta, n_heads, causal)


def _ref_attn_cross(q, kv, x, wo, bo, g, beta, n_heads):
    H = q.shape[-1]
    return _ref_attn_core(q, kv[..., :H], kv[..., H:], x, wo, bo, g, beta,
                          n_heads, False)


REF_OPS = dict(linear=_ref_linear, attn_self=_ref_attn_self,
               attn_cross=_ref_attn_cross)


# --------------------------------------------------------------------------
# Model composition (glue in plain JAX; compute routed through `ops`)
# --------------------------------------------------------------------------
def _self_attn_block(ops, p, x, g, beta, n_heads, causal):
    B, L, H = x.shape
    # fused QKV projection (bf16 out); attention kernel slices it by lane offset
    qkv = ops["linear"](x.reshape(-1, H), p["wqkv"], p["bqkv"]).reshape(B, L, 3 * H)
    return ops["attn_self"](qkv, x, p["wo"], p["bo"], g, beta, n_heads, causal)


def _cross_attn_block(ops, p, x_q, x_kv, g, beta, n_heads):
    B, Lq, H = x_q.shape
    Lk = x_kv.shape[1]
    q = ops["linear"](x_q.reshape(-1, H), p["wq"], p["bq"]).reshape(B, Lq, H)
    kv = ops["linear"](x_kv.reshape(-1, H), p["wkv"], p["bkv"]).reshape(B, Lk, 2 * H)
    return ops["attn_cross"](q, kv, x_q, p["wo"], p["bo"], g, beta, n_heads)


def _ffn_block(ops, p, x, g, beta):
    B, L, H = x.shape
    h = ops["linear"](x.reshape(-1, H), p["w1"], p["b1"], act="gelu")
    # second linear fuses residual add + LayerNorm into its flush epilogue
    y = ops["linear"](h, p["w2"], p["b2"], residual=x.reshape(-1, H), ln=(g, beta))
    return y.reshape(B, L, H)


def encoder_forward(ops, p, input_ids, n_heads):
    L = input_ids.shape[1]
    # TODO(synk): embedding gathers stay in XLA (no clean dense Pallas tile).
    x = p["tok_emb"][input_ids] + p["pos_emb"][:L][None, :, :]
    x = _self_attn_block(ops, p["attn"], x, p["ln1_g"], p["ln1_b"], n_heads,
                         causal=False)
    x = _ffn_block(ops, p, x, p["ln2_g"], p["ln2_b"])
    return x  # last_hidden_state: [B, Ls, H] bf16


def decoder_forward(ops, p, decoder_input_ids, encoder_hidden_states, n_heads):
    B, L = decoder_input_ids.shape
    H = p["tok_emb"].shape[1]
    x = p["tok_emb"][decoder_input_ids] + p["pos_emb"][:L][None, :, :]
    x = _self_attn_block(ops, p["self_attn"], x, p["ln1_g"], p["ln1_b"], n_heads,
                         causal=True)
    x = _cross_attn_block(ops, p["cross_attn"], x, encoder_hidden_states,
                          p["ln2_g"], p["ln2_b"], n_heads)
    x = _ffn_block(ops, p, x, p["ln3_g"], p["ln3_b"])
    V = p["lm_w"].shape[1]
    logits = ops["linear"](x.reshape(-1, H), p["lm_w"], p["lm_b"],
                           out_dtype=jnp.float32)
    return logits.reshape(B, L, V)


def seq2seq_forward(ops, params, input_ids, decoder_input_ids, n_heads):
    # Mirrors Seq2Seq.forward
    enc_h = encoder_forward(ops, params["encoder"], input_ids, n_heads)
    return decoder_forward(ops, params["decoder"], decoder_input_ids, enc_h,
                           n_heads)


# --------------------------------------------------------------------------
# Deterministic parameter initialization
#   * QKV / KV projections pre-fused
#   * 1/sqrt(head_dim) folded into the Q projection (weights + bias)
#   * matmul weights & embeddings stored in bf16 once; biases / LN params f32
# --------------------------------------------------------------------------
def _dense(key, shape, scale=0.02):
    return scale * jax.random.normal(key, shape, dtype=jnp.float32)


def _self_attn_params(key, H, n_heads):
    ks = jax.random.split(key, 4)
    inv_sqrt_d = 1.0 / float(np.sqrt(H // n_heads))
    wq = _dense(ks[0], (H, H)) * inv_sqrt_d          # scale folded into Q proj
    wqkv = jnp.concatenate([wq, _dense(ks[1], (H, H)), _dense(ks[2], (H, H))],
                           axis=1)
    return dict(wqkv=wqkv.astype(jnp.bfloat16),
                bqkv=jnp.zeros((3 * H,), jnp.float32),   # (q-part pre-scaled)
                wo=_dense(ks[3], (H, H)).astype(jnp.bfloat16),
                bo=jnp.zeros((H,), jnp.float32))


def _cross_attn_params(key, H, n_heads):
    ks = jax.random.split(key, 4)
    inv_sqrt_d = 1.0 / float(np.sqrt(H // n_heads))
    wkv = jnp.concatenate([_dense(ks[1], (H, H)), _dense(ks[2], (H, H))], axis=1)
    return dict(wq=(_dense(ks[0], (H, H)) * inv_sqrt_d).astype(jnp.bfloat16),
                bq=jnp.zeros((H,), jnp.float32),
                wkv=wkv.astype(jnp.bfloat16),
                bkv=jnp.zeros((2 * H,), jnp.float32),
                wo=_dense(ks[3], (H, H)).astype(jnp.bfloat16),
                bo=jnp.zeros((H,), jnp.float32))


def init_params(key, vocab, H, ffn, max_pos, n_heads):
    ke, kd = jax.random.split(key)
    kes = jax.random.split(ke, 5)
    kds = jax.random.split(kd, 8)
    bf = jnp.bfloat16
    enc = dict(
        tok_emb=_dense(kes[0], (vocab, H)).astype(bf),
        pos_emb=_dense(kes[1], (max_pos, H)).astype(bf),
        attn=_self_attn_params(kes[2], H, n_heads),
        ln1_g=jnp.ones((H,), jnp.float32), ln1_b=jnp.zeros((H,), jnp.float32),
        ln2_g=jnp.ones((H,), jnp.float32), ln2_b=jnp.zeros((H,), jnp.float32),
        w1=_dense(kes[3], (H, ffn)).astype(bf), b1=jnp.zeros((ffn,), jnp.float32),
        w2=_dense(kes[4], (ffn, H)).astype(bf), b2=jnp.zeros((H,), jnp.float32),
    )
    dec = dict(
        tok_emb=_dense(kds[0], (vocab, H)).astype(bf),
        pos_emb=_dense(kds[1], (max_pos, H)).astype(bf),
        self_attn=_self_attn_params(kds[2], H, n_heads),
        cross_attn=_cross_attn_params(kds[3], H, n_heads),
        ln1_g=jnp.ones((H,), jnp.float32), ln1_b=jnp.zeros((H,), jnp.float32),
        ln2_g=jnp.ones((H,), jnp.float32), ln2_b=jnp.zeros((H,), jnp.float32),
        ln3_g=jnp.ones((H,), jnp.float32), ln3_b=jnp.zeros((H,), jnp.float32),
        w1=_dense(kds[4], (H, ffn)).astype(bf), b1=jnp.zeros((ffn,), jnp.float32),
        w2=_dense(kds[5], (ffn, H)).astype(bf), b2=jnp.zeros((H,), jnp.float32),
        lm_w=_dense(kds[6], (H, vocab)).astype(bf),
        lm_b=jnp.zeros((vocab,), jnp.float32),
    )
    return dict(encoder=enc, decoder=dec)


# --------------------------------------------------------------------------
if __name__ == "__main__":
    # small shapes consistent with the forward pass
    B, Ls, Lt = 2, 16, 8
    VOCAB, H, N_HEADS, FFN, MAX_POS = 256, 128, 4, 256, 32

    key = jax.random.PRNGKey(0)
    kp, ki, kd = jax.random.split(key, 3)
    params = init_params(kp, VOCAB, H, FFN, MAX_POS, N_HEADS)

    input_ids = jax.random.randint(ki, (B, Ls), 0, VOCAB, dtype=jnp.int32)
    decoder_input_ids = jax.random.randint(kd, (B, Lt), 0, VOCAB, dtype=jnp.int32)

    pallas_fn = jax.jit(
        lambda p, a, b: seq2seq_forward(PALLAS_OPS, p, a, b, N_HEADS))
    ref_fn = jax.jit(
        lambda p, a, b: seq2seq_forward(REF_OPS, p, a, b, N_HEADS))

    logits = jax.block_until_ready(pallas_fn(params, input_ids, decoder_input_ids))
    assert logits.shape == (B, Lt, VOCAB)
    assert logits.dtype == jnp.float32

    # correctness check against a pure-JAX reference with matching numerics
    ref_logits = jax.block_until_ready(ref_fn(params, input_ids, decoder_input_ids))
    np.testing.assert_allclose(np.asarray(logits), np.asarray(ref_logits),
                               rtol=2e-2, atol=5e-3)

    print("KERNEL_OK")
</pallas_src>

<mosaic_0001>
module attributes {stable_mosaic.version = 11 : i64} {
  func.func @_self_attn_kernel(%arg0: i32, %arg1: memref<1x16x384xbf16, #tpu.memory_space<vmem>>, %arg2: memref<1x16x128xbf16, #tpu.memory_space<vmem>>, %arg3: memref<128x128xbf16, #tpu.memory_space<vmem>>, %arg4: memref<1x128xf32, #tpu.memory_space<vmem>>, %arg5: memref<1x128xf32, #tpu.memory_space<vmem>>, %arg6: memref<1x128xf32, #tpu.memory_space<vmem>>, %arg7: memref<1x16x128xbf16, #tpu.memory_space<vmem>>) attributes {dimension_semantics = [#tpu.dimension_semantics<parallel>], iteration_bounds = array<i64: 2>, scalar_prefetch = 0 : i64, scratch_operands = 0 : i64, tpu.core_type = #tpu.core_type<tc>, window_params = [{transform_indices = @transform_0, window_bounds = array<i64: 1, 16, 384>}, {transform_indices = @transform_1, window_bounds = array<i64: 1, 16, 128>}, {pipeline_mode = #tpu.pipeline_mode<synchronous>, transform_indices = @transform_2, window_bounds = array<i64: 128, 128>}, {pipeline_mode = #tpu.pipeline_mode<synchronous>, transform_indices = @transform_3, window_bounds = array<i64: 1, 128>}, {pipeline_mode = #tpu.pipeline_mode<synchronous>, transform_indices = @transform_4, window_bounds = array<i64: 1, 128>}, {pipeline_mode = #tpu.pipeline_mode<synchronous>, transform_indices = @transform_5, window_bounds = array<i64: 1, 128>}, {transform_indices = @transform_6, window_bounds = array<i64: 1, 16, 128>}]} {
    %c0 = arith.constant 0 : index
    %c0_0 = arith.constant 0 : index
    %c0_1 = arith.constant 0 : index
    %0 = vector.load %arg1[%c0, %c0_0, %c0_1] : memref<1x16x384xbf16, #tpu.memory_space<vmem>>, vector<1x16x384xbf16>
    %1 = vector.shape_cast %0 : vector<1x16x384xbf16> to vector<16x384xbf16>
    %2 = vector.extract_strided_slice %1 {offsets = [0, 0], sizes = [16, 128], strides = [1, 1]} : vector<16x384xbf16> to vector<16x128xbf16>
    %3 = vector.extract_strided_slice %1 {offsets = [0, 128], sizes = [16, 128], strides = [1, 1]} : vector<16x384xbf16> to vector<16x128xbf16>
    %4 = vector.extract_strided_slice %1 {offsets = [0, 256], sizes = [16, 128], strides = [1, 1]} : vector<16x384xbf16> to vector<16x128xbf16>
    %c0_2 = arith.constant 0 : index
    %c0_3 = arith.constant 0 : index
    %c0_4 = arith.constant 0 : index
    %5 = vector.load %arg2[%c0_2, %c0_3, %c0_4] : memref<1x16x128xbf16, #tpu.memory_space<vmem>>, vector<1x16x128xbf16>
    %6 = vector.shape_cast %5 : vector<1x16x128xbf16> to vector<16x128xbf16>
    %cst = arith.constant 0.000000e+00 : f32
    %7 = vector.broadcast %cst : f32 to vector<16x128xf32>
    %8 = vector.extract_strided_slice %2 {offsets = [0, 0], sizes = [16, 32], strides = [1, 1]} : vector<16x128xbf16> to vector<16x32xbf16>
    %9 = vector.extract_strided_slice %3 {offsets = [0, 0], sizes = [16, 32], strides = [1, 1]} : vector<16x128xbf16> to vector<16x32xbf16>
    %cst_5 = arith.constant dense<0.000000e+00> : vector<16x16xf32>
    %10 = tpu.matmul %8, %9, %cst_5 {dimension_numbers = #tpu.dot_dimension_numbers<[1], [1], [0], [0], [0, 0, 1, 0], [], []>} : vector<16x32xbf16>, vector<16x32xbf16>, vector<16x16xf32> -> vector<16x16xf32>
    %cst_6 = arith.constant dense<0xFF800000> : vector<16xf32>
    %11 = vector.multi_reduction <maximumf>, %10, %cst_6 [1] : vector<16x16xf32> to vector<16xf32>
    %12 = vector.shape_cast %11 : vector<16xf32> to vector<16x1xf32>
    %13 = vector.broadcast %12 : vector<16x1xf32> to vector<16x16xf32>
    %14 = arith.subf %10, %13 : vector<16x16xf32>
    %15 = math.exp %14 : vector<16x16xf32>
    %cst_7 = arith.constant dense<0.000000e+00> : vector<16xf32>
    %16 = vector.multi_reduction <add>, %15, %cst_7 [1] : vector<16x16xf32> to vector<16xf32>
    %17 = vector.shape_cast %16 : vector<16xf32> to vector<16x1xf32>
    %18 = tpu.reciprocal %17 {approx = true} : vector<16x1xf32> -> vector<16x1xf32>
    %19 = vector.broadcast %18 : vector<16x1xf32> to vector<16x16xf32>
    %20 = arith.mulf %15, %19 : vector<16x16xf32>
    %21 = arith.truncf %20 : vector<16x16xf32> to vector<16x16xbf16>
    %22 = vector.extract_strided_slice %4 {offsets = [0, 0], sizes = [16, 32], strides = [1, 1]} : vector<16x128xbf16> to vector<16x32xbf16>
    %cst_8 = arith.constant dense<0.000000e+00> : vector<16x32xf32>
    %23 = tpu.matmul %21, %22, %cst_8 {dimension_numbers = #tpu.dot_dimension_numbers<[1], [0], [0], [1], [0, 0, 1, 1], [], []>} : vector<16x16xbf16>, vector<16x32xbf16>, vector<16x32xf32> -> vector<16x32xf32>
    %24 = arith.truncf %23 : vector<16x32xf32> to vector<16x32xbf16>
    %c0_9 = arith.constant 0 : index
    %c0_10 = arith.constant 0 : index
    %25 = vector.load %arg3[%c0_9, %c0_10] : memref<128x128xbf16, #tpu.memory_space<vmem>>, vector<32x128xbf16>
    %cst_11 = arith.constant dense<0.000000e+00> : vector<16x128xf32>
    %26 = tpu.matmul %24, %25, %cst_11 {dimension_numbers = #tpu.dot_dimension_numbers<[1], [0], [0], [1], [0, 0, 1, 1], [], []>} : vector<16x32xbf16>, vector<32x128xbf16>, vector<16x128xf32> -> vector<16x128xf32>
    %27 = arith.addf %7, %26 : vector<16x128xf32>
    %28 = vector.extract_strided_slice %2 {offsets = [0, 32], sizes = [16, 32], strides = [1, 1]} : vector<16x128xbf16> to vector<16x32xbf16>
    %29 = vector.extract_strided_slice %3 {offsets = [0, 32], sizes = [16, 32], strides = [1, 1]} : vector<16x128xbf16> to vector<16x32xbf16>
    %cst_12 = arith.constant dense<0.000000e+00> : vector<16x16xf32>
    %30 = tpu.matmul %28, %29, %cst_12 {dimension_numbers = #tpu.dot_dimension_numbers<[1], [1], [0], [0], [0, 0, 1, 0], [], []>} : vector<16x32xbf16>, vector<16x32xbf16>, vector<16x16xf32> -> vector<16x16xf32>
    %cst_13 = arith.constant dense<0xFF800000> : vector<16xf32>
    %31 = vector.multi_reduction <maximumf>, %30, %cst_13 [1] : vector<16x16xf32> to vector<16xf32>
    %32 = vector.shape_cast %31 : vector<16xf32> to vector<16x1xf32>
    %33 = vector.broadcast %32 : vector<16x1xf32> to vector<16x16xf32>
    %34 = arith.subf %30, %33 : vector<16x16xf32>
    %35 = math.exp %34 : vector<16x16xf32>
    %cst_14 = arith.constant dense<0.000000e+00> : vector<16xf32>
    %36 = vector.multi_reduction <add>, %35, %cst_14 [1] : vector<16x16xf32> to vector<16xf32>
    %37 = vector.shape_cast %36 : vector<16xf32> to vector<16x1xf32>
    %38 = tpu.reciprocal %37 {approx = true} : vector<16x1xf32> -> vector<16x1xf32>
    %39 = vector.broadcast %38 : vector<16x1xf32> to vector<16x16xf32>
    %40 = arith.mulf %35, %39 : vector<16x16xf32>
    %41 = arith.truncf %40 : vector<16x16xf32> to vector<16x16xbf16>
    %42 = vector.extract_strided_slice %4 {offsets = [0, 32], sizes = [16, 32], strides = [1, 1]} : vector<16x128xbf16> to vector<16x32xbf16>
    %cst_15 = arith.constant dense<0.000000e+00> : vector<16x32xf32>
    %43 = tpu.matmul %41, %42, %cst_15 {dimension_numbers = #tpu.dot_dimension_numbers<[1], [0], [0], [1], [0, 0, 1, 1], [], []>} : vector<16x16xbf16>, vector<16x32xbf16>, vector<16x32xf32> -> vector<16x32xf32>
    %44 = arith.truncf %43 : vector<16x32xf32> to vector<16x32xbf16>
    %c32 = arith.constant 32 : index
    %c0_16 = arith.constant 0 : index
    %45 = vector.load %arg3[%c32, %c0_16] : memref<128x128xbf16, #tpu.memory_space<vmem>>, vector<32x128xbf16>
    %cst_17 = arith.constant dense<0.000000e+00> : vector<16x128xf32>
    %46 = tpu.matmul %44, %45, %cst_17 {dimension_numbers = #tpu.dot_dimension_numbers<[1], [0], [0], [1], [0, 0, 1, 1], [], []>} : vector<16x32xbf16>, vector<32x128xbf16>, vector<16x128xf32> -> vector<16x128xf32>
    %47 = arith.addf %27, %46 : vector<16x128xf32>
    %48 = vector.extract_strided_slice %2 {offsets = [0, 64], sizes = [16, 32], strides = [1, 1]} : vector<16x128xbf16> to vector<16x32xbf16>
    %49 = vector.extract_strided_slice %3 {offsets = [0, 64], sizes = [16, 32], strides = [1, 1]} : vector<16x128xbf16> to vector<16x32xbf16>
    %cst_18 = arith.constant dense<0.000000e+00> : vector<16x16xf32>
    %50 = tpu.matmul %48, %49, %cst_18 {dimension_numbers = #tpu.dot_dimension_numbers<[1], [1], [0], [0], [0, 0, 1, 0], [], []>} : vector<16x32xbf16>, vector<16x32xbf16>, vector<16x16xf32> -> vector<16x16xf32>
    %cst_19 = arith.constant dense<0xFF800000> : vector<16xf32>
    %51 = vector.multi_reduction <maximumf>, %50, %cst_19 [1] : vector<16x16xf32> to vector<16xf32>
    %52 = vector.shape_cast %51 : vector<16xf32> to vector<16x1xf32>
    %53 = vector.broadcast %52 : vector<16x1xf32> to vector<16x16xf32>
    %54 = arith.subf %50, %53 : vector<16x16xf32>
    %55 = math.exp %54 : vector<16x16xf32>
    %cst_20 = arith.constant dense<0.000000e+00> : vector<16xf32>
    %56 = vector.multi_reduction <add>, %55, %cst_20 [1] : vector<16x16xf32> to vector<16xf32>
    %57 = vector.shape_cast %56 : vector<16xf32> to vector<16x1xf32>
    %58 = tpu.reciprocal %57 {approx = true} : vector<16x1xf32> -> vector<16x1xf32>
    %59 = vector.broadcast %58 : vector<16x1xf32> to vector<16x16xf32>
    %60 = arith.mulf %55, %59 : vector<16x16xf32>
    %61 = arith.truncf %60 : vector<16x16xf32> to vector<16x16xbf16>
    %62 = vector.extract_strided_slice %4 {offsets = [0, 64], sizes = [16, 32], strides = [1, 1]} : vector<16x128xbf16> to vector<16x32xbf16>
    %cst_21 = arith.constant dense<0.000000e+00> : vector<16x32xf32>
    %63 = tpu.matmul %61, %62, %cst_21 {dimension_numbers = #tpu.dot_dimension_numbers<[1], [0], [0], [1], [0, 0, 1, 1], [], []>} : vector<16x16xbf16>, vector<16x32xbf16>, vector<16x32xf32> -> vector<16x32xf32>
    %64 = arith.truncf %63 : vector<16x32xf32> to vector<16x32xbf16>
    %c64 = arith.constant 64 : index
    %c0_22 = arith.constant 0 : index
    %65 = vector.load %arg3[%c64, %c0_22] : memref<128x128xbf16, #tpu.memory_space<vmem>>, vector<32x128xbf16>
    %cst_23 = arith.constant dense<0.000000e+00> : vector<16x128xf32>
    %66 = tpu.matmul %64, %65, %cst_23 {dimension_numbers = #tpu.dot_dimension_numbers<[1], [0], [0], [1], [0, 0, 1, 1], [], []>} : vector<16x32xbf16>, vector<32x128xbf16>, vector<16x128xf32> -> vector<16x128xf32>
    %67 = arith.addf %47, %66 : vector<16x128xf32>
    %68 = vector.extract_strided_slice %2 {offsets = [0, 96], sizes = [16, 32], strides = [1, 1]} : vector<16x128xbf16> to vector<16x32xbf16>
    %69 = vector.extract_strided_slice %3 {offsets = [0, 96], sizes = [16, 32], strides = [1, 1]} : vector<16x128xbf16> to vector<16x32xbf16>
    %cst_24 = arith.constant dense<0.000000e+00> : vector<16x16xf32>
    %70 = tpu.matmul %68, %69, %cst_24 {dimension_numbers = #tpu.dot_dimension_numbers<[1], [1], [0], [0], [0, 0, 1, 0], [], []>} : vector<16x32xbf16>, vector<16x32xbf16>, vector<16x16xf32> -> vector<16x16xf32>
    %cst_25 = arith.constant dense<0xFF800000> : vector<16xf32>
    %71 = vector.multi_reduction <maximumf>, %70, %cst_25 [1] : vector<16x16xf32> to vector<16xf32>
    %72 = vector.shape_cast %71 : vector<16xf32> to vector<16x1xf32>
    %73 = vector.broadcast %72 : vector<16x1xf32> to vector<16x16xf32>
    %74 = arith.subf %70, %73 : vector<16x16xf32>
    %75 = math.exp %74 : vector<16x16xf32>
    %cst_26 = arith.constant dense<0.000000e+00> : vector<16xf32>
    %76 = vector.multi_reduction <add>, %75, %cst_26 [1] : vector<16x16xf32> to vector<16xf32>
    %77 = vector.shape_cast %76 : vector<16xf32> to vector<16x1xf32>
    %78 = tpu.reciprocal %77 {approx = true} : vector<16x1xf32> -> vector<16x1xf32>
    %79 = vector.broadcast %78 : vector<16x1xf32> to vector<16x16xf32>
    %80 = arith.mulf %75, %79 : vector<16x16xf32>
    %81 = arith.truncf %80 : vector<16x16xf32> to vector<16x16xbf16>
    %82 = vector.extract_strided_slice %4 {offsets = [0, 96], sizes = [16, 32], strides = [1, 1]} : vector<16x128xbf16> to vector<16x32xbf16>
    %cst_27 = arith.constant dense<0.000000e+00> : vector<16x32xf32>
    %83 = tpu.matmul %81, %82, %cst_27 {dimension_numbers = #tpu.dot_dimension_numbers<[1], [0], [0], [1], [0, 0, 1, 1], [], []>} : vector<16x16xbf16>, vector<16x32xbf16>, vector<16x32xf32> -> vector<16x32xf32>
    %84 = arith.truncf %83 : vector<16x32xf32> to vector<16x32xbf16>
    %c96 = arith.constant 96 : index
    %c0_28 = arith.constant 0 : index
    %85 = vector.load %arg3[%c96, %c0_28] : memref<128x128xbf16, #tpu.memory_space<vmem>>, vector<32x128xbf16>
    %cst_29 = arith.constant dense<0.000000e+00> : vector<16x128xf32>
    %86 = tpu.matmul %84, %85, %cst_29 {dimension_numbers = #tpu.dot_dimension_numbers<[1], [0], [0], [1], [0, 0, 1, 1], [], []>} : vector<16x32xbf16>, vector<32x128xbf16>, vector<16x128xf32> -> vector<16x128xf32>
    %87 = arith.addf %67, %86 : vector<16x128xf32>
    %c0_30 = arith.constant 0 : index
    %c0_31 = arith.constant 0 : index
    %88 = vector.load %arg4[%c0_30, %c0_31] : memref<1x128xf32, #tpu.memory_space<vmem>>, vector<1x128xf32>
    %89 = vector.broadcast %88 : vector<1x128xf32> to vector<16x128xf32>
    %90 = arith.addf %87, %89 : vector<16x128xf32>
    %91 = arith.extf %6 : vector<16x128xbf16> to vector<16x128xf32>
    %92 = arith.addf %90, %91 : vector<16x128xf32>
    %cst_32 = arith.constant dense<0.000000e+00> : vector<16xf32>
    %93 = vector.multi_reduction <add>, %92, %cst_32 [1] : vector<16x128xf32> to vector<16xf32>
    %94 = vector.shape_cast %93 : vector<16xf32> to vector<16x1xf32>
    %cst_33 = arith.constant 1.280000e+02 : f32
    %95 = vector.broadcast %cst_33 : f32 to vector<16x1xf32>
    %96 = arith.divf %94, %95 : vector<16x1xf32>
    %97 = vector.broadcast %96 : vector<16x1xf32> to vector<16x128xf32>
    %98 = arith.subf %92, %97 : vector<16x128xf32>
    %99 = arith.mulf %98, %98 : vector<16x128xf32>
    %cst_34 = arith.constant dense<0.000000e+00> : vector<16xf32>
    %100 = vector.multi_reduction <add>, %99, %cst_34 [1] : vector<16x128xf32> to vector<16xf32>
    %101 = vector.shape_cast %100 : vector<16xf32> to vector<16x1xf32>
    %cst_35 = arith.constant 1.280000e+02 : f32
    %102 = vector.broadcast %cst_35 : f32 to vector<16x1xf32>
    %103 = arith.divf %101, %102 : vector<16x1xf32>
    %104 = vector.broadcast %96 : vector<16x1xf32> to vector<16x128xf32>
    %105 = arith.subf %92, %104 : vector<16x128xf32>
    %cst_36 = arith.constant 9.99999974E-6 : f32
    %106 = vector.broadcast %cst_36 : f32 to vector<16x1xf32>
    %107 = arith.addf %103, %106 : vector<16x1xf32>
    %108 = math.rsqrt %107 : vector<16x1xf32>
    %109 = vector.broadcast %108 : vector<16x1xf32> to vector<16x128xf32>
    %110 = arith.mulf %105, %109 : vector<16x128xf32>
    %c0_37 = arith.constant 0 : index
    %c0_38 = arith.constant 0 : index
    %111 = vector.load %arg5[%c0_37, %c0_38] : memref<1x128xf32, #tpu.memory_space<vmem>>, vector<1x128xf32>
    %112 = vector.broadcast %111 : vector<1x128xf32> to vector<16x128xf32>
    %113 = arith.mulf %110, %112 : vector<16x128xf32>
    %c0_39 = arith.constant 0 : index
    %c0_40 = arith.constant 0 : index
    %114 = vector.load %arg6[%c0_39, %c0_40] : memref<1x128xf32, #tpu.memory_space<vmem>>, vector<1x128xf32>
    %115 = vector.broadcast %114 : vector<1x128xf32> to vector<16x128xf32>
    %116 = arith.addf %113, %115 : vector<16x128xf32>
    %117 = arith.truncf %116 : vector<16x128xf32> to vector<16x128xbf16>
    %c0_41 = arith.constant 0 : index
    %c0_42 = arith.constant 0 : index
    %c0_43 = arith.constant 0 : index
    %118 = vector.load %arg7[%c0_41, %c0_42, %c0_43] : memref<1x16x128xbf16, #tpu.memory_space<vmem>>, vector<1x16x128xbf16>
    %119 = vector.shape_cast %118 : vector<1x16x128xbf16> to vector<16x128xbf16>
    %120 = vector.shape_cast %117 : vector<16x128xbf16> to vector<1x16x128xbf16>
    tpu.vector_store %arg7[%c0_41, %c0_42, %c0_43], %120 {strides = array<i32>} : memref<1x16x128xbf16, #tpu.memory_space<vmem>>, vector<1x16x128xbf16>,
    return
  }
  func.func @transform_0(%arg0: i32) -> (i32, i32, i32) {
    %c0_i32 = arith.constant 0 : i32
    %c0_i32_0 = arith.constant 0 : i32
    %c0_i32_1 = arith.constant 0 : i32
    return %arg0, %c0_i32, %c0_i32_0 : i32, i32, i32
  }
  func.func @transform_1(%arg0: i32) -> (i32, i32, i32) {
    %c0_i32 = arith.constant 0 : i32
    %c0_i32_0 = arith.constant 0 : i32
    %c0_i32_1 = arith.constant 0 : i32
    return %arg0, %c0_i32, %c0_i32_0 : i32, i32, i32
  }
  func.func @transform_2(%arg0: i32) -> (i32, i32) {
    %c0_i32 = arith.constant 0 : i32
    %c0_i32_0 = arith.constant 0 : i32
    %c0_i32_1 = arith.constant 0 : i32
    return %c0_i32, %c0_i32_0 : i32, i32
  }
  func.func @transform_3(%arg0: i32) -> (i32, i32) {
    %c0_i32 = arith.constant 0 : i32
    %c0_i32_0 = arith.constant 0 : i32
    %c0_i32_1 = arith.constant 0 : i32
    return %c0_i32, %c0_i32_0 : i32, i32
  }
  func.func @transform_4(%arg0: i32) -> (i32, i32) {
    %c0_i32 = arith.constant 0 : i32
    %c0_i32_0 = arith.constant 0 : i32
    %c0_i32_1 = arith.constant 0 : i32
    return %c0_i32, %c0_i32_0 : i32, i32
  }
  func.func @transform_5(%arg0: i32) -> (i32, i32) {
    %c0_i32 = arith.constant 0 : i32
    %c0_i32_0 = arith.constant 0 : i32
    %c0_i32_1 = arith.constant 0 : i32
    return %c0_i32, %c0_i32_0 : i32, i32
  }
  func.func @transform_6(%arg0: i32) -> (i32, i32, i32) {
    %c0_i32 = arith.constant 0 : i32
    %c0_i32_0 = arith.constant 0 : i32
    %c0_i32_1 = arith.constant 0 : i32
    return %arg0, %c0_i32, %c0_i32_0 : i32, i32, i32
  }
}

module attributes {stable_mosaic.version = 11 : i64} {
  func.func @_linear_kernel(%arg0: i32, %arg1: i32, %arg2: i32, %arg3: memref<16x128xbf16, #tpu.memory_space<vmem>>, %arg4: memref<128x384xbf16, #tpu.memory_space<vmem>>, %arg5: memref<1x384xf32, #tpu.memory_space<vmem>>, %arg6: memref<16x384xbf16, #tpu.memory_space<vmem>>, %arg7: memref<16x384xf32, #tpu.memory_space<vmem>>) attributes {dimension_semantics = [#tpu.dimension_semantics<parallel>, #tpu.dimension_semantics<parallel>, #tpu.dimension_semantics<arbitrary>], iteration_bounds = array<i64: 2, 1, 1>, scalar_prefetch = 0 : i64, scratch_operands = 1 : i64, tpu.core_type = #tpu.core_type<tc>, window_params = [{transform_indices = @transform_0, window_bounds = array<i64: 16, 128>}, {transform_indices = @transform_1, window_bounds = array<i64: 128, 384>}, {transform_indices = @transform_2, window_bounds = array<i64: 1, 384>}, {transform_indices = @transform_3, window_bounds = array<i64: 16, 384>}]} {
    %c0_i32 = arith.constant 0 : i32
    %0 = arith.cmpi eq, %arg2, %c0_i32 : i32
    %1 = arith.extui %0 : i1 to i32
    %c0_i32_0 = arith.constant 0 : i32
    %2 = arith.cmpi ne, %1, %c0_i32_0 : i32
    scf.if %2 {
      %cst_10 = arith.constant 0.000000e+00 : f32
      %12 = vector.broadcast %cst_10 : f32 to vector<16x384xf32>
      %c0_11 = arith.constant 0 : index
      %c0_12 = arith.constant 0 : index
      %13 = vector.load %arg7[%c0_11, %c0_12] : memref<16x384xf32, #tpu.memory_space<vmem>>, vector<16x384xf32>
      tpu.vector_store %arg7[%c0_11, %c0_12], %12 {strides = array<i32>} : memref<16x384xf32, #tpu.memory_space<vmem>>, vector<16x384xf32>,
    } else {
    }
    %c0 = arith.constant 0 : index
    %c0_1 = arith.constant 0 : index
    %3 = vector.load %arg7[%c0, %c0_1] : memref<16x384xf32, #tpu.memory_space<vmem>>, vector<16x384xf32>
    %c0_2 = arith.constant 0 : index
    %c0_3 = arith.constant 0 : index
    %4 = vector.load %arg3[%c0_2, %c0_3] : memref<16x128xbf16, #tpu.memory_space<vmem>>, vector<16x128xbf16>
    %c0_4 = arith.constant 0 : index
    %c0_5 = arith.constant 0 : index
    %5 = vector.load %arg4[%c0_4, %c0_5] : memref<128x384xbf16, #tpu.memory_space<vmem>>, vector<128x384xbf16>
    %cst = arith.constant dense<0.000000e+00> : vector<16x384xf32>
    %6 = tpu.matmul %4, %5, %cst {dimension_numbers = #tpu.dot_dimension_numbers<[1], [0], [0], [1], [0, 0, 1, 1], [], []>} : vector<16x128xbf16>, vector<128x384xbf16>, vector<16x384xf32> -> vector<16x384xf32>
    %7 = arith.addf %3, %6 : vector<16x384xf32>
    %c0_6 = arith.constant 0 : index
    %c0_7 = arith.constant 0 : index
    %8 = vector.load %arg7[%c0_6, %c0_7] : memref<16x384xf32, #tpu.memory_space<vmem>>, vector<16x384xf32>
    tpu.vector_store %arg7[%c0_6, %c0_7], %7 {strides = array<i32>} : memref<16x384xf32, #tpu.memory_space<vmem>>, vector<16x384xf32>,
    %c0_i32_8 = arith.constant 0 : i32
    %9 = arith.cmpi eq, %arg2, %c0_i32_8 : i32
    %10 = arith.extui %9 : i1 to i32
    %c0_i32_9 = arith.constant 0 : i32
    %11 = arith.cmpi ne, %10, %c0_i32_9 : i32
    scf.if %11 {
      %c0_10 = arith.constant 0 : index
      %c0_11 = arith.constant 0 : index
      %12 = vector.load %arg7[%c0_10, %c0_11] : memref<16x384xf32, #tpu.memory_space<vmem>>, vector<16x384xf32>
      %c0_12 = arith.constant 0 : index
      %c0_13 = arith.constant 0 : index
      %13 = vector.load %arg5[%c0_12, %c0_13] : memref<1x384xf32, #tpu.memory_space<vmem>>, vector<1x384xf32>
      %14 = vector.broadcast %13 : vector<1x384xf32> to vector<16x384xf32>
      %15 = arith.addf %12, %14 : vector<16x384xf32>
      %16 = arith.truncf %15 : vector<16x384xf32> to vector<16x384xbf16>
      %c0_14 = arith.constant 0 : index
      %c0_15 = arith.constant 0 : index
      %17 = vector.load %arg6[%c0_14, %c0_15] : memref<16x384xbf16, #tpu.memory_space<vmem>>, vector<16x384xbf16>
      tpu.vector_store %arg6[%c0_14, %c0_15], %16 {strides = array<i32>} : memref<16x384xbf16, #tpu.memory_space<vmem>>, vector<16x384xbf16>,
    } else {
    }
    return
  }
  func.func @transform_0(%arg0: i32, %arg1: i32, %arg2: i32) -> (i32, i32) {
    %c0_i32 = arith.constant 0 : i32
    return %arg0, %arg2 : i32, i32
  }
  func.func @transform_1(%arg0: i32, %arg1: i32, %arg2: i32) -> (i32, i32) {
    %c0_i32 = arith.constant 0 : i32
    return %arg2, %arg1 : i32, i32
  }
  func.func @transform_2(%arg0: i32, %arg1: i32, %arg2: i32) -> (i32, i32) {
    %c0_i32 = arith.constant 0 : i32
    %c0_i32_0 = arith.constant 0 : i32
    return %c0_i32, %arg1 : i32, i32
  }
  func.func @transform_3(%arg0: i32, %arg1: i32, %arg2: i32) -> (i32, i32) {
    %c0_i32 = arith.constant 0 : i32
    return %arg0, %arg1 : i32, i32
  }
}

module attributes {stable_mosaic.version = 11 : i64} {
  func.func @_linear_kernel(%arg0: i32, %arg1: i32, %arg2: i32, %arg3: memref<16x128xbf16, #tpu.memory_space<vmem>>, %arg4: memref<128x256xbf16, #tpu.memory_space<vmem>>, %arg5: memref<1x256xf32, #tpu.memory_space<vmem>>, %arg6: memref<16x256xbf16, #tpu.memory_space<vmem>>, %arg7: memref<16x256xf32, #tpu.memory_space<vmem>>) attributes {dimension_semantics = [#tpu.dimension_semantics<parallel>, #tpu.dimension_semantics<parallel>, #tpu.dimension_semantics<arbitrary>], iteration_bounds = array<i64: 2, 1, 1>, scalar_prefetch = 0 : i64, scratch_operands = 1 : i64, tpu.core_type = #tpu.core_type<tc>, window_params = [{transform_indices = @transform_0, window_bounds = array<i64: 16, 128>}, {transform_indices = @transform_1, window_bounds = array<i64: 128, 256>}, {transform_indices = @transform_2, window_bounds = array<i64: 1, 256>}, {transform_indices = @transform_3, window_bounds = array<i64: 16, 256>}]} {
    %c0_i32 = arith.constant 0 : i32
    %0 = arith.cmpi eq, %arg2, %c0_i32 : i32
    %1 = arith.extui %0 : i1 to i32
    %c0_i32_0 = arith.constant 0 : i32
    %2 = arith.cmpi ne, %1, %c0_i32_0 : i32
    scf.if %2 {
      %cst_10 = arith.constant 0.000000e+00 : f32
      %12 = vector.broadcast %cst_10 : f32 to vector<16x256xf32>
      %c0_11 = arith.constant 0 : index
      %c0_12 = arith.constant 0 : index
      %13 = vector.load %arg7[%c0_11, %c0_12] : memref<16x256xf32, #tpu.memory_space<vmem>>, vector<16x256xf32>
      tpu.vector_store %arg7[%c0_11, %c0_12], %12 {strides = array<i32>} : memref<16x256xf32, #tpu.memory_space<vmem>>, vector<16x256xf32>,
    } else {
    }
    %c0 = arith.constant 0 : index
    %c0_1 = arith.constant 0 : index
    %3 = vector.load %arg7[%c0, %c0_1] : memref<16x256xf32, #tpu.memory_space<vmem>>, vector<16x256xf32>
    %c0_2 = arith.constant 0 : index
    %c0_3 = arith.constant 0 : index
    %4 = vector.load %arg3[%c0_2, %c0_3] : memref<16x128xbf16, #tpu.memory_space<vmem>>, vector<16x128xbf16>
    %c0_4 = arith.constant 0 : index
    %c0_5 = arith.constant 0 : index
    %5 = vector.load %arg4[%c0_4, %c0_5] : memref<128x256xbf16, #tpu.memory_space<vmem>>, vector<128x256xbf16>
    %cst = arith.constant dense<0.000000e+00> : vector<16x256xf32>
    %6 = tpu.matmul %4, %5, %cst {dimension_numbers = #tpu.dot_dimension_numbers<[1], [0], [0], [1], [0, 0, 1, 1], [], []>} : vector<16x128xbf16>, vector<128x256xbf16>, vector<16x256xf32> -> vector<16x256xf32>
    %7 = arith.addf %3, %6 : vector<16x256xf32>
    %c0_6 = arith.constant 0 : index
    %c0_7 = arith.constant 0 : index
    %8 = vector.load %arg7[%c0_6, %c0_7] : memref<16x256xf32, #tpu.memory_space<vmem>>, vector<16x256xf32>
    tpu.vector_store %arg7[%c0_6, %c0_7], %7 {strides = array<i32>} : memref<16x256xf32, #tpu.memory_space<vmem>>, vector<16x256xf32>,
    %c0_i32_8 = arith.constant 0 : i32
    %9 = arith.cmpi eq, %arg2, %c0_i32_8 : i32
    %10 = arith.extui %9 : i1 to i32
    %c0_i32_9 = arith.constant 0 : i32
    %11 = arith.cmpi ne, %10, %c0_i32_9 : i32
    scf.if %11 {
      %c0_10 = arith.constant 0 : index
      %c0_11 = arith.constant 0 : index
      %12 = vector.load %arg7[%c0_10, %c0_11] : memref<16x256xf32, #tpu.memory_space<vmem>>, vector<16x256xf32>
      %c0_12 = arith.constant 0 : index
      %c0_13 = arith.constant 0 : index
      %13 = vector.load %arg5[%c0_12, %c0_13] : memref<1x256xf32, #tpu.memory_space<vmem>>, vector<1x256xf32>
      %14 = vector.broadcast %13 : vector<1x256xf32> to vector<16x256xf32>
      %15 = arith.addf %12, %14 : vector<16x256xf32>
      %16 = arith.mulf %15, %15 : vector<16x256xf32>
      %17 = arith.mulf %15, %16 : vector<16x256xf32>
      %cst_14 = arith.constant 4.471500e-02 : f32
      %18 = vector.broadcast %cst_14 : f32 to vector<16x256xf32>
      %19 = arith.mulf %18, %17 : vector<16x256xf32>
      %20 = arith.addf %15, %19 : vector<16x256xf32>
      %cst_15 = arith.constant 0.797884583 : f32
      %21 = vector.broadcast %cst_15 : f32 to vector<16x256xf32>
      %22 = arith.mulf %21, %20 : vector<16x256xf32>
      %23 = math.tanh %22 : vector<16x256xf32>
      %cst_16 = arith.constant 1.000000e+00 : f32
      %24 = vector.broadcast %cst_16 : f32 to vector<16x256xf32>
      %25 = arith.addf %24, %23 : vector<16x256xf32>
      %cst_17 = arith.constant 5.000000e-01 : f32
      %26 = vector.broadcast %cst_17 : f32 to vector<16x256xf32>
      %27 = arith.mulf %26, %25 : vector<16x256xf32>
      %28 = arith.mulf %15, %27 : vector<16x256xf32>
      %29 = arith.truncf %28 : vector<16x256xf32> to vector<16x256xbf16>
      %c0_18 = arith.constant 0 : index
      %c0_19 = arith.constant 0 : index
      %30 = vector.load %arg6[%c0_18, %c0_19] : memref<16x256xbf16, #tpu.memory_space<vmem>>, vector<16x256xbf16>
      tpu.vector_store %arg6[%c0_18, %c0_19], %29 {strides = array<i32>} : memref<16x256xbf16, #tpu.memory_space<vmem>>, vector<16x256xbf16>,
    } else {
    }
    return
  }
  func.func @transform_0(%arg0: i32, %arg1: i32, %arg2: i32) -> (i32, i32) {
    %c0_i32 = arith.constant 0 : i32
    return %arg0, %arg2 : i32, i32
  }
  func.func @transform_1(%arg0: i32, %arg1: i32, %arg2: i32) -> (i32, i32) {
    %c0_i32 = arith.constant 0 : i32
    return %arg2, %arg1 : i32, i32
  }
  func.func @transform_2(%arg0: i32, %arg1: i32, %arg2: i32) -> (i32, i32) {
    %c0_i32 = arith.constant 0 : i32
    %c0_i32_0 = arith.constant 0 : i32
    return %c0_i32, %arg1 : i32, i32
  }
  func.func @transform_3(%arg0: i32, %arg1: i32, %arg2: i32) -> (i32, i32) {
    %c0_i32 = arith.constant 0 : i32
    return %arg0, %arg1 : i32, i32
  }
}

module attributes {stable_mosaic.version = 11 : i64} {
  func.func @_linear_kernel(%arg0: i32, %arg1: i32, %arg2: i32, %arg3: memref<16x256xbf16, #tpu.memory_space<vmem>>, %arg4: memref<256x128xbf16, #tpu.memory_space<vmem>>, %arg5: memref<1x128xf32, #tpu.memory_space<vmem>>, %arg6: memref<16x128xbf16, #tpu.memory_space<vmem>>, %arg7: memref<1x128xf32, #tpu.memory_space<vmem>>, %arg8: memref<1x128xf32, #tpu.memory_space<vmem>>, %arg9: memref<16x128xbf16, #tpu.memory_space<vmem>>, %arg10: memref<16x128xf32, #tpu.memory_space<vmem>>) attributes {dimension_semantics = [#tpu.dimension_semantics<parallel>, #tpu.dimension_semantics<parallel>, #tpu.dimension_semantics<arbitrary>], iteration_bounds = array<i64: 2, 1, 1>, scalar_prefetch = 0 : i64, scratch_operands = 1 : i64, tpu.core_type = #tpu.core_type<tc>, window_params = [{transform_indices = @transform_0, window_bounds = array<i64: 16, 256>}, {transform_indices = @transform_1, window_bounds = array<i64: 256, 128>}, {transform_indices = @transform_2, window_bounds = array<i64: 1, 128>}, {transform_indices = @transform_3, window_bounds = array<i64: 16, 128>}, {transform_indices = @transform_4, window_bounds = array<i64: 1, 128>}, {transform_indices = @transform_5, window_bounds = array<i64: 1, 128>}, {transform_indices = @transform_6, window_bounds = array<i64: 16, 128>}]} {
    %c0_i32 = arith.constant 0 : i32
    %0 = arith.cmpi eq, %arg2, %c0_i32 : i32
    %1 = arith.extui %0 : i1 to i32
    %c0_i32_0 = arith.constant 0 : i32
    %2 = arith.cmpi ne, %1, %c0_i32_0 : i32
    scf.if %2 {
      %cst_10 = arith.constant 0.000000e+00 : f32
      %12 = vector.broadcast %cst_10 : f32 to vector<16x128xf32>
      %c0_11 = arith.constant 0 : index
      %c0_12 = arith.constant 0 : index
      %13 = vector.load %arg10[%c0_11, %c0_12] : memref<16x128xf32, #tpu.memory_space<vmem>>, vector<16x128xf32>
      tpu.vector_store %arg10[%c0_11, %c0_12], %12 {strides = array<i32>} : memref<16x128xf32, #tpu.memory_space<vmem>>, vector<16x128xf32>,
    } else {
    }
    %c0 = arith.constant 0 : index
    %c0_1 = arith.constant 0 : index
    %3 = vector.load %arg10[%c0, %c0_1] : memref<16x128xf32, #tpu.memory_space<vmem>>, vector<16x128xf32>
    %c0_2 = arith.constant 0 : index
    %c0_3 = arith.constant 0 : index
    %4 = vector.load %arg3[%c0_2, %c0_3] : memref<16x256xbf16, #tpu.memory_space<vmem>>, vector<16x256xbf16>
    %c0_4 = arith.constant 0 : index
    %c0_5 = arith.constant 0 : index
    %5 = vector.load %arg4[%c0_4, %c0_5] : memref<256x128xbf16, #tpu.memory_space<vmem>>, vector<256x128xbf16>
    %cst = arith.constant dense<0.000000e+00> : vector<16x128xf32>
    %6 = tpu.matmul %4, %5, %cst {dimension_numbers = #tpu.dot_dimension_numbers<[1], [0], [0], [1], [0, 0, 1, 1], [], []>} : vector<16x256xbf16>, vector<256x128xbf16>, vector<16x128xf32> -> vector<16x128xf32>
    %7 = arith.addf %3, %6 : vector<16x128xf32>
    %c0_6 = arith.constant 0 : index
    %c0_7 = arith.constant 0 : index
    %8 = vector.load %arg10[%c0_6, %c0_7] : memref<16x128xf32, #tpu.memory_space<vmem>>, vector<16x128xf32>
    tpu.vector_store %arg10[%c0_6, %c0_7], %7 {strides = array<i32>} : memref<16x128xf32, #tpu.memory_space<vmem>>, vector<16x128xf32>,
    %c0_i32_8 = arith.constant 0 : i32
    %9 = arith.cmpi eq, %arg2, %c0_i32_8 : i32
    %10 = arith.extui %9 : i1 to i32
    %c0_i32_9 = arith.constant 0 : i32
    %11 = arith.cmpi ne, %10, %c0_i32_9 : i32
    scf.if %11 {
      %c0_10 = arith.constant 0 : index
      %c0_11 = arith.constant 0 : index
      %12 = vector.load %arg10[%c0_10, %c0_11] : memref<16x128xf32, #tpu.memory_space<vmem>>, vector<16x128xf32>
      %c0_12 = arith.constant 0 : index
      %c0_13 = arith.constant 0 : index
      %13 = vector.load %arg5[%c0_12, %c0_13] : memref<1x128xf32, #tpu.memory_space<vmem>>, vector<1x128xf32>
      %14 = vector.broadcast %13 : vector<1x128xf32> to vector<16x128xf32>
      %15 = arith.addf %12, %14 : vector<16x128xf32>
      %c0_14 = arith.constant 0 : index
      %c0_15 = arith.constant 0 : index
      %16 = vector.load %arg6[%c0_14, %c0_15] : memref<16x128xbf16, #tpu.memory_space<vmem>>, vector<16x128xbf16>
      %17 = arith.extf %16 : vector<16x128xbf16> to vector<16x128xf32>
      %18 = arith.addf %15, %17 : vector<16x128xf32>
      %cst_16 = arith.constant dense<0.000000e+00> : vector<16xf32>
      %19 = vector.multi_reduction <add>, %18, %cst_16 [1] : vector<16x128xf32> to vector<16xf32>
      %20 = vector.shape_cast %19 : vector<16xf32> to vector<16x1xf32>
      %cst_17 = arith.constant 1.280000e+02 : f32
      %21 = vector.broadcast %cst_17 : f32 to vector<16x1xf32>
      %22 = arith.divf %20, %21 : vector<16x1xf32>
      %23 = vector.broadcast %22 : vector<16x1xf32> to vector<16x128xf32>
      %24 = arith.subf %18, %23 : vector<16x128xf32>
      %25 = arith.mulf %24, %24 : vector<16x128xf32>
      %cst_18 = arith.constant dense<0.000000e+00> : vector<16xf32>
      %26 = vector.multi_reduction <add>, %25, %cst_18 [1] : vector<16x128xf32> to vector<16xf32>
      %27 = vector.shape_cast %26 : vector<16xf32> to vector<16x1xf32>
      %cst_19 = arith.constant 1.280000e+02 : f32
      %28 = vector.broadcast %cst_19 : f32 to vector<16x1xf32>
      %29 = arith.divf %27, %28 : vector<16x1xf32>
      %30 = vector.broadcast %22 : vector<16x1xf32> to vector<16x128xf32>
      %31 = arith.subf %18, %30 : vector<16x128xf32>
      %cst_20 = arith.constant 9.99999974E-6 : f32
      %32 = vector.broadcast %cst_20 : f32 to vector<16x1xf32>
      %33 = arith.addf %29, %32 : vector<16x1xf32>
      %34 = math.rsqrt %33 : vector<16x1xf32>
      %35 = vector.broadcast %34 : vector<16x1xf32> to vector<16x128xf32>
      %36 = arith.mulf %31, %35 : vector<16x128xf32>
      %c0_21 = arith.constant 0 : index
      %c0_22 = arith.constant 0 : index
      %37 = vector.load %arg7[%c0_21, %c0_22] : memref<1x128xf32, #tpu.memory_space<vmem>>, vector<1x128xf32>
      %38 = vector.broadcast %37 : vector<1x128xf32> to vector<16x128xf32>
      %39 = arith.mulf %36, %38 : vector<16x128xf32>
      %c0_23 = arith.constant 0 : index
      %c0_24 = arith.constant 0 : index
      %40 = vector.load %arg8[%c0_23, %c0_24] : memref<1x128xf32, #tpu.memory_space<vmem>>, vector<1x128xf32>
      %41 = vector.broadcast %40 : vector<1x128xf32> to vector<16x128xf32>
      %42 = arith.addf %39, %41 : vector<16x128xf32>
      %43 = arith.truncf %42 : vector<16x128xf32> to vector<16x128xbf16>
      %c0_25 = arith.constant 0 : index
      %c0_26 = arith.constant 0 : index
      %44 = vector.load %arg9[%c0_25, %c0_26] : memref<16x128xbf16, #tpu.memory_space<vmem>>, vector<16x128xbf16>
      tpu.vector_store %arg9[%c0_25, %c0_26], %43 {strides = array<i32>} : memref<16x128xbf16, #tpu.memory_space<vmem>>, vector<16x128xbf16>,
    } else {
    }
    return
  }
  func.func @transform_0(%arg0: i32, %arg1: i32, %arg2: i32) -> (i32, i32) {
    %c0_i32 = arith.constant 0 : i32
    return %arg0, %arg2 : i32, i32
  }
  func.func @transform_1(%arg0: i32, %arg1: i32, %arg2: i32) -> (i32, i32) {
    %c0_i32 = arith.constant 0 : i32
    return %arg2, %arg1 : i32, i32
  }
  func.func @transform_2(%arg0: i32, %arg1: i32, %arg2: i32) -> (i32, i32) {
    %c0_i32 = arith.constant 0 : i32
    %c0_i32_0 = arith.constant 0 : i32
    return %c0_i32, %arg1 : i32, i32
  }
  func.func @transform_3(%arg0: i32, %arg1: i32, %arg2: i32) -> (i32, i32) {
    %c0_i32 = arith.constant 0 : i32
    return %arg0, %arg1 : i32, i32
  }
  func.func @transform_4(%arg0: i32, %arg1: i32, %arg2: i32) -> (i32, i32) {
    %c0_i32 = arith.constant 0 : i32
    %c0_i32_0 = arith.constant 0 : i32
    return %c0_i32, %arg1 : i32, i32
  }
  func.func @transform_5(%arg0: i32, %arg1: i32, %arg2: i32) -> (i32, i32) {
    %c0_i32 = arith.constant 0 : i32
    %c0_i32_0 = arith.constant 0 : i32
    return %c0_i32, %arg1 : i32, i32
  }
  func.func @transform_6(%arg0: i32, %arg1: i32, %arg2: i32) -> (i32, i32) {
    %c0_i32 = arith.constant 0 : i32
    return %arg0, %arg1 : i32, i32
  }
}

module attributes {stable_mosaic.version = 11 : i64} {
  func.func @_linear_kernel(%arg0: i32, %arg1: i32, %arg2: i32, %arg3: memref<16x128xbf16, #tpu.memory_space<vmem>>, %arg4: memref<128x256xbf16, #tpu.memory_space<vmem>>, %arg5: memref<1x256xf32, #tpu.memory_space<vmem>>, %arg6: memref<16x256xbf16, #tpu.memory_space<vmem>>, %arg7: memref<16x256xf32, #tpu.memory_space<vmem>>) attributes {dimension_semantics = [#tpu.dimension_semantics<parallel>, #tpu.dimension_semantics<parallel>, #tpu.dimension_semantics<arbitrary>], iteration_bounds = array<i64: 2, 1, 1>, scalar_prefetch = 0 : i64, scratch_operands = 1 : i64, tpu.core_type = #tpu.core_type<tc>, window_params = [{transform_indices = @transform_0, window_bounds = array<i64: 16, 128>}, {transform_indices = @transform_1, window_bounds = array<i64: 128, 256>}, {transform_indices = @transform_2, window_bounds = array<i64: 1, 256>}, {transform_indices = @transform_3, window_bounds = array<i64: 16, 256>}]} {
    %c0_i32 = arith.constant 0 : i32
    %0 = arith.cmpi eq, %arg2, %c0_i32 : i32
    %1 = arith.extui %0 : i1 to i32
    %c0_i32_0 = arith.constant 0 : i32
    %2 = arith.cmpi ne, %1, %c0_i32_0 : i32
    scf.if %2 {
      %cst_10 = arith.constant 0.000000e+00 : f32
      %12 = vector.broadcast %cst_10 : f32 to vector<16x256xf32>
      %c0_11 = arith.constant 0 : index
      %c0_12 = arith.constant 0 : index
      %13 = vector.load %arg7[%c0_11, %c0_12] : memref<16x256xf32, #tpu.memory_space<vmem>>, vector<16x256xf32>
      tpu.vector_store %arg7[%c0_11, %c0_12], %12 {strides = array<i32>} : memref<16x256xf32, #tpu.memory_space<vmem>>, vector<16x256xf32>,
    } else {
    }
    %c0 = arith.constant 0 : index
    %c0_1 = arith.constant 0 : index
    %3 = vector.load %arg7[%c0, %c0_1] : memref<16x256xf32, #tpu.memory_space<vmem>>, vector<16x256xf32>
    %c0_2 = arith.constant 0 : index
    %c0_3 = arith.constant 0 : index
    %4 = vector.load %arg3[%c0_2, %c0_3] : memref<16x128xbf16, #tpu.memory_space<vmem>>, vector<16x128xbf16>
    %c0_4 = arith.constant 0 : index
    %c0_5 = arith.constant 0 : index
    %5 = vector.load %arg4[%c0_4, %c0_5] : memref<128x256xbf16, #tpu.memory_space<vmem>>, vector<128x256xbf16>
    %cst = arith.constant dense<0.000000e+00> : vector<16x256xf32>
    %6 = tpu.matmul %4, %5, %cst {dimension_numbers = #tpu.dot_dimension_numbers<[1], [0], [0], [1], [0, 0, 1, 1], [], []>} : vector<16x128xbf16>, vector<128x256xbf16>, vector<16x256xf32> -> vector<16x256xf32>
    %7 = arith.addf %3, %6 : vector<16x256xf32>
    %c0_6 = arith.constant 0 : index
    %c0_7 = arith.constant 0 : index
    %8 = vector.load %arg7[%c0_6, %c0_7] : memref<16x256xf32, #tpu.memory_space<vmem>>, vector<16x256xf32>
    tpu.vector_store %arg7[%c0_6, %c0_7], %7 {strides = array<i32>} : memref<16x256xf32, #tpu.memory_space<vmem>>, vector<16x256xf32>,
    %c0_i32_8 = arith.constant 0 : i32
    %9 = arith.cmpi eq, %arg2, %c0_i32_8 : i32
    %10 = arith.extui %9 : i1 to i32
    %c0_i32_9 = arith.constant 0 : i32
    %11 = arith.cmpi ne, %10, %c0_i32_9 : i32
    scf.if %11 {
      %c0_10 = arith.constant 0 : index
      %c0_11 = arith.constant 0 : index
      %12 = vector.load %arg7[%c0_10, %c0_11] : memref<16x256xf32, #tpu.memory_space<vmem>>, vector<16x256xf32>
      %c0_12 = arith.constant 0 : index
      %c0_13 = arith.constant 0 : index
      %13 = vector.load %arg5[%c0_12, %c0_13] : memref<1x256xf32, #tpu.memory_space<vmem>>, vector<1x256xf32>
      %14 = vector.broadcast %13 : vector<1x256xf32> to vector<16x256xf32>
      %15 = arith.addf %12, %14 : vector<16x256xf32>
      %16 = arith.truncf %15 : vector<16x256xf32> to vector<16x256xbf16>
      %c0_14 = arith.constant 0 : index
      %c0_15 = arith.constant 0 : index
      %17 = vector.load %arg6[%c0_14, %c0_15] : memref<16x256xbf16, #tpu.memory_space<vmem>>, vector<16x256xbf16>
      tpu.vector_store %arg6[%c0_14, %c0_15], %16 {strides = array<i32>} : memref<16x256xbf16, #tpu.memory_space<vmem>>, vector<16x256xbf16>,
    } else {
    }
    return
  }
  func.func @transform_0(%arg0: i32, %arg1: i32, %arg2: i32) -> (i32, i32) {
    %c0_i32 = arith.constant 0 : i32
    return %arg0, %arg2 : i32, i32
  }
  func.func @transform_1(%arg0: i32, %arg1: i32, %arg2: i32) -> (i32, i32) {
    %c0_i32 = arith.constant 0 : i32
    return %arg2, %arg1 : i32, i32
  }
  func.func @transform_2(%arg0: i32, %arg1: i32, %arg2: i32) -> (i32, i32) {
    %c0_i32 = arith.constant 0 : i32
    %c0_i32_0 = arith.constant 0 : i32
    return %c0_i32, %arg1 : i32, i32
  }
  func.func @transform_3(%arg0: i32, %arg1: i32, %arg2: i32) -> (i32, i32) {
    %c0_i32 = arith.constant 0 : i32
    return %arg0, %arg1 : i32, i32
  }
}

module attributes {stable_mosaic.version = 11 : i64} {
  func.func @_linear_kernel(%arg0: i32, %arg1: i32, %arg2: i32, %arg3: memref<16x128xbf16, #tpu.memory_space<vmem>>, %arg4: memref<128x384xbf16, #tpu.memory_space<vmem>>, %arg5: memref<1x384xf32, #tpu.memory_space<vmem>>, %arg6: memref<16x384xbf16, #tpu.memory_space<vmem>>, %arg7: memref<16x384xf32, #tpu.memory_space<vmem>>) attributes {dimension_semantics = [#tpu.dimension_semantics<parallel>, #tpu.dimension_semantics<parallel>, #tpu.dimension_semantics<arbitrary>], iteration_bounds = array<i64: 1, 1, 1>, scalar_prefetch = 0 : i64, scratch_operands = 1 : i64, tpu.core_type = #tpu.core_type<tc>, window_params = [{transform_indices = @transform_0, window_bounds = array<i64: 16, 128>}, {transform_indices = @transform_1, window_bounds = array<i64: 128, 384>}, {transform_indices = @transform_2, window_bounds = array<i64: 1, 384>}, {transform_indices = @transform_3, window_bounds = array<i64: 16, 384>}]} {
    %c0_i32 = arith.constant 0 : i32
    %0 = arith.cmpi eq, %arg2, %c0_i32 : i32
    %1 = arith.extui %0 : i1 to i32
    %c0_i32_0 = arith.constant 0 : i32
    %2 = arith.cmpi ne, %1, %c0_i32_0 : i32
    scf.if %2 {
      %cst_10 = arith.constant 0.000000e+00 : f32
      %12 = vector.broadcast %cst_10 : f32 to vector<16x384xf32>
      %c0_11 = arith.constant 0 : index
      %c0_12 = arith.constant 0 : index
      %13 = vector.load %arg7[%c0_11, %c0_12] : memref<16x384xf32, #tpu.memory_space<vmem>>, vector<16x384xf32>
      tpu.vector_store %arg7[%c0_11, %c0_12], %12 {strides = array<i32>} : memref<16x384xf32, #tpu.memory_space<vmem>>, vector<16x384xf32>,
    } else {
    }
    %c0 = arith.constant 0 : index
    %c0_1 = arith.constant 0 : index
    %3 = vector.load %arg7[%c0, %c0_1] : memref<16x384xf32, #tpu.memory_space<vmem>>, vector<16x384xf32>
    %c0_2 = arith.constant 0 : index
    %c0_3 = arith.constant 0 : index
    %4 = vector.load %arg3[%c0_2, %c0_3] : memref<16x128xbf16, #tpu.memory_space<vmem>>, vector<16x128xbf16>
    %c0_4 = arith.constant 0 : index
    %c0_5 = arith.constant 0 : index
    %5 = vector.load %arg4[%c0_4, %c0_5] : memref<128x384xbf16, #tpu.memory_space<vmem>>, vector<128x384xbf16>
    %cst = arith.constant dense<0.000000e+00> : vector<16x384xf32>
    %6 = tpu.matmul %4, %5, %cst {dimension_numbers = #tpu.dot_dimension_numbers<[1], [0], [0], [1], [0, 0, 1, 1], [], []>} : vector<16x128xbf16>, vector<128x384xbf16>, vector<16x384xf32> -> vector<16x384xf32>
    %7 = arith.addf %3, %6 : vector<16x384xf32>
    %c0_6 = arith.constant 0 : index
    %c0_7 = arith.constant 0 : index
    %8 = vector.load %arg7[%c0_6, %c0_7] : memref<16x384xf32, #tpu.memory_space<vmem>>, vector<16x384xf32>
    tpu.vector_store %arg7[%c0_6, %c0_7], %7 {strides = array<i32>} : memref<16x384xf32, #tpu.memory_space<vmem>>, vector<16x384xf32>,
    %c0_i32_8 = arith.constant 0 : i32
    %9 = arith.cmpi eq, %arg2, %c0_i32_8 : i32
    %10 = arith.extui %9 : i1 to i32
    %c0_i32_9 = arith.constant 0 : i32
    %11 = arith.cmpi ne, %10, %c0_i32_9 : i32
    scf.if %11 {
      %c0_10 = arith.constant 0 : index
      %c0_11 = arith.constant 0 : index
      %12 = vector.load %arg7[%c0_10, %c0_11] : memref<16x384xf32, #tpu.memory_space<vmem>>, vector<16x384xf32>
      %c0_12 = arith.constant 0 : index
      %c0_13 = arith.constant 0 : index
      %13 = vector.load %arg5[%c0_12, %c0_13] : memref<1x384xf32, #tpu.memory_space<vmem>>, vector<1x384xf32>
      %14 = vector.broadcast %13 : vector<1x384xf32> to vector<16x384xf32>
      %15 = arith.addf %12, %14 : vector<16x384xf32>
      %16 = arith.truncf %15 : vector<16x384xf32> to vector<16x384xbf16>
      %c0_14 = arith.constant 0 : index
      %c0_15 = arith.constant 0 : index
      %17 = vector.load %arg6[%c0_14, %c0_15] : memref<16x384xbf16, #tpu.memory_space<vmem>>, vector<16x384xbf16>
      tpu.vector_store %arg6[%c0_14, %c0_15], %16 {strides = array<i32>} : memref<16x384xbf16, #tpu.memory_space<vmem>>, vector<16x384xbf16>,
    } else {
    }
    return
  }
  func.func @transform_0(%arg0: i32, %arg1: i32, %arg2: i32) -> (i32, i32) {
    %c0_i32 = arith.constant 0 : i32
    return %arg0, %arg2 : i32, i32
  }
  func.func @transform_1(%arg0: i32, %arg1: i32, %arg2: i32) -> (i32, i32) {
    %c0_i32 = arith.constant 0 : i32
    return %arg2, %arg1 : i32, i32
  }
  func.func @transform_2(%arg0: i32, %arg1: i32, %arg2: i32) -> (i32, i32) {
    %c0_i32 = arith.constant 0 : i32
    %c0_i32_0 = arith.constant 0 : i32
    return %c0_i32, %arg1 : i32, i32
  }
  func.func @transform_3(%arg0: i32, %arg1: i32, %arg2: i32) -> (i32, i32) {
    %c0_i32 = arith.constant 0 : i32
    return %arg0, %arg1 : i32, i32
  }
}

module attributes {stable_mosaic.version = 11 : i64} {
  func.func @_linear_kernel(%arg0: i32, %arg1: i32, %arg2: i32, %arg3: memref<16x128xbf16, #tpu.memory_space<vmem>>, %arg4: memref<128x128xbf16, #tpu.memory_space<vmem>>, %arg5: memref<1x128xf32, #tpu.memory_space<vmem>>, %arg6: memref<16x128xbf16, #tpu.memory_space<vmem>>, %arg7: memref<16x128xf32, #tpu.memory_space<vmem>>) attributes {dimension_semantics = [#tpu.dimension_semantics<parallel>, #tpu.dimension_semantics<parallel>, #tpu.dimension_semantics<arbitrary>], iteration_bounds = array<i64: 1, 1, 1>, scalar_prefetch = 0 : i64, scratch_operands = 1 : i64, tpu.core_type = #tpu.core_type<tc>, window_params = [{transform_indices = @transform_0, window_bounds = array<i64: 16, 128>}, {transform_indices = @transform_1, window_bounds = array<i64: 128, 128>}, {transform_indices = @transform_2, window_bounds = array<i64: 1, 128>}, {transform_indices = @transform_3, window_bounds = array<i64: 16, 128>}]} {
    %c0_i32 = arith.constant 0 : i32
    %0 = arith.cmpi eq, %arg2, %c0_i32 : i32
    %1 = arith.extui %0 : i1 to i32
    %c0_i32_0 = arith.constant 0 : i32
    %2 = arith.cmpi ne, %1, %c0_i32_0 : i32
    scf.if %2 {
      %cst_10 = arith.constant 0.000000e+00 : f32
      %12 = vector.broadcast %cst_10 : f32 to vector<16x128xf32>
      %c0_11 = arith.constant 0 : index
      %c0_12 = arith.constant 0 : index
      %13 = vector.load %arg7[%c0_11, %c0_12] : memref<16x128xf32, #tpu.memory_space<vmem>>, vector<16x128xf32>
      tpu.vector_store %arg7[%c0_11, %c0_12], %12 {strides = array<i32>} : memref<16x128xf32, #tpu.memory_space<vmem>>, vector<16x128xf32>,
    } else {
    }
    %c0 = arith.constant 0 : index
    %c0_1 = arith.constant 0 : index
    %3 = vector.load %arg7[%c0, %c0_1] : memref<16x128xf32, #tpu.memory_space<vmem>>, vector<16x128xf32>
    %c0_2 = arith.constant 0 : index
    %c0_3 = arith.constant 0 : index
    %4 = vector.load %arg3[%c0_2, %c0_3] : memref<16x128xbf16, #tpu.memory_space<vmem>>, vector<16x128xbf16>
    %c0_4 = arith.constant 0 : index
    %c0_5 = arith.constant 0 : index
    %5 = vector.load %arg4[%c0_4, %c0_5] : memref<128x128xbf16, #tpu.memory_space<vmem>>, vector<128x128xbf16>
    %cst = arith.constant dense<0.000000e+00> : vector<16x128xf32>
    %6 = tpu.matmul %4, %5, %cst {dimension_numbers = #tpu.dot_dimension_numbers<[1], [0], [0], [1], [0, 0, 1, 1], [], []>} : vector<16x128xbf16>, vector<128x128xbf16>, vector<16x128xf32> -> vector<16x128xf32>
    %7 = arith.addf %3, %6 : vector<16x128xf32>
    %c0_6 = arith.constant 0 : index
    %c0_7 = arith.constant 0 : index
    %8 = vector.load %arg7[%c0_6, %c0_7] : memref<16x128xf32, #tpu.memory_space<vmem>>, vector<16x128xf32>
    tpu.vector_store %arg7[%c0_6, %c0_7], %7 {strides = array<i32>} : memref<16x128xf32, #tpu.memory_space<vmem>>, vector<16x128xf32>,
    %c0_i32_8 = arith.constant 0 : i32
    %9 = arith.cmpi eq, %arg2, %c0_i32_8 : i32
    %10 = arith.extui %9 : i1 to i32
    %c0_i32_9 = arith.constant 0 : i32
    %11 = arith.cmpi ne, %10, %c0_i32_9 : i32
    scf.if %11 {
      %c0_10 = arith.constant 0 : index
      %c0_11 = arith.constant 0 : index
      %12 = vector.load %arg7[%c0_10, %c0_11] : memref<16x128xf32, #tpu.memory_space<vmem>>, vector<16x128xf32>
      %c0_12 = arith.constant 0 : index
      %c0_13 = arith.constant 0 : index
      %13 = vector.load %arg5[%c0_12, %c0_13] : memref<1x128xf32, #tpu.memory_space<vmem>>, vector<1x128xf32>
      %14 = vector.broadcast %13 : vector<1x128xf32> to vector<16x128xf32>
      %15 = arith.addf %12, %14 : vector<16x128xf32>
      %16 = arith.truncf %15 : vector<16x128xf32> to vector<16x128xbf16>
      %c0_14 = arith.constant 0 : index
      %c0_15 = arith.constant 0 : index
      %17 = vector.load %arg6[%c0_14, %c0_15] : memref<16x128xbf16, #tpu.memory_space<vmem>>, vector<16x128xbf16>
      tpu.vector_store %arg6[%c0_14, %c0_15], %16 {strides = array<i32>} : memref<16x128xbf16, #tpu.memory_space<vmem>>, vector<16x128xbf16>,
    } else {
    }
    return
  }
  func.func @transform_0(%arg0: i32, %arg1: i32, %arg2: i32) -> (i32, i32) {
    %c0_i32 = arith.constant 0 : i32
    return %arg0, %arg2 : i32, i32
  }
  func.func @transform_1(%arg0: i32, %arg1: i32, %arg2: i32) -> (i32, i32) {
    %c0_i32 = arith.constant 0 : i32
    return %arg2, %arg1 : i32, i32
  }
  func.func @transform_2(%arg0: i32, %arg1: i32, %arg2: i32) -> (i32, i32) {
    %c0_i32 = arith.constant 0 : i32
    %c0_i32_0 = arith.constant 0 : i32
    return %c0_i32, %arg1 : i32, i32
  }
  func.func @transform_3(%arg0: i32, %arg1: i32, %arg2: i32) -> (i32, i32) {
    %c0_i32 = arith.constant 0 : i32
    return %arg0, %arg1 : i32, i32
  }
}

module attributes {stable_mosaic.version = 11 : i64} {
  func.func @_self_attn_kernel(%arg0: i32, %arg1: memref<1x8x384xbf16, #tpu.memory_space<vmem>>, %arg2: memref<1x8x128xbf16, #tpu.memory_space<vmem>>, %arg3: memref<128x128xbf16, #tpu.memory_space<vmem>>, %arg4: memref<1x128xf32, #tpu.memory_space<vmem>>, %arg5: memref<1x128xf32, #tpu.memory_space<vmem>>, %arg6: memref<1x128xf32, #tpu.memory_space<vmem>>, %arg7: memref<1x8x128xbf16, #tpu.memory_space<vmem>>) attributes {dimension_semantics = [#tpu.dimension_semantics<parallel>], iteration_bounds = array<i64: 2>, scalar_prefetch = 0 : i64, scratch_operands = 0 : i64, tpu.core_type = #tpu.core_type<tc>, window_params = [{transform_indices = @transform_0, window_bounds = array<i64: 1, 8, 384>}, {transform_indices = @transform_1, window_bounds = array<i64: 1, 8, 128>}, {pipeline_mode = #tpu.pipeline_mode<synchronous>, transform_indices = @transform_2, window_bounds = array<i64: 128, 128>}, {pipeline_mode = #tpu.pipeline_mode<synchronous>, transform_indices = @transform_3, window_bounds = array<i64: 1, 128>}, {pipeline_mode = #tpu.pipeline_mode<synchronous>, transform_indices = @transform_4, window_bounds = array<i64: 1, 128>}, {pipeline_mode = #tpu.pipeline_mode<synchronous>, transform_indices = @transform_5, window_bounds = array<i64: 1, 128>}, {transform_indices = @transform_6, window_bounds = array<i64: 1, 8, 128>}]} {
    %c0 = arith.constant 0 : index
    %c0_0 = arith.constant 0 : index
    %c0_1 = arith.constant 0 : index
    %0 = vector.load %arg1[%c0, %c0_0, %c0_1] : memref<1x8x384xbf16, #tpu.memory_space<vmem>>, vector<1x8x384xbf16>
    %1 = vector.shape_cast %0 : vector<1x8x384xbf16> to vector<8x384xbf16>
    %2 = vector.extract_strided_slice %1 {offsets = [0, 0], sizes = [8, 128], strides = [1, 1]} : vector<8x384xbf16> to vector<8x128xbf16>
    %3 = vector.extract_strided_slice %1 {offsets = [0, 128], sizes = [8, 128], strides = [1, 1]} : vector<8x384xbf16> to vector<8x128xbf16>
    %4 = vector.extract_strided_slice %1 {offsets = [0, 256], sizes = [8, 128], strides = [1, 1]} : vector<8x384xbf16> to vector<8x128xbf16>
    %c0_2 = arith.constant 0 : index
    %c0_3 = arith.constant 0 : index
    %c0_4 = arith.constant 0 : index
    %5 = vector.load %arg2[%c0_2, %c0_3, %c0_4] : memref<1x8x128xbf16, #tpu.memory_space<vmem>>, vector<1x8x128xbf16>
    %6 = vector.shape_cast %5 : vector<1x8x128xbf16> to vector<8x128xbf16>
    %7 = tpu.iota {dimensions = array<i32: 0>} : vector<8x8xi32>
    %8 = tpu.iota {dimensions = array<i32: 1>} : vector<8x8xi32>
    %9 = arith.cmpi sge, %7, %8 : vector<8x8xi32>
    %cst = arith.constant 0.000000e+00 : f32
    %cst_5 = arith.constant -1.000000e+30 : f32
    %10 = vector.broadcast %cst : f32 to vector<8x8xf32>
    %11 = vector.broadcast %cst_5 : f32 to vector<8x8xf32>
    %12 = arith.select %9, %10, %11 : vector<8x8xi1>, vector<8x8xf32>
    %cst_6 = arith.constant 0.000000e+00 : f32
    %13 = vector.broadcast %cst_6 : f32 to vector<8x128xf32>
    %14 = vector.extract_strided_slice %2 {offsets = [0, 0], sizes = [8, 32], strides = [1, 1]} : vector<8x128xbf16> to vector<8x32xbf16>
    %15 = vector.extract_strided_slice %3 {offsets = [0, 0], sizes = [8, 32], strides = [1, 1]} : vector<8x128xbf16> to vector<8x32xbf16>
    %cst_7 = arith.constant dense<0.000000e+00> : vector<8x8xf32>
    %16 = tpu.matmul %14, %15, %cst_7 {dimension_numbers = #tpu.dot_dimension_numbers<[1], [1], [0], [0], [0, 0, 1, 0], [], []>} : vector<8x32xbf16>, vector<8x32xbf16>, vector<8x8xf32> -> vector<8x8xf32>
    %17 = arith.addf %16, %12 : vector<8x8xf32>
    %cst_8 = arith.constant dense<0xFF800000> : vector<8xf32>
    %18 = vector.multi_reduction <maximumf>, %17, %cst_8 [1] : vector<8x8xf32> to vector<8xf32>
    %19 = vector.shape_cast %18 : vector<8xf32> to vector<8x1xf32>
    %20 = vector.broadcast %19 : vector<8x1xf32> to vector<8x8xf32>
    %21 = arith.subf %17, %20 : vector<8x8xf32>
    %22 = math.exp %21 : vector<8x8xf32>
    %cst_9 = arith.constant dense<0.000000e+00> : vector<8xf32>
    %23 = vector.multi_reduction <add>, %22, %cst_9 [1] : vector<8x8xf32> to vector<8xf32>
    %24 = vector.shape_cast %23 : vector<8xf32> to vector<8x1xf32>
    %25 = tpu.reciprocal %24 {approx = true} : vector<8x1xf32> -> vector<8x1xf32>
    %26 = vector.broadcast %25 : vector<8x1xf32> to vector<8x8xf32>
    %27 = arith.mulf %22, %26 : vector<8x8xf32>
    %28 = arith.truncf %27 : vector<8x8xf32> to vector<8x8xbf16>
    %29 = vector.extract_strided_slice %4 {offsets = [0, 0], sizes = [8, 32], strides = [1, 1]} : vector<8x128xbf16> to vector<8x32xbf16>
    %cst_10 = arith.constant dense<0.000000e+00> : vector<8x32xf32>
    %30 = tpu.matmul %28, %29, %cst_10 {dimension_numbers = #tpu.dot_dimension_numbers<[1], [0], [0], [1], [0, 0, 1, 1], [], []>} : vector<8x8xbf16>, vector<8x32xbf16>, vector<8x32xf32> -> vector<8x32xf32>
    %31 = arith.truncf %30 : vector<8x32xf32> to vector<8x32xbf16>
    %c0_11 = arith.constant 0 : index
    %c0_12 = arith.constant 0 : index
    %32 = vector.load %arg3[%c0_11, %c0_12] : memref<128x128xbf16, #tpu.memory_space<vmem>>, vector<32x128xbf16>
    %cst_13 = arith.constant dense<0.000000e+00> : vector<8x128xf32>
    %33 = tpu.matmul %31, %32, %cst_13 {dimension_numbers = #tpu.dot_dimension_numbers<[1], [0], [0], [1], [0, 0, 1, 1], [], []>} : vector<8x32xbf16>, vector<32x128xbf16>, vector<8x128xf32> -> vector<8x128xf32>
    %34 = arith.addf %13, %33 : vector<8x128xf32>
    %35 = vector.extract_strided_slice %2 {offsets = [0, 32], sizes = [8, 32], strides = [1, 1]} : vector<8x128xbf16> to vector<8x32xbf16>
    %36 = vector.extract_strided_slice %3 {offsets = [0, 32], sizes = [8, 32], strides = [1, 1]} : vector<8x128xbf16> to vector<8x32xbf16>
    %cst_14 = arith.constant dense<0.000000e+00> : vector<8x8xf32>
    %37 = tpu.matmul %35, %36, %cst_14 {dimension_numbers = #tpu.dot_dimension_numbers<[1], [1], [0], [0], [0, 0, 1, 0], [], []>} : vector<8x32xbf16>, vector<8x32xbf16>, vector<8x8xf32> -> vector<8x8xf32>
    %38 = arith.addf %37, %12 : vector<8x8xf32>
    %cst_15 = arith.constant dense<0xFF800000> : vector<8xf32>
    %39 = vector.multi_reduction <maximumf>, %38, %cst_15 [1] : vector<8x8xf32> to vector<8xf32>
    %40 = vector.shape_cast %39 : vector<8xf32> to vector<8x1xf32>
    %41 = vector.broadcast %40 : vector<8x1xf32> to vector<8x8xf32>
    %42 = arith.subf %38, %41 : vector<8x8xf32>
    %43 = math.exp %42 : vector<8x8xf32>
    %cst_16 = arith.constant dense<0.000000e+00> : vector<8xf32>
    %44 = vector.multi_reduction <add>, %43, %cst_16 [1] : vector<8x8xf32> to vector<8xf32>
    %45 = vector.shape_cast %44 : vector<8xf32> to vector<8x1xf32>
    %46 = tpu.reciprocal %45 {approx = true} : vector<8x1xf32> -> vector<8x1xf32>
    %47 = vector.broadcast %46 : vector<8x1xf32> to vector<8x8xf32>
    %48 = arith.mulf %43, %47 : vector<8x8xf32>
    %49 = arith.truncf %48 : vector<8x8xf32> to vector<8x8xbf16>
    %50 = vector.extract_strided_slice %4 {offsets = [0, 32], sizes = [8, 32], strides = [1, 1]} : vector<8x128xbf16> to vector<8x32xbf16>
    %cst_17 = arith.constant dense<0.000000e+00> : vector<8x32xf32>
    %51 = tpu.matmul %49, %50, %cst_17 {dimension_numbers = #tpu.dot_dimension_numbers<[1], [0], [0], [1], [0, 0, 1, 1], [], []>} : vector<8x8xbf16>, vector<8x32xbf16>, vector<8x32xf32> -> vector<8x32xf32>
    %52 = arith.truncf %51 : vector<8x32xf32> to vector<8x32xbf16>
    %c32 = arith.constant 32 : index
    %c0_18 = arith.constant 0 : index
    %53 = vector.load %arg3[%c32, %c0_18] : memref<128x128xbf16, #tpu.memory_space<vmem>>, vector<32x128xbf16>
    %cst_19 = arith.constant dense<0.000000e+00> : vector<8x128xf32>
    %54 = tpu.matmul %52, %53, %cst_19 {dimension_numbers = #tpu.dot_dimension_numbers<[1], [0], [0], [1], [0, 0, 1, 1], [], []>} : vector<8x32xbf16>, vector<32x128xbf16>, vector<8x128xf32> -> vector<8x128xf32>
    %55 = arith.addf %34, %54 : vector<8x128xf32>
    %56 = vector.extract_strided_slice %2 {offsets = [0, 64], sizes = [8, 32], strides = [1, 1]} : vector<8x128xbf16> to vector<8x32xbf16>
    %57 = vector.extract_strided_slice %3 {offsets = [0, 64], sizes = [8, 32], strides = [1, 1]} : vector<8x128xbf16> to vector<8x32xbf16>
    %cst_20 = arith.constant dense<0.000000e+00> : vector<8x8xf32>
    %58 = tpu.matmul %56, %57, %cst_20 {dimension_numbers = #tpu.dot_dimension_numbers<[1], [1], [0], [0], [0, 0, 1, 0], [], []>} : vector<8x32xbf16>, vector<8x32xbf16>, vector<8x8xf32> -> vector<8x8xf32>
    %59 = arith.addf %58, %12 : vector<8x8xf32>
    %cst_21 = arith.constant dense<0xFF800000> : vector<8xf32>
    %60 = vector.multi_reduction <maximumf>, %59, %cst_21 [1] : vector<8x8xf32> to vector<8xf32>
    %61 = vector.shape_cast %60 : vector<8xf32> to vector<8x1xf32>
    %62 = vector.broadcast %61 : vector<8x1xf32> to vector<8x8xf32>
    %63 = arith.subf %59, %62 : vector<8x8xf32>
    %64 = math.exp %63 : vector<8x8xf32>
    %cst_22 = arith.constant dense<0.000000e+00> : vector<8xf32>
    %65 = vector.multi_reduction <add>, %64, %cst_22 [1] : vector<8x8xf32> to vector<8xf32>
    %66 = vector.shape_cast %65 : vector<8xf32> to vector<8x1xf32>
    %67 = tpu.reciprocal %66 {approx = true} : vector<8x1xf32> -> vector<8x1xf32>
    %68 = vector.broadcast %67 : vector<8x1xf32> to vector<8x8xf32>
    %69 = arith.mulf %64, %68 : vector<8x8xf32>
    %70 = arith.truncf %69 : vector<8x8xf32> to vector<8x8xbf16>
    %71 = vector.extract_strided_slice %4 {offsets = [0, 64], sizes = [8, 32], strides = [1, 1]} : vector<8x128xbf16> to vector<8x32xbf16>
    %cst_23 = arith.constant dense<0.000000e+00> : vector<8x32xf32>
    %72 = tpu.matmul %70, %71, %cst_23 {dimension_numbers = #tpu.dot_dimension_numbers<[1], [0], [0], [1], [0, 0, 1, 1], [], []>} : vector<8x8xbf16>, vector<8x32xbf16>, vector<8x32xf32> -> vector<8x32xf32>
    %73 = arith.truncf %72 : vector<8x32xf32> to vector<8x32xbf16>
    %c64 = arith.constant 64 : index
    %c0_24 = arith.constant 0 : index
    %74 = vector.load %arg3[%c64, %c0_24] : memref<128x128xbf16, #tpu.memory_space<vmem>>, vector<32x128xbf16>
    %cst_25 = arith.constant dense<0.000000e+00> : vector<8x128xf32>
    %75 = tpu.matmul %73, %74, %cst_25 {dimension_numbers = #tpu.dot_dimension_numbers<[1], [0], [0], [1], [0, 0, 1, 1], [], []>} : vector<8x32xbf16>, vector<32x128xbf16>, vector<8x128xf32> -> vector<8x128xf32>
    %76 = arith.addf %55, %75 : vector<8x128xf32>
    %77 = vector.extract_strided_slice %2 {offsets = [0, 96], sizes = [8, 32], strides = [1, 1]} : vector<8x128xbf16> to vector<8x32xbf16>
    %78 = vector.extract_strided_slice %3 {offsets = [0, 96], sizes = [8, 32], strides = [1, 1]} : vector<8x128xbf16> to vector<8x32xbf16>
    %cst_26 = arith.constant dense<0.000000e+00> : vector<8x8xf32>
    %79 = tpu.matmul %77, %78, %cst_26 {dimension_numbers = #tpu.dot_dimension_numbers<[1], [1], [0], [0], [0, 0, 1, 0], [], []>} : vector<8x32xbf16>, vector<8x32xbf16>, vector<8x8xf32> -> vector<8x8xf32>
    %80 = arith.addf %79, %12 : vector<8x8xf32>
    %cst_27 = arith.constant dense<0xFF800000> : vector<8xf32>
    %81 = vector.multi_reduction <maximumf>, %80, %cst_27 [1] : vector<8x8xf32> to vector<8xf32>
    %82 = vector.shape_cast %81 : vector<8xf32> to vector<8x1xf32>
    %83 = vector.broadcast %82 : vector<8x1xf32> to vector<8x8xf32>
    %84 = arith.subf %80, %83 : vector<8x8xf32>
    %85 = math.exp %84 : vector<8x8xf32>
    %cst_28 = arith.constant dense<0.000000e+00> : vector<8xf32>
    %86 = vector.multi_reduction <add>, %85, %cst_28 [1] : vector<8x8xf32> to vector<8xf32>
    %87 = vector.shape_cast %86 : vector<8xf32> to vector<8x1xf32>
    %88 = tpu.reciprocal %87 {approx = true} : vector<8x1xf32> -> vector<8x1xf32>
    %89 = vector.broadcast %88 : vector<8x1xf32> to vector<8x8xf32>
    %90 = arith.mulf %85, %89 : vector<8x8xf32>
    %91 = arith.truncf %90 : vector<8x8xf32> to vector<8x8xbf16>
    %92 = vector.extract_strided_slice %4 {offsets = [0, 96], sizes = [8, 32], strides = [1, 1]} : vector<8x128xbf16> to vector<8x32xbf16>
    %cst_29 = arith.constant dense<0.000000e+00> : vector<8x32xf32>
    %93 = tpu.matmul %91, %92, %cst_29 {dimension_numbers = #tpu.dot_dimension_numbers<[1], [0], [0], [1], [0, 0, 1, 1], [], []>} : vector<8x8xbf16>, vector<8x32xbf16>, vector<8x32xf32> -> vector<8x32xf32>
    %94 = arith.truncf %93 : vector<8x32xf32> to vector<8x32xbf16>
    %c96 = arith.constant 96 : index
    %c0_30 = arith.constant 0 : index
    %95 = vector.load %arg3[%c96, %c0_30] : memref<128x128xbf16, #tpu.memory_space<vmem>>, vector<32x128xbf16>
    %cst_31 = arith.constant dense<0.000000e+00> : vector<8x128xf32>
    %96 = tpu.matmul %94, %95, %cst_31 {dimension_numbers = #tpu.dot_dimension_numbers<[1], [0], [0], [1], [0, 0, 1, 1], [], []>} : vector<8x32xbf16>, vector<32x128xbf16>, vector<8x128xf32> -> vector<8x128xf32>
    %97 = arith.addf %76, %96 : vector<8x128xf32>
    %c0_32 = arith.constant 0 : index
    %c0_33 = arith.constant 0 : index
    %98 = vector.load %arg4[%c0_32, %c0_33] : memref<1x128xf32, #tpu.memory_space<vmem>>, vector<1x128xf32>
    %99 = vector.broadcast %98 : vector<1x128xf32> to vector<8x128xf32>
    %100 = arith.addf %97, %99 : vector<8x128xf32>
    %101 = arith.extf %6 : vector<8x128xbf16> to vector<8x128xf32>
    %102 = arith.addf %100, %101 : vector<8x128xf32>
    %cst_34 = arith.constant dense<0.000000e+00> : vector<8xf32>
    %103 = vector.multi_reduction <add>, %102, %cst_34 [1] : vector<8x128xf32> to vector<8xf32>
    %104 = vector.shape_cast %103 : vector<8xf32> to vector<8x1xf32>
    %cst_35 = arith.constant 1.280000e+02 : f32
    %105 = vector.broadcast %cst_35 : f32 to vector<8x1xf32>
    %106 = arith.divf %104, %105 : vector<8x1xf32>
    %107 = vector.broadcast %106 : vector<8x1xf32> to vector<8x128xf32>
    %108 = arith.subf %102, %107 : vector<8x128xf32>
    %109 = arith.mulf %108, %108 : vector<8x128xf32>
    %cst_36 = arith.constant dense<0.000000e+00> : vector<8xf32>
    %110 = vector.multi_reduction <add>, %109, %cst_36 [1] : vector<8x128xf32> to vector<8xf32>
    %111 = vector.shape_cast %110 : vector<8xf32> to vector<8x1xf32>
    %cst_37 = arith.constant 1.280000e+02 : f32
    %112 = vector.broadcast %cst_37 : f32 to vector<8x1xf32>
    %113 = arith.divf %111, %112 : vector<8x1xf32>
    %114 = vector.broadcast %106 : vector<8x1xf32> to vector<8x128xf32>
    %115 = arith.subf %102, %114 : vector<8x128xf32>
    %cst_38 = arith.constant 9.99999974E-6 : f32
    %116 = vector.broadcast %cst_38 : f32 to vector<8x1xf32>
    %117 = arith.addf %113, %116 : vector<8x1xf32>
    %118 = math.rsqrt %117 : vector<8x1xf32>
    %119 = vector.broadcast %118 : vector<8x1xf32> to vector<8x128xf32>
    %120 = arith.mulf %115, %119 : vector<8x128xf32>
    %c0_39 = arith.constant 0 : index
    %c0_40 = arith.constant 0 : index
    %121 = vector.load %arg5[%c0_39, %c0_40] : memref<1x128xf32, #tpu.memory_space<vmem>>, vector<1x128xf32>
    %122 = vector.broadcast %121 : vector<1x128xf32> to vector<8x128xf32>
    %123 = arith.mulf %120, %122 : vector<8x128xf32>
    %c0_41 = arith.constant 0 : index
    %c0_42 = arith.constant 0 : index
    %124 = vector.load %arg6[%c0_41, %c0_42] : memref<1x128xf32, #tpu.memory_space<vmem>>, vector<1x128xf32>
    %125 = vector.broadcast %124 : vector<1x128xf32> to vector<8x128xf32>
    %126 = arith.addf %123, %125 : vector<8x128xf32>
    %127 = arith.truncf %126 : vector<8x128xf32> to vector<8x128xbf16>
    %c0_43 = arith.constant 0 : index
    %c0_44 = arith.constant 0 : index
    %c0_45 = arith.constant 0 : index
    %128 = vector.load %arg7[%c0_43, %c0_44, %c0_45] : memref<1x8x128xbf16, #tpu.memory_space<vmem>>, vector<1x8x128xbf16>
    %129 = vector.shape_cast %128 : vector<1x8x128xbf16> to vector<8x128xbf16>
    %130 = vector.shape_cast %127 : vector<8x128xbf16> to vector<1x8x128xbf16>
    tpu.vector_store %arg7[%c0_43, %c0_44, %c0_45], %130 {strides = array<i32>} : memref<1x8x128xbf16, #tpu.memory_space<vmem>>, vector<1x8x128xbf16>,
    return
  }
  func.func @transform_0(%arg0: i32) -> (i32, i32, i32) {
    %c0_i32 = arith.constant 0 : i32
    %c0_i32_0 = arith.constant 0 : i32
    %c0_i32_1 = arith.constant 0 : i32
    return %arg0, %c0_i32, %c0_i32_0 : i32, i32, i32
  }
  func.func @transform_1(%arg0: i32) -> (i32, i32, i32) {
    %c0_i32 = arith.constant 0 : i32
    %c0_i32_0 = arith.constant 0 : i32
    %c0_i32_1 = arith.constant 0 : i32
    return %arg0, %c0_i32, %c0_i32_0 : i32, i32, i32
  }
  func.func @transform_2(%arg0: i32) -> (i32, i32) {
    %c0_i32 = arith.constant 0 : i32
    %c0_i32_0 = arith.constant 0 : i32
    %c0_i32_1 = arith.constant 0 : i32
    return %c0_i32, %c0_i32_0 : i32, i32
  }
  func.func @transform_3(%arg0: i32) -> (i32, i32) {
    %c0_i32 = arith.constant 0 : i32
    %c0_i32_0 = arith.constant 0 : i32
    %c0_i32_1 = arith.constant 0 : i32
    return %c0_i32, %c0_i32_0 : i32, i32
  }
  func.func @transform_4(%arg0: i32) -> (i32, i32) {
    %c0_i32 = arith.constant 0 : i32
    %c0_i32_0 = arith.constant 0 : i32
    %c0_i32_1 = arith.constant 0 : i32
    return %c0_i32, %c0_i32_0 : i32, i32
  }
  func.func @transform_5(%arg0: i32) -> (i32, i32) {
    %c0_i32 = arith.constant 0 : i32
    %c0_i32_0 = arith.constant 0 : i32
    %c0_i32_1 = arith.constant 0 : i32
    return %c0_i32, %c0_i32_0 : i32, i32
  }
  func.func @transform_6(%arg0: i32) -> (i32, i32, i32) {
    %c0_i32 = arith.constant 0 : i32
    %c0_i32_0 = arith.constant 0 : i32
    %c0_i32_1 = arith.constant 0 : i32
    return %arg0, %c0_i32, %c0_i32_0 : i32, i32, i32
  }
}

module attributes {stable_mosaic.version = 11 : i64} {
  func.func @_cross_attn_kernel(%arg0: i32, %arg1: memref<1x8x128xbf16, #tpu.memory_space<vmem>>, %arg2: memref<1x16x256xbf16, #tpu.memory_space<vmem>>, %arg3: memref<1x8x128xbf16, #tpu.memory_space<vmem>>, %arg4: memref<128x128xbf16, #tpu.memory_space<vmem>>, %arg5: memref<1x128xf32, #tpu.memory_space<vmem>>, %arg6: memref<1x128xf32, #tpu.memory_space<vmem>>, %arg7: memref<1x128xf32, #tpu.memory_space<vmem>>, %arg8: memref<1x8x128xbf16, #tpu.memory_space<vmem>>) attributes {dimension_semantics = [#tpu.dimension_semantics<parallel>], iteration_bounds = array<i64: 2>, scalar_prefetch = 0 : i64, scratch_operands = 0 : i64, tpu.core_type = #tpu.core_type<tc>, window_params = [{transform_indices = @transform_0, window_bounds = array<i64: 1, 8, 128>}, {transform_indices = @transform_1, window_bounds = array<i64: 1, 16, 256>}, {transform_indices = @transform_2, window_bounds = array<i64: 1, 8, 128>}, {pipeline_mode = #tpu.pipeline_mode<synchronous>, transform_indices = @transform_3, window_bounds = array<i64: 128, 128>}, {pipeline_mode = #tpu.pipeline_mode<synchronous>, transform_indices = @transform_4, window_bounds = array<i64: 1, 128>}, {pipeline_mode = #tpu.pipeline_mode<synchronous>, transform_indices = @transform_5, window_bounds = array<i64: 1, 128>}, {pipeline_mode = #tpu.pipeline_mode<synchronous>, transform_indices = @transform_6, window_bounds = array<i64: 1, 128>}, {transform_indices = @transform_7, window_bounds = array<i64: 1, 8, 128>}]} {
    %c0 = arith.constant 0 : index
    %c0_0 = arith.constant 0 : index
    %c0_1 = arith.constant 0 : index
    %0 = vector.load %arg2[%c0, %c0_0, %c0_1] : memref<1x16x256xbf16, #tpu.memory_space<vmem>>, vector<1x16x256xbf16>
    %1 = vector.shape_cast %0 : vector<1x16x256xbf16> to vector<16x256xbf16>
    %c0_2 = arith.constant 0 : index
    %c0_3 = arith.constant 0 : index
    %c0_4 = arith.constant 0 : index
    %2 = vector.load %arg1[%c0_2, %c0_3, %c0_4] : memref<1x8x128xbf16, #tpu.memory_space<vmem>>, vector<1x8x128xbf16>
    %3 = vector.shape_cast %2 : vector<1x8x128xbf16> to vector<8x128xbf16>
    %4 = vector.extract_strided_slice %1 {offsets = [0, 0], sizes = [16, 128], strides = [1, 1]} : vector<16x256xbf16> to vector<16x128xbf16>
    %5 = vector.extract_strided_slice %1 {offsets = [0, 128], sizes = [16, 128], strides = [1, 1]} : vector<16x256xbf16> to vector<16x128xbf16>
    %c0_5 = arith.constant 0 : index
    %c0_6 = arith.constant 0 : index
    %c0_7 = arith.constant 0 : index
    %6 = vector.load %arg3[%c0_5, %c0_6, %c0_7] : memref<1x8x128xbf16, #tpu.memory_space<vmem>>, vector<1x8x128xbf16>
    %7 = vector.shape_cast %6 : vector<1x8x128xbf16> to vector<8x128xbf16>
    %cst = arith.constant 0.000000e+00 : f32
    %8 = vector.broadcast %cst : f32 to vector<8x128xf32>
    %9 = vector.extract_strided_slice %3 {offsets = [0, 0], sizes = [8, 32], strides = [1, 1]} : vector<8x128xbf16> to vector<8x32xbf16>
    %10 = vector.extract_strided_slice %4 {offsets = [0, 0], sizes = [16, 32], strides = [1, 1]} : vector<16x128xbf16> to vector<16x32xbf16>
    %cst_8 = arith.constant dense<0.000000e+00> : vector<8x16xf32>
    %11 = tpu.matmul %9, %10, %cst_8 {dimension_numbers = #tpu.dot_dimension_numbers<[1], [1], [0], [0], [0, 0, 1, 0], [], []>} : vector<8x32xbf16>, vector<16x32xbf16>, vector<8x16xf32> -> vector<8x16xf32>
    %cst_9 = arith.constant dense<0xFF800000> : vector<8xf32>
    %12 = vector.multi_reduction <maximumf>, %11, %cst_9 [1] : vector<8x16xf32> to vector<8xf32>
    %13 = vector.shape_cast %12 : vector<8xf32> to vector<8x1xf32>
    %14 = vector.broadcast %13 : vector<8x1xf32> to vector<8x16xf32>
    %15 = arith.subf %11, %14 : vector<8x16xf32>
    %16 = math.exp %15 : vector<8x16xf32>
    %cst_10 = arith.constant dense<0.000000e+00> : vector<8xf32>
    %17 = vector.multi_reduction <add>, %16, %cst_10 [1] : vector<8x16xf32> to vector<8xf32>
    %18 = vector.shape_cast %17 : vector<8xf32> to vector<8x1xf32>
    %19 = tpu.reciprocal %18 {approx = true} : vector<8x1xf32> -> vector<8x1xf32>
    %20 = vector.broadcast %19 : vector<8x1xf32> to vector<8x16xf32>
    %21 = arith.mulf %16, %20 : vector<8x16xf32>
    %22 = arith.truncf %21 : vector<8x16xf32> to vector<8x16xbf16>
    %23 = vector.extract_strided_slice %5 {offsets = [0, 0], sizes = [16, 32], strides = [1, 1]} : vector<16x128xbf16> to vector<16x32xbf16>
    %cst_11 = arith.constant dense<0.000000e+00> : vector<8x32xf32>
    %24 = tpu.matmul %22, %23, %cst_11 {dimension_numbers = #tpu.dot_dimension_numbers<[1], [0], [0], [1], [0, 0, 1, 1], [], []>} : vector<8x16xbf16>, vector<16x32xbf16>, vector<8x32xf32> -> vector<8x32xf32>
    %25 = arith.truncf %24 : vector<8x32xf32> to vector<8x32xbf16>
    %c0_12 = arith.constant 0 : index
    %c0_13 = arith.constant 0 : index
    %26 = vector.load %arg4[%c0_12, %c0_13] : memref<128x128xbf16, #tpu.memory_space<vmem>>, vector<32x128xbf16>
    %cst_14 = arith.constant dense<0.000000e+00> : vector<8x128xf32>
    %27 = tpu.matmul %25, %26, %cst_14 {dimension_numbers = #tpu.dot_dimension_numbers<[1], [0], [0], [1], [0, 0, 1, 1], [], []>} : vector<8x32xbf16>, vector<32x128xbf16>, vector<8x128xf32> -> vector<8x128xf32>
    %28 = arith.addf %8, %27 : vector<8x128xf32>
    %29 = vector.extract_strided_slice %3 {offsets = [0, 32], sizes = [8, 32], strides = [1, 1]} : vector<8x128xbf16> to vector<8x32xbf16>
    %30 = vector.extract_strided_slice %4 {offsets = [0, 32], sizes = [16, 32], strides = [1, 1]} : vector<16x128xbf16> to vector<16x32xbf16>
    %cst_15 = arith.constant dense<0.000000e+00> : vector<8x16xf32>
    %31 = tpu.matmul %29, %30, %cst_15 {dimension_numbers = #tpu.dot_dimension_numbers<[1], [1], [0], [0], [0, 0, 1, 0], [], []>} : vector<8x32xbf16>, vector<16x32xbf16>, vector<8x16xf32> -> vector<8x16xf32>
    %cst_16 = arith.constant dense<0xFF800000> : vector<8xf32>
    %32 = vector.multi_reduction <maximumf>, %31, %cst_16 [1] : vector<8x16xf32> to vector<8xf32>
    %33 = vector.shape_cast %32 : vector<8xf32> to vector<8x1xf32>
    %34 = vector.broadcast %33 : vector<8x1xf32> to vector<8x16xf32>
    %35 = arith.subf %31, %34 : vector<8x16xf32>
    %36 = math.exp %35 : vector<8x16xf32>
    %cst_17 = arith.constant dense<0.000000e+00> : vector<8xf32>
    %37 = vector.multi_reduction <add>, %36, %cst_17 [1] : vector<8x16xf32> to vector<8xf32>
    %38 = vector.shape_cast %37 : vector<8xf32> to vector<8x1xf32>
    %39 = tpu.reciprocal %38 {approx = true} : vector<8x1xf32> -> vector<8x1xf32>
    %40 = vector.broadcast %39 : vector<8x1xf32> to vector<8x16xf32>
    %41 = arith.mulf %36, %40 : vector<8x16xf32>
    %42 = arith.truncf %41 : vector<8x16xf32> to vector<8x16xbf16>
    %43 = vector.extract_strided_slice %5 {offsets = [0, 32], sizes = [16, 32], strides = [1, 1]} : vector<16x128xbf16> to vector<16x32xbf16>
    %cst_18 = arith.constant dense<0.000000e+00> : vector<8x32xf32>
    %44 = tpu.matmul %42, %43, %cst_18 {dimension_numbers = #tpu.dot_dimension_numbers<[1], [0], [0], [1], [0, 0, 1, 1], [], []>} : vector<8x16xbf16>, vector<16x32xbf16>, vector<8x32xf32> -> vector<8x32xf32>
    %45 = arith.truncf %44 : vector<8x32xf32> to vector<8x32xbf16>
    %c32 = arith.constant 32 : index
    %c0_19 = arith.constant 0 : index
    %46 = vector.load %arg4[%c32, %c0_19] : memref<128x128xbf16, #tpu.memory_space<vmem>>, vector<32x128xbf16>
    %cst_20 = arith.constant dense<0.000000e+00> : vector<8x128xf32>
    %47 = tpu.matmul %45, %46, %cst_20 {dimension_numbers = #tpu.dot_dimension_numbers<[1], [0], [0], [1], [0, 0, 1, 1], [], []>} : vector<8x32xbf16>, vector<32x128xbf16>, vector<8x128xf32> -> vector<8x128xf32>
    %48 = arith.addf %28, %47 : vector<8x128xf32>
    %49 = vector.extract_strided_slice %3 {offsets = [0, 64], sizes = [8, 32], strides = [1, 1]} : vector<8x128xbf16> to vector<8x32xbf16>
    %50 = vector.extract_strided_slice %4 {offsets = [0, 64], sizes = [16, 32], strides = [1, 1]} : vector<16x128xbf16> to vector<16x32xbf16>
    %cst_21 = arith.constant dense<0.000000e+00> : vector<8x16xf32>
    %51 = tpu.matmul %49, %50, %cst_21 {dimension_numbers = #tpu.dot_dimension_numbers<[1], [1], [0], [0], [0, 0, 1, 0], [], []>} : vector<8x32xbf16>, vector<16x32xbf16>, vector<8x16xf32> -> vector<8x16xf32>
    %cst_22 = arith.constant dense<0xFF800000> : vector<8xf32>
    %52 = vector.multi_reduction <maximumf>, %51, %cst_22 [1] : vector<8x16xf32> to vector<8xf32>
    %53 = vector.shape_cast %52 : vector<8xf32> to vector<8x1xf32>
    %54 = vector.broadcast %53 : vector<8x1xf32> to vector<8x16xf32>
    %55 = arith.subf %51, %54 : vector<8x16xf32>
    %56 = math.exp %55 : vector<8x16xf32>
    %cst_23 = arith.constant dense<0.000000e+00> : vector<8xf32>
    %57 = vector.multi_reduction <add>, %56, %cst_23 [1] : vector<8x16xf32> to vector<8xf32>
    %58 = vector.shape_cast %57 : vector<8xf32> to vector<8x1xf32>
    %59 = tpu.reciprocal %58 {approx = true} : vector<8x1xf32> -> vector<8x1xf32>
    %60 = vector.broadcast %59 : vector<8x1xf32> to vector<8x16xf32>
    %61 = arith.mulf %56, %60 : vector<8x16xf32>
    %62 = arith.truncf %61 : vector<8x16xf32> to vector<8x16xbf16>
    %63 = vector.extract_strided_slice %5 {offsets = [0, 64], sizes = [16, 32], strides = [1, 1]} : vector<16x128xbf16> to vector<16x32xbf16>
    %cst_24 = arith.constant dense<0.000000e+00> : vector<8x32xf32>
    %64 = tpu.matmul %62, %63, %cst_24 {dimension_numbers = #tpu.dot_dimension_numbers<[1], [0], [0], [1], [0, 0, 1, 1], [], []>} : vector<8x16xbf16>, vector<16x32xbf16>, vector<8x32xf32> -> vector<8x32xf32>
    %65 = arith.truncf %64 : vector<8x32xf32> to vector<8x32xbf16>
    %c64 = arith.constant 64 : index
    %c0_25 = arith.constant 0 : index
    %66 = vector.load %arg4[%c64, %c0_25] : memref<128x128xbf16, #tpu.memory_space<vmem>>, vector<32x128xbf16>
    %cst_26 = arith.constant dense<0.000000e+00> : vector<8x128xf32>
    %67 = tpu.matmul %65, %66, %cst_26 {dimension_numbers = #tpu.dot_dimension_numbers<[1], [0], [0], [1], [0, 0, 1, 1], [], []>} : vector<8x32xbf16>, vector<32x128xbf16>, vector<8x128xf32> -> vector<8x128xf32>
    %68 = arith.addf %48, %67 : vector<8x128xf32>
    %69 = vector.extract_strided_slice %3 {offsets = [0, 96], sizes = [8, 32], strides = [1, 1]} : vector<8x128xbf16> to vector<8x32xbf16>
    %70 = vector.extract_strided_slice %4 {offsets = [0, 96], sizes = [16, 32], strides = [1, 1]} : vector<16x128xbf16> to vector<16x32xbf16>
    %cst_27 = arith.constant dense<0.000000e+00> : vector<8x16xf32>
    %71 = tpu.matmul %69, %70, %cst_27 {dimension_numbers = #tpu.dot_dimension_numbers<[1], [1], [0], [0], [0, 0, 1, 0], [], []>} : vector<8x32xbf16>, vector<16x32xbf16>, vector<8x16xf32> -> vector<8x16xf32>
    %cst_28 = arith.constant dense<0xFF800000> : vector<8xf32>
    %72 = vector.multi_reduction <maximumf>, %71, %cst_28 [1] : vector<8x16xf32> to vector<8xf32>
    %73 = vector.shape_cast %72 : vector<8xf32> to vector<8x1xf32>
    %74 = vector.broadcast %73 : vector<8x1xf32> to vector<8x16xf32>
    %75 = arith.subf %71, %74 : vector<8x16xf32>
    %76 = math.exp %75 : vector<8x16xf32>
    %cst_29 = arith.constant dense<0.000000e+00> : vector<8xf32>
    %77 = vector.multi_reduction <add>, %76, %cst_29 [1] : vector<8x16xf32> to vector<8xf32>
    %78 = vector.shape_cast %77 : vector<8xf32> to vector<8x1xf32>
    %79 = tpu.reciprocal %78 {approx = true} : vector<8x1xf32> -> vector<8x1xf32>
    %80 = vector.broadcast %79 : vector<8x1xf32> to vector<8x16xf32>
    %81 = arith.mulf %76, %80 : vector<8x16xf32>
    %82 = arith.truncf %81 : vector<8x16xf32> to vector<8x16xbf16>
    %83 = vector.extract_strided_slice %5 {offsets = [0, 96], sizes = [16, 32], strides = [1, 1]} : vector<16x128xbf16> to vector<16x32xbf16>
    %cst_30 = arith.constant dense<0.000000e+00> : vector<8x32xf32>
    %84 = tpu.matmul %82, %83, %cst_30 {dimension_numbers = #tpu.dot_dimension_numbers<[1], [0], [0], [1], [0, 0, 1, 1], [], []>} : vector<8x16xbf16>, vector<16x32xbf16>, vector<8x32xf32> -> vector<8x32xf32>
    %85 = arith.truncf %84 : vector<8x32xf32> to vector<8x32xbf16>
    %c96 = arith.constant 96 : index
    %c0_31 = arith.constant 0 : index
    %86 = vector.load %arg4[%c96, %c0_31] : memref<128x128xbf16, #tpu.memory_space<vmem>>, vector<32x128xbf16>
    %cst_32 = arith.constant dense<0.000000e+00> : vector<8x128xf32>
    %87 = tpu.matmul %85, %86, %cst_32 {dimension_numbers = #tpu.dot_dimension_numbers<[1], [0], [0], [1], [0, 0, 1, 1], [], []>} : vector<8x32xbf16>, vector<32x128xbf16>, vector<8x128xf32> -> vector<8x128xf32>
    %88 = arith.addf %68, %87 : vector<8x128xf32>
    %c0_33 = arith.constant 0 : index
    %c0_34 = arith.constant 0 : index
    %89 = vector.load %arg5[%c0_33, %c0_34] : memref<1x128xf32, #tpu.memory_space<vmem>>, vector<1x128xf32>
    %90 = vector.broadcast %89 : vector<1x128xf32> to vector<8x128xf32>
    %91 = arith.addf %88, %90 : vector<8x128xf32>
    %92 = arith.extf %7 : vector<8x128xbf16> to vector<8x128xf32>
    %93 = arith.addf %91, %92 : vector<8x128xf32>
    %cst_35 = arith.constant dense<0.000000e+00> : vector<8xf32>
    %94 = vector.multi_reduction <add>, %93, %cst_35 [1] : vector<8x128xf32> to vector<8xf32>
    %95 = vector.shape_cast %94 : vector<8xf32> to vector<8x1xf32>
    %cst_36 = arith.constant 1.280000e+02 : f32
    %96 = vector.broadcast %cst_36 : f32 to vector<8x1xf32>
    %97 = arith.divf %95, %96 : vector<8x1xf32>
    %98 = vector.broadcast %97 : vector<8x1xf32> to vector<8x128xf32>
    %99 = arith.subf %93, %98 : vector<8x128xf32>
    %100 = arith.mulf %99, %99 : vector<8x128xf32>
    %cst_37 = arith.constant dense<0.000000e+00> : vector<8xf32>
    %101 = vector.multi_reduction <add>, %100, %cst_37 [1] : vector<8x128xf32> to vector<8xf32>
    %102 = vector.shape_cast %101 : vector<8xf32> to vector<8x1xf32>
    %cst_38 = arith.constant 1.280000e+02 : f32
    %103 = vector.broadcast %cst_38 : f32 to vector<8x1xf32>
    %104 = arith.divf %102, %103 : vector<8x1xf32>
    %105 = vector.broadcast %97 : vector<8x1xf32> to vector<8x128xf32>
    %106 = arith.subf %93, %105 : vector<8x128xf32>
    %cst_39 = arith.constant 9.99999974E-6 : f32
    %107 = vector.broadcast %cst_39 : f32 to vector<8x1xf32>
    %108 = arith.addf %104, %107 : vector<8x1xf32>
    %109 = math.rsqrt %108 : vector<8x1xf32>
    %110 = vector.broadcast %109 : vector<8x1xf32> to vector<8x128xf32>
    %111 = arith.mulf %106, %110 : vector<8x128xf32>
    %c0_40 = arith.constant 0 : index
    %c0_41 = arith.constant 0 : index
    %112 = vector.load %arg6[%c0_40, %c0_41] : memref<1x128xf32, #tpu.memory_space<vmem>>, vector<1x128xf32>
    %113 = vector.broadcast %112 : vector<1x128xf32> to vector<8x128xf32>
    %114 = arith.mulf %111, %113 : vector<8x128xf32>
    %c0_42 = arith.constant 0 : index
    %c0_43 = arith.constant 0 : index
    %115 = vector.load %arg7[%c0_42, %c0_43] : memref<1x128xf32, #tpu.memory_space<vmem>>, vector<1x128xf32>
    %116 = vector.broadcast %115 : vector<1x128xf32> to vector<8x128xf32>
    %117 = arith.addf %114, %116 : vector<8x128xf32>
    %118 = arith.truncf %117 : vector<8x128xf32> to vector<8x128xbf16>
    %c0_44 = arith.constant 0 : index
    %c0_45 = arith.constant 0 : index
    %c0_46 = arith.constant 0 : index
    %119 = vector.load %arg8[%c0_44, %c0_45, %c0_46] : memref<1x8x128xbf16, #tpu.memory_space<vmem>>, vector<1x8x128xbf16>
    %120 = vector.shape_cast %119 : vector<1x8x128xbf16> to vector<8x128xbf16>
    %121 = vector.shape_cast %118 : vector<8x128xbf16> to vector<1x8x128xbf16>
    tpu.vector_store %arg8[%c0_44, %c0_45, %c0_46], %121 {strides = array<i32>} : memref<1x8x128xbf16, #tpu.memory_space<vmem>>, vector<1x8x128xbf16>,
    return
  }
  func.func @transform_0(%arg0: i32) -> (i32, i32, i32) {
    %c0_i32 = arith.constant 0 : i32
    %c0_i32_0 = arith.constant 0 : i32
    %c0_i32_1 = arith.constant 0 : i32
    return %arg0, %c0_i32, %c0_i32_0 : i32, i32, i32
  }
  func.func @transform_1(%arg0: i32) -> (i32, i32, i32) {
    %c0_i32 = arith.constant 0 : i32
    %c0_i32_0 = arith.constant 0 : i32
    %c0_i32_1 = arith.constant 0 : i32
    return %arg0, %c0_i32, %c0_i32_0 : i32, i32, i32
  }
  func.func @transform_2(%arg0: i32) -> (i32, i32, i32) {
    %c0_i32 = arith.constant 0 : i32
    %c0_i32_0 = arith.constant 0 : i32
    %c0_i32_1 = arith.constant 0 : i32
    return %arg0, %c0_i32, %c0_i32_0 : i32, i32, i32
  }
  func.func @transform_3(%arg0: i32) -> (i32, i32) {
    %c0_i32 = arith.constant 0 : i32
    %c0_i32_0 = arith.constant 0 : i32
    %c0_i32_1 = arith.constant 0 : i32
    return %c0_i32, %c0_i32_0 : i32, i32
  }
  func.func @transform_4(%arg0: i32) -> (i32, i32) {
    %c0_i32 = arith.constant 0 : i32
    %c0_i32_0 = arith.constant 0 : i32
    %c0_i32_1 = arith.constant 0 : i32
    return %c0_i32, %c0_i32_0 : i32, i32
  }
  func.func @transform_5(%arg0: i32) -> (i32, i32) {
    %c0_i32 = arith.constant 0 : i32
    %c0_i32_0 = arith.constant 0 : i32
    %c0_i32_1 = arith.constant 0 : i32
    return %c0_i32, %c0_i32_0 : i32, i32
  }
  func.func @transform_6(%arg0: i32) -> (i32, i32) {
    %c0_i32 = arith.constant 0 : i32
    %c0_i32_0 = arith.constant 0 : i32
    %c0_i32_1 = arith.constant 0 : i32
    return %c0_i32, %c0_i32_0 : i32, i32
  }
  func.func @transform_7(%arg0: i32) -> (i32, i32, i32) {
    %c0_i32 = arith.constant 0 : i32
    %c0_i32_0 = arith.constant 0 : i32
    %c0_i32_1 = arith.constant 0 : i32
    return %arg0, %c0_i32, %c0_i32_0 : i32, i32, i32
  }
}

module attributes {stable_mosaic.version = 11 : i64} {
  func.func @_linear_kernel(%arg0: i32, %arg1: i32, %arg2: i32, %arg3: memref<16x256xbf16, #tpu.memory_space<vmem>>, %arg4: memref<256x128xbf16, #tpu.memory_space<vmem>>, %arg5: memref<1x128xf32, #tpu.memory_space<vmem>>, %arg6: memref<16x128xbf16, #tpu.memory_space<vmem>>, %arg7: memref<1x128xf32, #tpu.memory_space<vmem>>, %arg8: memref<1x128xf32, #tpu.memory_space<vmem>>, %arg9: memref<16x128xbf16, #tpu.memory_space<vmem>>, %arg10: memref<16x128xf32, #tpu.memory_space<vmem>>) attributes {dimension_semantics = [#tpu.dimension_semantics<parallel>, #tpu.dimension_semantics<parallel>, #tpu.dimension_semantics<arbitrary>], iteration_bounds = array<i64: 1, 1, 1>, scalar_prefetch = 0 : i64, scratch_operands = 1 : i64, tpu.core_type = #tpu.core_type<tc>, window_params = [{transform_indices = @transform_0, window_bounds = array<i64: 16, 256>}, {transform_indices = @transform_1, window_bounds = array<i64: 256, 128>}, {transform_indices = @transform_2, window_bounds = array<i64: 1, 128>}, {transform_indices = @transform_3, window_bounds = array<i64: 16, 128>}, {transform_indices = @transform_4, window_bounds = array<i64: 1, 128>}, {transform_indices = @transform_5, window_bounds = array<i64: 1, 128>}, {transform_indices = @transform_6, window_bounds = array<i64: 16, 128>}]} {
    %c0_i32 = arith.constant 0 : i32
    %0 = arith.cmpi eq, %arg2, %c0_i32 : i32
    %1 = arith.extui %0 : i1 to i32
    %c0_i32_0 = arith.constant 0 : i32
    %2 = arith.cmpi ne, %1, %c0_i32_0 : i32
    scf.if %2 {
      %cst_10 = arith.constant 0.000000e+00 : f32
      %12 = vector.broadcast %cst_10 : f32 to vector<16x128xf32>
      %c0_11 = arith.constant 0 : index
      %c0_12 = arith.constant 0 : index
      %13 = vector.load %arg10[%c0_11, %c0_12] : memref<16x128xf32, #tpu.memory_space<vmem>>, vector<16x128xf32>
      tpu.vector_store %arg10[%c0_11, %c0_12], %12 {strides = array<i32>} : memref<16x128xf32, #tpu.memory_space<vmem>>, vector<16x128xf32>,
    } else {
    }
    %c0 = arith.constant 0 : index
    %c0_1 = arith.constant 0 : index
    %3 = vector.load %arg10[%c0, %c0_1] : memref<16x128xf32, #tpu.memory_space<vmem>>, vector<16x128xf32>
    %c0_2 = arith.constant 0 : index
    %c0_3 = arith.constant 0 : index
    %4 = vector.load %arg3[%c0_2, %c0_3] : memref<16x256xbf16, #tpu.memory_space<vmem>>, vector<16x256xbf16>
    %c0_4 = arith.constant 0 : index
    %c0_5 = arith.constant 0 : index
    %5 = vector.load %arg4[%c0_4, %c0_5] : memref<256x128xbf16, #tpu.memory_space<vmem>>, vector<256x128xbf16>
    %cst = arith.constant dense<0.000000e+00> : vector<16x128xf32>
    %6 = tpu.matmul %4, %5, %cst {dimension_numbers = #tpu.dot_dimension_numbers<[1], [0], [0], [1], [0, 0, 1, 1], [], []>} : vector<16x256xbf16>, vector<256x128xbf16>, vector<16x128xf32> -> vector<16x128xf32>
    %7 = arith.addf %3, %6 : vector<16x128xf32>
    %c0_6 = arith.constant 0 : index
    %c0_7 = arith.constant 0 : index
    %8 = vector.load %arg10[%c0_6, %c0_7] : memref<16x128xf32, #tpu.memory_space<vmem>>, vector<16x128xf32>
    tpu.vector_store %arg10[%c0_6, %c0_7], %7 {strides = array<i32>} : memref<16x128xf32, #tpu.memory_space<vmem>>, vector<16x128xf32>,
    %c0_i32_8 = arith.constant 0 : i32
    %9 = arith.cmpi eq, %arg2, %c0_i32_8 : i32
    %10 = arith.extui %9 : i1 to i32
    %c0_i32_9 = arith.constant 0 : i32
    %11 = arith.cmpi ne, %10, %c0_i32_9 : i32
    scf.if %11 {
      %c0_10 = arith.constant 0 : index
      %c0_11 = arith.constant 0 : index
      %12 = vector.load %arg10[%c0_10, %c0_11] : memref<16x128xf32, #tpu.memory_space<vmem>>, vector<16x128xf32>
      %c0_12 = arith.constant 0 : index
      %c0_13 = arith.constant 0 : index
      %13 = vector.load %arg5[%c0_12, %c0_13] : memref<1x128xf32, #tpu.memory_space<vmem>>, vector<1x128xf32>
      %14 = vector.broadcast %13 : vector<1x128xf32> to vector<16x128xf32>
      %15 = arith.addf %12, %14 : vector<16x128xf32>
      %c0_14 = arith.constant 0 : index
      %c0_15 = arith.constant 0 : index
      %16 = vector.load %arg6[%c0_14, %c0_15] : memref<16x128xbf16, #tpu.memory_space<vmem>>, vector<16x128xbf16>
      %17 = arith.extf %16 : vector<16x128xbf16> to vector<16x128xf32>
      %18 = arith.addf %15, %17 : vector<16x128xf32>
      %cst_16 = arith.constant dense<0.000000e+00> : vector<16xf32>
      %19 = vector.multi_reduction <add>, %18, %cst_16 [1] : vector<16x128xf32> to vector<16xf32>
      %20 = vector.shape_cast %19 : vector<16xf32> to vector<16x1xf32>
      %cst_17 = arith.constant 1.280000e+02 : f32
      %21 = vector.broadcast %cst_17 : f32 to vector<16x1xf32>
      %22 = arith.divf %20, %21 : vector<16x1xf32>
      %23 = vector.broadcast %22 : vector<16x1xf32> to vector<16x128xf32>
      %24 = arith.subf %18, %23 : vector<16x128xf32>
      %25 = arith.mulf %24, %24 : vector<16x128xf32>
      %cst_18 = arith.constant dense<0.000000e+00> : vector<16xf32>
      %26 = vector.multi_reduction <add>, %25, %cst_18 [1] : vector<16x128xf32> to vector<16xf32>
      %27 = vector.shape_cast %26 : vector<16xf32> to vector<16x1xf32>
      %cst_19 = arith.constant 1.280000e+02 : f32
      %28 = vector.broadcast %cst_19 : f32 to vector<16x1xf32>
      %29 = arith.divf %27, %28 : vector<16x1xf32>
      %30 = vector.broadcast %22 : vector<16x1xf32> to vector<16x128xf32>
      %31 = arith.subf %18, %30 : vector<16x128xf32>
      %cst_20 = arith.constant 9.99999974E-6 : f32
      %32 = vector.broadcast %cst_20 : f32 to vector<16x1xf32>
      %33 = arith.addf %29, %32 : vector<16x1xf32>
      %34 = math.rsqrt %33 : vector<16x1xf32>
      %35 = vector.broadcast %34 : vector<16x1xf32> to vector<16x128xf32>
      %36 = arith.mulf %31, %35 : vector<16x128xf32>
      %c0_21 = arith.constant 0 : index
      %c0_22 = arith.constant 0 : index
      %37 = vector.load %arg7[%c0_21, %c0_22] : memref<1x128xf32, #tpu.memory_space<vmem>>, vector<1x128xf32>
      %38 = vector.broadcast %37 : vector<1x128xf32> to vector<16x128xf32>
      %39 = arith.mulf %36, %38 : vector<16x128xf32>
      %c0_23 = arith.constant 0 : index
      %c0_24 = arith.constant 0 : index
      %40 = vector.load %arg8[%c0_23, %c0_24] : memref<1x128xf32, #tpu.memory_space<vmem>>, vector<1x128xf32>
      %41 = vector.broadcast %40 : vector<1x128xf32> to vector<16x128xf32>
      %42 = arith.addf %39, %41 : vector<16x128xf32>
      %43 = arith.truncf %42 : vector<16x128xf32> to vector<16x128xbf16>
      %c0_25 = arith.constant 0 : index
      %c0_26 = arith.constant 0 : index
      %44 = vector.load %arg9[%c0_25, %c0_26] : memref<16x128xbf16, #tpu.memory_space<vmem>>, vector<16x128xbf16>
      tpu.vector_store %arg9[%c0_25, %c0_26], %43 {strides = array<i32>} : memref<16x128xbf16, #tpu.memory_space<vmem>>, vector<16x128xbf16>,
    } else {
    }
    return
  }
  func.func @transform_0(%arg0: i32, %arg1: i32, %arg2: i32) -> (i32, i32) {
    %c0_i32 = arith.constant 0 : i32
    return %arg0, %arg2 : i32, i32
  }
  func.func @transform_1(%arg0: i32, %arg1: i32, %arg2: i32) -> (i32, i32) {
    %c0_i32 = arith.constant 0 : i32
    return %arg2, %arg1 : i32, i32
  }
  func.func @transform_2(%arg0: i32, %arg1: i32, %arg2: i32) -> (i32, i32) {
    %c0_i32 = arith.constant 0 : i32
    %c0_i32_0 = arith.constant 0 : i32
    return %c0_i32, %arg1 : i32, i32
  }
  func.func @transform_3(%arg0: i32, %arg1: i32, %arg2: i32) -> (i32, i32) {
    %c0_i32 = arith.constant 0 : i32
    return %arg0, %arg1 : i32, i32
  }
  func.func @transform_4(%arg0: i32, %arg1: i32, %arg2: i32) -> (i32, i32) {
    %c0_i32 = arith.constant 0 : i32
    %c0_i32_0 = arith.constant 0 : i32
    return %c0_i32, %arg1 : i32, i32
  }
  func.func @transform_5(%arg0: i32, %arg1: i32, %arg2: i32) -> (i32, i32) {
    %c0_i32 = arith.constant 0 : i32
    %c0_i32_0 = arith.constant 0 : i32
    return %c0_i32, %arg1 : i32, i32
  }
  func.func @transform_6(%arg0: i32, %arg1: i32, %arg2: i32) -> (i32, i32) {
    %c0_i32 = arith.constant 0 : i32
    return %arg0, %arg1 : i32, i32
  }
}

module attributes {stable_mosaic.version = 11 : i64} {
  func.func @_linear_kernel(%arg0: i32, %arg1: i32, %arg2: i32, %arg3: memref<16x128xbf16, #tpu.memory_space<vmem>>, %arg4: memref<128x256xbf16, #tpu.memory_space<vmem>>, %arg5: memref<1x256xf32, #tpu.memory_space<vmem>>, %arg6: memref<16x256xbf16, #tpu.memory_space<vmem>>, %arg7: memref<16x256xf32, #tpu.memory_space<vmem>>) attributes {dimension_semantics = [#tpu.dimension_semantics<parallel>, #tpu.dimension_semantics<parallel>, #tpu.dimension_semantics<arbitrary>], iteration_bounds = array<i64: 1, 1, 1>, scalar_prefetch = 0 : i64, scratch_operands = 1 : i64, tpu.core_type = #tpu.core_type<tc>, window_params = [{transform_indices = @transform_0, window_bounds = array<i64: 16, 128>}, {transform_indices = @transform_1, window_bounds = array<i64: 128, 256>}, {transform_indices = @transform_2, window_bounds = array<i64: 1, 256>}, {transform_indices = @transform_3, window_bounds = array<i64: 16, 256>}]} {
    %c0_i32 = arith.constant 0 : i32
    %0 = arith.cmpi eq, %arg2, %c0_i32 : i32
    %1 = arith.extui %0 : i1 to i32
    %c0_i32_0 = arith.constant 0 : i32
    %2 = arith.cmpi ne, %1, %c0_i32_0 : i32
    scf.if %2 {
      %cst_10 = arith.constant 0.000000e+00 : f32
      %12 = vector.broadcast %cst_10 : f32 to vector<16x256xf32>
      %c0_11 = arith.constant 0 : index
      %c0_12 = arith.constant 0 : index
      %13 = vector.load %arg7[%c0_11, %c0_12] : memref<16x256xf32, #tpu.memory_space<vmem>>, vector<16x256xf32>
      tpu.vector_store %arg7[%c0_11, %c0_12], %12 {strides = array<i32>} : memref<16x256xf32, #tpu.memory_space<vmem>>, vector<16x256xf32>,
    } else {
    }
    %c0 = arith.constant 0 : index
    %c0_1 = arith.constant 0 : index
    %3 = vector.load %arg7[%c0, %c0_1] : memref<16x256xf32, #tpu.memory_space<vmem>>, vector<16x256xf32>
    %c0_2 = arith.constant 0 : index
    %c0_3 = arith.constant 0 : index
    %4 = vector.load %arg3[%c0_2, %c0_3] : memref<16x128xbf16, #tpu.memory_space<vmem>>, vector<16x128xbf16>
    %c0_4 = arith.constant 0 : index
    %c0_5 = arith.constant 0 : index
    %5 = vector.load %arg4[%c0_4, %c0_5] : memref<128x256xbf16, #tpu.memory_space<vmem>>, vector<128x256xbf16>
    %cst = arith.constant dense<0.000000e+00> : vector<16x256xf32>
    %6 = tpu.matmul %4, %5, %cst {dimension_numbers = #tpu.dot_dimension_numbers<[1], [0], [0], [1], [0, 0, 1, 1], [], []>} : vector<16x128xbf16>, vector<128x256xbf16>, vector<16x256xf32> -> vector<16x256xf32>
    %7 = arith.addf %3, %6 : vector<16x256xf32>
    %c0_6 = arith.constant 0 : index
    %c0_7 = arith.constant 0 : index
    %8 = vector.load %arg7[%c0_6, %c0_7] : memref<16x256xf32, #tpu.memory_space<vmem>>, vector<16x256xf32>
    tpu.vector_store %arg7[%c0_6, %c0_7], %7 {strides = array<i32>} : memref<16x256xf32, #tpu.memory_space<vmem>>, vector<16x256xf32>,
    %c0_i32_8 = arith.constant 0 : i32
    %9 = arith.cmpi eq, %arg2, %c0_i32_8 : i32
    %10 = arith.extui %9 : i1 to i32
    %c0_i32_9 = arith.constant 0 : i32
    %11 = arith.cmpi ne, %10, %c0_i32_9 : i32
    scf.if %11 {
      %c0_10 = arith.constant 0 : index
      %c0_11 = arith.constant 0 : index
      %12 = vector.load %arg7[%c0_10, %c0_11] : memref<16x256xf32, #tpu.memory_space<vmem>>, vector<16x256xf32>
      %c0_12 = arith.constant 0 : index
      %c0_13 = arith.constant 0 : index
      %13 = vector.load %arg5[%c0_12, %c0_13] : memref<1x256xf32, #tpu.memory_space<vmem>>, vector<1x256xf32>
      %14 = vector.broadcast %13 : vector<1x256xf32> to vector<16x256xf32>
      %15 = arith.addf %12, %14 : vector<16x256xf32>
      %16 = arith.mulf %15, %15 : vector<16x256xf32>
      %17 = arith.mulf %15, %16 : vector<16x256xf32>
      %cst_14 = arith.constant 4.471500e-02 : f32
      %18 = vector.broadcast %cst_14 : f32 to vector<16x256xf32>
      %19 = arith.mulf %18, %17 : vector<16x256xf32>
      %20 = arith.addf %15, %19 : vector<16x256xf32>
      %cst_15 = arith.constant 0.797884583 : f32
      %21 = vector.broadcast %cst_15 : f32 to vector<16x256xf32>
      %22 = arith.mulf %21, %20 : vector<16x256xf32>
      %23 = math.tanh %22 : vector<16x256xf32>
      %cst_16 = arith.constant 1.000000e+00 : f32
      %24 = vector.broadcast %cst_16 : f32 to vector<16x256xf32>
      %25 = arith.addf %24, %23 : vector<16x256xf32>
      %cst_17 = arith.constant 5.000000e-01 : f32
      %26 = vector.broadcast %cst_17 : f32 to vector<16x256xf32>
      %27 = arith.mulf %26, %25 : vector<16x256xf32>
      %28 = arith.mulf %15, %27 : vector<16x256xf32>
      %29 = arith.truncf %28 : vector<16x256xf32> to vector<16x256xbf16>
      %c0_18 = arith.constant 0 : index
      %c0_19 = arith.constant 0 : index
      %30 = vector.load %arg6[%c0_18, %c0_19] : memref<16x256xbf16, #tpu.memory_space<vmem>>, vector<16x256xbf16>
      tpu.vector_store %arg6[%c0_18, %c0_19], %29 {strides = array<i32>} : memref<16x256xbf16, #tpu.memory_space<vmem>>, vector<16x256xbf16>,
    } else {
    }
    return
  }
  func.func @transform_0(%arg0: i32, %arg1: i32, %arg2: i32) -> (i32, i32) {
    %c0_i32 = arith.constant 0 : i32
    return %arg0, %arg2 : i32, i32
  }
  func.func @transform_1(%arg0: i32, %arg1: i32, %arg2: i32) -> (i32, i32) {
    %c0_i32 = arith.constant 0 : i32
    return %arg2, %arg1 : i32, i32
  }
  func.func @transform_2(%arg0: i32, %arg1: i32, %arg2: i32) -> (i32, i32) {
    %c0_i32 = arith.constant 0 : i32
    %c0_i32_0 = arith.constant 0 : i32
    return %c0_i32, %arg1 : i32, i32
  }
  func.func @transform_3(%arg0: i32, %arg1: i32, %arg2: i32) -> (i32, i32) {
    %c0_i32 = arith.constant 0 : i32
    return %arg0, %arg1 : i32, i32
  }
}

module attributes {stable_mosaic.version = 11 : i64} {
  func.func @_linear_kernel(%arg0: i32, %arg1: i32, %arg2: i32, %arg3: memref<16x128xbf16, #tpu.memory_space<vmem>>, %arg4: memref<128x256xbf16, #tpu.memory_space<vmem>>, %arg5: memref<1x256xf32, #tpu.memory_space<vmem>>, %arg6: memref<16x256xf32, #tpu.memory_space<vmem>>, %arg7: memref<16x256xf32, #tpu.memory_space<vmem>>) attributes {dimension_semantics = [#tpu.dimension_semantics<parallel>, #tpu.dimension_semantics<parallel>, #tpu.dimension_semantics<arbitrary>], iteration_bounds = array<i64: 1, 1, 1>, scalar_prefetch = 0 : i64, scratch_operands = 1 : i64, tpu.core_type = #tpu.core_type<tc>, window_params = [{transform_indices = @transform_0, window_bounds = array<i64: 16, 128>}, {transform_indices = @transform_1, window_bounds = array<i64: 128, 256>}, {transform_indices = @transform_2, window_bounds = array<i64: 1, 256>}, {transform_indices = @transform_3, window_bounds = array<i64: 16, 256>}]} {
    %c0_i32 = arith.constant 0 : i32
    %0 = arith.cmpi eq, %arg2, %c0_i32 : i32
    %1 = arith.extui %0 : i1 to i32
    %c0_i32_0 = arith.constant 0 : i32
    %2 = arith.cmpi ne, %1, %c0_i32_0 : i32
    scf.if %2 {
      %cst_10 = arith.constant 0.000000e+00 : f32
      %12 = vector.broadcast %cst_10 : f32 to vector<16x256xf32>
      %c0_11 = arith.constant 0 : index
      %c0_12 = arith.constant 0 : index
      %13 = vector.load %arg7[%c0_11, %c0_12] : memref<16x256xf32, #tpu.memory_space<vmem>>, vector<16x256xf32>
      tpu.vector_store %arg7[%c0_11, %c0_12], %12 {strides = array<i32>} : memref<16x256xf32, #tpu.memory_space<vmem>>, vector<16x256xf32>,
    } else {
    }
    %c0 = arith.constant 0 : index
    %c0_1 = arith.constant 0 : index
    %3 = vector.load %arg7[%c0, %c0_1] : memref<16x256xf32, #tpu.memory_space<vmem>>, vector<16x256xf32>
    %c0_2 = arith.constant 0 : index
    %c0_3 = arith.constant 0 : index
    %4 = vector.load %arg3[%c0_2, %c0_3] : memref<16x128xbf16, #tpu.memory_space<vmem>>, vector<16x128xbf16>
    %c0_4 = arith.constant 0 : index
    %c0_5 = arith.constant 0 : index
    %5 = vector.load %arg4[%c0_4, %c0_5] : memref<128x256xbf16, #tpu.memory_space<vmem>>, vector<128x256xbf16>
    %cst = arith.constant dense<0.000000e+00> : vector<16x256xf32>
    %6 = tpu.matmul %4, %5, %cst {dimension_numbers = #tpu.dot_dimension_numbers<[1], [0], [0], [1], [0, 0, 1, 1], [], []>} : vector<16x128xbf16>, vector<128x256xbf16>, vector<16x256xf32> -> vector<16x256xf32>
    %7 = arith.addf %3, %6 : vector<16x256xf32>
    %c0_6 = arith.constant 0 : index
    %c0_7 = arith.constant 0 : index
    %8 = vector.load %arg7[%c0_6, %c0_7] : memref<16x256xf32, #tpu.memory_space<vmem>>, vector<16x256xf32>
    tpu.vector_store %arg7[%c0_6, %c0_7], %7 {strides = array<i32>} : memref<16x256xf32, #tpu.memory_space<vmem>>, vector<16x256xf32>,
    %c0_i32_8 = arith.constant 0 : i32
    %9 = arith.cmpi eq, %arg2, %c0_i32_8 : i32
    %10 = arith.extui %9 : i1 to i32
    %c0_i32_9 = arith.constant 0 : i32
    %11 = arith.cmpi ne, %10, %c0_i32_9 : i32
    scf.if %11 {
      %c0_10 = arith.constant 0 : index
      %c0_11 = arith.constant 0 : index
      %12 = vector.load %arg7[%c0_10, %c0_11] : memref<16x256xf32, #tpu.memory_space<vmem>>, vector<16x256xf32>
      %c0_12 = arith.constant 0 : index
      %c0_13 = arith.constant 0 : index
      %13 = vector.load %arg5[%c0_12, %c0_13] : memref<1x256xf32, #tpu.memory_space<vmem>>, vector<1x256xf32>
      %14 = vector.broadcast %13 : vector<1x256xf32> to vector<16x256xf32>
      %15 = arith.addf %12, %14 : vector<16x256xf32>
      %c0_14 = arith.constant 0 : index
      %c0_15 = arith.constant 0 : index
      %16 = vector.load %arg6[%c0_14, %c0_15] : memref<16x256xf32, #tpu.memory_space<vmem>>, vector<16x256xf32>
      tpu.vector_store %arg6[%c0_14, %c0_15], %15 {strides = array<i32>} : memref<16x256xf32, #tpu.memory_space<vmem>>, vector<16x256xf32>,
    } else {
    }
    return
  }
  func.func @transform_0(%arg0: i32, %arg1: i32, %arg2: i32) -> (i32, i32) {
    %c0_i32 = arith.constant 0 : i32
    return %arg0, %arg2 : i32, i32
  }
  func.func @transform_1(%arg0: i32, %arg1: i32, %arg2: i32) -> (i32, i32) {
    %c0_i32 = arith.constant 0 : i32
    return %arg2, %arg1 : i32, i32
  }
  func.func @transform_2(%arg0: i32, %arg1: i32, %arg2: i32) -> (i32, i32) {
    %c0_i32 = arith.constant 0 : i32
    %c0_i32_0 = arith.constant 0 : i32
    return %c0_i32, %arg1 : i32, i32
  }
  func.func @transform_3(%arg0: i32, %arg1: i32, %arg2: i32) -> (i32, i32) {
    %c0_i32 = arith.constant 0 : i32
    return %arg0, %arg1 : i32, i32
  }
}

</mosaic_0001>

<llo_original>
// kernel: _lambda_.14
$region0: #{_lambda_.14}
  #allocation0 [shape = 'u32[]', space=smem, size = 0x4, offset = 0x4, fixed_abs, tag = 'smem constant byte address 0x4 - core index']
  #allocation1 [shape = 'u32[72,128]{1,0:T(1,128)}', space=vmem, size = 0x9000, scoped, tag = 'internal scratch']
  #allocation2 [shape = 'f32[16,256]{1,0:T(8,128)}', space=vmem, size = 0x4000, scoped, tag = 'scratch operand']
  %s0 = inlined_call_operand.vmem [shape: bf16[32,128], index: 0, kind: input, shape index: {}]
  %s1 = inlined_call_operand.hbm [shape: bf16[128,256], index: 1, kind: input, shape index: {}]
  %s2 = inlined_call_operand.vmem [shape: f32[1,256], index: 2, kind: input, shape index: {}]
  %s3 = inlined_call_operand.vmem [shape: bf16[32,256], index: 3, kind: output, shape index: {}]
  %s4 = sld [smem:[#allocation0]]
  $region57: #{_lambda_.14} parent=0
    _
  %s6 = ssub.s32 1, %s4
  %s7 = scalar_select 0, %s6, %s4
  $region1: #{_lambda_.14} parent=0
    #allocation3 [shape = 'u8[65536]{0}', space=vmem, size = 0x10000, scoped, tag = 'input window, operand 1, single buffered']
    #allocation4 [shape = 's32[2]{0}', space=sflag, size = 0x8, scoped, tag = 'scoped memory for _lambda_.14']
    %8 = vsyncpa [#allocation4], 0
    loop: start=0, step=1, limit=4
    $region2: #{_lambda_.14} parent=1 // loop_pre_header
      _
    $region3: #{_lambda_.14} parent=1 // loop_header
      %s10 = sphi 0, %s14
      %p11 = scmp.ge.s32.totalorder %s10, 4
      %s17 = sphi 0, %s36
      %s18 = sphi 0, %s32
      %s19 = sphi 0, %s28
      %s20 = sphi 0, %s17
      %s21 = sphi 0, %s18
      %s22 = sphi 0, %s19
      %s23 = sphi 0, %s20
      %s24 = sphi 0, %s21
      %s25 = sphi 0, %s22
      %s41 = sphi 0, %s43
      %s44 = sphi 0, %s41
      %s45 = sphi 0, %s44
      %s61 = sphi 0, %s45
      %s69 = sphi 0, %s71
      %s72 = sphi 0, %s69
      %s73 = sphi 0, %s72
      %s89 = sphi 0, %s73
      %s95 = sphi 0, %s97
      %s98 = sphi 0, %s95
      %s99 = sphi 0, %s98
      %s115 = sphi 0, %s99
      %s123 = sphi 0, %s125
      %s126 = sphi 0, %s123
      %s127 = sphi 0, %s126
      %s143 = sphi 0, %s127
    $region4: #{_lambda_.14} parent=1 // loop_header_branch
      %13 = sbr.rel (%p11) target = $region8
    $region5: #{_lambda_.14} parent=1 // loop_body
      %s15 = ssub.s32 %s10, 1
      %s16 = ssub.s32 %s10, 2
      %s26 = sadd.s32 1, %s19
      %p27 = scmp.ge.s32.totalorder %s26, 1
      %s28 = scalar_select %p27, 0, %s26
      %s29 = sadd.s32 1, %s18
      %s30 = scalar_select %p27, %s29, %s18
      %p31 = scmp.ge.s32.totalorder %s30, 1
      %s32 = scalar_select %p31, 0, %s30
      %s33 = sadd.s32 1, %s17
      %s34 = scalar_select %p31, %s33, %s17
      %p35 = scmp.ge.s32.totalorder %s34, 2
      %s36 = scalar_select %p35, 0, %s34
      %s37 = ssub.s32 %s17, %s36
      %s38 = ssub.s32 %s19, %s28
      %s39 = sor.u32 %s37, %s38
      %p40 = scmp.eq.s32.totalorder %s39, 0
      %s42 = sadd.s32 %s41, 1
      %s43 = scalar_select %p40, %s41, %s42
      %p46 = pneg %p40
      %p47 = scmp.eq.s32.totalorder %s10, 1
      %p48 = por %p46, %p47
      %p49 = scmp.ne.s32.totalorder %s41, %s44
      %p50 = scmp.eq.s32.totalorder %s10, 0
      %p51 = por %p49, %p50
      %p52 = scmp.ne.s32.totalorder %s41, %s44
      %p53 = scmp.eq.s32.totalorder %s15, 1
      %p54 = por %p52, %p53
      %p55 = scmp.ne.s32.totalorder %s44, %s45
      %p56 = scmp.eq.s32.totalorder %s15, 0
      %p57 = por %p55, %p56
      %p58 = scmp.ne.s32.totalorder %s44, %s45
      %p59 = scmp.eq.s32.totalorder %s16, 1
      %p60 = por %p58, %p59
      %p62 = scmp.ne.s32.totalorder %s45, %s61
      %p63 = scmp.eq.s32.totalorder %s16, 0
      %p64 = por %p62, %p63
      %s65 = ssub.s32 %s19, %s28
      %s66 = ssub.s32 %s18, %s32
      %s67 = sor.u32 %s65, %s66
      %p68 = scmp.eq.s32.totalorder %s67, 0
      %s70 = sadd.s32 %s69, 1
      %s71 = scalar_select %p68, %s69, %s70
      %p74 = pneg %p68
      %p75 = scmp.eq.s32.totalorder %s10, 1
      %p76 = por %p74, %p75
      %p77 = scmp.ne.s32.totalorder %s69, %s72
      %p78 = scmp.eq.s32.totalorder %s10, 0
      %p79 = por %p77, %p78
      %p80 = scmp.ne.s32.totalorder %s69, %s72
      %p81 = scmp.eq.s32.totalorder %s15, 1
      %p82 = por %p80, %p81
      %p83 = scmp.ne.s32.totalorder %s72, %s73
      %p84 = scmp.eq.s32.totalorder %s15, 0
      %p85 = por %p83, %p84
      %p86 = scmp.ne.s32.totalorder %s72, %s73
      %p87 = scmp.eq.s32.totalorder %s16, 1
      %p88 = por %p86, %p87
      %p90 = scmp.ne.s32.totalorder %s73, %s89
      %p91 = scmp.eq.s32.totalorder %s16, 0
      %p92 = por %p90, %p91
      %s93 = ssub.s32 %s18, %s32
      %p94 = scmp.eq.s32.totalorder %s93, 0
      %s96 = sadd.s32 %s95, 1
      %s97 = scalar_select %p94, %s95, %s96
      %p100 = pneg %p94
      %p101 = scmp.eq.s32.totalorder %s10, 1
      %p102 = por %p100, %p101
      %p103 = scmp.ne.s32.totalorder %s95, %s98
      %p104 = scmp.eq.s32.totalorder %s10, 0
      %p105 = por %p103, %p104
      %p106 = scmp.ne.s32.totalorder %s95, %s98
      %p107 = scmp.eq.s32.totalorder %s15, 1
      %p108 = por %p106, %p107
      %p109 = scmp.ne.s32.totalorder %s98, %s99
      %p110 = scmp.eq.s32.totalorder %s15, 0
      %p111 = por %p109, %p110
      %p112 = scmp.ne.s32.totalorder %s98, %s99
      %p113 = scmp.eq.s32.totalorder %s16, 1
      %p114 = por %p112, %p113
      %p116 = scmp.ne.s32.totalorder %s99, %s115
      %p117 = scmp.eq.s32.totalorder %s16, 0
      %p118 = por %p116, %p117
      %s119 = ssub.s32 %s17, %s36
      %s120 = ssub.s32 %s18, %s32
      %s121 = sor.u32 %s119, %s120
      %p122 = scmp.eq.s32.totalorder %s121, 0
      %s124 = sadd.s32 %s123, 1
      %s125 = scalar_select %p122, %s123, %s124
      %p128 = pneg %p122
      %p129 = scmp.eq.s32.totalorder %s10, 1
      %p130 = por %p128, %p129
      %p131 = scmp.ne.s32.totalorder %s123, %s126
      %p132 = scmp.eq.s32.totalorder %s10, 0
      %p133 = por %p131, %p132
      %p134 = scmp.ne.s32.totalorder %s123, %s126
      %p135 = scmp.eq.s32.totalorder %s15, 1
      %p136 = por %p134, %p135
      %p137 = scmp.ne.s32.totalorder %s126, %s127
      %p138 = scmp.eq.s32.totalorder %s15, 0
      %p139 = por %p137, %p138
      %p140 = scmp.ne.s32.totalorder %s126, %s127
      %p141 = scmp.eq.s32.totalorder %s16, 1
      %p142 = por %p140, %p141
      %p144 = scmp.ne.s32.totalorder %s127, %s143
      %p145 = scmp.eq.s32.totalorder %s16, 0
      %p146 = por %p144, %p145
      %p147 = scmp.le.s32.totalorder 1, %s10
      %p148 = scmp.lt.s32.totalorder %s10, 3
      %p149 = pnand %p147, %p148
      %p150 = pneg %p149
      // Predicated region
      $region9: #{_lambda_.14} parent=5 // pred_check
        _
      $region10: #{_lambda_.14} parent=5 // pred_check_branch
        %152 = sbr.rel (%p149) target = $region12
      $region11: #{_lambda_.14} parent=5 // pred_region
        %s153 = ssub.s32 %s10, 1
        // Predicated region
        $region13: #{_lambda_.14} parent=11 // pred_check
          %p154 = pneg %p85
        $region14: #{_lambda_.14} parent=11 // pred_check_branch
          %156 = sbr.rel (%p154) target = $region16
        $region15: #{_lambda_.14} parent=11 // pred_region
          %s157 = smul.u32 16, %s22
          %s158 = smul.u32 2, %s21
          %160 = vsyncadd [#allocation4], 0
          %s161 = smul.addr %s157, 2
          %s162 = sadd.s32 %s158, %s161
          %s163 = smul.addr %s162, 4
          %s164 = scalar_lea.hbm %s1, %s163
          %s165 = sshll.u32 %s164, 4
          %s166 = int_to_ptr.hbm [resolvable:$true] %s165
          %s167 = sshll.u32 [#allocation3], 4
          %s168 = int_to_ptr.vmem [resolvable:$true] %s167
          %173 = dma.hbm_to_vmem [thread:$0]  %s166, 2048, %s168, [#allocation4], 128, 128, 8
        $region16: #{_lambda_.14} parent=11 // pred_fallthru
          _
        // Predicated region
        $region17: #{_lambda_.14} parent=11 // pred_check
          %p174 = pneg %p111
        $region18: #{_lambda_.14} parent=11 // pred_check_branch
          %176 = sbr.rel (%p174) target = $region20
        $region19: #{_lambda_.14} parent=11 // pred_region
          %s177 = smul.u32 2, %s21
          %p178 = scmp.lt.s32.totalorder %s177, 1
          %s179 = scalar_select %p178, %s177, 1
          %s180 = scalar_lea.vmem %s2, %s179
          %s181 = smul.u32 2, %s21
        $region20: #{_lambda_.14} parent=11 // pred_fallthru
          _
      $region12: #{_lambda_.14} parent=5 // pred_fallthru
        _
      %p182 = scmp.lt.s32.totalorder %s10, 2
      // Predicated region
      $region21: #{_lambda_.14} parent=5 // pred_check
        %p183 = pneg %p182
      $region22: #{_lambda_.14} parent=5 // pred_check_branch
        %185 = sbr.rel (%p183) target = $region24
      $region23: #{_lambda_.14} parent=5 // pred_region
        // Predicated region
        $region25: #{_lambda_.14} parent=23 // pred_check
          %p186 = pneg %p51
        $region26: #{_lambda_.14} parent=23 // pred_check_branch
          %188 = sbr.rel (%p186) target = $region28
        $region27: #{_lambda_.14} parent=23 // pred_region
          %s189 = smul.u32 2, %s17
          %p190 = scmp.lt.s32.totalorder %s189, 3
          %s191 = scalar_select %p190, %s189, 3
          %p192 = scmp.lt.s32.totalorder %s19, 0
          %s193 = scalar_select %p192, %s19, 0
          %s194 = sadd.s32 %s193, %s191
          %s195 = smul.addr %s194, 4
          %s196 = scalar_lea.vmem %s0, %s195
          %s197 = smul.u32 2, %s17
        $region28: #{_lambda_.14} parent=23 // pred_fallthru
          _
      $region24: #{_lambda_.14} parent=5 // pred_fallthru
        _
      %p198 = scmp.le.s32.totalorder 1, %s10
      %p199 = scmp.lt.s32.totalorder %s10, 3
      %p200 = pnand %p198, %p199
      %p201 = pneg %p200
      // Predicated region
      $region29: #{_lambda_.14} parent=5 // pred_check
        _
      $region30: #{_lambda_.14} parent=5 // pred_check_branch
        %203 = sbr.rel (%p200) target = $region32
      $region31: #{_lambda_.14} parent=5 // pred_region
        %s204 = ssub.s32 %s10, 1
        // Predicated region
        $region33: #{_lambda_.14} parent=31 // pred_check
          %p205 = pneg %p85
        $region34: #{_lambda_.14} parent=31 // pred_check_branch
          %207 = sbr.rel (%p205) target = $region36
        $region35: #{_lambda_.14} parent=31 // pred_region
          %209 = dma.done [#allocation4], 2048
        $region36: #{_lambda_.14} parent=31 // pred_fallthru
          _
        %s210 = smul.u32 2, %s20
        %p211 = scmp.lt.s32.totalorder %s210, 3
        %s212 = scalar_select %p211, %s210, 3
        %p213 = scmp.lt.s32.totalorder %s22, 0
        %s214 = scalar_select %p213, %s22, 0
        %s215 = sadd.s32 %s214, %s212
        %s216 = smul.addr %s215, 4
        %s217 = scalar_lea.vmem %s0, %s216
        %p218 = pneg %p57
        %p219 = pneg %p54
        %p220 = pneg %p85
        %p221 = pneg %p82
        %s222 = smul.u32 2, %s21
        %p223 = scmp.lt.s32.totalorder %s222, 1
        %s224 = scalar_select %p223, %s222, 1
        %s225 = scalar_lea.vmem %s2, %s224
        %p226 = pneg %p111
        %p227 = pneg %p108
        %p228 = pneg %p139
        %p229 = pneg %p136
        %s230 = smul.u32 2, %s20
        %s231 = smul.u32 2, %s21
        %p232 = scmp.lt.s32.totalorder %s230, 3
        %s233 = scalar_select %p232, %s230, 3
        %p234 = scmp.lt.s32.totalorder %s231, 1
        %s235 = scalar_select %p234, %s231, 1
        %s236 = smul.addr %s233, 2
        %s237 = sadd.s32 %s235, %s236
        %s238 = smul.addr %s237, 4
        %s239 = scalar_lea.vmem %s3, %s238
        %s240 = smul.u32 2, %s20
        %p241 = scmp.lt.s32.totalorder %s240, 3
        %s242 = scalar_select %p241, %s240, 3
        %p243 = scmp.lt.s32.totalorder %s22, 0
        %s244 = scalar_select %p243, %s22, 0
        %s245 = sadd.s32 %s244, %s242
        %s246 = smul.addr %s245, 4
        %s247 = scalar_lea.vmem %s0, %s246
        %s248 = smul.u32 2, %s20
        %s249 = smul.u32 16, %s22
        %s250 = smul.u32 2, %s21
        %s251 = smul.u32 2, %s21
        %p252 = scmp.lt.s32.totalorder %s251, 1
        %s253 = scalar_select %p252, %s251, 1
        %s254 = scalar_lea.vmem %s2, %s253
        %s255 = smul.u32 2, %s21
        %s256 = smul.u32 2, %s20
        %s257 = smul.u32 2, %s21
        %p258 = scmp.lt.s32.totalorder %s256, 3
        %s259 = scalar_select %p258, %s256, 3
        %p260 = scmp.lt.s32.totalorder %s257, 1
        %s261 = scalar_select %p260, %s257, 1
        %s262 = smul.addr %s259, 2
        %s263 = sadd.s32 %s261, %s262
        %s264 = smul.addr %s263, 4
        %s265 = scalar_lea.vmem %s3, %s264
        %s266 = smul.u32 2, %s20
        %s267 = smul.u32 2, %s21
        %p268 = scmp.eq.s32.totalorder %s22, 0
        // Predicated region
        $region37: #{_lambda_.14} parent=31 // pred_check
          %p269 = pneg %p268
        $region38: #{_lambda_.14} parent=31 // pred_check_branch
          %271 = sbr.rel (%p269) target = $region40
        $region39: #{_lambda_.14} parent=31 // pred_region
          %272 = vst [vmem:[#allocation2] sm:$0xff] 0.0
          %273 = vst [vmem:[#allocation2 + $0x8] sm:$0xff] 0.0
          %274 = vst [vmem:[#allocation2 + $0x10] sm:$0xff] 0.0
          %275 = vst [vmem:[#allocation2 + $0x18] sm:$0xff] 0.0
        $region40: #{_lambda_.14} parent=31 // pred_fallthru
          _
        %v276 = vld [vmem:[#allocation2] sm:$0xff]
        %v277 = vld [vmem:[#allocation2 + $0x8] sm:$0xff]
        %v278 = vld [vmem:[#allocation2 + $0x10] sm:$0xff]
        %v279 = vld [vmem:[#allocation2 + $0x18] sm:$0xff]
        %v280 = vld [vmem:[%s247] sm:$0xf]
        %v281 = vld [vmem:[%s247 + $0x4] sm:$0xf]
        %v282 = vld [vmem:[#allocation3] sm:$0xff]
        %v283 = vld [vmem:[#allocation3 + $0x8] sm:$0xff]
        %v284 = vld [vmem:[#allocation3 + $0x10] sm:$0xff]
        %v285 = vld [vmem:[#allocation3 + $0x18] sm:$0xff]
        %v286 = vld [vmem:[#allocation3 + $0x20] sm:$0xff]
        %v287 = vld [vmem:[#allocation3 + $0x28] sm:$0xff]
        %v288 = vld [vmem:[#allocation3 + $0x30] sm:$0xff]
        %v289 = vld [vmem:[#allocation3 + $0x38] sm:$0xff]
        %v290 = vld [vmem:[#allocation3 + $0x40] sm:$0xff]
        %v291 = vld [vmem:[#allocation3 + $0x48] sm:$0xff]
        %v292 = vld [vmem:[#allocation3 + $0x50] sm:$0xff]
        %v293 = vld [vmem:[#allocation3 + $0x58] sm:$0xff]
        %v294 = vld [vmem:[#allocation3 + $0x60] sm:$0xff]
        %v295 = vld [vmem:[#allocation3 + $0x68] sm:$0xff]
        %v296 = vld [vmem:[#allocation3 + $0x70] sm:$0xff]
        %v297 = vld [vmem:[#allocation3 + $0x78] sm:$0xff]
        %v300 = vunpack.c.l.b16 %v280
        %v301 = vunpack.c.l.b16 %v281
        %v302 = vpack.c.b16 %v301, %v300
        %v320 = vunpack.c.l.b16 %v282
        %v321 = vunpack.c.h.b16 %v282
        %v322 = vunpack.c.l.b16 %v283
        %v323 = vunpack.c.h.b16 %v283
        %v324 = vunpack.c.l.b16 %v284
        %v325 = vunpack.c.h.b16 %v284
        %v326 = vunpack.c.l.b16 %v285
        %v327 = vunpack.c.h.b16 %v285
        %v328 = vunpack.c.l.b16 %v286
        %v329 = vunpack.c.h.b16 %v286
        %v330 = vunpack.c.l.b16 %v287
        %v331 = vunpack.c.h.b16 %v287
        %v332 = vunpack.c.l.b16 %v288
        %v333 = vunpack.c.h.b16 %v288
        %v334 = vunpack.c.l.b16 %v289
        %v335 = vunpack.c.h.b16 %v289
        %v336 = vunpack.c.l.b16 %v290
        %v337 = vunpack.c.h.b16 %v290
        %v338 = vunpack.c.l.b16 %v291
        %v339 = vunpack.c.h.b16 %v291
        %v340 = vunpack.c.l.b16 %v292
        %v341 = vunpack.c.h.b16 %v292
        %v342 = vunpack.c.l.b16 %v293
        %v343 = vunpack.c.h.b16 %v293
        %v344 = vunpack.c.l.b16 %v294
        %v345 = vunpack.c.h.b16 %v294
        %v346 = vunpack.c.l.b16 %v295
        %v347 = vunpack.c.h.b16 %v295
        %v348 = vunpack.c.l.b16 %v296
        %v349 = vunpack.c.h.b16 %v296
        %v350 = vunpack.c.l.b16 %v297
        %v351 = vunpack.c.h.b16 %v297
        %v352 = vpack.c.b16 %v322, %v320
        %v353 = vpack.c.b16 %v323, %v321
        %v354 = vpack.c.b16 %v326, %v324
        %v355 = vpack.c.b16 %v327, %v325
        %v356 = vpack.c.b16 %v330, %v328
        %v357 = vpack.c.b16 %v331, %v329
        %v358 = vpack.c.b16 %v334, %v332
        %v359 = vpack.c.b16 %v335, %v333
        %v360 = vpack.c.b16 %v338, %v336
        %v361 = vpack.c.b16 %v339, %v337
        %v362 = vpack.c.b16 %v342, %v340
        %v363 = vpack.c.b16 %v343, %v341
        %v364 = vpack.c.b16 %v346, %v344
        %v365 = vpack.c.b16 %v347, %v345
        %v366 = vpack.c.b16 %v350, %v348
        %v367 = vpack.c.b16 %v351, %v349
        %384 = vmatpush.bf16.msra.mxu0 %v366
        %385 = vmatpush.bf16.msra.mxu0 %v364
        %386 = vmatpush.bf16.msra.mxu0 %v362
        %387 = vmatpush.bf16.msra.mxu0 %v360
        %388 = vmatpush.bf16.msra.mxu0 %v358
        %389 = vmatpush.bf16.msra.mxu0 %v356
        %390 = vmatpush.bf16.msra.mxu0 %v354
        %391 = vmatpush.bf16.msra.mxu0 %v352
        %392 = vmatmul.bf16.gmra.mxu0 %v302
        %v393 = vpop.f32.mrf.mxu0
        %v394 = vadd.f32 0.0, %v393
        %v395 = vpop.f32.mrf.mxu0
        %v396 = vadd.f32 0.0, %v395
        %397 = vdwg.mxu0
        %398 = vmatpush.bf16.msra.mxu0 %v367
        %399 = vmatpush.bf16.msra.mxu0 %v365
        %400 = vmatpush.bf16.msra.mxu0 %v363
        %401 = vmatpush.bf16.msra.mxu0 %v361
        %402 = vmatpush.bf16.msra.mxu0 %v359
        %403 = vmatpush.bf16.msra.mxu0 %v357
        %404 = vmatpush.bf16.msra.mxu0 %v355
        %405 = vmatpush.bf16.msra.mxu0 %v353
        %406 = vmatmul.bf16.gmra.mxu0 %v302
        %v407 = vpop.f32.mrf.mxu0
        %v408 = vadd.f32 0.0, %v407
        %v409 = vpop.f32.mrf.mxu0
        %v410 = vadd.f32 0.0, %v409
        %411 = vdwg.mxu0
        %v412 = vadd.f32 %v276, %v394
        %v413 = vadd.f32 %v277, %v408
        %v414 = vadd.f32 %v278, %v396
        %v415 = vadd.f32 %v279, %v410
        %416 = vst [vmem:[#allocation2] sm:$0xff] %v412
        %417 = vst [vmem:[#allocation2 + $0x8] sm:$0xff] %v413
        %418 = vst [vmem:[#allocation2 + $0x10] sm:$0xff] %v414
        %419 = vst [vmem:[#allocation2 + $0x18] sm:$0xff] %v415
        // Predicated region
        $region41: #{_lambda_.14} parent=31 // pred_check
          %p420 = pneg %p268
        $region42: #{_lambda_.14} parent=31 // pred_check_branch
          %422 = sbr.rel (%p420) target = $region44
        $region43: #{_lambda_.14} parent=31 // pred_region
          %v423 = vld [vmem:[#allocation2] sm:$0xff]
          %v424 = vld [vmem:[#allocation2 + $0x8] sm:$0xff]
          %v425 = vld [vmem:[#allocation2 + $0x10] sm:$0xff]
          %v426 = vld [vmem:[#allocation2 + $0x18] sm:$0xff]
          %v427 = vld [vmem:[%s254] sm:$0x3]
          %v429 = vperm.slane %v427, 0
          %v430 = vperm.slane %v427, 1
          %v433 = vadd.f32 %v423, %v429
          %v434 = vadd.f32 %v424, %v430
          %v435 = vadd.f32 %v425, %v429
          %v436 = vadd.f32 %v426, %v430
          %v437 = vmul.f32 %v433, %v433
          %v438 = vmul.f32 %v434, %v434
          %v439 = vmul.f32 %v435, %v435
          %v440 = vmul.f32 %v436, %v436
          %v441 = vmul.f32 %v433, %v437
          %v442 = vmul.f32 %v434, %v438
          %v443 = vmul.f32 %v435, %v439
          %v444 = vmul.f32 %v436, %v440
          %v445 = vmul.f32 %v441, 0.044715
          %v446 = vmul.f32 %v442, 0.044715
          %v447 = vmul.f32 %v443, 0.044715
          %v448 = vmul.f32 %v444, 0.044715
          %v449 = vadd.f32 %v433, %v445
          %v450 = vadd.f32 %v434, %v446
          %v451 = vadd.f32 %v435, %v447
          %v452 = vadd.f32 %v436, %v448
          %v453 = vmul.f32 %v449, 0.7978846
          %v454 = vmul.f32 %v450, 0.7978846
          %v455 = vmul.f32 %v451, 0.7978846
          %v456 = vmul.f32 %v452, 0.7978846
          %v457 = vtanh.pop %v453
          %v458 = vtanh.pop %v454
          %v459 = vtanh.pop %v455
          %v460 = vtanh.pop %v456
          %v461 = vadd.f32 %v457, 1.0
          %v462 = vadd.f32 %v458, 1.0
          %v463 = vadd.f32 %v459, 1.0
          %v464 = vadd.f32 %v460, 1.0
          %v465 = vmul.f32 %v461, 0.5
          %v466 = vmul.f32 %v462, 0.5
          %v467 = vmul.f32 %v463, 0.5
          %v468 = vmul.f32 %v464, 0.5
          %v469 = vmul.f32 %v433, %v465
          %v470 = vmul.f32 %v434, %v466
          %v471 = vmul.f32 %v435, %v467
          %v472 = vmul.f32 %v436, %v468
          %v473 = vpack.c.bf16 %v470, %v469
          %v474 = vpack.c.bf16 %v472, %v471
          %475 = vst [vmem:[%s265] sm:$0xff] %v473
          %476 = vst [vmem:[%s265 + $0x8] sm:$0xff] %v474
        $region44: #{_lambda_.14} parent=31 // pred_fallthru
          _
        %s477 = smul.u32 2, %s20
        %s478 = smul.u32 2, %s21
        %p479 = scmp.lt.s32.totalorder %s477, 3
        %s480 = scalar_select %p479, %s477, 3
        %p481 = scmp.lt.s32.totalorder %s478, 1
        %s482 = scalar_select %p481, %s478, 1
        %s483 = smul.addr %s480, 2
        %s484 = sadd.s32 %s482, %s483
        %s485 = smul.addr %s484, 4
        %s486 = scalar_lea.vmem %s3, %s485
        // Predicated region
        $region45: #{_lambda_.14} parent=31 // pred_check
          %p487 = pneg %p136
        $region46: #{_lambda_.14} parent=31 // pred_check_branch
          %489 = sbr.rel (%p487) target = $region48
        $region47: #{_lambda_.14} parent=31 // pred_region
          %s490 = smul.u32 2, %s20
          %s491 = smul.u32 2, %s21
        $region48: #{_lambda_.14} parent=31 // pred_fallthru
          _
      $region32: #{_lambda_.14} parent=5 // pred_fallthru
        _
      %p492 = scmp.le.s32.totalorder 2, %s10
      // Predicated region
      $region49: #{_lambda_.14} parent=5 // pred_check
        %p493 = pneg %p492
      $region50: #{_lambda_.14} parent=5 // pred_check_branch
        %495 = sbr.rel (%p493) target = $region52
      $region51: #{_lambda_.14} parent=5 // pred_region
        %s496 = ssub.s32 %s10, 2
        // Predicated region
        $region53: #{_lambda_.14} parent=51 // pred_check
          %p497 = pneg %p142
        $region54: #{_lambda_.14} parent=51 // pred_check_branch
          %499 = sbr.rel (%p497) target = $region56
        $region55: #{_lambda_.14} parent=51 // pred_region
          %s500 = smul.u32 2, %s23
          %s501 = smul.u32 2, %s24
          %p502 = scmp.lt.s32.totalorder %s500, 3
          %s503 = scalar_select %p502, %s500, 3
          %p504 = scmp.lt.s32.totalorder %s501, 1
          %s505 = scalar_select %p504, %s501, 1
          %s506 = smul.addr %s503, 2
          %s507 = sadd.s32 %s505, %s506
          %s508 = smul.addr %s507, 4
          %s509 = scalar_lea.vmem %s3, %s508
        $region56: #{_lambda_.14} parent=51 // pred_fallthru
          _
      $region52: #{_lambda_.14} parent=5 // pred_fallthru
        _
    $region6: #{_lambda_.14} parent=1 // loop_footer
      %s14 = sadd.s32 1, %s10
    $region7: #{_lambda_.14} parent=1 // loop_footer_branch
      %9 = sbr.rel target = $region3
    $region8: #{_lambda_.14} parent=1 // loop_exit
      _
    %510 = vsyncpa [#allocation4], 1
    %s511 = scalar_lea.sflag [#allocation4], 1
    %512 = vsyncpa %s511, 1

// kernel: _lambda_.12
$region0: #{_lambda_.12}
  #allocation0 [shape = 'u32[]', space=smem, size = 0x4, offset = 0x4, fixed_abs, tag = 'smem constant byte address 0x4 - core index']
  #allocation1 [shape = 'u32[72,128]{1,0:T(1,128)}', space=vmem, size = 0x9000, scoped, tag = 'internal scratch']
  #allocation2 [shape = 'f32[16,384]{1,0:T(8,128)}', space=vmem, size = 0x6000, scoped, tag = 'scratch operand']
  %s0 = inlined_call_operand.vmem [shape: bf16[32,128], index: 0, kind: input, shape index: {}]
  %s1 = inlined_call_operand.hbm [shape: bf16[128,384], index: 1, kind: input, shape index: {}]
  %s2 = inlined_call_operand.vmem [shape: f32[1,384], index: 2, kind: input, shape index: {}]
  %s3 = inlined_call_operand.vmem [shape: bf16[32,384], index: 3, kind: output, shape index: {}]
  %s4 = sld [smem:[#allocation0]]
  $region57: #{_lambda_.12} parent=0
    _
  %s6 = ssub.s32 1, %s4
  %s7 = scalar_select 0, %s6, %s4
  $region1: #{_lambda_.12} parent=0
    #allocation3 [shape = 'u8[98304]{0}', space=vmem, size = 0x18000, scoped, tag = 'input window, operand 1, single buffered']
    #allocation4 [shape = 's32[2]{0}', space=sflag, size = 0x8, scoped, tag = 'scoped memory for _lambda_.12']
    %8 = vsyncpa [#allocation4], 0
    loop: start=0, step=1, limit=4
    $region2: #{_lambda_.12} parent=1 // loop_pre_header
      _
    $region3: #{_lambda_.12} parent=1 // loop_header
      %s10 = sphi 0, %s14
      %p11 = scmp.ge.s32.totalorder %s10, 4
      %s17 = sphi 0, %s36
      %s18 = sphi 0, %s32
      %s19 = sphi 0, %s28
      %s20 = sphi 0, %s17
      %s21 = sphi 0, %s18
      %s22 = sphi 0, %s19
      %s23 = sphi 0, %s20
      %s24 = sphi 0, %s21
      %s25 = sphi 0, %s22
      %s41 = sphi 0, %s43
      %s44 = sphi 0, %s41
      %s45 = sphi 0, %s44
      %s61 = sphi 0, %s45
      %s69 = sphi 0, %s71
      %s72 = sphi 0, %s69
      %s73 = sphi 0, %s72
      %s89 = sphi 0, %s73
      %s95 = sphi 0, %s97
      %s98 = sphi 0, %s95
      %s99 = sphi 0, %s98
      %s115 = sphi 0, %s99
      %s123 = sphi 0, %s125
      %s126 = sphi 0, %s123
      %s127 = sphi 0, %s126
      %s143 = sphi 0, %s127
    $region4: #{_lambda_.12} parent=1 // loop_header_branch
      %13 = sbr.rel (%p11) target = $region8
    $region5: #{_lambda_.12} parent=1 // loop_body
      %s15 = ssub.s32 %s10, 1
      %s16 = ssub.s32 %s10, 2
      %s26 = sadd.s32 1, %s19
      %p27 = scmp.ge.s32.totalorder %s26, 1
      %s28 = scalar_select %p27, 0, %s26
      %s29 = sadd.s32 1, %s18
      %s30 = scalar_select %p27, %s29, %s18
      %p31 = scmp.ge.s32.totalorder %s30, 1
      %s32 = scalar_select %p31, 0, %s30
      %s33 = sadd.s32 1, %s17
      %s34 = scalar_select %p31, %s33, %s17
      %p35 = scmp.ge.s32.totalorder %s34, 2
      %s36 = scalar_select %p35, 0, %s34
      %s37 = ssub.s32 %s17, %s36
      %s38 = ssub.s32 %s19, %s28
      %s39 = sor.u32 %s37, %s38
      %p40 = scmp.eq.s32.totalorder %s39, 0
      %s42 = sadd.s32 %s41, 1
      %s43 = scalar_select %p40, %s41, %s42
      %p46 = pneg %p40
      %p47 = scmp.eq.s32.totalorder %s10, 1
      %p48 = por %p46, %p47
      %p49 = scmp.ne.s32.totalorder %s41, %s44
      %p50 = scmp.eq.s32.totalorder %s10, 0
      %p51 = por %p49, %p50
      %p52 = scmp.ne.s32.totalorder %s41, %s44
      %p53 = scmp.eq.s32.totalorder %s15, 1
      %p54 = por %p52, %p53
      %p55 = scmp.ne.s32.totalorder %s44, %s45
      %p56 = scmp.eq.s32.totalorder %s15, 0
      %p57 = por %p55, %p56
      %p58 = scmp.ne.s32.totalorder %s44, %s45
      %p59 = scmp.eq.s32.totalorder %s16, 1
      %p60 = por %p58, %p59
      %p62 = scmp.ne.s32.totalorder %s45, %s61
      %p63 = scmp.eq.s32.totalorder %s16, 0
      %p64 = por %p62, %p63
      %s65 = ssub.s32 %s19, %s28
      %s66 = ssub.s32 %s18, %s32
      %s67 = sor.u32 %s65, %s66
      %p68 = scmp.eq.s32.totalorder %s67, 0
      %s70 = sadd.s32 %s69, 1
      %s71 = scalar_select %p68, %s69, %s70
      %p74 = pneg %p68
      %p75 = scmp.eq.s32.totalorder %s10, 1
      %p76 = por %p74, %p75
      %p77 = scmp.ne.s32.totalorder %s69, %s72
      %p78 = scmp.eq.s32.totalorder %s10, 0
      %p79 = por %p77, %p78
      %p80 = scmp.ne.s32.totalorder %s69, %s72
      %p81 = scmp.eq.s32.totalorder %s15, 1
      %p82 = por %p80, %p81
      %p83 = scmp.ne.s32.totalorder %s72, %s73
      %p84 = scmp.eq.s32.totalorder %s15, 0
      %p85 = por %p83, %p84
      %p86 = scmp.ne.s32.totalorder %s72, %s73
      %p87 = scmp.eq.s32.totalorder %s16, 1
      %p88 = por %p86, %p87
      %p90 = scmp.ne.s32.totalorder %s73, %s89
      %p91 = scmp.eq.s32.totalorder %s16, 0
      %p92 = por %p90, %p91
      %s93 = ssub.s32 %s18, %s32
      %p94 = scmp.eq.s32.totalorder %s93, 0
      %s96 = sadd.s32 %s95, 1
      %s97 = scalar_select %p94, %s95, %s96
      %p100 = pneg %p94
      %p101 = scmp.eq.s32.totalorder %s10, 1
      %p102 = por %p100, %p101
      %p103 = scmp.ne.s32.totalorder %s95, %s98
      %p104 = scmp.eq.s32.totalorder %s10, 0
      %p105 = por %p103, %p104
      %p106 = scmp.ne.s32.totalorder %s95, %s98
      %p107 = scmp.eq.s32.totalorder %s15, 1
      %p108 = por %p106, %p107
      %p109 = scmp.ne.s32.totalorder %s98, %s99
      %p110 = scmp.eq.s32.totalorder %s15, 0
      %p111 = por %p109, %p110
      %p112 = scmp.ne.s32.totalorder %s98, %s99
      %p113 = scmp.eq.s32.totalorder %s16, 1
      %p114 = por %p112, %p113
      %p116 = scmp.ne.s32.totalorder %s99, %s115
      %p117 = scmp.eq.s32.totalorder %s16, 0
      %p118 = por %p116, %p117
      %s119 = ssub.s32 %s17, %s36
      %s120 = ssub.s32 %s18, %s32
      %s121 = sor.u32 %s119, %s120
      %p122 = scmp.eq.s32.totalorder %s121, 0
      %s124 = sadd.s32 %s123, 1
      %s125 = scalar_select %p122, %s123, %s124
      %p128 = pneg %p122
      %p129 = scmp.eq.s32.totalorder %s10, 1
      %p130 = por %p128, %p129
      %p131 = scmp.ne.s32.totalorder %s123, %s126
      %p132 = scmp.eq.s32.totalorder %s10, 0
      %p133 = por %p131, %p132
      %p134 = scmp.ne.s32.totalorder %s123, %s126
      %p135 = scmp.eq.s32.totalorder %s15, 1
      %p136 = por %p134, %p135
      %p137 = scmp.ne.s32.totalorder %s126, %s127
      %p138 = scmp.eq.s32.totalorder %s15, 0
      %p139 = por %p137, %p138
      %p140 = scmp.ne.s32.totalorder %s126, %s127
      %p141 = scmp.eq.s32.totalorder %s16, 1
      %p142 = por %p140, %p141
      %p144 = scmp.ne.s32.totalorder %s127, %s143
      %p145 = scmp.eq.s32.totalorder %s16, 0
      %p146 = por %p144, %p145
      %p147 = scmp.le.s32.totalorder 1, %s10
      %p148 = scmp.lt.s32.totalorder %s10, 3
      %p149 = pnand %p147, %p148
      %p150 = pneg %p149
      // Predicated region
      $region9: #{_lambda_.12} parent=5 // pred_check
        _
      $region10: #{_lambda_.12} parent=5 // pred_check_branch
        %152 = sbr.rel (%p149) target = $region12
      $region11: #{_lambda_.12} parent=5 // pred_region
        %s153 = ssub.s32 %s10, 1
        // Predicated region
        $region13: #{_lambda_.12} parent=11 // pred_check
          %p154 = pneg %p85
        $region14: #{_lambda_.12} parent=11 // pred_check_branch
          %156 = sbr.rel (%p154) target = $region16
        $region15: #{_lambda_.12} parent=11 // pred_region
          %s157 = smul.u32 16, %s22
          %s158 = smul.u32 3, %s21
          %160 = vsyncadd [#allocation4], 0
          %s161 = smul.addr %s157, 3
          %s162 = sadd.s32 %s158, %s161
          %s163 = smul.addr %s162, 4
          %s164 = scalar_lea.hbm %s1, %s163
          %s165 = sshll.u32 %s164, 4
          %s166 = int_to_ptr.hbm [resolvable:$true] %s165
          %s167 = sshll.u32 [#allocation3], 4
          %s168 = int_to_ptr.vmem [resolvable:$true] %s167
          %173 = dma.hbm_to_vmem [thread:$0]  %s166, 3072, %s168, [#allocation4], 192, 192, 12
        $region16: #{_lambda_.12} parent=11 // pred_fallthru
          _
        // Predicated region
        $region17: #{_lambda_.12} parent=11 // pred_check
          %p174 = pneg %p111
        $region18: #{_lambda_.12} parent=11 // pred_check_branch
          %176 = sbr.rel (%p174) target = $region20
        $region19: #{_lambda_.12} parent=11 // pred_region
          %s177 = smul.u32 3, %s21
          %p178 = scmp.lt.s32.totalorder %s177, 2
          %s179 = scalar_select %p178, %s177, 2
          %s180 = scalar_lea.vmem %s2, %s179
          %s181 = smul.u32 3, %s21
        $region20: #{_lambda_.12} parent=11 // pred_fallthru
          _
      $region12: #{_lambda_.12} parent=5 // pred_fallthru
        _
      %p182 = scmp.lt.s32.totalorder %s10, 2
      // Predicated region
      $region21: #{_lambda_.12} parent=5 // pred_check
        %p183 = pneg %p182
      $region22: #{_lambda_.12} parent=5 // pred_check_branch
        %185 = sbr.rel (%p183) target = $region24
      $region23: #{_lambda_.12} parent=5 // pred_region
        // Predicated region
        $region25: #{_lambda_.12} parent=23 // pred_check
          %p186 = pneg %p51
        $region26: #{_lambda_.12} parent=23 // pred_check_branch
          %188 = sbr.rel (%p186) target = $region28
        $region27: #{_lambda_.12} parent=23 // pred_region
          %s189 = smul.u32 2, %s17
          %p190 = scmp.lt.s32.totalorder %s189, 3
          %s191 = scalar_select %p190, %s189, 3
          %p192 = scmp.lt.s32.totalorder %s19, 0
          %s193 = scalar_select %p192, %s19, 0
          %s194 = sadd.s32 %s193, %s191
          %s195 = smul.addr %s194, 4
          %s196 = scalar_lea.vmem %s0, %s195
          %s197 = smul.u32 2, %s17
        $region28: #{_lambda_.12} parent=23 // pred_fallthru
          _
      $region24: #{_lambda_.12} parent=5 // pred_fallthru
        _
      %p198 = scmp.le.s32.totalorder 1, %s10
      %p199 = scmp.lt.s32.totalorder %s10, 3
      %p200 = pnand %p198, %p199
      %p201 = pneg %p200
      // Predicated region
      $region29: #{_lambda_.12} parent=5 // pred_check
        _
      $region30: #{_lambda_.12} parent=5 // pred_check_branch
        %203 = sbr.rel (%p200) target = $region32
      $region31: #{_lambda_.12} parent=5 // pred_region
        %s204 = ssub.s32 %s10, 1
        // Predicated region
        $region33: #{_lambda_.12} parent=31 // pred_check
          %p205 = pneg %p85
        $region34: #{_lambda_.12} parent=31 // pred_check_branch
          %207 = sbr.rel (%p205) target = $region36
        $region35: #{_lambda_.12} parent=31 // pred_region
          %209 = dma.done [#allocation4], 3072
        $region36: #{_lambda_.12} parent=31 // pred_fallthru
          _
        %s210 = smul.u32 2, %s20
        %p211 = scmp.lt.s32.totalorder %s210, 3
        %s212 = scalar_select %p211, %s210, 3
        %p213 = scmp.lt.s32.totalorder %s22, 0
        %s214 = scalar_select %p213, %s22, 0
        %s215 = sadd.s32 %s214, %s212
        %s216 = smul.addr %s215, 4
        %s217 = scalar_lea.vmem %s0, %s216
        %p218 = pneg %p57
        %p219 = pneg %p54
        %p220 = pneg %p85
        %p221 = pneg %p82
        %s222 = smul.u32 3, %s21
        %p223 = scmp.lt.s32.totalorder %s222, 2
        %s224 = scalar_select %p223, %s222, 2
        %s225 = scalar_lea.vmem %s2, %s224
        %p226 = pneg %p111
        %p227 = pneg %p108
        %p228 = pneg %p139
        %p229 = pneg %p136
        %s230 = smul.u32 2, %s20
        %s231 = smul.u32 3, %s21
        %p232 = scmp.lt.s32.totalorder %s230, 3
        %s233 = scalar_select %p232, %s230, 3
        %p234 = scmp.lt.s32.totalorder %s231, 2
        %s235 = scalar_select %p234, %s231, 2
        %s236 = smul.addr %s233, 3
        %s237 = sadd.s32 %s235, %s236
        %s238 = smul.addr %s237, 4
        %s239 = scalar_lea.vmem %s3, %s238
        %s240 = smul.u32 2, %s20
        %p241 = scmp.lt.s32.totalorder %s240, 3
        %s242 = scalar_select %p241, %s240, 3
        %p243 = scmp.lt.s32.totalorder %s22, 0
        %s244 = scalar_select %p243, %s22, 0
        %s245 = sadd.s32 %s244, %s242
        %s246 = smul.addr %s245, 4
        %s247 = scalar_lea.vmem %s0, %s246
        %s248 = smul.u32 2, %s20
        %s249 = smul.u32 16, %s22
        %s250 = smul.u32 3, %s21
        %s251 = smul.u32 3, %s21
        %p252 = scmp.lt.s32.totalorder %s251, 2
        %s253 = scalar_select %p252, %s251, 2
        %s254 = scalar_lea.vmem %s2, %s253
        %s255 = smul.u32 3, %s21
        %s256 = smul.u32 2, %s20
        %s257 = smul.u32 3, %s21
        %p258 = scmp.lt.s32.totalorder %s256, 3
        %s259 = scalar_select %p258, %s256, 3
        %p260 = scmp.lt.s32.totalorder %s257, 2
        %s261 = scalar_select %p260, %s257, 2
        %s262 = smul.addr %s259, 3
        %s263 = sadd.s32 %s261, %s262
        %s264 = smul.addr %s263, 4
        %s265 = scalar_lea.vmem %s3, %s264
        %s266 = smul.u32 2, %s20
        %s267 = smul.u32 3, %s21
        %p268 = scmp.eq.s32.totalorder %s22, 0
        // Predicated region
        $region37: #{_lambda_.12} parent=31 // pred_check
          %p269 = pneg %p268
        $region38: #{_lambda_.12} parent=31 // pred_check_branch
          %271 = sbr.rel (%p269) target = $region40
        $region39: #{_lambda_.12} parent=31 // pred_region
          %272 = vst [vmem:[#allocation2] sm:$0xff] 0.0
          %273 = vst [vmem:[#allocation2 + $0x8] sm:$0xff] 0.0
          %274 = vst [vmem:[#allocation2 + $0x10] sm:$0xff] 0.0
          %275 = vst [vmem:[#allocation2 + $0x18] sm:$0xff] 0.0
          %276 = vst [vmem:[#allocation2 + $0x20] sm:$0xff] 0.0
          %277 = vst [vmem:[#allocation2 + $0x28] sm:$0xff] 0.0
        $region40: #{_lambda_.12} parent=31 // pred_fallthru
          _
        %v278 = vld [vmem:[#allocation2] sm:$0xff]
        %v279 = vld [vmem:[#allocation2 + $0x8] sm:$0xff]
        %v280 = vld [vmem:[#allocation2 + $0x10] sm:$0xff]
        %v281 = vld [vmem:[#allocation2 + $0x18] sm:$0xff]
        %v282 = vld [vmem:[#allocation2 + $0x20] sm:$0xff]
        %v283 = vld [vmem:[#allocation2 + $0x28] sm:$0xff]
        %v284 = vld [vmem:[%s247] sm:$0xf]
        %v285 = vld [vmem:[%s247 + $0x4] sm:$0xf]
        %v286 = vld [vmem:[#allocation3] sm:$0xff]
        %v287 = vld [vmem:[#allocation3 + $0x8] sm:$0xf]
        %v288 = vld [vmem:[#allocation3 + $0xc] sm:$0xff]
        %v289 = vld [vmem:[#allocation3 + $0x14] sm:$0xf]
        %v290 = vld [vmem:[#allocation3 + $0x18] sm:$0xff]
        %v291 = vld [vmem:[#allocation3 + $0x20] sm:$0xf]
        %v292 = vld [vmem:[#allocation3 + $0x24] sm:$0xff]
        %v293 = vld [vmem:[#allocation3 + $0x2c] sm:$0xf]
        %v294 = vld [vmem:[#allocation3 + $0x30] sm:$0xff]
        %v295 = vld [vmem:[#allocation3 + $0x38] sm:$0xf]
        %v296 = vld [vmem:[#allocation3 + $0x3c] sm:$0xff]
        %v297 = vld [vmem:[#allocation3 + $0x44] sm:$0xf]
        %v298 = vld [vmem:[#allocation3 + $0x48] sm:$0xff]
        %v299 = vld [vmem:[#allocation3 + $0x50] sm:$0xf]
        %v300 = vld [vmem:[#allocation3 + $0x54] sm:$0xff]
        %v301 = vld [vmem:[#allocation3 + $0x5c] sm:$0xf]
        %v302 = vld [vmem:[#allocation3 + $0x60] sm:$0xff]
        %v303 = vld [vmem:[#allocation3 + $0x68] sm:$0xf]
        %v304 = vld [vmem:[#allocation3 + $0x6c] sm:$0xff]
        %v305 = vld [vmem:[#allocation3 + $0x74] sm:$0xf]
        %v306 = vld [vmem:[#allocation3 + $0x78] sm:$0xff]
        %v307 = vld [vmem:[#allocation3 + $0x80] sm:$0xf]
        %v308 = vld [vmem:[#allocation3 + $0x84] sm:$0xff]
        %v309 = vld [vmem:[#allocation3 + $0x8c] sm:$0xf]
        %v310 = vld [vmem:[#allocation3 + $0x90] sm:$0xff]
        %v311 = vld [vmem:[#allocation3 + $0x98] sm:$0xf]
        %v312 = vld [vmem:[#allocation3 + $0x9c] sm:$0xff]
        %v313 = vld [vmem:[#allocation3 + $0xa4] sm:$0xf]
        %v314 = vld [vmem:[#allocation3 + $0xa8] sm:$0xff]
        %v315 = vld [vmem:[#allocation3 + $0xb0] sm:$0xf]
        %v316 = vld [vmem:[#allocation3 + $0xb4] sm:$0xff]
        %v317 = vld [vmem:[#allocation3 + $0xbc] sm:$0xf]
        %v320 = vunpack.c.l.b16 %v284
        %v321 = vunpack.c.l.b16 %v285
        %v322 = vpack.c.b16 %v321, %v320
        %v356 = vunpack.c.l.b16 %v286
        %v357 = vunpack.c.h.b16 %v286
        %v358 = vunpack.c.l.b16 %v287
        %v359 = vunpack.c.l.b16 %v288
        %v360 = vunpack.c.h.b16 %v288
        %v361 = vunpack.c.l.b16 %v289
        %v362 = vunpack.c.l.b16 %v290
        %v363 = vunpack.c.h.b16 %v290
        %v364 = vunpack.c.l.b16 %v291
        %v365 = vunpack.c.l.b16 %v292
        %v366 = vunpack.c.h.b16 %v292
        %v367 = vunpack.c.l.b16 %v293
        %v368 = vunpack.c.l.b16 %v294
        %v369 = vunpack.c.h.b16 %v294
        %v370 = vunpack.c.l.b16 %v295
        %v371 = vunpack.c.l.b16 %v296
        %v372 = vunpack.c.h.b16 %v296
        %v373 = vunpack.c.l.b16 %v297
        %v374 = vunpack.c.l.b16 %v298
        %v375 = vunpack.c.h.b16 %v298
        %v376 = vunpack.c.l.b16 %v299
        %v377 = vunpack.c.l.b16 %v300
        %v378 = vunpack.c.h.b16 %v300
        %v379 = vunpack.c.l.b16 %v301
        %v380 = vunpack.c.l.b16 %v302
        %v381 = vunpack.c.h.b16 %v302
        %v382 = vunpack.c.l.b16 %v303
        %v383 = vunpack.c.l.b16 %v304
        %v384 = vunpack.c.h.b16 %v304
        %v385 = vunpack.c.l.b16 %v305
        %v386 = vunpack.c.l.b16 %v306
        %v387 = vunpack.c.h.b16 %v306
        %v388 = vunpack.c.l.b16 %v307
        %v389 = vunpack.c.l.b16 %v308
        %v390 = vunpack.c.h.b16 %v308
        %v391 = vunpack.c.l.b16 %v309
        %v392 = vunpack.c.l.b16 %v310
        %v393 = vunpack.c.h.b16 %v310
        %v394 = vunpack.c.l.b16 %v311
        %v395 = vunpack.c.l.b16 %v312
        %v396 = vunpack.c.h.b16 %v312
        %v397 = vunpack.c.l.b16 %v313
        %v398 = vunpack.c.l.b16 %v314
        %v399 = vunpack.c.h.b16 %v314
        %v400 = vunpack.c.l.b16 %v315
        %v401 = vunpack.c.l.b16 %v316
        %v402 = vunpack.c.h.b16 %v316
        %v403 = vunpack.c.l.b16 %v317
        %v404 = vpack.c.b16 %v359, %v356
        %v405 = vpack.c.b16 %v360, %v357
        %v406 = vpack.c.b16 %v361, %v358
        %v407 = vpack.c.b16 %v365, %v362
        %v408 = vpack.c.b16 %v366, %v363
        %v409 = vpack.c.b16 %v367, %v364
        %v410 = vpack.c.b16 %v371, %v368
        %v411 = vpack.c.b16 %v372, %v369
        %v412 = vpack.c.b16 %v373, %v370
        %v413 = vpack.c.b16 %v377, %v374
        %v414 = vpack.c.b16 %v378, %v375
        %v415 = vpack.c.b16 %v379, %v376
        %v416 = vpack.c.b16 %v383, %v380
        %v417 = vpack.c.b16 %v384, %v381
        %v418 = vpack.c.b16 %v385, %v382
        %v419 = vpack.c.b16 %v389, %v386
        %v420 = vpack.c.b16 %v390, %v387
        %v421 = vpack.c.b16 %v391, %v388
        %v422 = vpack.c.b16 %v395, %v392
        %v423 = vpack.c.b16 %v396, %v393
        %v424 = vpack.c.b16 %v397, %v394
        %v425 = vpack.c.b16 %v401, %v398
        %v426 = vpack.c.b16 %v402, %v399
        %v427 = vpack.c.b16 %v403, %v400
        %452 = vmatpush.bf16.msra.mxu0 %v425
        %453 = vmatpush.bf16.msra.mxu0 %v422
        %454 = vmatpush.bf16.msra.mxu0 %v419
        %455 = vmatpush.bf16.msra.mxu0 %v416
        %456 = vmatpush.bf16.msra.mxu0 %v413
        %457 = vmatpush.bf16.msra.mxu0 %v410
        %458 = vmatpush.bf16.msra.mxu0 %v407
        %459 = vmatpush.bf16.msra.mxu0 %v404
        %460 = vmatmul.bf16.gmra.mxu0 %v322
        %v461 = vpop.f32.mrf.mxu0
        %v462 = vadd.f32 0.0, %v461
        %v463 = vpop.f32.mrf.mxu0
        %v464 = vadd.f32 0.0, %v463
        %465 = vdwg.mxu0
        %466 = vmatpush.bf16.msra.mxu0 %v426
        %467 = vmatpush.bf16.msra.mxu0 %v423
        %468 = vmatpush.bf16.msra.mxu0 %v420
        %469 = vmatpush.bf16.msra.mxu0 %v417
        %470 = vmatpush.bf16.msra.mxu0 %v414
        %471 = vmatpush.bf16.msra.mxu0 %v411
        %472 = vmatpush.bf16.msra.mxu0 %v408
        %473 = vmatpush.bf16.msra.mxu0 %v405
        %474 = vmatmul.bf16.gmra.mxu0 %v322
        %v475 = vpop.f32.mrf.mxu0
        %v476 = vadd.f32 0.0, %v475
        %v477 = vpop.f32.mrf.mxu0
        %v478 = vadd.f32 0.0, %v477
        %479 = vdwg.mxu0
        %480 = vmatpush.bf16.msra.mxu0 %v427
        %481 = vmatpush.bf16.msra.mxu0 %v424
        %482 = vmatpush.bf16.msra.mxu0 %v421
        %483 = vmatpush.bf16.msra.mxu0 %v418
        %484 = vmatpush.bf16.msra.mxu0 %v415
        %485 = vmatpush.bf16.msra.mxu0 %v412
        %486 = vmatpush.bf16.msra.mxu0 %v409
        %487 = vmatpush.bf16.msra.mxu0 %v406
        %488 = vmatmul.bf16.gmra.mxu0 %v322
        %v489 = vpop.f32.mrf.mxu0
        %v490 = vadd.f32 0.0, %v489
        %v491 = vpop.f32.mrf.mxu0
        %v492 = vadd.f32 0.0, %v491
        %493 = vdwg.mxu0
        %v494 = vadd.f32 %v278, %v462
        %v495 = vadd.f32 %v279, %v476
        %v496 = vadd.f32 %v280, %v490
        %v497 = vadd.f32 %v281, %v464
        %v498 = vadd.f32 %v282, %v478
        %v499 = vadd.f32 %v283, %v492
        %500 = vst [vmem:[#allocation2] sm:$0xff] %v494
        %501 = vst [vmem:[#allocation2 + $0x8] sm:$0xff] %v495
        %502 = vst [vmem:[#allocation2 + $0x10] sm:$0xff] %v496
        %503 = vst [vmem:[#allocation2 + $0x18] sm:$0xff] %v497
        %504 = vst [vmem:[#allocation2 + $0x20] sm:$0xff] %v498
        %505 = vst [vmem:[#allocation2 + $0x28] sm:$0xff] %v499
        // Predicated region
        $region41: #{_lambda_.12} parent=31 // pred_check
          %p506 = pneg %p268
        $region42: #{_lambda_.12} parent=31 // pred_check_branch
          %508 = sbr.rel (%p506) target = $region44
        $region43: #{_lambda_.12} parent=31 // pred_region
          %v509 = vld [vmem:[#allocation2] sm:$0xff]
          %v510 = vld [vmem:[#allocation2 + $0x8] sm:$0xff]
          %v511 = vld [vmem:[#allocation2 + $0x10] sm:$0xff]
          %v512 = vld [vmem:[#allocation2 + $0x18] sm:$0xff]
          %v513 = vld [vmem:[#allocation2 + $0x20] sm:$0xff]
          %v514 = vld [vmem:[#allocation2 + $0x28] sm:$0xff]
          %v515 = vld [vmem:[%s254] sm:$0x7]
          %v517 = vperm.slane %v515, 0
          %v518 = vperm.slane %v515, 1
          %v519 = vperm.slane %v515, 2
          %v523 = vadd.f32 %v509, %v517
          %v524 = vadd.f32 %v510, %v518
          %v525 = vadd.f32 %v511, %v519
          %v526 = vadd.f32 %v512, %v517
          %v527 = vadd.f32 %v513, %v518
          %v528 = vadd.f32 %v514, %v519
          %v529 = vpack.c.bf16 %v524, %v523
          %v530 = vpack.c.bf16 %v525, %v525
          %v531 = vpack.c.bf16 %v527, %v526
          %v532 = vpack.c.bf16 %v528, %v528
          %533 = vst [vmem:[%s265] sm:$0xff] %v529
          %534 = vst [vmem:[%s265 + $0x8] sm:$0xf] %v530
          %535 = vst [vmem:[%s265 + $0xc] sm:$0xff] %v531
          %536 = vst [vmem:[%s265 + $0x14] sm:$0xf] %v532
        $region44: #{_lambda_.12} parent=31 // pred_fallthru
          _
        %s537 = smul.u32 2, %s20
        %s538 = smul.u32 3, %s21
        %p539 = scmp.lt.s32.totalorder %s537, 3
        %s540 = scalar_select %p539, %s537, 3
        %p541 = scmp.lt.s32.totalorder %s538, 2
        %s542 = scalar_select %p541, %s538, 2
        %s543 = smul.addr %s540, 3
        %s544 = sadd.s32 %s542, %s543
        %s545 = smul.addr %s544, 4
        %s546 = scalar_lea.vmem %s3, %s545
        // Predicated region
        $region45: #{_lambda_.12} parent=31 // pred_check
          %p547 = pneg %p136
        $region46: #{_lambda_.12} parent=31 // pred_check_branch
          %549 = sbr.rel (%p547) target = $region48
        $region47: #{_lambda_.12} parent=31 // pred_region
          %s550 = smul.u32 2, %s20
          %s551 = smul.u32 3, %s21
        $region48: #{_lambda_.12} parent=31 // pred_fallthru
          _
      $region32: #{_lambda_.12} parent=5 // pred_fallthru
        _
      %p552 = scmp.le.s32.totalorder 2, %s10
      // Predicated region
      $region49: #{_lambda_.12} parent=5 // pred_check
        %p553 = pneg %p552
      $region50: #{_lambda_.12} parent=5 // pred_check_branch
        %555 = sbr.rel (%p553) target = $region52
      $region51: #{_lambda_.12} parent=5 // pred_region
        %s556 = ssub.s32 %s10, 2
        // Predicated region
        $region53: #{_lambda_.12} parent=51 // pred_check
          %p557 = pneg %p142
        $region54: #{_lambda_.12} parent=51 // pred_check_branch
          %559 = sbr.rel (%p557) target = $region56
        $region55: #{_lambda_.12} parent=51 // pred_region
          %s560 = smul.u32 2, %s23
          %s561 = smul.u32 3, %s24
          %p562 = scmp.lt.s32.totalorder %s560, 3
          %s563 = scalar_select %p562, %s560, 3
          %p564 = scmp.lt.s32.totalorder %s561, 2
          %s565 = scalar_select %p564, %s561, 2
          %s566 = smul.addr %s563, 3
          %s567 = sadd.s32 %s565, %s566
          %s568 = smul.addr %s567, 4
          %s569 = scalar_lea.vmem %s3, %s568
        $region56: #{_lambda_.12} parent=51 // pred_fallthru
          _
      $region52: #{_lambda_.12} parent=5 // pred_fallthru
        _
    $region6: #{_lambda_.12} parent=1 // loop_footer
      %s14 = sadd.s32 1, %s10
    $region7: #{_lambda_.12} parent=1 // loop_footer_branch
      %9 = sbr.rel target = $region3
    $region8: #{_lambda_.12} parent=1 // loop_exit
      _
    %570 = vsyncpa [#allocation4], 1
    %s571 = scalar_lea.sflag [#allocation4], 1
    %572 = vsyncpa %s571, 1

// kernel: _lambda_.13
$region0: #{_lambda_.13}
  #allocation0 [shape = 'u32[]', space=smem, size = 0x4, offset = 0x4, fixed_abs, tag = 'smem constant byte address 0x4 - core index']
  #allocation1 [shape = 'u32[72,128]{1,0:T(1,128)}', space=vmem, size = 0x9000, scoped, tag = 'internal scratch']
  %s0 = inlined_call_operand.vmem [shape: bf16[2,16,384], index: 0, kind: input, shape index: {}]
  %s1 = inlined_call_operand.vmem [shape: bf16[2,16,128], index: 1, kind: input, shape index: {}]
  %s2 = inlined_call_operand.hbm [shape: bf16[128,128], index: 2, kind: input, shape index: {}]
  %s3 = inlined_call_operand.vmem [shape: f32[1,128], index: 3, kind: input, shape index: {}]
  %s4 = inlined_call_operand.vmem [shape: f32[1,128], index: 4, kind: input, shape index: {}]
  %s5 = inlined_call_operand.vmem [shape: f32[1,128], index: 5, kind: input, shape index: {}]
  %s6 = inlined_call_operand.vmem [shape: bf16[2,16,128], index: 6, kind: output, shape index: {}]
  %s7 = sld [smem:[#allocation0]]
  $region61: #{_lambda_.13} parent=0
    _
  %s9 = ssub.s32 1, %s7
  %s10 = scalar_select 0, %s9, %s7
  $region1: #{_lambda_.13} parent=0
    #allocation2 [shape = 'u8[32768]{0}', space=vmem, size = 0x8000, scoped, tag = 'input window, operand 2, single buffered']
    #allocation3 [shape = 's32[2]{0}', space=sflag, size = 0x8, scoped, tag = 'scoped memory for _lambda_.13']
    %11 = vsyncpa [#allocation3], 0
    loop: start=0, step=1, limit=4
    $region2: #{_lambda_.13} parent=1 // loop_pre_header
      _
    $region3: #{_lambda_.13} parent=1 // loop_header
      %s13 = sphi 0, %s17
      %p14 = scmp.ge.s32.totalorder %s13, 4
      %s23 = sphi 0, %s25
      %s26 = sphi 0, %s23
      %s27 = sphi 0, %s26
      %s43 = sphi 0, %s27
      %s49 = sphi 0, %s51
      %s52 = sphi 0, %s49
      %s53 = sphi 0, %s52
      %s69 = sphi 0, %s53
      %s73 = sphi 0, %s73
      %s75 = sphi 0, %s73
      %s76 = sphi 0, %s75
      %s90 = sphi 0, %s76
      %s94 = sphi 0, %s94
      %s96 = sphi 0, %s94
      %s97 = sphi 0, %s96
      %s111 = sphi 0, %s97
      %s115 = sphi 0, %s115
      %s117 = sphi 0, %s115
      %s118 = sphi 0, %s117
      %s132 = sphi 0, %s118
      %s136 = sphi 0, %s136
      %s138 = sphi 0, %s136
      %s139 = sphi 0, %s138
      %s153 = sphi 0, %s139
      %s159 = sphi 0, %s161
      %s162 = sphi 0, %s159
      %s163 = sphi 0, %s162
      %s179 = sphi 0, %s163
    $region4: #{_lambda_.13} parent=1 // loop_header_branch
      %16 = sbr.rel (%p14) target = $region8
    $region5: #{_lambda_.13} parent=1 // loop_body
      %s18 = ssub.s32 %s13, 1
      %s19 = ssub.s32 %s13, 2
      %s20 = sadd.s32 %s13, 1
      %s21 = ssub.s32 %s13, %s20
      %p22 = scmp.eq.s32.totalorder %s21, 0
      %s24 = sadd.s32 %s23, 1
      %s25 = scalar_select %p22, %s23, %s24
      %p28 = pneg %p22
      %p29 = scmp.eq.s32.totalorder %s13, 1
      %p30 = por %p28, %p29
      %p31 = scmp.ne.s32.totalorder %s23, %s26
      %p32 = scmp.eq.s32.totalorder %s13, 0
      %p33 = por %p31, %p32
      %p34 = scmp.ne.s32.totalorder %s23, %s26
      %p35 = scmp.eq.s32.totalorder %s18, 1
      %p36 = por %p34, %p35
      %p37 = scmp.ne.s32.totalorder %s26, %s27
      %p38 = scmp.eq.s32.totalorder %s18, 0
      %p39 = por %p37, %p38
      %p40 = scmp.ne.s32.totalorder %s26, %s27
      %p41 = scmp.eq.s32.totalorder %s19, 1
      %p42 = por %p40, %p41
      %p44 = scmp.ne.s32.totalorder %s27, %s43
      %p45 = scmp.eq.s32.totalorder %s19, 0
      %p46 = por %p44, %p45
      %s47 = ssub.s32 %s13, %s20
      %p48 = scmp.eq.s32.totalorder %s47, 0
      %s50 = sadd.s32 %s49, 1
      %s51 = scalar_select %p48, %s49, %s50
      %p54 = pneg %p48
      %p55 = scmp.eq.s32.totalorder %s13, 1
      %p56 = por %p54, %p55
      %p57 = scmp.ne.s32.totalorder %s49, %s52
      %p58 = scmp.eq.s32.totalorder %s13, 0
      %p59 = por %p57, %p58
      %p60 = scmp.ne.s32.totalorder %s49, %s52
      %p61 = scmp.eq.s32.totalorder %s18, 1
      %p62 = por %p60, %p61
      %p63 = scmp.ne.s32.totalorder %s52, %s53
      %p64 = scmp.eq.s32.totalorder %s18, 0
      %p65 = por %p63, %p64
      %p66 = scmp.ne.s32.totalorder %s52, %s53
      %p67 = scmp.eq.s32.totalorder %s19, 1
      %p68 = por %p66, %p67
      %p70 = scmp.ne.s32.totalorder %s53, %s69
      %p71 = scmp.eq.s32.totalorder %s19, 0
      %p72 = por %p70, %p71
      %s74 = sadd.s32 %s73, 1
      %p77 = scmp.eq.s32.totalorder %s13, 1
      %p78 = scmp.ne.s32.totalorder %s73, %s75
      %p79 = scmp.eq.s32.totalorder %s13, 0
      %p80 = por %p78, %p79
      %p81 = scmp.ne.s32.totalorder %s73, %s75
      %p82 = scmp.eq.s32.totalorder %s18, 1
      %p83 = por %p81, %p82
      %p84 = scmp.ne.s32.totalorder %s75, %s76
      %p85 = scmp.eq.s32.totalorder %s18, 0
      %p86 = por %p84, %p85
      %p87 = scmp.ne.s32.totalorder %s75, %s76
      %p88 = scmp.eq.s32.totalorder %s19, 1
      %p89 = por %p87, %p88
      %p91 = scmp.ne.s32.totalorder %s76, %s90
      %p92 = scmp.eq.s32.totalorder %s19, 0
      %p93 = por %p91, %p92
      %s95 = sadd.s32 %s94, 1
      %p98 = scmp.eq.s32.totalorder %s13, 1
      %p99 = scmp.ne.s32.totalorder %s94, %s96
      %p100 = scmp.eq.s32.totalorder %s13, 0
      %p101 = por %p99, %p100
      %p102 = scmp.ne.s32.totalorder %s94, %s96
      %p103 = scmp.eq.s32.totalorder %s18, 1
      %p104 = por %p102, %p103
      %p105 = scmp.ne.s32.totalorder %s96, %s97
      %p106 = scmp.eq.s32.totalorder %s18, 0
      %p107 = por %p105, %p106
      %p108 = scmp.ne.s32.totalorder %s96, %s97
      %p109 = scmp.eq.s32.totalorder %s19, 1
      %p110 = por %p108, %p109
      %p112 = scmp.ne.s32.totalorder %s97, %s111
      %p113 = scmp.eq.s32.totalorder %s19, 0
      %p114 = por %p112, %p113
      %s116 = sadd.s32 %s115, 1
      %p119 = scmp.eq.s32.totalorder %s13, 1
      %p120 = scmp.ne.s32.totalorder %s115, %s117
      %p121 = scmp.eq.s32.totalorder %s13, 0
      %p122 = por %p120, %p121
      %p123 = scmp.ne.s32.totalorder %s115, %s117
      %p124 = scmp.eq.s32.totalorder %s18, 1
      %p125 = por %p123, %p124
      %p126 = scmp.ne.s32.totalorder %s117, %s118
      %p127 = scmp.eq.s32.totalorder %s18, 0
      %p128 = por %p126, %p127
      %p129 = scmp.ne.s32.totalorder %s117, %s118
      %p130 = scmp.eq.s32.totalorder %s19, 1
      %p131 = por %p129, %p130
      %p133 = scmp.ne.s32.totalorder %s118, %s132
      %p134 = scmp.eq.s32.totalorder %s19, 0
      %p135 = por %p133, %p134
      %s137 = sadd.s32 %s136, 1
      %p140 = scmp.eq.s32.totalorder %s13, 1
      %p141 = scmp.ne.s32.totalorder %s136, %s138
      %p142 = scmp.eq.s32.totalorder %s13, 0
      %p143 = por %p141, %p142
      %p144 = scmp.ne.s32.totalorder %s136, %s138
      %p145 = scmp.eq.s32.totalorder %s18, 1
      %p146 = por %p144, %p145
      %p147 = scmp.ne.s32.totalorder %s138, %s139
      %p148 = scmp.eq.s32.totalorder %s18, 0
      %p149 = por %p147, %p148
      %p150 = scmp.ne.s32.totalorder %s138, %s139
      %p151 = scmp.eq.s32.totalorder %s19, 1
      %p152 = por %p150, %p151
      %p154 = scmp.ne.s32.totalorder %s139, %s153
      %p155 = scmp.eq.s32.totalorder %s19, 0
      %p156 = por %p154, %p155
      %s157 = ssub.s32 %s13, %s20
      %p158 = scmp.eq.s32.totalorder %s157, 0
      %s160 = sadd.s32 %s159, 1
      %s161 = scalar_select %p158, %s159, %s160
      %p164 = pneg %p158
      %p165 = scmp.eq.s32.totalorder %s13, 1
      %p166 = por %p164, %p165
      %p167 = scmp.ne.s32.totalorder %s159, %s162
      %p168 = scmp.eq.s32.totalorder %s13, 0
      %p169 = por %p167, %p168
      %p170 = scmp.ne.s32.totalorder %s159, %s162
      %p171 = scmp.eq.s32.totalorder %s18, 1
      %p172 = por %p170, %p171
      %p173 = scmp.ne.s32.totalorder %s162, %s163
      %p174 = scmp.eq.s32.totalorder %s18, 0
      %p175 = por %p173, %p174
      %p176 = scmp.ne.s32.totalorder %s162, %s163
      %p177 = scmp.eq.s32.totalorder %s19, 1
      %p178 = por %p176, %p177
      %p180 = scmp.ne.s32.totalorder %s163, %s179
      %p181 = scmp.eq.s32.totalorder %s19, 0
      %p182 = por %p180, %p181
      %p183 = scmp.le.s32.totalorder 1, %s13
      %p184 = scmp.lt.s32.totalorder %s13, 3
      %p185 = pnand %p183, %p184
      %p186 = pneg %p185
      // Predicated region
      $region9: #{_lambda_.13} parent=5 // pred_check
        _
      $region10: #{_lambda_.13} parent=5 // pred_check_branch
        %188 = sbr.rel (%p185) target = $region12
      $region11: #{_lambda_.13} parent=5 // pred_region
        %s189 = ssub.s32 %s13, 1
        // Predicated region
        $region13: #{_lambda_.13} parent=11 // pred_check
          %p190 = pneg %p86
        $region14: #{_lambda_.13} parent=11 // pred_check_branch
          %192 = sbr.rel (%p190) target = $region16
        $region15: #{_lambda_.13} parent=11 // pred_region
          %194 = vsyncadd [#allocation3], 0
          %s195 = sshll.u32 %s2, 4
          %s196 = int_to_ptr.hbm [resolvable:$true] %s195
          %s197 = sshll.u32 [#allocation2], 4
          %s198 = int_to_ptr.vmem [resolvable:$true] %s197
          %203 = dma.hbm_to_vmem [thread:$0]  %s196, 1024, %s198, [#allocation3], 64, 64, 4
        $region16: #{_lambda_.13} parent=11 // pred_fallthru
          _
        // Predicated region
        $region17: #{_lambda_.13} parent=11 // pred_check
          %p204 = pneg %p107
        $region18: #{_lambda_.13} parent=11 // pred_check_branch
          %206 = sbr.rel (%p204) target = $region20
        $region19: #{_lambda_.13} parent=11 // pred_region
          _
        $region20: #{_lambda_.13} parent=11 // pred_fallthru
          _
        // Predicated region
        $region21: #{_lambda_.13} parent=11 // pred_check
          %p207 = pneg %p128
        $region22: #{_lambda_.13} parent=11 // pred_check_branch
          %209 = sbr.rel (%p207) target = $region24
        $region23: #{_lambda_.13} parent=11 // pred_region
          _
        $region24: #{_lambda_.13} parent=11 // pred_fallthru
          _
        // Predicated region
        $region25: #{_lambda_.13} parent=11 // pred_check
          %p210 = pneg %p149
        $region26: #{_lambda_.13} parent=11 // pred_check_branch
          %212 = sbr.rel (%p210) target = $region28
        $region27: #{_lambda_.13} parent=11 // pred_region
          _
        $region28: #{_lambda_.13} parent=11 // pred_fallthru
          _
      $region12: #{_lambda_.13} parent=5 // pred_fallthru
        _
      %p213 = scmp.lt.s32.totalorder %s13, 2
      // Predicated region
      $region29: #{_lambda_.13} parent=5 // pred_check
        %p214 = pneg %p213
      $region30: #{_lambda_.13} parent=5 // pred_check_branch
        %216 = sbr.rel (%p214) target = $region32
      $region31: #{_lambda_.13} parent=5 // pred_region
        // Predicated region
        $region33: #{_lambda_.13} parent=31 // pred_check
          %p217 = pneg %p33
        $region34: #{_lambda_.13} parent=31 // pred_check_branch
          %219 = sbr.rel (%p217) target = $region36
        $region35: #{_lambda_.13} parent=31 // pred_region
          %p220 = scmp.lt.s32.totalorder %s13, 1
          %s221 = scalar_select %p220, %s13, 1
          %s222 = smul.addr %s221, 6
          %s223 = smul.addr %s222, 4
          %s224 = scalar_lea.vmem %s0, %s223
        $region36: #{_lambda_.13} parent=31 // pred_fallthru
          _
        // Predicated region
        $region37: #{_lambda_.13} parent=31 // pred_check
          %p225 = pneg %p59
        $region38: #{_lambda_.13} parent=31 // pred_check_branch
          %227 = sbr.rel (%p225) target = $region40
        $region39: #{_lambda_.13} parent=31 // pred_region
          %p228 = scmp.lt.s32.totalorder %s13, 1
          %s229 = scalar_select %p228, %s13, 1
          %s230 = smul.addr %s229, 2
          %s231 = smul.addr %s230, 4
          %s232 = scalar_lea.vmem %s1, %s231
        $region40: #{_lambda_.13} parent=31 // pred_fallthru
          _
      $region32: #{_lambda_.13} parent=5 // pred_fallthru
        _
      %p233 = scmp.le.s32.totalorder 1, %s13
      %p234 = scmp.lt.s32.totalorder %s13, 3
      %p235 = pnand %p233, %p234
      %p236 = pneg %p235
      // Predicated region
      $region41: #{_lambda_.13} parent=5 // pred_check
        _
      $region42: #{_lambda_.13} parent=5 // pred_check_branch
        %238 = sbr.rel (%p235) target = $region44
      $region43: #{_lambda_.13} parent=5 // pred_region
        %s239 = ssub.s32 %s13, 1
        // Predicated region
        $region45: #{_lambda_.13} parent=43 // pred_check
          %p240 = pneg %p86
        $region46: #{_lambda_.13} parent=43 // pred_check_branch
          %242 = sbr.rel (%p240) target = $region48
        $region47: #{_lambda_.13} parent=43 // pred_region
          %244 = dma.done [#allocation3], 1024
        $region48: #{_lambda_.13} parent=43 // pred_fallthru
          _
        %p245 = scmp.lt.s32.totalorder %s18, 1
        %s246 = scalar_select %p245, %s18, 1
        %s247 = smul.addr %s246, 6
        %s248 = smul.addr %s247, 4
        %s249 = scalar_lea.vmem %s0, %s248
        %p250 = pneg %p39
        %p251 = pneg %p36
        %p252 = scmp.lt.s32.totalorder %s18, 1
        %s253 = scalar_select %p252, %s18, 1
        %s254 = smul.addr %s253, 2
        %s255 = smul.addr %s254, 4
        %s256 = scalar_lea.vmem %s1, %s255
        %p257 = pneg %p65
        %p258 = pneg %p62
        %p259 = pneg %p86
        %p260 = pneg %p83
        %p261 = pneg %p107
        %p262 = pneg %p104
        %p263 = pneg %p128
        %p264 = pneg %p125
        %p265 = pneg %p149
        %p266 = pneg %p146
        %p267 = pneg %p175
        %p268 = pneg %p172
        %p269 = scmp.lt.s32.totalorder %s18, 1
        %s270 = scalar_select %p269, %s18, 1
        %s271 = smul.addr %s270, 2
        %s272 = smul.addr %s271, 4
        %s273 = scalar_lea.vmem %s6, %s272
        %p274 = scmp.lt.s32.totalorder %s18, 1
        %s275 = scalar_select %p274, %s18, 1
        %s276 = smul.addr %s275, 6
        %s277 = smul.addr %s276, 4
        %s278 = scalar_lea.vmem %s0, %s277
        %p279 = scmp.lt.s32.totalorder %s18, 1
        %s280 = scalar_select %p279, %s18, 1
        %s281 = smul.addr %s280, 2
        %s282 = smul.addr %s281, 4
        %s283 = scalar_lea.vmem %s1, %s282
        %p284 = scmp.lt.s32.totalorder %s18, 1
        %s285 = scalar_select %p284, %s18, 1
        %s286 = smul.addr %s285, 2
        %s287 = smul.addr %s286, 4
        %s288 = scalar_lea.vmem %s6, %s287
        %v290 = vld [vmem:[%s278] sm:$0xff]
        %v291 = vld [vmem:[%s278 + $0x8] sm:$0xf]
        %v292 = vld [vmem:[%s278 + $0xc] sm:$0xff]
        %v293 = vld [vmem:[%s278 + $0x14] sm:$0xf]
        %v294 = vld [vmem:[%s283] sm:$0xf]
        %v295 = vld [vmem:[%s283 + $0x4] sm:$0xf]
        %v298 = vunpack.c.l.b16 %v290
        %v299 = vunpack.c.l.b16 %v292
        %v300 = vpack.c.b16 %v299, %v298
        %v301 = vunpack.c.h.b16 %v290
        %v302 = vunpack.c.h.b16 %v292
        %v303 = vpack.c.b16 %v302, %v301
        %vm304 = vcmask 261120
        %v306 = vsel %vm304, %v300, 0
        %v309 = vsel %vm304, %v303, 0
        %311 = vmatpush.bf16.xpose.msra.mxu0 0
        %312 = vmatpush.bf16.xpose.msra.mxu0 0
        %313 = vmatpush.bf16.xpose.msra.mxu0 0
        %314 = vmatpush.bf16.xpose.msra.mxu0 0
        %315 = vmatpush.bf16.xpose.msra.mxu0 0
        %316 = vmatpush.bf16.xpose.msra.mxu0 0
        %317 = vmatpush.bf16.xpose.msra.mxu0 0
        %318 = vmatpush.bf16.xpose.msra.mxu0 %v309
        %319 = vmatmul.bf16.gmra.mxu0 %v306
        %v320 = vpop.f32.mrf.mxu0
        %v321 = vadd.f32 0.0, %v320
        %v322 = vpop.f32.mrf.mxu0
        %v323 = vadd.f32 0.0, %v322
        %324 = vdwg.mxu0
        %vm325 = vcmask 130048
        %v326 = vsel %vm325, %v321, -inf
        %327 = vmax.xlane.f32.xlu0 %v326
        %v328 = vpop.xlane.xlu0 %327
        %v329 = vsel %vm325, %v323, -inf
        %330 = vmax.xlane.f32.xlu0 %v329
        %v331 = vpop.xlane.xlu0 %330
        %v332 = vsub.f32 %v321, %v328
        %v333 = vsub.f32 %v323, %v331
        %v334 = vmul.f32 %v332, 1.442695
        %v335 = vpow.pop %v334
        %v336 = vmul.f32 %v333, 1.442695
        %v337 = vpow.pop %v336
        %v338 = vsel %vm325, %v335, 0.0
        %339 = vadd.xlane.f32.xlu0 %v338
        %v340 = vpop.xlane.xlu0 %339
        %v341 = vsel %vm325, %v337, 0.0
        %342 = vadd.xlane.f32.xlu0 %v341
        %v343 = vpop.xlane.xlu0 %342
        %v344 = vrcp.pop %v340
        %v345 = vrcp.pop %v343
        %v346 = vmul.f32 %v335, %v344
        %v347 = vmul.f32 %v337, %v345
        %v348 = vpack.c.bf16 %v347, %v346
        %v351 = vunpack.c.l.b16 %v291
        %v352 = vunpack.c.l.b16 %v293
        %v353 = vpack.c.b16 %v352, %v351
        %v356 = vsel %vm325, %v348, 0
        %358 = vmatpush.bf16.msra.mxu0 0
        %359 = vmatpush.bf16.msra.mxu0 0
        %360 = vmatpush.bf16.msra.mxu0 0
        %361 = vmatpush.bf16.msra.mxu0 0
        %362 = vmatpush.bf16.msra.mxu0 0
        %363 = vmatpush.bf16.msra.mxu0 0
        %364 = vmatpush.bf16.msra.mxu0 0
        %365 = vmatpush.bf16.msra.mxu0 %v353
        %366 = vmatmul.bf16.gmra.mxu0 %v356
        %v367 = vpop.f32.mrf.mxu0
        %v368 = vadd.f32 0.0, %v367
        %v369 = vpop.f32.mrf.mxu0
        %v370 = vadd.f32 0.0, %v369
        %371 = vdwg.mxu0
        %v372 = vpack.c.bf16 %v370, %v368
        %v373 = vld [vmem:[#allocation2] sm:$0xf]
        %v374 = vld [vmem:[#allocation2 + $0x4] sm:$0xf]
        %v375 = vld [vmem:[#allocation2 + $0x8] sm:$0xf]
        %v376 = vld [vmem:[#allocation2 + $0xc] sm:$0xf]
        %377 = vrot.lane.b32.xlu0 %v300, 96
        %v378 = vpop.permute.xlu0 %377
        %379 = vrot.lane.b32.xlu0 %v303, 96
        %v380 = vpop.permute.xlu0 %379
        %v382 = vsel %vm304, %v378, 0
        %v385 = vsel %vm304, %v380, 0
        %387 = vmatpush.bf16.xpose.msra.mxu0 0
        %388 = vmatpush.bf16.xpose.msra.mxu0 0
        %389 = vmatpush.bf16.xpose.msra.mxu0 0
        %390 = vmatpush.bf16.xpose.msra.mxu0 0
        %391 = vmatpush.bf16.xpose.msra.mxu0 0
        %392 = vmatpush.bf16.xpose.msra.mxu0 0
        %393 = vmatpush.bf16.xpose.msra.mxu0 0
        %394 = vmatpush.bf16.xpose.msra.mxu0 %v385
        %395 = vmatmul.bf16.gmra.mxu0 %v382
        %v396 = vpop.f32.mrf.mxu0
        %v397 = vadd.f32 0.0, %v396
        %v398 = vpop.f32.mrf.mxu0
        %v399 = vadd.f32 0.0, %v398
        %400 = vdwg.mxu0
        %v401 = vsel %vm325, %v397, -inf
        %402 = vmax.xlane.f32.xlu0 %v401
        %v403 = vpop.xlane.xlu0 %402
        %v404 = vsel %vm325, %v399, -inf
        %405 = vmax.xlane.f32.xlu0 %v404
        %v406 = vpop.xlane.xlu0 %405
        %v407 = vsub.f32 %v397, %v403
        %v408 = vsub.f32 %v399, %v406
        %v409 = vmul.f32 %v407, 1.442695
        %v410 = vpow.pop %v409
        %v411 = vmul.f32 %v408, 1.442695
        %v412 = vpow.pop %v411
        %v413 = vsel %vm325, %v410, 0.0
        %414 = vadd.xlane.f32.xlu0 %v413
        %v415 = vpop.xlane.xlu0 %414
        %v416 = vsel %vm325, %v412, 0.0
        %417 = vadd.xlane.f32.xlu0 %v416
        %v418 = vpop.xlane.xlu0 %417
        %v419 = vrcp.pop %v415
        %v420 = vrcp.pop %v418
        %v421 = vmul.f32 %v410, %v419
        %v422 = vmul.f32 %v412, %v420
        %v423 = vpack.c.bf16 %v422, %v421
        %424 = vrot.lane.b32.xlu0 %v353, 96
        %v425 = vpop.permute.xlu0 %424
        %v428 = vsel %vm325, %v423, 0
        %430 = vmatpush.bf16.msra.mxu0 0
        %431 = vmatpush.bf16.msra.mxu0 0
        %432 = vmatpush.bf16.msra.mxu0 0
        %433 = vmatpush.bf16.msra.mxu0 0
        %434 = vmatpush.bf16.msra.mxu0 0
        %435 = vmatpush.bf16.msra.mxu0 0
        %436 = vmatpush.bf16.msra.mxu0 0
        %437 = vmatpush.bf16.msra.mxu0 %v425
        %438 = vmatmul.bf16.gmra.mxu0 %v428
        %v439 = vpop.f32.mrf.mxu0
        %v440 = vadd.f32 0.0, %v439
        %v441 = vpop.f32.mrf.mxu0
        %v442 = vadd.f32 0.0, %v441
        %443 = vdwg.mxu0
        %v444 = vpack.c.bf16 %v442, %v440
        %v445 = vld [vmem:[#allocation2 + $0x10] sm:$0xf]
        %v446 = vld [vmem:[#allocation2 + $0x14] sm:$0xf]
        %v447 = vld [vmem:[#allocation2 + $0x18] sm:$0xf]
        %v448 = vld [vmem:[#allocation2 + $0x1c] sm:$0xf]
        %v453 = vunpack.c.l.b16 %v445
        %v454 = vunpack.c.l.b16 %v446
        %v455 = vunpack.c.l.b16 %v447
        %v456 = vunpack.c.l.b16 %v448
        %v457 = vpack.c.b16 %v454, %v453
        %v458 = vpack.c.b16 %v456, %v455
        %v462 = vsel %vm304, %v444, 0
        %464 = vmatpush.bf16.msra.mxu0 0
        %465 = vmatpush.bf16.msra.mxu0 0
        %466 = vmatpush.bf16.msra.mxu0 0
        %467 = vmatpush.bf16.msra.mxu0 0
        %468 = vmatpush.bf16.msra.mxu0 0
        %469 = vmatpush.bf16.msra.mxu0 0
        %470 = vmatpush.bf16.msra.mxu0 %v458
        %471 = vmatpush.bf16.msra.mxu0 %v457
        %472 = vmatmul.bf16.gmra.mxu0 %v462
        %v473 = vpop.f32.mrf.mxu0
        %v474 = vadd.f32 0.0, %v473
        %v475 = vpop.f32.mrf.mxu0
        %v476 = vadd.f32 0.0, %v475
        %477 = vdwg.mxu0
        %v482 = vunpack.c.l.b16 %v373
        %v483 = vunpack.c.l.b16 %v374
        %v484 = vunpack.c.l.b16 %v375
        %v485 = vunpack.c.l.b16 %v376
        %v486 = vpack.c.b16 %v483, %v482
        %v487 = vpack.c.b16 %v485, %v484
        %v491 = vsel %vm304, %v372, 0
        %493 = vmatpush.bf16.msra.mxu0 0
        %494 = vmatpush.bf16.msra.mxu0 0
        %495 = vmatpush.bf16.msra.mxu0 0
        %496 = vmatpush.bf16.msra.mxu0 0
        %497 = vmatpush.bf16.msra.mxu0 0
        %498 = vmatpush.bf16.msra.mxu0 0
        %499 = vmatpush.bf16.msra.mxu0 %v487
        %500 = vmatpush.bf16.msra.mxu0 %v486
        %501 = vmatmul.bf16.gmra.mxu0 %v491
        %v502 = vpop.f32.mrf.mxu0
        %v503 = vadd.f32 %v474, %v502
        %v504 = vpop.f32.mrf.mxu0
        %v505 = vadd.f32 %v476, %v504
        %506 = vdwg.mxu0
        %507 = vrot.lane.b32.xlu0 %v300, 64
        %v508 = vpop.permute.xlu0 %507
        %509 = vrot.lane.b32.xlu0 %v303, 64
        %v510 = vpop.permute.xlu0 %509
        %v512 = vsel %vm304, %v508, 0
        %v515 = vsel %vm304, %v510, 0
        %517 = vmatpush.bf16.xpose.msra.mxu0 0
        %518 = vmatpush.bf16.xpose.msra.mxu0 0
        %519 = vmatpush.bf16.xpose.msra.mxu0 0
        %520 = vmatpush.bf16.xpose.msra.mxu0 0
        %521 = vmatpush.bf16.xpose.msra.mxu0 0
        %522 = vmatpush.bf16.xpose.msra.mxu0 0
        %523 = vmatpush.bf16.xpose.msra.mxu0 0
        %524 = vmatpush.bf16.xpose.msra.mxu0 %v515
        %525 = vmatmul.bf16.gmra.mxu0 %v512
        %v526 = vpop.f32.mrf.mxu0
        %v527 = vadd.f32 0.0, %v526
        %v528 = vpop.f32.mrf.mxu0
        %v529 = vadd.f32 0.0, %v528
        %530 = vdwg.mxu0
        %v531 = vsel %vm325, %v527, -inf
        %532 = vmax.xlane.f32.xlu0 %v531
        %v533 = vpop.xlane.xlu0 %532
        %v534 = vsel %vm325, %v529, -inf
        %535 = vmax.xlane.f32.xlu0 %v534
        %v536 = vpop.xlane.xlu0 %535
        %v537 = vsub.f32 %v527, %v533
        %v538 = vsub.f32 %v529, %v536
        %v539 = vmul.f32 %v537, 1.442695
        %v540 = vpow.pop %v539
        %v541 = vmul.f32 %v538, 1.442695
        %v542 = vpow.pop %v541
        %v543 = vsel %vm325, %v540, 0.0
        %544 = vadd.xlane.f32.xlu0 %v543
        %v545 = vpop.xlane.xlu0 %544
        %v546 = vsel %vm325, %v542, 0.0
        %547 = vadd.xlane.f32.xlu0 %v546
        %v548 = vpop.xlane.xlu0 %547
        %v549 = vrcp.pop %v545
        %v550 = vrcp.pop %v548
        %v551 = vmul.f32 %v540, %v549
        %v552 = vmul.f32 %v542, %v550
        %v553 = vpack.c.bf16 %v552, %v551
        %554 = vrot.lane.b32.xlu0 %v353, 64
        %v555 = vpop.permute.xlu0 %554
        %v558 = vsel %vm325, %v553, 0
        %560 = vmatpush.bf16.msra.mxu0 0
        %561 = vmatpush.bf16.msra.mxu0 0
        %562 = vmatpush.bf16.msra.mxu0 0
        %563 = vmatpush.bf16.msra.mxu0 0
        %564 = vmatpush.bf16.msra.mxu0 0
        %565 = vmatpush.bf16.msra.mxu0 0
        %566 = vmatpush.bf16.msra.mxu0 0
        %567 = vmatpush.bf16.msra.mxu0 %v555
        %568 = vmatmul.bf16.gmra.mxu0 %v558
        %v569 = vpop.f32.mrf.mxu0
        %v570 = vadd.f32 0.0, %v569
        %v571 = vpop.f32.mrf.mxu0
        %v572 = vadd.f32 0.0, %v571
        %573 = vdwg.mxu0
        %v574 = vpack.c.bf16 %v572, %v570
        %v575 = vld [vmem:[#allocation2 + $0x20] sm:$0xf]
        %v576 = vld [vmem:[#allocation2 + $0x24] sm:$0xf]
        %v577 = vld [vmem:[#allocation2 + $0x28] sm:$0xf]
        %v578 = vld [vmem:[#allocation2 + $0x2c] sm:$0xf]
        %v583 = vunpack.c.l.b16 %v575
        %v584 = vunpack.c.l.b16 %v576
        %v585 = vunpack.c.l.b16 %v577
        %v586 = vunpack.c.l.b16 %v578
        %v587 = vpack.c.b16 %v584, %v583
        %v588 = vpack.c.b16 %v586, %v585
        %v592 = vsel %vm304, %v574, 0
        %594 = vmatpush.bf16.msra.mxu0 0
        %595 = vmatpush.bf16.msra.mxu0 0
        %596 = vmatpush.bf16.msra.mxu0 0
        %597 = vmatpush.bf16.msra.mxu0 0
        %598 = vmatpush.bf16.msra.mxu0 0
        %599 = vmatpush.bf16.msra.mxu0 0
        %600 = vmatpush.bf16.msra.mxu0 %v588
        %601 = vmatpush.bf16.msra.mxu0 %v587
        %602 = vmatmul.bf16.gmra.mxu0 %v592
        %v603 = vpop.f32.mrf.mxu0
        %v604 = vadd.f32 0.0, %v603
        %v605 = vpop.f32.mrf.mxu0
        %v606 = vadd.f32 0.0, %v605
        %607 = vdwg.mxu0
        %v608 = vadd.f32 %v503, %v604
        %v609 = vadd.f32 %v505, %v606
        %610 = vrot.lane.b32.xlu0 %v300, 32
        %v611 = vpop.permute.xlu0 %610
        %612 = vrot.lane.b32.xlu0 %v303, 32
        %v613 = vpop.permute.xlu0 %612
        %v615 = vsel %vm304, %v611, 0
        %v618 = vsel %vm304, %v613, 0
        %620 = vmatpush.bf16.xpose.msra.mxu0 0
        %621 = vmatpush.bf16.xpose.msra.mxu0 0
        %622 = vmatpush.bf16.xpose.msra.mxu0 0
        %623 = vmatpush.bf16.xpose.msra.mxu0 0
        %624 = vmatpush.bf16.xpose.msra.mxu0 0
        %625 = vmatpush.bf16.xpose.msra.mxu0 0
        %626 = vmatpush.bf16.xpose.msra.mxu0 0
        %627 = vmatpush.bf16.xpose.msra.mxu0 %v618
        %628 = vmatmul.bf16.gmra.mxu0 %v615
        %v629 = vpop.f32.mrf.mxu0
        %v630 = vadd.f32 0.0, %v629
        %v631 = vpop.f32.mrf.mxu0
        %v632 = vadd.f32 0.0, %v631
        %633 = vdwg.mxu0
        %v634 = vsel %vm325, %v630, -inf
        %635 = vmax.xlane.f32.xlu0 %v634
        %v636 = vpop.xlane.xlu0 %635
        %v637 = vsel %vm325, %v632, -inf
        %638 = vmax.xlane.f32.xlu0 %v637
        %v639 = vpop.xlane.xlu0 %638
        %v640 = vsub.f32 %v630, %v636
        %v641 = vsub.f32 %v632, %v639
        %v642 = vmul.f32 %v640, 1.442695
        %v643 = vpow.pop %v642
        %v644 = vmul.f32 %v641, 1.442695
        %v645 = vpow.pop %v644
        %v646 = vsel %vm325, %v643, 0.0
        %647 = vadd.xlane.f32.xlu0 %v646
        %v648 = vpop.xlane.xlu0 %647
        %v649 = vsel %vm325, %v645, 0.0
        %650 = vadd.xlane.f32.xlu0 %v649
        %v651 = vpop.xlane.xlu0 %650
        %v652 = vrcp.pop %v648
        %v653 = vrcp.pop %v651
        %v654 = vmul.f32 %v643, %v652
        %v655 = vmul.f32 %v645, %v653
        %v656 = vpack.c.bf16 %v655, %v654
        %657 = vrot.lane.b32.xlu0 %v353, 32
        %v658 = vpop.permute.xlu0 %657
        %v661 = vsel %vm325, %v656, 0
        %663 = vmatpush.bf16.msra.mxu0 0
        %664 = vmatpush.bf16.msra.mxu0 0
        %665 = vmatpush.bf16.msra.mxu0 0
        %666 = vmatpush.bf16.msra.mxu0 0
        %667 = vmatpush.bf16.msra.mxu0 0
        %668 = vmatpush.bf16.msra.mxu0 0
        %669 = vmatpush.bf16.msra.mxu0 0
        %670 = vmatpush.bf16.msra.mxu0 %v658
        %671 = vmatmul.bf16.gmra.mxu0 %v661
        %v672 = vpop.f32.mrf.mxu0
        %v673 = vadd.f32 0.0, %v672
        %v674 = vpop.f32.mrf.mxu0
        %v675 = vadd.f32 0.0, %v674
        %676 = vdwg.mxu0
        %v677 = vpack.c.bf16 %v675, %v673
        %v678 = vld [vmem:[#allocation2 + $0x30] sm:$0xf]
        %v679 = vld [vmem:[#allocation2 + $0x34] sm:$0xf]
        %v680 = vld [vmem:[#allocation2 + $0x38] sm:$0xf]
        %v681 = vld [vmem:[#allocation2 + $0x3c] sm:$0xf]
        %v686 = vunpack.c.l.b16 %v678
        %v687 = vunpack.c.l.b16 %v679
        %v688 = vunpack.c.l.b16 %v680
        %v689 = vunpack.c.l.b16 %v681
        %v690 = vpack.c.b16 %v687, %v686
        %v691 = vpack.c.b16 %v689, %v688
        %v695 = vsel %vm304, %v677, 0
        %697 = vmatpush.bf16.msra.mxu0 0
        %698 = vmatpush.bf16.msra.mxu0 0
        %699 = vmatpush.bf16.msra.mxu0 0
        %700 = vmatpush.bf16.msra.mxu0 0
        %701 = vmatpush.bf16.msra.mxu0 0
        %702 = vmatpush.bf16.msra.mxu0 0
        %703 = vmatpush.bf16.msra.mxu0 %v691
        %704 = vmatpush.bf16.msra.mxu0 %v690
        %705 = vmatmul.bf16.gmra.mxu0 %v695
        %v706 = vpop.f32.mrf.mxu0
        %v707 = vadd.f32 0.0, %v706
        %v708 = vpop.f32.mrf.mxu0
        %v709 = vadd.f32 0.0, %v708
        %710 = vdwg.mxu0
        %v711 = vadd.f32 %v608, %v707
        %v712 = vadd.f32 %v609, %v709
        %v713 = vld [vmem:[%s3] sm:$0x1]
        %v715 = vperm.slane %v713, 0
        %v717 = vadd.f32 %v711, %v715
        %v718 = vadd.f32 %v712, %v715
        %v719 = vunpack.c.l.bf16 %v294
        %v720 = vunpack.c.l.bf16 %v295
        %v721 = vadd.f32 %v717, %v719
        %v722 = vadd.f32 %v718, %v720
        %723 = vadd.xlane.f32.xlu0 %v721
        %v724 = vpop.xlane.xlu0 %723
        %725 = vadd.xlane.f32.xlu0 %v722
        %v726 = vpop.xlane.xlu0 %725
        %v727 = vrcp.pop 128.0
        %v728 = vmul.f32 128.0, %v727
        %v729 = vsub.f32 1.0, %v728
        %v730 = vmul.f32 %v727, %v729
        %v731 = vadd.f32 %v727, %v730
        %vm732 = vweird.f32 %v727
        %v733 = vsel %vm732, %v727, %v731
        %v734 = vmul.f32 %v724, %v733
        %v735 = vmul.f32 %v726, %v733
        %v736 = vsub.f32 %v721, %v734
        %v737 = vsub.f32 %v722, %v735
        %v738 = vmul.f32 %v736, %v736
        %v739 = vmul.f32 %v737, %v737
        %740 = vadd.xlane.f32.xlu0 %v738
        %v741 = vpop.xlane.xlu0 %740
        %742 = vadd.xlane.f32.xlu0 %v739
        %v743 = vpop.xlane.xlu0 %742
        %v744 = vmul.f32 %v741, %v733
        %v745 = vmul.f32 %v743, %v733
        %v746 = vadd.f32 %v744, 1e-05
        %v747 = vadd.f32 %v745, 1e-05
        %v748 = vrsqrt.pop %v746
        %v749 = vmul.f32 %v748, %v746
        %v750 = vmul.f32 %v749, %v748
        %v751 = vmul.f32 0.5, %v750
        %v752 = vsub.f32 1.5, %v751
        %v753 = vmul.f32 %v748, %v752
        %vm754 = vweird.f32 %v746
        %vm755 = vweird.f32 %v748
        %vm756 = vmor %vm754, %vm755
        %v757 = vsel %vm756, %v748, %v753
        %v758 = vrsqrt.pop %v747
        %v759 = vmul.f32 %v758, %v747
        %v760 = vmul.f32 %v759, %v758
        %v761 = vmul.f32 0.5, %v760
        %v762 = vsub.f32 1.5, %v761
        %v763 = vmul.f32 %v758, %v762
        %vm764 = vweird.f32 %v747
        %vm765 = vweird.f32 %v758
        %vm766 = vmor %vm764, %vm765
        %v767 = vsel %vm766, %v758, %v763
        %v768 = vmul.f32 %v736, %v757
        %v769 = vmul.f32 %v737, %v767
        %v770 = vld [vmem:[%s4] sm:$0x1]
        %v772 = vperm.slane %v770, 0
        %v774 = vmul.f32 %v768, %v772
        %v775 = vmul.f32 %v769, %v772
        %v776 = vld [vmem:[%s5] sm:$0x1]
        %v778 = vperm.slane %v776, 0
        %v780 = vadd.f32 %v774, %v778
        %v781 = vadd.f32 %v775, %v778
        %v782 = vpack.c.bf16 %v780, %v780
        %v783 = vpack.c.bf16 %v781, %v781
        %784 = vst [vmem:[%s288] sm:$0xf] %v782
        %785 = vst [vmem:[%s288 + $0x4] sm:$0xf] %v783
        %p786 = scmp.lt.s32.totalorder %s18, 1
        %s787 = scalar_select %p786, %s18, 1
        %s788 = smul.addr %s787, 2
        %s789 = smul.addr %s788, 4
        %s790 = scalar_lea.vmem %s6, %s789
        // Predicated region
        $region49: #{_lambda_.13} parent=43 // pred_check
          %p791 = pneg %p172
        $region50: #{_lambda_.13} parent=43 // pred_check_branch
          %793 = sbr.rel (%p791) target = $region52
        $region51: #{_lambda_.13} parent=43 // pred_region
          _
        $region52: #{_lambda_.13} parent=43 // pred_fallthru
          _
      $region44: #{_lambda_.13} parent=5 // pred_fallthru
        _
      %p794 = scmp.le.s32.totalorder 2, %s13
      // Predicated region
      $region53: #{_lambda_.13} parent=5 // pred_check
        %p795 = pneg %p794
      $region54: #{_lambda_.13} parent=5 // pred_check_branch
        %797 = sbr.rel (%p795) target = $region56
      $region55: #{_lambda_.13} parent=5 // pred_region
        %s798 = ssub.s32 %s13, 2
        // Predicated region
        $region57: #{_lambda_.13} parent=55 // pred_check
          %p799 = pneg %p178
        $region58: #{_lambda_.13} parent=55 // pred_check_branch
          %801 = sbr.rel (%p799) target = $region60
        $region59: #{_lambda_.13} parent=55 // pred_region
          %p802 = scmp.lt.s32.totalorder %s19, 1
          %s803 = scalar_select %p802, %s19, 1
          %s804 = smul.addr %s803, 2
          %s805 = smul.addr %s804, 4
          %s806 = scalar_lea.vmem %s6, %s805
        $region60: #{_lambda_.13} parent=55 // pred_fallthru
          _
      $region56: #{_lambda_.13} parent=5 // pred_fallthru
        _
    $region6: #{_lambda_.13} parent=1 // loop_footer
      %s17 = sadd.s32 1, %s13
    $region7: #{_lambda_.13} parent=1 // loop_footer_branch
      %12 = sbr.rel target = $region3
    $region8: #{_lambda_.13} parent=1 // loop_exit
      _
    %807 = vsyncpa [#allocation3], 1
    %s808 = scalar_lea.sflag [#allocation3], 1
    %809 = vsyncpa %s808, 1

// kernel: _lambda_.15
$region0: #{_lambda_.15}
  #allocation0 [shape = 'u32[]', space=smem, size = 0x4, offset = 0x4, fixed_abs, tag = 'smem constant byte address 0x4 - core index']
  #allocation1 [shape = 'u32[72,128]{1,0:T(1,128)}', space=vmem, size = 0x9000, scoped, tag = 'internal scratch']
  #allocation2 [shape = 'f32[16,128]{1,0:T(8,128)}', space=vmem, size = 0x2000, scoped, tag = 'scratch operand']
  %s0 = inlined_call_operand.vmem [shape: bf16[32,256], index: 0, kind: input, shape index: {}]
  %s1 = inlined_call_operand.hbm [shape: bf16[256,128], index: 1, kind: input, shape index: {}]
  %s2 = inlined_call_operand.vmem [shape: f32[1,128], index: 2, kind: input, shape index: {}]
  %s3 = inlined_call_operand.vmem [shape: bf16[32,128], index: 3, kind: input, shape index: {}]
  %s4 = inlined_call_operand.vmem [shape: f32[1,128], index: 4, kind: input, shape index: {}]
  %s5 = inlined_call_operand.vmem [shape: f32[1,128], index: 5, kind: input, shape index: {}]
  %s6 = inlined_call_operand.vmem [shape: bf16[32,128], index: 6, kind: output, shape index: {}]
  %s7 = sld [smem:[#allocation0]]
  $region69: #{_lambda_.15} parent=0
    _
  %s9 = ssub.s32 1, %s7
  %s10 = scalar_select 0, %s9, %s7
  $region1: #{_lambda_.15} parent=0
    #allocation3 [shape = 'u8[65536]{0}', space=vmem, size = 0x10000, scoped, tag = 'input window, operand 1, single buffered']
    #allocation4 [shape = 's32[2]{0}', space=sflag, size = 0x8, scoped, tag = 'scoped memory for _lambda_.15']
    %11 = vsyncpa [#allocation4], 0
    loop: start=0, step=1, limit=4
    $region2: #{_lambda_.15} parent=1 // loop_pre_header
      _
    $region3: #{_lambda_.15} parent=1 // loop_header
      %s13 = sphi 0, %s17
      %p14 = scmp.ge.s32.totalorder %s13, 4
      %s20 = sphi 0, %s39
      %s21 = sphi 0, %s35
      %s22 = sphi 0, %s31
      %s23 = sphi 0, %s20
      %s24 = sphi 0, %s21
      %s25 = sphi 0, %s22
      %s26 = sphi 0, %s23
      %s27 = sphi 0, %s24
      %s28 = sphi 0, %s25
      %s44 = sphi 0, %s46
      %s47 = sphi 0, %s44
      %s48 = sphi 0, %s47
      %s64 = sphi 0, %s48
      %s72 = sphi 0, %s74
      %s75 = sphi 0, %s72
      %s76 = sphi 0, %s75
      %s92 = sphi 0, %s76
      %s98 = sphi 0, %s100
      %s101 = sphi 0, %s98
      %s102 = sphi 0, %s101
      %s118 = sphi 0, %s102
      %s126 = sphi 0, %s128
      %s129 = sphi 0, %s126
      %s130 = sphi 0, %s129
      %s146 = sphi 0, %s130
      %s152 = sphi 0, %s154
      %s155 = sphi 0, %s152
      %s156 = sphi 0, %s155
      %s172 = sphi 0, %s156
      %s178 = sphi 0, %s180
      %s181 = sphi 0, %s178
      %s182 = sphi 0, %s181
      %s198 = sphi 0, %s182
      %s206 = sphi 0, %s208
      %s209 = sphi 0, %s206
      %s210 = sphi 0, %s209
      %s226 = sphi 0, %s210
    $region4: #{_lambda_.15} parent=1 // loop_header_branch
      %16 = sbr.rel (%p14) target = $region8
    $region5: #{_lambda_.15} parent=1 // loop_body
      %s18 = ssub.s32 %s13, 1
      %s19 = ssub.s32 %s13, 2
      %s29 = sadd.s32 1, %s22
      %p30 = scmp.ge.s32.totalorder %s29, 1
      %s31 = scalar_select %p30, 0, %s29
      %s32 = sadd.s32 1, %s21
      %s33 = scalar_select %p30, %s32, %s21
      %p34 = scmp.ge.s32.totalorder %s33, 1
      %s35 = scalar_select %p34, 0, %s33
      %s36 = sadd.s32 1, %s20
      %s37 = scalar_select %p34, %s36, %s20
      %p38 = scmp.ge.s32.totalorder %s37, 2
      %s39 = scalar_select %p38, 0, %s37
      %s40 = ssub.s32 %s20, %s39
      %s41 = ssub.s32 %s22, %s31
      %s42 = sor.u32 %s40, %s41
      %p43 = scmp.eq.s32.totalorder %s42, 0
      %s45 = sadd.s32 %s44, 1
      %s46 = scalar_select %p43, %s44, %s45
      %p49 = pneg %p43
      %p50 = scmp.eq.s32.totalorder %s13, 1
      %p51 = por %p49, %p50
      %p52 = scmp.ne.s32.totalorder %s44, %s47
      %p53 = scmp.eq.s32.totalorder %s13, 0
      %p54 = por %p52, %p53
      %p55 = scmp.ne.s32.totalorder %s44, %s47
      %p56 = scmp.eq.s32.totalorder %s18, 1
      %p57 = por %p55, %p56
      %p58 = scmp.ne.s32.totalorder %s47, %s48
      %p59 = scmp.eq.s32.totalorder %s18, 0
      %p60 = por %p58, %p59
      %p61 = scmp.ne.s32.totalorder %s47, %s48
      %p62 = scmp.eq.s32.totalorder %s19, 1
      %p63 = por %p61, %p62
      %p65 = scmp.ne.s32.totalorder %s48, %s64
      %p66 = scmp.eq.s32.totalorder %s19, 0
      %p67 = por %p65, %p66
      %s68 = ssub.s32 %s22, %s31
      %s69 = ssub.s32 %s21, %s35
      %s70 = sor.u32 %s68, %s69
      %p71 = scmp.eq.s32.totalorder %s70, 0
      %s73 = sadd.s32 %s72, 1
      %s74 = scalar_select %p71, %s72, %s73
      %p77 = pneg %p71
      %p78 = scmp.eq.s32.totalorder %s13, 1
      %p79 = por %p77, %p78
      %p80 = scmp.ne.s32.totalorder %s72, %s75
      %p81 = scmp.eq.s32.totalorder %s13, 0
      %p82 = por %p80, %p81
      %p83 = scmp.ne.s32.totalorder %s72, %s75
      %p84 = scmp.eq.s32.totalorder %s18, 1
      %p85 = por %p83, %p84
      %p86 = scmp.ne.s32.totalorder %s75, %s76
      %p87 = scmp.eq.s32.totalorder %s18, 0
      %p88 = por %p86, %p87
      %p89 = scmp.ne.s32.totalorder %s75, %s76
      %p90 = scmp.eq.s32.totalorder %s19, 1
      %p91 = por %p89, %p90
      %p93 = scmp.ne.s32.totalorder %s76, %s92
      %p94 = scmp.eq.s32.totalorder %s19, 0
      %p95 = por %p93, %p94
      %s96 = ssub.s32 %s21, %s35
      %p97 = scmp.eq.s32.totalorder %s96, 0
      %s99 = sadd.s32 %s98, 1
      %s100 = scalar_select %p97, %s98, %s99
      %p103 = pneg %p97
      %p104 = scmp.eq.s32.totalorder %s13, 1
      %p105 = por %p103, %p104
      %p106 = scmp.ne.s32.totalorder %s98, %s101
      %p107 = scmp.eq.s32.totalorder %s13, 0
      %p108 = por %p106, %p107
      %p109 = scmp.ne.s32.totalorder %s98, %s101
      %p110 = scmp.eq.s32.totalorder %s18, 1
      %p111 = por %p109, %p110
      %p112 = scmp.ne.s32.totalorder %s101, %s102
      %p113 = scmp.eq.s32.totalorder %s18, 0
      %p114 = por %p112, %p113
      %p115 = scmp.ne.s32.totalorder %s101, %s102
      %p116 = scmp.eq.s32.totalorder %s19, 1
      %p117 = por %p115, %p116
      %p119 = scmp.ne.s32.totalorder %s102, %s118
      %p120 = scmp.eq.s32.totalorder %s19, 0
      %p121 = por %p119, %p120
      %s122 = ssub.s32 %s20, %s39
      %s123 = ssub.s32 %s21, %s35
      %s124 = sor.u32 %s122, %s123
      %p125 = scmp.eq.s32.totalorder %s124, 0
      %s127 = sadd.s32 %s126, 1
      %s128 = scalar_select %p125, %s126, %s127
      %p131 = pneg %p125
      %p132 = scmp.eq.s32.totalorder %s13, 1
      %p133 = por %p131, %p132
      %p134 = scmp.ne.s32.totalorder %s126, %s129
      %p135 = scmp.eq.s32.totalorder %s13, 0
      %p136 = por %p134, %p135
      %p137 = scmp.ne.s32.totalorder %s126, %s129
      %p138 = scmp.eq.s32.totalorder %s18, 1
      %p139 = por %p137, %p138
      %p140 = scmp.ne.s32.totalorder %s129, %s130
      %p141 = scmp.eq.s32.totalorder %s18, 0
      %p142 = por %p140, %p141
      %p143 = scmp.ne.s32.totalorder %s129, %s130
      %p144 = scmp.eq.s32.totalorder %s19, 1
      %p145 = por %p143, %p144
      %p147 = scmp.ne.s32.totalorder %s130, %s146
      %p148 = scmp.eq.s32.totalorder %s19, 0
      %p149 = por %p147, %p148
      %s150 = ssub.s32 %s21, %s35
      %p151 = scmp.eq.s32.totalorder %s150, 0
      %s153 = sadd.s32 %s152, 1
      %s154 = scalar_select %p151, %s152, %s153
      %p157 = pneg %p151
      %p158 = scmp.eq.s32.totalorder %s13, 1
      %p159 = por %p157, %p158
      %p160 = scmp.ne.s32.totalorder %s152, %s155
      %p161 = scmp.eq.s32.totalorder %s13, 0
      %p162 = por %p160, %p161
      %p163 = scmp.ne.s32.totalorder %s152, %s155
      %p164 = scmp.eq.s32.totalorder %s18, 1
      %p165 = por %p163, %p164
      %p166 = scmp.ne.s32.totalorder %s155, %s156
      %p167 = scmp.eq.s32.totalorder %s18, 0
      %p168 = por %p166, %p167
      %p169 = scmp.ne.s32.totalorder %s155, %s156
      %p170 = scmp.eq.s32.totalorder %s19, 1
      %p171 = por %p169, %p170
      %p173 = scmp.ne.s32.totalorder %s156, %s172
      %p174 = scmp.eq.s32.totalorder %s19, 0
      %p175 = por %p173, %p174
      %s176 = ssub.s32 %s21, %s35
      %p177 = scmp.eq.s32.totalorder %s176, 0
      %s179 = sadd.s32 %s178, 1
      %s180 = scalar_select %p177, %s178, %s179
      %p183 = pneg %p177
      %p184 = scmp.eq.s32.totalorder %s13, 1
      %p185 = por %p183, %p184
      %p186 = scmp.ne.s32.totalorder %s178, %s181
      %p187 = scmp.eq.s32.totalorder %s13, 0
      %p188 = por %p186, %p187
      %p189 = scmp.ne.s32.totalorder %s178, %s181
      %p190 = scmp.eq.s32.totalorder %s18, 1
      %p191 = por %p189, %p190
      %p192 = scmp.ne.s32.totalorder %s181, %s182
      %p193 = scmp.eq.s32.totalorder %s18, 0
      %p194 = por %p192, %p193
      %p195 = scmp.ne.s32.totalorder %s181, %s182
      %p196 = scmp.eq.s32.totalorder %s19, 1
      %p197 = por %p195, %p196
      %p199 = scmp.ne.s32.totalorder %s182, %s198
      %p200 = scmp.eq.s32.totalorder %s19, 0
      %p201 = por %p199, %p200
      %s202 = ssub.s32 %s20, %s39
      %s203 = ssub.s32 %s21, %s35
      %s204 = sor.u32 %s202, %s203
      %p205 = scmp.eq.s32.totalorder %s204, 0
      %s207 = sadd.s32 %s206, 1
      %s208 = scalar_select %p205, %s206, %s207
      %p211 = pneg %p205
      %p212 = scmp.eq.s32.totalorder %s13, 1
      %p213 = por %p211, %p212
      %p214 = scmp.ne.s32.totalorder %s206, %s209
      %p215 = scmp.eq.s32.totalorder %s13, 0
      %p216 = por %p214, %p215
      %p217 = scmp.ne.s32.totalorder %s206, %s209
      %p218 = scmp.eq.s32.totalorder %s18, 1
      %p219 = por %p217, %p218
      %p220 = scmp.ne.s32.totalorder %s209, %s210
      %p221 = scmp.eq.s32.totalorder %s18, 0
      %p222 = por %p220, %p221
      %p223 = scmp.ne.s32.totalorder %s209, %s210
      %p224 = scmp.eq.s32.totalorder %s19, 1
      %p225 = por %p223, %p224
      %p227 = scmp.ne.s32.totalorder %s210, %s226
      %p228 = scmp.eq.s32.totalorder %s19, 0
      %p229 = por %p227, %p228
      %p230 = scmp.le.s32.totalorder 1, %s13
      %p231 = scmp.lt.s32.totalorder %s13, 3
      %p232 = pnand %p230, %p231
      %p233 = pneg %p232
      // Predicated region
      $region9: #{_lambda_.15} parent=5 // pred_check
        _
      $region10: #{_lambda_.15} parent=5 // pred_check_branch
        %235 = sbr.rel (%p232) target = $region12
      $region11: #{_lambda_.15} parent=5 // pred_region
        %s236 = ssub.s32 %s13, 1
        // Predicated region
        $region13: #{_lambda_.15} parent=11 // pred_check
          %p237 = pneg %p88
        $region14: #{_lambda_.15} parent=11 // pred_check_branch
          %239 = sbr.rel (%p237) target = $region16
        $region15: #{_lambda_.15} parent=11 // pred_region
          %s240 = smul.u32 32, %s25
          %242 = vsyncadd [#allocation4], 0
          %s243 = sadd.s32 %s24, %s240
          %s244 = smul.addr %s243, 4
          %s245 = scalar_lea.hbm %s1, %s244
          %s246 = sshll.u32 %s245, 4
          %s247 = int_to_ptr.hbm [resolvable:$true] %s246
          %s248 = sshll.u32 [#allocation3], 4
          %s249 = int_to_ptr.vmem [resolvable:$true] %s248
          %254 = dma.hbm_to_vmem [thread:$0]  %s247, 2048, %s249, [#allocation4], 64, 64, 4
        $region16: #{_lambda_.15} parent=11 // pred_fallthru
          _
        // Predicated region
        $region17: #{_lambda_.15} parent=11 // pred_check
          %p255 = pneg %p114
        $region18: #{_lambda_.15} parent=11 // pred_check_branch
          %257 = sbr.rel (%p255) target = $region20
        $region19: #{_lambda_.15} parent=11 // pred_region
          %p258 = scmp.lt.s32.totalorder %s24, 0
          %s259 = scalar_select %p258, %s24, 0
          %s260 = scalar_lea.vmem %s2, %s259
        $region20: #{_lambda_.15} parent=11 // pred_fallthru
          _
        // Predicated region
        $region21: #{_lambda_.15} parent=11 // pred_check
          %p261 = pneg %p168
        $region22: #{_lambda_.15} parent=11 // pred_check_branch
          %263 = sbr.rel (%p261) target = $region24
        $region23: #{_lambda_.15} parent=11 // pred_region
          %p264 = scmp.lt.s32.totalorder %s24, 0
          %s265 = scalar_select %p264, %s24, 0
          %s266 = scalar_lea.vmem %s4, %s265
        $region24: #{_lambda_.15} parent=11 // pred_fallthru
          _
        // Predicated region
        $region25: #{_lambda_.15} parent=11 // pred_check
          %p267 = pneg %p194
        $region26: #{_lambda_.15} parent=11 // pred_check_branch
          %269 = sbr.rel (%p267) target = $region28
        $region27: #{_lambda_.15} parent=11 // pred_region
          %p270 = scmp.lt.s32.totalorder %s24, 0
          %s271 = scalar_select %p270, %s24, 0
          %s272 = scalar_lea.vmem %s5, %s271
        $region28: #{_lambda_.15} parent=11 // pred_fallthru
          _
      $region12: #{_lambda_.15} parent=5 // pred_fallthru
        _
      %p273 = scmp.lt.s32.totalorder %s13, 2
      // Predicated region
      $region29: #{_lambda_.15} parent=5 // pred_check
        %p274 = pneg %p273
      $region30: #{_lambda_.15} parent=5 // pred_check_branch
        %276 = sbr.rel (%p274) target = $region32
      $region31: #{_lambda_.15} parent=5 // pred_region
        // Predicated region
        $region33: #{_lambda_.15} parent=31 // pred_check
          %p277 = pneg %p54
        $region34: #{_lambda_.15} parent=31 // pred_check_branch
          %279 = sbr.rel (%p277) target = $region36
        $region35: #{_lambda_.15} parent=31 // pred_region
          %s280 = smul.u32 2, %s20
          %s281 = smul.u32 2, %s22
          %p282 = scmp.lt.s32.totalorder %s280, 3
          %s283 = scalar_select %p282, %s280, 3
          %p284 = scmp.lt.s32.totalorder %s281, 1
          %s285 = scalar_select %p284, %s281, 1
          %s286 = smul.addr %s283, 2
          %s287 = sadd.s32 %s285, %s286
          %s288 = smul.addr %s287, 4
          %s289 = scalar_lea.vmem %s0, %s288
          %s290 = smul.u32 2, %s20
          %s291 = smul.u32 2, %s22
        $region36: #{_lambda_.15} parent=31 // pred_fallthru
          _
        // Predicated region
        $region37: #{_lambda_.15} parent=31 // pred_check
          %p292 = pneg %p136
        $region38: #{_lambda_.15} parent=31 // pred_check_branch
          %294 = sbr.rel (%p292) target = $region40
        $region39: #{_lambda_.15} parent=31 // pred_region
          %s295 = smul.u32 2, %s20
          %p296 = scmp.lt.s32.totalorder %s295, 3
          %s297 = scalar_select %p296, %s295, 3
          %p298 = scmp.lt.s32.totalorder %s21, 0
          %s299 = scalar_select %p298, %s21, 0
          %s300 = sadd.s32 %s299, %s297
          %s301 = smul.addr %s300, 4
          %s302 = scalar_lea.vmem %s3, %s301
          %s303 = smul.u32 2, %s20
        $region40: #{_lambda_.15} parent=31 // pred_fallthru
          _
      $region32: #{_lambda_.15} parent=5 // pred_fallthru
        _
      %p304 = scmp.le.s32.totalorder 1, %s13
      %p305 = scmp.lt.s32.totalorder %s13, 3
      %p306 = pnand %p304, %p305
      %p307 = pneg %p306
      // Predicated region
      $region41: #{_lambda_.15} parent=5 // pred_check
        _
      $region42: #{_lambda_.15} parent=5 // pred_check_branch
        %309 = sbr.rel (%p306) target = $region44
      $region43: #{_lambda_.15} parent=5 // pred_region
        %s310 = ssub.s32 %s13, 1
        // Predicated region
        $region45: #{_lambda_.15} parent=43 // pred_check
          %p311 = pneg %p88
        $region46: #{_lambda_.15} parent=43 // pred_check_branch
          %313 = sbr.rel (%p311) target = $region48
        $region47: #{_lambda_.15} parent=43 // pred_region
          %315 = dma.done [#allocation4], 2048
        $region48: #{_lambda_.15} parent=43 // pred_fallthru
          _
        %s316 = smul.u32 2, %s23
        %s317 = smul.u32 2, %s25
        %p318 = scmp.lt.s32.totalorder %s316, 3
        %s319 = scalar_select %p318, %s316, 3
        %p320 = scmp.lt.s32.totalorder %s317, 1
        %s321 = scalar_select %p320, %s317, 1
        %s322 = smul.addr %s319, 2
        %s323 = sadd.s32 %s321, %s322
        %s324 = smul.addr %s323, 4
        %s325 = scalar_lea.vmem %s0, %s324
        %p326 = pneg %p60
        %p327 = pneg %p57
        %p328 = pneg %p88
        %p329 = pneg %p85
        %p330 = scmp.lt.s32.totalorder %s24, 0
        %s331 = scalar_select %p330, %s24, 0
        %s332 = scalar_lea.vmem %s2, %s331
        %p333 = pneg %p114
        %p334 = pneg %p111
        %s335 = smul.u32 2, %s23
        %p336 = scmp.lt.s32.totalorder %s335, 3
        %s337 = scalar_select %p336, %s335, 3
        %p338 = scmp.lt.s32.totalorder %s24, 0
        %s339 = scalar_select %p338, %s24, 0
        %s340 = sadd.s32 %s339, %s337
        %s341 = smul.addr %s340, 4
        %s342 = scalar_lea.vmem %s3, %s341
        %p343 = pneg %p142
        %p344 = pneg %p139
        %p345 = scmp.lt.s32.totalorder %s24, 0
        %s346 = scalar_select %p345, %s24, 0
        %s347 = scalar_lea.vmem %s4, %s346
        %p348 = pneg %p168
        %p349 = pneg %p165
        %p350 = scmp.lt.s32.totalorder %s24, 0
        %s351 = scalar_select %p350, %s24, 0
        %s352 = scalar_lea.vmem %s5, %s351
        %p353 = pneg %p194
        %p354 = pneg %p191
        %p355 = pneg %p222
        %p356 = pneg %p219
        %s357 = smul.u32 2, %s23
        %p358 = scmp.lt.s32.totalorder %s357, 3
        %s359 = scalar_select %p358, %s357, 3
        %p360 = scmp.lt.s32.totalorder %s24, 0
        %s361 = scalar_select %p360, %s24, 0
        %s362 = sadd.s32 %s361, %s359
        %s363 = smul.addr %s362, 4
        %s364 = scalar_lea.vmem %s6, %s363
        %s365 = smul.u32 2, %s23
        %s366 = smul.u32 2, %s25
        %p367 = scmp.lt.s32.totalorder %s365, 3
        %s368 = scalar_select %p367, %s365, 3
        %p369 = scmp.lt.s32.totalorder %s366, 1
        %s370 = scalar_select %p369, %s366, 1
        %s371 = smul.addr %s368, 2
        %s372 = sadd.s32 %s370, %s371
        %s373 = smul.addr %s372, 4
        %s374 = scalar_lea.vmem %s0, %s373
        %s375 = smul.u32 2, %s23
        %s376 = smul.u32 2, %s25
        %s377 = smul.u32 32, %s25
        %p378 = scmp.lt.s32.totalorder %s24, 0
        %s379 = scalar_select %p378, %s24, 0
        %s380 = scalar_lea.vmem %s2, %s379
        %s381 = smul.u32 2, %s23
        %p382 = scmp.lt.s32.totalorder %s381, 3
        %s383 = scalar_select %p382, %s381, 3
        %p384 = scmp.lt.s32.totalorder %s24, 0
        %s385 = scalar_select %p384, %s24, 0
        %s386 = sadd.s32 %s385, %s383
        %s387 = smul.addr %s386, 4
        %s388 = scalar_lea.vmem %s3, %s387
        %s389 = smul.u32 2, %s23
        %p390 = scmp.lt.s32.totalorder %s24, 0
        %s391 = scalar_select %p390, %s24, 0
        %s392 = scalar_lea.vmem %s4, %s391
        %p393 = scmp.lt.s32.totalorder %s24, 0
        %s394 = scalar_select %p393, %s24, 0
        %s395 = scalar_lea.vmem %s5, %s394
        %s396 = smul.u32 2, %s23
        %p397 = scmp.lt.s32.totalorder %s396, 3
        %s398 = scalar_select %p397, %s396, 3
        %p399 = scmp.lt.s32.totalorder %s24, 0
        %s400 = scalar_select %p399, %s24, 0
        %s401 = sadd.s32 %s400, %s398
        %s402 = smul.addr %s401, 4
        %s403 = scalar_lea.vmem %s6, %s402
        %s404 = smul.u32 2, %s23
        %p405 = scmp.eq.s32.totalorder %s25, 0
        // Predicated region
        $region49: #{_lambda_.15} parent=43 // pred_check
          %p406 = pneg %p405
        $region50: #{_lambda_.15} parent=43 // pred_check_branch
          %408 = sbr.rel (%p406) target = $region52
        $region51: #{_lambda_.15} parent=43 // pred_region
          %409 = vst [vmem:[#allocation2] sm:$0xff] 0.0
          %410 = vst [vmem:[#allocation2 + $0x8] sm:$0xff] 0.0
        $region52: #{_lambda_.15} parent=43 // pred_fallthru
          _
        %v411 = vld [vmem:[#allocation2] sm:$0xff]
        %v412 = vld [vmem:[#allocation2 + $0x8] sm:$0xff]
        %v413 = vld [vmem:[%s374] sm:$0xff]
        %v414 = vld [vmem:[%s374 + $0x8] sm:$0xff]
        %v415 = vld [vmem:[#allocation3] sm:$0xf]
        %v416 = vld [vmem:[#allocation3 + $0x4] sm:$0xf]
        %v417 = vld [vmem:[#allocation3 + $0x8] sm:$0xf]
        %v418 = vld [vmem:[#allocation3 + $0xc] sm:$0xf]
        %v419 = vld [vmem:[#allocation3 + $0x10] sm:$0xf]
        %v420 = vld [vmem:[#allocation3 + $0x14] sm:$0xf]
        %v421 = vld [vmem:[#allocation3 + $0x18] sm:$0xf]
        %v422 = vld [vmem:[#allocation3 + $0x1c] sm:$0xf]
        %v423 = vld [vmem:[#allocation3 + $0x20] sm:$0xf]
        %v424 = vld [vmem:[#allocation3 + $0x24] sm:$0xf]
        %v425 = vld [vmem:[#allocation3 + $0x28] sm:$0xf]
        %v426 = vld [vmem:[#allocation3 + $0x2c] sm:$0xf]
        %v427 = vld [vmem:[#allocation3 + $0x30] sm:$0xf]
        %v428 = vld [vmem:[#allocation3 + $0x34] sm:$0xf]
        %v429 = vld [vmem:[#allocation3 + $0x38] sm:$0xf]
        %v430 = vld [vmem:[#allocation3 + $0x3c] sm:$0xf]
        %v431 = vld [vmem:[#allocation3 + $0x40] sm:$0xf]
        %v432 = vld [vmem:[#allocation3 + $0x44] sm:$0xf]
        %v433 = vld [vmem:[#allocation3 + $0x48] sm:$0xf]
        %v434 = vld [vmem:[#allocation3 + $0x4c] sm:$0xf]
        %v435 = vld [vmem:[#allocation3 + $0x50] sm:$0xf]
        %v436 = vld [vmem:[#allocation3 + $0x54] sm:$0xf]
        %v437 = vld [vmem:[#allocation3 + $0x58] sm:$0xf]
        %v438 = vld [vmem:[#allocation3 + $0x5c] sm:$0xf]
        %v439 = vld [vmem:[#allocation3 + $0x60] sm:$0xf]
        %v440 = vld [vmem:[#allocation3 + $0x64] sm:$0xf]
        %v441 = vld [vmem:[#allocation3 + $0x68] sm:$0xf]
        %v442 = vld [vmem:[#allocation3 + $0x6c] sm:$0xf]
        %v443 = vld [vmem:[#allocation3 + $0x70] sm:$0xf]
        %v444 = vld [vmem:[#allocation3 + $0x74] sm:$0xf]
        %v445 = vld [vmem:[#allocation3 + $0x78] sm:$0xf]
        %v446 = vld [vmem:[#allocation3 + $0x7c] sm:$0xf]
        %v449 = vunpack.c.l.b16 %v413
        %v450 = vunpack.c.h.b16 %v413
        %v451 = vunpack.c.l.b16 %v414
        %v452 = vunpack.c.h.b16 %v414
        %v453 = vpack.c.b16 %v451, %v449
        %v454 = vpack.c.b16 %v452, %v450
        %v489 = vunpack.c.l.b16 %v415
        %v490 = vunpack.c.l.b16 %v416
        %v491 = vunpack.c.l.b16 %v417
        %v492 = vunpack.c.l.b16 %v418
        %v493 = vunpack.c.l.b16 %v419
        %v494 = vunpack.c.l.b16 %v420
        %v495 = vunpack.c.l.b16 %v421
        %v496 = vunpack.c.l.b16 %v422
        %v497 = vunpack.c.l.b16 %v423
        %v498 = vunpack.c.l.b16 %v424
        %v499 = vunpack.c.l.b16 %v425
        %v500 = vunpack.c.l.b16 %v426
        %v501 = vunpack.c.l.b16 %v427
        %v502 = vunpack.c.l.b16 %v428
        %v503 = vunpack.c.l.b16 %v429
        %v504 = vunpack.c.l.b16 %v430
        %v505 = vunpack.c.l.b16 %v431
        %v506 = vunpack.c.l.b16 %v432
        %v507 = vunpack.c.l.b16 %v433
        %v508 = vunpack.c.l.b16 %v434
        %v509 = vunpack.c.l.b16 %v435
        %v510 = vunpack.c.l.b16 %v436
        %v511 = vunpack.c.l.b16 %v437
        %v512 = vunpack.c.l.b16 %v438
        %v513 = vunpack.c.l.b16 %v439
        %v514 = vunpack.c.l.b16 %v440
        %v515 = vunpack.c.l.b16 %v441
        %v516 = vunpack.c.l.b16 %v442
        %v517 = vunpack.c.l.b16 %v443
        %v518 = vunpack.c.l.b16 %v444
        %v519 = vunpack.c.l.b16 %v445
        %v520 = vunpack.c.l.b16 %v446
        %v521 = vpack.c.b16 %v490, %v489
        %v522 = vpack.c.b16 %v492, %v491
        %v523 = vpack.c.b16 %v494, %v493
        %v524 = vpack.c.b16 %v496, %v495
        %v525 = vpack.c.b16 %v498, %v497
        %v526 = vpack.c.b16 %v500, %v499
        %v527 = vpack.c.b16 %v502, %v501
        %v528 = vpack.c.b16 %v504, %v503
        %v529 = vpack.c.b16 %v506, %v505
        %v530 = vpack.c.b16 %v508, %v507
        %v531 = vpack.c.b16 %v510, %v509
        %v532 = vpack.c.b16 %v512, %v511
        %v533 = vpack.c.b16 %v514, %v513
        %v534 = vpack.c.b16 %v516, %v515
        %v535 = vpack.c.b16 %v518, %v517
        %v536 = vpack.c.b16 %v520, %v519
        %553 = vmatpush.bf16.msra.mxu0 %v528
        %554 = vmatpush.bf16.msra.mxu0 %v527
        %555 = vmatpush.bf16.msra.mxu0 %v526
        %556 = vmatpush.bf16.msra.mxu0 %v525
        %557 = vmatpush.bf16.msra.mxu0 %v524
        %558 = vmatpush.bf16.msra.mxu0 %v523
        %559 = vmatpush.bf16.msra.mxu0 %v522
        %560 = vmatpush.bf16.msra.mxu0 %v521
        %561 = vmatmul.bf16.gmra.mxu0 %v453
        %v562 = vpop.f32.mrf.mxu0
        %v563 = vadd.f32 0.0, %v562
        %v564 = vpop.f32.mrf.mxu0
        %v565 = vadd.f32 0.0, %v564
        %566 = vdwg.mxu0
        %567 = vmatpush.bf16.msra.mxu0 %v536
        %568 = vmatpush.bf16.msra.mxu0 %v535
        %569 = vmatpush.bf16.msra.mxu0 %v534
        %570 = vmatpush.bf16.msra.mxu0 %v533
        %571 = vmatpush.bf16.msra.mxu0 %v532
        %572 = vmatpush.bf16.msra.mxu0 %v531
        %573 = vmatpush.bf16.msra.mxu0 %v530
        %574 = vmatpush.bf16.msra.mxu0 %v529
        %575 = vmatmul.bf16.gmra.mxu0 %v454
        %v576 = vpop.f32.mrf.mxu0
        %v577 = vadd.f32 %v563, %v576
        %v578 = vpop.f32.mrf.mxu0
        %v579 = vadd.f32 %v565, %v578
        %580 = vdwg.mxu0
        %v581 = vadd.f32 %v411, %v577
        %v582 = vadd.f32 %v412, %v579
        %583 = vst [vmem:[#allocation2] sm:$0xff] %v581
        %584 = vst [vmem:[#allocation2 + $0x8] sm:$0xff] %v582
        // Predicated region
        $region53: #{_lambda_.15} parent=43 // pred_check
          %p585 = pneg %p405
        $region54: #{_lambda_.15} parent=43 // pred_check_branch
          %587 = sbr.rel (%p585) target = $region56
        $region55: #{_lambda_.15} parent=43 // pred_region
          %v588 = vld [vmem:[#allocation2] sm:$0xff]
          %v589 = vld [vmem:[#allocation2 + $0x8] sm:$0xff]
          %v590 = vld [vmem:[%s380] sm:$0x1]
          %v592 = vperm.slane %v590, 0
          %v594 = vadd.f32 %v588, %v592
          %v595 = vadd.f32 %v589, %v592
          %v596 = vld [vmem:[%s388] sm:$0xf]
          %v597 = vld [vmem:[%s388 + $0x4] sm:$0xf]
          %v598 = vunpack.c.l.bf16 %v596
          %v599 = vunpack.c.l.bf16 %v597
          %v600 = vadd.f32 %v594, %v598
          %v601 = vadd.f32 %v595, %v599
          %602 = vadd.xlane.f32.xlu0 %v600
          %v603 = vpop.xlane.xlu0 %602
          %604 = vadd.xlane.f32.xlu0 %v601
          %v605 = vpop.xlane.xlu0 %604
          %v606 = vrcp.pop 128.0
          %v607 = vmul.f32 128.0, %v606
          %v608 = vsub.f32 1.0, %v607
          %v609 = vmul.f32 %v606, %v608
          %v610 = vadd.f32 %v606, %v609
          %vm611 = vweird.f32 %v606
          %v612 = vsel %vm611, %v606, %v610
          %v613 = vmul.f32 %v603, %v612
          %v614 = vmul.f32 %v605, %v612
          %v615 = vsub.f32 %v600, %v613
          %v616 = vsub.f32 %v601, %v614
          %v617 = vmul.f32 %v615, %v615
          %v618 = vmul.f32 %v616, %v616
          %619 = vadd.xlane.f32.xlu0 %v617
          %v620 = vpop.xlane.xlu0 %619
          %621 = vadd.xlane.f32.xlu0 %v618
          %v622 = vpop.xlane.xlu0 %621
          %v623 = vmul.f32 %v620, %v612
          %v624 = vmul.f32 %v622, %v612
          %v625 = vadd.f32 %v623, 1e-05
          %v626 = vadd.f32 %v624, 1e-05
          %v627 = vrsqrt.pop %v625
          %v628 = vmul.f32 %v627, %v625
          %v629 = vmul.f32 %v628, %v627
          %v630 = vmul.f32 0.5, %v629
          %v631 = vsub.f32 1.5, %v630
          %v632 = vmul.f32 %v627, %v631
          %vm633 = vweird.f32 %v625
          %vm634 = vweird.f32 %v627
          %vm635 = vmor %vm633, %vm634
          %v636 = vsel %vm635, %v627, %v632
          %v637 = vrsqrt.pop %v626
          %v638 = vmul.f32 %v637, %v626
          %v639 = vmul.f32 %v638, %v637
          %v640 = vmul.f32 0.5, %v639
          %v641 = vsub.f32 1.5, %v640
          %v642 = vmul.f32 %v637, %v641
          %vm643 = vweird.f32 %v626
          %vm644 = vweird.f32 %v637
          %vm645 = vmor %vm643, %vm644
          %v646 = vsel %vm645, %v637, %v642
          %v647 = vmul.f32 %v615, %v636
          %v648 = vmul.f32 %v616, %v646
          %v649 = vld [vmem:[%s392] sm:$0x1]
          %v651 = vperm.slane %v649, 0
          %v653 = vmul.f32 %v647, %v651
          %v654 = vmul.f32 %v648, %v651
          %v655 = vld [vmem:[%s395] sm:$0x1]
          %v657 = vperm.slane %v655, 0
          %v659 = vadd.f32 %v653, %v657
          %v660 = vadd.f32 %v654, %v657
          %v661 = vpack.c.bf16 %v659, %v659
          %v662 = vpack.c.bf16 %v660, %v660
          %663 = vst [vmem:[%s403] sm:$0xf] %v661
          %664 = vst [vmem:[%s403 + $0x4] sm:$0xf] %v662
        $region56: #{_lambda_.15} parent=43 // pred_fallthru
          _
        %s665 = smul.u32 2, %s23
        %p666 = scmp.lt.s32.totalorder %s665, 3
        %s667 = scalar_select %p666, %s665, 3
        %p668 = scmp.lt.s32.totalorder %s24, 0
        %s669 = scalar_select %p668, %s24, 0
        %s670 = sadd.s32 %s669, %s667
        %s671 = smul.addr %s670, 4
        %s672 = scalar_lea.vmem %s6, %s671
        // Predicated region
        $region57: #{_lambda_.15} parent=43 // pred_check
          %p673 = pneg %p219
        $region58: #{_lambda_.15} parent=43 // pred_check_branch
          %675 = sbr.rel (%p673) target = $region60
        $region59: #{_lambda_.15} parent=43 // pred_region
          %s676 = smul.u32 2, %s23
        $region60: #{_lambda_.15} parent=43 // pred_fallthru
          _
      $region44: #{_lambda_.15} parent=5 // pred_fallthru
        _
      %p677 = scmp.le.s32.totalorder 2, %s13
      // Predicated region
      $region61: #{_lambda_.15} parent=5 // pred_check
        %p678 = pneg %p677
      $region62: #{_lambda_.15} parent=5 // pred_check_branch
        %680 = sbr.rel (%p678) target = $region64
      $region63: #{_lambda_.15} parent=5 // pred_region
        %s681 = ssub.s32 %s13, 2
        // Predicated region
        $region65: #{_lambda_.15} parent=63 // pred_check
          %p682 = pneg %p225
        $region66: #{_lambda_.15} parent=63 // pred_check_branch
          %684 = sbr.rel (%p682) target = $region68
        $region67: #{_lambda_.15} parent=63 // pred_region
          %s685 = smul.u32 2, %s26
          %p686 = scmp.lt.s32.totalorder %s685, 3
          %s687 = scalar_select %p686, %s685, 3
          %p688 = scmp.lt.s32.totalorder %s27, 0
          %s689 = scalar_select %p688, %s27, 0
          %s690 = sadd.s32 %s689, %s687
          %s691 = smul.addr %s690, 4
          %s692 = scalar_lea.vmem %s6, %s691
        $region68: #{_lambda_.15} parent=63 // pred_fallthru
          _
      $region64: #{_lambda_.15} parent=5 // pred_fallthru
        _
    $region6: #{_lambda_.15} parent=1 // loop_footer
      %s17 = sadd.s32 1, %s13
    $region7: #{_lambda_.15} parent=1 // loop_footer_branch
      %12 = sbr.rel target = $region3
    $region8: #{_lambda_.15} parent=1 // loop_exit
      _
    %693 = vsyncpa [#allocation4], 1
    %s694 = scalar_lea.sflag [#allocation4], 1
    %695 = vsyncpa %s694, 1

// kernel: _lambda_.19
$region0: #{_lambda_.19}
  #allocation0 [shape = 'u32[]', space=smem, size = 0x4, offset = 0x4, fixed_abs, tag = 'smem constant byte address 0x4 - core index']
  #allocation1 [shape = 'u32[72,128]{1,0:T(1,128)}', space=vmem, size = 0x9000, scoped, tag = 'internal scratch']
  #allocation2 [shape = 'f32[16,256]{1,0:T(8,128)}', space=vmem, size = 0x4000, scoped, tag = 'scratch operand']
  %s0 = inlined_call_operand.vmem [shape: bf16[32,128], index: 0, kind: input, shape index: {}]
  %s1 = inlined_call_operand.hbm [shape: bf16[128,256], index: 1, kind: input, shape index: {}]
  %s2 = inlined_call_operand.vmem [shape: f32[1,256], index: 2, kind: input, shape index: {}]
  %s3 = inlined_call_operand.vmem [shape: bf16[32,256], index: 3, kind: output, shape index: {}]
  %s4 = sld [smem:[#allocation0]]
  $region57: #{_lambda_.19} parent=0
    _
  %s6 = ssub.s32 1, %s4
  %s7 = scalar_select 0, %s6, %s4
  $region1: #{_lambda_.19} parent=0
    #allocation3 [shape = 'u8[65536]{0}', space=vmem, size = 0x10000, scoped, tag = 'input window, operand 1, single buffered']
    #allocation4 [shape = 's32[2]{0}', space=sflag, size = 0x8, scoped, tag = 'scoped memory for _lambda_.19']
    %8 = vsyncpa [#allocation4], 0
    loop: start=0, step=1, limit=4
    $region2: #{_lambda_.19} parent=1 // loop_pre_header
      _
    $region3: #{_lambda_.19} parent=1 // loop_header
      %s10 = sphi 0, %s14
      %p11 = scmp.ge.s32.totalorder %s10, 4
      %s17 = sphi 0, %s36
      %s18 = sphi 0, %s32
      %s19 = sphi 0, %s28
      %s20 = sphi 0, %s17
      %s21 = sphi 0, %s18
      %s22 = sphi 0, %s19
      %s23 = sphi 0, %s20
      %s24 = sphi 0, %s21
      %s25 = sphi 0, %s22
      %s41 = sphi 0, %s43
      %s44 = sphi 0, %s41
      %s45 = sphi 0, %s44
      %s61 = sphi 0, %s45
      %s69 = sphi 0, %s71
      %s72 = sphi 0, %s69
      %s73 = sphi 0, %s72
      %s89 = sphi 0, %s73
      %s95 = sphi 0, %s97
      %s98 = sphi 0, %s95
      %s99 = sphi 0, %s98
      %s115 = sphi 0, %s99
      %s123 = sphi 0, %s125
      %s126 = sphi 0, %s123
      %s127 = sphi 0, %s126
      %s143 = sphi 0, %s127
    $region4: #{_lambda_.19} parent=1 // loop_header_branch
      %13 = sbr.rel (%p11) target = $region8
    $region5: #{_lambda_.19} parent=1 // loop_body
      %s15 = ssub.s32 %s10, 1
      %s16 = ssub.s32 %s10, 2
      %s26 = sadd.s32 1, %s19
      %p27 = scmp.ge.s32.totalorder %s26, 1
      %s28 = scalar_select %p27, 0, %s26
      %s29 = sadd.s32 1, %s18
      %s30 = scalar_select %p27, %s29, %s18
      %p31 = scmp.ge.s32.totalorder %s30, 1
      %s32 = scalar_select %p31, 0, %s30
      %s33 = sadd.s32 1, %s17
      %s34 = scalar_select %p31, %s33, %s17
      %p35 = scmp.ge.s32.totalorder %s34, 2
      %s36 = scalar_select %p35, 0, %s34
      %s37 = ssub.s32 %s17, %s36
      %s38 = ssub.s32 %s19, %s28
      %s39 = sor.u32 %s37, %s38
      %p40 = scmp.eq.s32.totalorder %s39, 0
      %s42 = sadd.s32 %s41, 1
      %s43 = scalar_select %p40, %s41, %s42
      %p46 = pneg %p40
      %p47 = scmp.eq.s32.totalorder %s10, 1
      %p48 = por %p46, %p47
      %p49 = scmp.ne.s32.totalorder %s41, %s44
      %p50 = scmp.eq.s32.totalorder %s10, 0
      %p51 = por %p49, %p50
      %p52 = scmp.ne.s32.totalorder %s41, %s44
      %p53 = scmp.eq.s32.totalorder %s15, 1
      %p54 = por %p52, %p53
      %p55 = scmp.ne.s32.totalorder %s44, %s45
      %p56 = scmp.eq.s32.totalorder %s15, 0
      %p57 = por %p55, %p56
      %p58 = scmp.ne.s32.totalorder %s44, %s45
      %p59 = scmp.eq.s32.totalorder %s16, 1
      %p60 = por %p58, %p59
      %p62 = scmp.ne.s32.totalorder %s45, %s61
      %p63 = scmp.eq.s32.totalorder %s16, 0
      %p64 = por %p62, %p63
      %s65 = ssub.s32 %s19, %s28
      %s66 = ssub.s32 %s18, %s32
      %s67 = sor.u32 %s65, %s66
      %p68 = scmp.eq.s32.totalorder %s67, 0
      %s70 = sadd.s32 %s69, 1
      %s71 = scalar_select %p68, %s69, %s70
      %p74 = pneg %p68
      %p75 = scmp.eq.s32.totalorder %s10, 1
      %p76 = por %p74, %p75
      %p77 = scmp.ne.s32.totalorder %s69, %s72
      %p78 = scmp.eq.s32.totalorder %s10, 0
      %p79 = por %p77, %p78
      %p80 = scmp.ne.s32.totalorder %s69, %s72
      %p81 = scmp.eq.s32.totalorder %s15, 1
      %p82 = por %p80, %p81
      %p83 = scmp.ne.s32.totalorder %s72, %s73
      %p84 = scmp.eq.s32.totalorder %s15, 0
      %p85 = por %p83, %p84
      %p86 = scmp.ne.s32.totalorder %s72, %s73
      %p87 = scmp.eq.s32.totalorder %s16, 1
      %p88 = por %p86, %p87
      %p90 = scmp.ne.s32.totalorder %s73, %s89
      %p91 = scmp.eq.s32.totalorder %s16, 0
      %p92 = por %p90, %p91
      %s93 = ssub.s32 %s18, %s32
      %p94 = scmp.eq.s32.totalorder %s93, 0
      %s96 = sadd.s32 %s95, 1
      %s97 = scalar_select %p94, %s95, %s96
      %p100 = pneg %p94
      %p101 = scmp.eq.s32.totalorder %s10, 1
      %p102 = por %p100, %p101
      %p103 = scmp.ne.s32.totalorder %s95, %s98
      %p104 = scmp.eq.s32.totalorder %s10, 0
      %p105 = por %p103, %p104
      %p106 = scmp.ne.s32.totalorder %s95, %s98
      %p107 = scmp.eq.s32.totalorder %s15, 1
      %p108 = por %p106, %p107
      %p109 = scmp.ne.s32.totalorder %s98, %s99
      %p110 = scmp.eq.s32.totalorder %s15, 0
      %p111 = por %p109, %p110
      %p112 = scmp.ne.s32.totalorder %s98, %s99
      %p113 = scmp.eq.s32.totalorder %s16, 1
      %p114 = por %p112, %p113
      %p116 = scmp.ne.s32.totalorder %s99, %s115
      %p117 = scmp.eq.s32.totalorder %s16, 0
      %p118 = por %p116, %p117
      %s119 = ssub.s32 %s17, %s36
      %s120 = ssub.s32 %s18, %s32
      %s121 = sor.u32 %s119, %s120
      %p122 = scmp.eq.s32.totalorder %s121, 0
      %s124 = sadd.s32 %s123, 1
      %s125 = scalar_select %p122, %s123, %s124
      %p128 = pneg %p122
      %p129 = scmp.eq.s32.totalorder %s10, 1
      %p130 = por %p128, %p129
      %p131 = scmp.ne.s32.totalorder %s123, %s126
      %p132 = scmp.eq.s32.totalorder %s10, 0
      %p133 = por %p131, %p132
      %p134 = scmp.ne.s32.totalorder %s123, %s126
      %p135 = scmp.eq.s32.totalorder %s15, 1
      %p136 = por %p134, %p135
      %p137 = scmp.ne.s32.totalorder %s126, %s127
      %p138 = scmp.eq.s32.totalorder %s15, 0
      %p139 = por %p137, %p138
      %p140 = scmp.ne.s32.totalorder %s126, %s127
      %p141 = scmp.eq.s32.totalorder %s16, 1
      %p142 = por %p140, %p141
      %p144 = scmp.ne.s32.totalorder %s127, %s143
      %p145 = scmp.eq.s32.totalorder %s16, 0
      %p146 = por %p144, %p145
      %p147 = scmp.le.s32.totalorder 1, %s10
      %p148 = scmp.lt.s32.totalorder %s10, 3
      %p149 = pnand %p147, %p148
      %p150 = pneg %p149
      // Predicated region
      $region9: #{_lambda_.19} parent=5 // pred_check
        _
      $region10: #{_lambda_.19} parent=5 // pred_check_branch
        %152 = sbr.rel (%p149) target = $region12
      $region11: #{_lambda_.19} parent=5 // pred_region
        %s153 = ssub.s32 %s10, 1
        // Predicated region
        $region13: #{_lambda_.19} parent=11 // pred_check
          %p154 = pneg %p85
        $region14: #{_lambda_.19} parent=11 // pred_check_branch
          %156 = sbr.rel (%p154) target = $region16
        $region15: #{_lambda_.19} parent=11 // pred_region
          %s157 = smul.u32 16, %s22
          %s158 = smul.u32 2, %s21
          %160 = vsyncadd [#allocation4], 0
          %s161 = smul.addr %s157, 2
          %s162 = sadd.s32 %s158, %s161
          %s163 = smul.addr %s162, 4
          %s164 = scalar_lea.hbm %s1, %s163
          %s165 = sshll.u32 %s164, 4
          %s166 = int_to_ptr.hbm [resolvable:$true] %s165
          %s167 = sshll.u32 [#allocation3], 4
          %s168 = int_to_ptr.vmem [resolvable:$true] %s167
          %173 = dma.hbm_to_vmem [thread:$0]  %s166, 2048, %s168, [#allocation4], 128, 128, 8
        $region16: #{_lambda_.19} parent=11 // pred_fallthru
          _
        // Predicated region
        $region17: #{_lambda_.19} parent=11 // pred_check
          %p174 = pneg %p111
        $region18: #{_lambda_.19} parent=11 // pred_check_branch
          %176 = sbr.rel (%p174) target = $region20
        $region19: #{_lambda_.19} parent=11 // pred_region
          %s177 = smul.u32 2, %s21
          %p178 = scmp.lt.s32.totalorder %s177, 1
          %s179 = scalar_select %p178, %s177, 1
          %s180 = scalar_lea.vmem %s2, %s179
          %s181 = smul.u32 2, %s21
        $region20: #{_lambda_.19} parent=11 // pred_fallthru
          _
      $region12: #{_lambda_.19} parent=5 // pred_fallthru
        _
      %p182 = scmp.lt.s32.totalorder %s10, 2
      // Predicated region
      $region21: #{_lambda_.19} parent=5 // pred_check
        %p183 = pneg %p182
      $region22: #{_lambda_.19} parent=5 // pred_check_branch
        %185 = sbr.rel (%p183) target = $region24
      $region23: #{_lambda_.19} parent=5 // pred_region
        // Predicated region
        $region25: #{_lambda_.19} parent=23 // pred_check
          %p186 = pneg %p51
        $region26: #{_lambda_.19} parent=23 // pred_check_branch
          %188 = sbr.rel (%p186) target = $region28
        $region27: #{_lambda_.19} parent=23 // pred_region
          %s189 = smul.u32 2, %s17
          %p190 = scmp.lt.s32.totalorder %s189, 3
          %s191 = scalar_select %p190, %s189, 3
          %p192 = scmp.lt.s32.totalorder %s19, 0
          %s193 = scalar_select %p192, %s19, 0
          %s194 = sadd.s32 %s193, %s191
          %s195 = smul.addr %s194, 4
          %s196 = scalar_lea.vmem %s0, %s195
          %s197 = smul.u32 2, %s17
        $region28: #{_lambda_.19} parent=23 // pred_fallthru
          _
      $region24: #{_lambda_.19} parent=5 // pred_fallthru
        _
      %p198 = scmp.le.s32.totalorder 1, %s10
      %p199 = scmp.lt.s32.totalorder %s10, 3
      %p200 = pnand %p198, %p199
      %p201 = pneg %p200
      // Predicated region
      $region29: #{_lambda_.19} parent=5 // pred_check
        _
      $region30: #{_lambda_.19} parent=5 // pred_check_branch
        %203 = sbr.rel (%p200) target = $region32
      $region31: #{_lambda_.19} parent=5 // pred_region
        %s204 = ssub.s32 %s10, 1
        // Predicated region
        $region33: #{_lambda_.19} parent=31 // pred_check
          %p205 = pneg %p85
        $region34: #{_lambda_.19} parent=31 // pred_check_branch
          %207 = sbr.rel (%p205) target = $region36
        $region35: #{_lambda_.19} parent=31 // pred_region
          %209 = dma.done [#allocation4], 2048
        $region36: #{_lambda_.19} parent=31 // pred_fallthru
          _
        %s210 = smul.u32 2, %s20
        %p211 = scmp.lt.s32.totalorder %s210, 3
        %s212 = scalar_select %p211, %s210, 3
        %p213 = scmp.lt.s32.totalorder %s22, 0
        %s214 = scalar_select %p213, %s22, 0
        %s215 = sadd.s32 %s214, %s212
        %s216 = smul.addr %s215, 4
        %s217 = scalar_lea.vmem %s0, %s216
        %p218 = pneg %p57
        %p219 = pneg %p54
        %p220 = pneg %p85
        %p221 = pneg %p82
        %s222 = smul.u32 2, %s21
        %p223 = scmp.lt.s32.totalorder %s222, 1
        %s224 = scalar_select %p223, %s222, 1
        %s225 = scalar_lea.vmem %s2, %s224
        %p226 = pneg %p111
        %p227 = pneg %p108
        %p228 = pneg %p139
        %p229 = pneg %p136
        %s230 = smul.u32 2, %s20
        %s231 = smul.u32 2, %s21
        %p232 = scmp.lt.s32.totalorder %s230, 3
        %s233 = scalar_select %p232, %s230, 3
        %p234 = scmp.lt.s32.totalorder %s231, 1
        %s235 = scalar_select %p234, %s231, 1
        %s236 = smul.addr %s233, 2
        %s237 = sadd.s32 %s235, %s236
        %s238 = smul.addr %s237, 4
        %s239 = scalar_lea.vmem %s3, %s238
        %s240 = smul.u32 2, %s20
        %p241 = scmp.lt.s32.totalorder %s240, 3
        %s242 = scalar_select %p241, %s240, 3
        %p243 = scmp.lt.s32.totalorder %s22, 0
        %s244 = scalar_select %p243, %s22, 0
        %s245 = sadd.s32 %s244, %s242
        %s246 = smul.addr %s245, 4
        %s247 = scalar_lea.vmem %s0, %s246
        %s248 = smul.u32 2, %s20
        %s249 = smul.u32 16, %s22
        %s250 = smul.u32 2, %s21
        %s251 = smul.u32 2, %s21
        %p252 = scmp.lt.s32.totalorder %s251, 1
        %s253 = scalar_select %p252, %s251, 1
        %s254 = scalar_lea.vmem %s2, %s253
        %s255 = smul.u32 2, %s21
        %s256 = smul.u32 2, %s20
        %s257 = smul.u32 2, %s21
        %p258 = scmp.lt.s32.totalorder %s256, 3
        %s259 = scalar_select %p258, %s256, 3
        %p260 = scmp.lt.s32.totalorder %s257, 1
        %s261 = scalar_select %p260, %s257, 1
        %s262 = smul.addr %s259, 2
        %s263 = sadd.s32 %s261, %s262
        %s264 = smul.addr %s263, 4
        %s265 = scalar_lea.vmem %s3, %s264
        %s266 = smul.u32 2, %s20
        %s267 = smul.u32 2, %s21
        %p268 = scmp.eq.s32.totalorder %s22, 0
        // Predicated region
        $region37: #{_lambda_.19} parent=31 // pred_check
          %p269 = pneg %p268
        $region38: #{_lambda_.19} parent=31 // pred_check_branch
          %271 = sbr.rel (%p269) target = $region40
        $region39: #{_lambda_.19} parent=31 // pred_region
          %272 = vst [vmem:[#allocation2] sm:$0xff] 0.0
          %273 = vst [vmem:[#allocation2 + $0x8] sm:$0xff] 0.0
          %274 = vst [vmem:[#allocation2 + $0x10] sm:$0xff] 0.0
          %275 = vst [vmem:[#allocation2 + $0x18] sm:$0xff] 0.0
        $region40: #{_lambda_.19} parent=31 // pred_fallthru
          _
        %v276 = vld [vmem:[#allocation2] sm:$0xff]
        %v277 = vld [vmem:[#allocation2 + $0x8] sm:$0xff]
        %v278 = vld [vmem:[#allocation2 + $0x10] sm:$0xff]
        %v279 = vld [vmem:[#allocation2 + $0x18] sm:$0xff]
        %v280 = vld [vmem:[%s247] sm:$0xf]
        %v281 = vld [vmem:[%s247 + $0x4] sm:$0xf]
        %v282 = vld [vmem:[#allocation3] sm:$0xff]
        %v283 = vld [vmem:[#allocation3 + $0x8] sm:$0xff]
        %v284 = vld [vmem:[#allocation3 + $0x10] sm:$0xff]
        %v285 = vld [vmem:[#allocation3 + $0x18] sm:$0xff]
        %v286 = vld [vmem:[#allocation3 + $0x20] sm:$0xff]
        %v287 = vld [vmem:[#allocation3 + $0x28] sm:$0xff]
        %v288 = vld [vmem:[#allocation3 + $0x30] sm:$0xff]
        %v289 = vld [vmem:[#allocation3 + $0x38] sm:$0xff]
        %v290 = vld [vmem:[#allocation3 + $0x40] sm:$0xff]
        %v291 = vld [vmem:[#allocation3 + $0x48] sm:$0xff]
        %v292 = vld [vmem:[#allocation3 + $0x50] sm:$0xff]
        %v293 = vld [vmem:[#allocation3 + $0x58] sm:$0xff]
        %v294 = vld [vmem:[#allocation3 + $0x60] sm:$0xff]
        %v295 = vld [vmem:[#allocation3 + $0x68] sm:$0xff]
        %v296 = vld [vmem:[#allocation3 + $0x70] sm:$0xff]
        %v297 = vld [vmem:[#allocation3 + $0x78] sm:$0xff]
        %v300 = vunpack.c.l.b16 %v280
        %v301 = vunpack.c.l.b16 %v281
        %v302 = vpack.c.b16 %v301, %v300
        %v320 = vunpack.c.l.b16 %v282
        %v321 = vunpack.c.h.b16 %v282
        %v322 = vunpack.c.l.b16 %v283
        %v323 = vunpack.c.h.b16 %v283
        %v324 = vunpack.c.l.b16 %v284
        %v325 = vunpack.c.h.b16 %v284
        %v326 = vunpack.c.l.b16 %v285
        %v327 = vunpack.c.h.b16 %v285
        %v328 = vunpack.c.l.b16 %v286
        %v329 = vunpack.c.h.b16 %v286
        %v330 = vunpack.c.l.b16 %v287
        %v331 = vunpack.c.h.b16 %v287
        %v332 = vunpack.c.l.b16 %v288
        %v333 = vunpack.c.h.b16 %v288
        %v334 = vunpack.c.l.b16 %v289
        %v335 = vunpack.c.h.b16 %v289
        %v336 = vunpack.c.l.b16 %v290
        %v337 = vunpack.c.h.b16 %v290
        %v338 = vunpack.c.l.b16 %v291
        %v339 = vunpack.c.h.b16 %v291
        %v340 = vunpack.c.l.b16 %v292
        %v341 = vunpack.c.h.b16 %v292
        %v342 = vunpack.c.l.b16 %v293
        %v343 = vunpack.c.h.b16 %v293
        %v344 = vunpack.c.l.b16 %v294
        %v345 = vunpack.c.h.b16 %v294
        %v346 = vunpack.c.l.b16 %v295
        %v347 = vunpack.c.h.b16 %v295
        %v348 = vunpack.c.l.b16 %v296
        %v349 = vunpack.c.h.b16 %v296
        %v350 = vunpack.c.l.b16 %v297
        %v351 = vunpack.c.h.b16 %v297
        %v352 = vpack.c.b16 %v322, %v320
        %v353 = vpack.c.b16 %v323, %v321
        %v354 = vpack.c.b16 %v326, %v324
        %v355 = vpack.c.b16 %v327, %v325
        %v356 = vpack.c.b16 %v330, %v328
        %v357 = vpack.c.b16 %v331, %v329
        %v358 = vpack.c.b16 %v334, %v332
        %v359 = vpack.c.b16 %v335, %v333
        %v360 = vpack.c.b16 %v338, %v336
        %v361 = vpack.c.b16 %v339, %v337
        %v362 = vpack.c.b16 %v342, %v340
        %v363 = vpack.c.b16 %v343, %v341
        %v364 = vpack.c.b16 %v346, %v344
        %v365 = vpack.c.b16 %v347, %v345
        %v366 = vpack.c.b16 %v350, %v348
        %v367 = vpack.c.b16 %v351, %v349
        %384 = vmatpush.bf16.msra.mxu0 %v366
        %385 = vmatpush.bf16.msra.mxu0 %v364
        %386 = vmatpush.bf16.msra.mxu0 %v362
        %387 = vmatpush.bf16.msra.mxu0 %v360
        %388 = vmatpush.bf16.msra.mxu0 %v358
        %389 = vmatpush.bf16.msra.mxu0 %v356
        %390 = vmatpush.bf16.msra.mxu0 %v354
        %391 = vmatpush.bf16.msra.mxu0 %v352
        %392 = vmatmul.bf16.gmra.mxu0 %v302
        %v393 = vpop.f32.mrf.mxu0
        %v394 = vadd.f32 0.0, %v393
        %v395 = vpop.f32.mrf.mxu0
        %v396 = vadd.f32 0.0, %v395
        %397 = vdwg.mxu0
        %398 = vmatpush.bf16.msra.mxu0 %v367
        %399 = vmatpush.bf16.msra.mxu0 %v365
        %400 = vmatpush.bf16.msra.mxu0 %v363
        %401 = vmatpush.bf16.msra.mxu0 %v361
        %402 = vmatpush.bf16.msra.mxu0 %v359
        %403 = vmatpush.bf16.msra.mxu0 %v357
        %404 = vmatpush.bf16.msra.mxu0 %v355
        %405 = vmatpush.bf16.msra.mxu0 %v353
        %406 = vmatmul.bf16.gmra.mxu0 %v302
        %v407 = vpop.f32.mrf.mxu0
        %v408 = vadd.f32 0.0, %v407
        %v409 = vpop.f32.mrf.mxu0
        %v410 = vadd.f32 0.0, %v409
        %411 = vdwg.mxu0
        %v412 = vadd.f32 %v276, %v394
        %v413 = vadd.f32 %v277, %v408
        %v414 = vadd.f32 %v278, %v396
        %v415 = vadd.f32 %v279, %v410
        %416 = vst [vmem:[#allocation2] sm:$0xff] %v412
        %417 = vst [vmem:[#allocation2 + $0x8] sm:$0xff] %v413
        %418 = vst [vmem:[#allocation2 + $0x10] sm:$0xff] %v414
        %419 = vst [vmem:[#allocation2 + $0x18] sm:$0xff] %v415
        // Predicated region
        $region41: #{_lambda_.19} parent=31 // pred_check
          %p420 = pneg %p268
        $region42: #{_lambda_.19} parent=31 // pred_check_branch
          %422 = sbr.rel (%p420) target = $region44
        $region43: #{_lambda_.19} parent=31 // pred_region
          %v423 = vld [vmem:[#allocation2] sm:$0xff]
          %v424 = vld [vmem:[#allocation2 + $0x8] sm:$0xff]
          %v425 = vld [vmem:[#allocation2 + $0x10] sm:$0xff]
          %v426 = vld [vmem:[#allocation2 + $0x18] sm:$0xff]
          %v427 = vld [vmem:[%s254] sm:$0x3]
          %v429 = vperm.slane %v427, 0
          %v430 = vperm.slane %v427, 1
          %v433 = vadd.f32 %v423, %v429
          %v434 = vadd.f32 %v424, %v430
          %v435 = vadd.f32 %v425, %v429
          %v436 = vadd.f32 %v426, %v430
          %v437 = vpack.c.bf16 %v434, %v433
          %v438 = vpack.c.bf16 %v436, %v435
          %439 = vst [vmem:[%s265] sm:$0xff] %v437
          %440 = vst [vmem:[%s265 + $0x8] sm:$0xff] %v438
        $region44: #{_lambda_.19} parent=31 // pred_fallthru
          _
        %s441 = smul.u32 2, %s20
        %s442 = smul.u32 2, %s21
        %p443 = scmp.lt.s32.totalorder %s441, 3
        %s444 = scalar_select %p443, %s441, 3
        %p445 = scmp.lt.s32.totalorder %s442, 1
        %s446 = scalar_select %p445, %s442, 1
        %s447 = smul.addr %s444, 2
        %s448 = sadd.s32 %s446, %s447
        %s449 = smul.addr %s448, 4
        %s450 = scalar_lea.vmem %s3, %s449
        // Predicated region
        $region45: #{_lambda_.19} parent=31 // pred_check
          %p451 = pneg %p136
        $region46: #{_lambda_.19} parent=31 // pred_check_branch
          %453 = sbr.rel (%p451) target = $region48
        $region47: #{_lambda_.19} parent=31 // pred_region
          %s454 = smul.u32 2, %s20
          %s455 = smul.u32 2, %s21
        $region48: #{_lambda_.19} parent=31 // pred_fallthru
          _
      $region32: #{_lambda_.19} parent=5 // pred_fallthru
        _
      %p456 = scmp.le.s32.totalorder 2, %s10
      // Predicated region
      $region49: #{_lambda_.19} parent=5 // pred_check
        %p457 = pneg %p456
      $region50: #{_lambda_.19} parent=5 // pred_check_branch
        %459 = sbr.rel (%p457) target = $region52
      $region51: #{_lambda_.19} parent=5 // pred_region
        %s460 = ssub.s32 %s10, 2
        // Predicated region
        $region53: #{_lambda_.19} parent=51 // pred_check
          %p461 = pneg %p142
        $region54: #{_lambda_.19} parent=51 // pred_check_branch
          %463 = sbr.rel (%p461) target = $region56
        $region55: #{_lambda_.19} parent=51 // pred_region
          %s464 = smul.u32 2, %s23
          %s465 = smul.u32 2, %s24
          %p466 = scmp.lt.s32.totalorder %s464, 3
          %s467 = scalar_select %p466, %s464, 3
          %p468 = scmp.lt.s32.totalorder %s465, 1
          %s469 = scalar_select %p468, %s465, 1
          %s470 = smul.addr %s467, 2
          %s471 = sadd.s32 %s469, %s470
          %s472 = smul.addr %s471, 4
          %s473 = scalar_lea.vmem %s3, %s472
        $region56: #{_lambda_.19} parent=51 // pred_fallthru
          _
      $region52: #{_lambda_.19} parent=5 // pred_fallthru
        _
    $region6: #{_lambda_.19} parent=1 // loop_footer
      %s14 = sadd.s32 1, %s10
    $region7: #{_lambda_.19} parent=1 // loop_footer_branch
      %9 = sbr.rel target = $region3
    $region8: #{_lambda_.19} parent=1 // loop_exit
      _
    %474 = vsyncpa [#allocation4], 1
    %s475 = scalar_lea.sflag [#allocation4], 1
    %476 = vsyncpa %s475, 1

// kernel: _lambda_.18
$region0: #{_lambda_.18}
  #allocation0 [shape = 'u32[]', space=smem, size = 0x4, offset = 0x4, fixed_abs, tag = 'smem constant byte address 0x4 - core index']
  #allocation1 [shape = 'u32[72,128]{1,0:T(1,128)}', space=vmem, size = 0x9000, scoped, tag = 'internal scratch']
  #allocation2 [shape = 'f32[16,128]{1,0:T(8,128)}', space=vmem, size = 0x2000, scoped, tag = 'scratch operand']
  %s0 = inlined_call_operand.vmem [shape: bf16[16,128], index: 0, kind: input, shape index: {}]
  %s1 = inlined_call_operand.hbm [shape: bf16[128,128], index: 1, kind: input, shape index: {}]
  %s2 = inlined_call_operand.vmem [shape: f32[1,128], index: 2, kind: input, shape index: {}]
  %s3 = inlined_call_operand.vmem [shape: bf16[16,128], index: 3, kind: output, shape index: {}]
  %s4 = sld [smem:[#allocation0]]
  $region34: #{_lambda_.18} parent=0
    _
  %s6 = ssub.s32 1, %s4
  %s7 = scalar_select 0, %s6, %s4
  $region1: #{_lambda_.18} parent=0
    #allocation3 [shape = 'u8[32768]{0}', space=vmem, size = 0x8000, scoped, tag = 'input window, operand 1, single buffered']
    #allocation4 [shape = 's32[1]{0}', space=sflag, size = 0x4, scoped, tag = 'scoped memory for _lambda_.18']
    %8 = vsyncpa [#allocation4], 0
    // Predicated region
    $region2: #{_lambda_.18} parent=1 // pred_check
      _
    $region3: #{_lambda_.18} parent=1 // pred_check_branch
      %10 = sbr.rel (0) target = $region5
    $region4: #{_lambda_.18} parent=1 // pred_region
      _
    $region5: #{_lambda_.18} parent=1 // pred_fallthru
      _
    // Predicated region
    $region6: #{_lambda_.18} parent=1 // pred_check
      _
    $region7: #{_lambda_.18} parent=1 // pred_check_branch
      %12 = sbr.rel (0) target = $region9
    $region8: #{_lambda_.18} parent=1 // pred_region
      %14 = vsyncadd [#allocation4], 0
      %s15 = sshll.u32 %s1, 4
      %s16 = int_to_ptr.hbm [resolvable:$true] %s15
      %s17 = sshll.u32 [#allocation3], 4
      %s18 = int_to_ptr.vmem [resolvable:$true] %s17
      %23 = dma.hbm_to_vmem [thread:$0]  %s16, 1024, %s18, [#allocation4], 64, 64, 4
    $region9: #{_lambda_.18} parent=1 // pred_fallthru
      _
    // Predicated region
    $region10: #{_lambda_.18} parent=1 // pred_check
      _
    $region11: #{_lambda_.18} parent=1 // pred_check_branch
      %25 = sbr.rel (0) target = $region13
    $region12: #{_lambda_.18} parent=1 // pred_region
      _
    $region13: #{_lambda_.18} parent=1 // pred_fallthru
      _
    // Predicated region
    $region14: #{_lambda_.18} parent=1 // pred_check
      _
    $region15: #{_lambda_.18} parent=1 // pred_check_branch
      %27 = sbr.rel (0) target = $region17
    $region16: #{_lambda_.18} parent=1 // pred_region
      %29 = dma.done [#allocation4], 1024
    $region17: #{_lambda_.18} parent=1 // pred_fallthru
      _
    %p30 = scmp.eq.s32.totalorder 0, 0
    // Predicated region
    $region18: #{_lambda_.18} parent=1 // pred_check
      %p31 = pneg %p30
    $region19: #{_lambda_.18} parent=1 // pred_check_branch
      %33 = sbr.rel (%p31) target = $region21
    $region20: #{_lambda_.18} parent=1 // pred_region
      %34 = vst [vmem:[#allocation2] sm:$0xff] 0.0
      %35 = vst [vmem:[#allocation2 + $0x8] sm:$0xff] 0.0
    $region21: #{_lambda_.18} parent=1 // pred_fallthru
      _
    %v36 = vld [vmem:[#allocation2] sm:$0xff]
    %v37 = vld [vmem:[#allocation2 + $0x8] sm:$0xff]
    %v38 = vld [vmem:[%s0] sm:$0xf]
    %v39 = vld [vmem:[%s0 + $0x4] sm:$0xf]
    %v40 = vld [vmem:[#allocation3] sm:$0xf]
    %v41 = vld [vmem:[#allocation3 + $0x4] sm:$0xf]
    %v42 = vld [vmem:[#allocation3 + $0x8] sm:$0xf]
    %v43 = vld [vmem:[#allocation3 + $0xc] sm:$0xf]
    %v44 = vld [vmem:[#allocation3 + $0x10] sm:$0xf]
    %v45 = vld [vmem:[#allocation3 + $0x14] sm:$0xf]
    %v46 = vld [vmem:[#allocation3 + $0x18] sm:$0xf]
    %v47 = vld [vmem:[#allocation3 + $0x1c] sm:$0xf]
    %v48 = vld [vmem:[#allocation3 + $0x20] sm:$0xf]
    %v49 = vld [vmem:[#allocation3 + $0x24] sm:$0xf]
    %v50 = vld [vmem:[#allocation3 + $0x28] sm:$0xf]
    %v51 = vld [vmem:[#allocation3 + $0x2c] sm:$0xf]
    %v52 = vld [vmem:[#allocation3 + $0x30] sm:$0xf]
    %v53 = vld [vmem:[#allocation3 + $0x34] sm:$0xf]
    %v54 = vld [vmem:[#allocation3 + $0x38] sm:$0xf]
    %v55 = vld [vmem:[#allocation3 + $0x3c] sm:$0xf]
    %v58 = vunpack.c.l.b16 %v38
    %v59 = vunpack.c.l.b16 %v39
    %v60 = vpack.c.b16 %v59, %v58
    %v78 = vunpack.c.l.b16 %v40
    %v79 = vunpack.c.l.b16 %v41
    %v80 = vunpack.c.l.b16 %v42
    %v81 = vunpack.c.l.b16 %v43
    %v82 = vunpack.c.l.b16 %v44
    %v83 = vunpack.c.l.b16 %v45
    %v84 = vunpack.c.l.b16 %v46
    %v85 = vunpack.c.l.b16 %v47
    %v86 = vunpack.c.l.b16 %v48
    %v87 = vunpack.c.l.b16 %v49
    %v88 = vunpack.c.l.b16 %v50
    %v89 = vunpack.c.l.b16 %v51
    %v90 = vunpack.c.l.b16 %v52
    %v91 = vunpack.c.l.b16 %v53
    %v92 = vunpack.c.l.b16 %v54
    %v93 = vunpack.c.l.b16 %v55
    %v94 = vpack.c.b16 %v79, %v78
    %v95 = vpack.c.b16 %v81, %v80
    %v96 = vpack.c.b16 %v83, %v82
    %v97 = vpack.c.b16 %v85, %v84
    %v98 = vpack.c.b16 %v87, %v86
    %v99 = vpack.c.b16 %v89, %v88
    %v100 = vpack.c.b16 %v91, %v90
    %v101 = vpack.c.b16 %v93, %v92
    %110 = vmatpush.bf16.msra.mxu0 %v101
    %111 = vmatpush.bf16.msra.mxu0 %v100
    %112 = vmatpush.bf16.msra.mxu0 %v99
    %113 = vmatpush.bf16.msra.mxu0 %v98
    %114 = vmatpush.bf16.msra.mxu0 %v97
    %115 = vmatpush.bf16.msra.mxu0 %v96
    %116 = vmatpush.bf16.msra.mxu0 %v95
    %117 = vmatpush.bf16.msra.mxu0 %v94
    %118 = vmatmul.bf16.gmra.mxu0 %v60
    %v119 = vpop.f32.mrf.mxu0
    %v120 = vadd.f32 0.0, %v119
    %v121 = vpop.f32.mrf.mxu0
    %v122 = vadd.f32 0.0, %v121
    %123 = vdwg.mxu0
    %v124 = vadd.f32 %v36, %v120
    %v125 = vadd.f32 %v37, %v122
    %126 = vst [vmem:[#allocation2] sm:$0xff] %v124
    %127 = vst [vmem:[#allocation2 + $0x8] sm:$0xff] %v125
    // Predicated region
    $region22: #{_lambda_.18} parent=1 // pred_check
      %p128 = pneg %p30
    $region23: #{_lambda_.18} parent=1 // pred_check_branch
      %130 = sbr.rel (%p128) target = $region25
    $region24: #{_lambda_.18} parent=1 // pred_region
      %v131 = vld [vmem:[#allocation2] sm:$0xff]
      %v132 = vld [vmem:[#allocation2 + $0x8] sm:$0xff]
      %v133 = vld [vmem:[%s2] sm:$0x1]
      %v135 = vperm.slane %v133, 0
      %v137 = vadd.f32 %v131, %v135
      %v138 = vadd.f32 %v132, %v135
      %v139 = vpack.c.bf16 %v137, %v137
      %v140 = vpack.c.bf16 %v138, %v138
      %141 = vst [vmem:[%s3] sm:$0xf] %v139
      %142 = vst [vmem:[%s3 + $0x4] sm:$0xf] %v140
    $region25: #{_lambda_.18} parent=1 // pred_fallthru
      _
    // Predicated region
    $region26: #{_lambda_.18} parent=1 // pred_check
      _
    $region27: #{_lambda_.18} parent=1 // pred_check_branch
      %144 = sbr.rel (0) target = $region29
    $region28: #{_lambda_.18} parent=1 // pred_region
      _
    $region29: #{_lambda_.18} parent=1 // pred_fallthru
      _
    // Predicated region
    $region30: #{_lambda_.18} parent=1 // pred_check
      _
    $region31: #{_lambda_.18} parent=1 // pred_check_branch
      %146 = sbr.rel (0) target = $region33
    $region32: #{_lambda_.18} parent=1 // pred_region
      _
    $region33: #{_lambda_.18} parent=1 // pred_fallthru
      _
    %147 = vsyncpa [#allocation4], 1

// kernel: _lambda_.16
$region0: #{_lambda_.16}
  #allocation0 [shape = 'u32[]', space=smem, size = 0x4, offset = 0x4, fixed_abs, tag = 'smem constant byte address 0x4 - core index']
  #allocation1 [shape = 'u32[72,128]{1,0:T(1,128)}', space=vmem, size = 0x9000, scoped, tag = 'internal scratch']
  #allocation2 [shape = 'f32[16,384]{1,0:T(8,128)}', space=vmem, size = 0x6000, scoped, tag = 'scratch operand']
  %s0 = inlined_call_operand.vmem [shape: bf16[16,128], index: 0, kind: input, shape index: {}]
  %s1 = inlined_call_operand.hbm [shape: bf16[128,384], index: 1, kind: input, shape index: {}]
  %s2 = inlined_call_operand.vmem [shape: f32[1,384], index: 2, kind: input, shape index: {}]
  %s3 = inlined_call_operand.vmem [shape: bf16[16,384], index: 3, kind: output, shape index: {}]
  %s4 = sld [smem:[#allocation0]]
  $region34: #{_lambda_.16} parent=0
    _
  %s6 = ssub.s32 1, %s4
  %s7 = scalar_select 0, %s6, %s4
  $region1: #{_lambda_.16} parent=0
    #allocation3 [shape = 'u8[98304]{0}', space=vmem, size = 0x18000, scoped, tag = 'input window, operand 1, single buffered']
    #allocation4 [shape = 's32[1]{0}', space=sflag, size = 0x4, scoped, tag = 'scoped memory for _lambda_.16']
    %8 = vsyncpa [#allocation4], 0
    // Predicated region
    $region2: #{_lambda_.16} parent=1 // pred_check
      _
    $region3: #{_lambda_.16} parent=1 // pred_check_branch
      %10 = sbr.rel (0) target = $region5
    $region4: #{_lambda_.16} parent=1 // pred_region
      _
    $region5: #{_lambda_.16} parent=1 // pred_fallthru
      _
    // Predicated region
    $region6: #{_lambda_.16} parent=1 // pred_check
      _
    $region7: #{_lambda_.16} parent=1 // pred_check_branch
      %12 = sbr.rel (0) target = $region9
    $region8: #{_lambda_.16} parent=1 // pred_region
      %14 = vsyncadd [#allocation4], 0
      %s15 = sshll.u32 %s1, 4
      %s16 = int_to_ptr.hbm [resolvable:$true] %s15
      %s17 = sshll.u32 [#allocation3], 4
      %s18 = int_to_ptr.vmem [resolvable:$true] %s17
      %23 = dma.hbm_to_vmem [thread:$0]  %s16, 3072, %s18, [#allocation4], 192, 192, 12
    $region9: #{_lambda_.16} parent=1 // pred_fallthru
      _
    // Predicated region
    $region10: #{_lambda_.16} parent=1 // pred_check
      _
    $region11: #{_lambda_.16} parent=1 // pred_check_branch
      %25 = sbr.rel (0) target = $region13
    $region12: #{_lambda_.16} parent=1 // pred_region
      _
    $region13: #{_lambda_.16} parent=1 // pred_fallthru
      _
    // Predicated region
    $region14: #{_lambda_.16} parent=1 // pred_check
      _
    $region15: #{_lambda_.16} parent=1 // pred_check_branch
      %27 = sbr.rel (0) target = $region17
    $region16: #{_lambda_.16} parent=1 // pred_region
      %29 = dma.done [#allocation4], 3072
    $region17: #{_lambda_.16} parent=1 // pred_fallthru
      _
    %p30 = scmp.eq.s32.totalorder 0, 0
    // Predicated region
    $region18: #{_lambda_.16} parent=1 // pred_check
      %p31 = pneg %p30
    $region19: #{_lambda_.16} parent=1 // pred_check_branch
      %33 = sbr.rel (%p31) target = $region21
    $region20: #{_lambda_.16} parent=1 // pred_region
      %34 = vst [vmem:[#allocation2] sm:$0xff] 0.0
      %35 = vst [vmem:[#allocation2 + $0x8] sm:$0xff] 0.0
      %36 = vst [vmem:[#allocation2 + $0x10] sm:$0xff] 0.0
      %37 = vst [vmem:[#allocation2 + $0x18] sm:$0xff] 0.0
      %38 = vst [vmem:[#allocation2 + $0x20] sm:$0xff] 0.0
      %39 = vst [vmem:[#allocation2 + $0x28] sm:$0xff] 0.0
    $region21: #{_lambda_.16} parent=1 // pred_fallthru
      _
    %v40 = vld [vmem:[#allocation2] sm:$0xff]
    %v41 = vld [vmem:[#allocation2 + $0x8] sm:$0xff]
    %v42 = vld [vmem:[#allocation2 + $0x10] sm:$0xff]
    %v43 = vld [vmem:[#allocation2 + $0x18] sm:$0xff]
    %v44 = vld [vmem:[#allocation2 + $0x20] sm:$0xff]
    %v45 = vld [vmem:[#allocation2 + $0x28] sm:$0xff]
    %v46 = vld [vmem:[%s0] sm:$0xf]
    %v47 = vld [vmem:[%s0 + $0x4] sm:$0xf]
    %v48 = vld [vmem:[#allocation3] sm:$0xff]
    %v49 = vld [vmem:[#allocation3 + $0x8] sm:$0xf]
    %v50 = vld [vmem:[#allocation3 + $0xc] sm:$0xff]
    %v51 = vld [vmem:[#allocation3 + $0x14] sm:$0xf]
    %v52 = vld [vmem:[#allocation3 + $0x18] sm:$0xff]
    %v53 = vld [vmem:[#allocation3 + $0x20] sm:$0xf]
    %v54 = vld [vmem:[#allocation3 + $0x24] sm:$0xff]
    %v55 = vld [vmem:[#allocation3 + $0x2c] sm:$0xf]
    %v56 = vld [vmem:[#allocation3 + $0x30] sm:$0xff]
    %v57 = vld [vmem:[#allocation3 + $0x38] sm:$0xf]
    %v58 = vld [vmem:[#allocation3 + $0x3c] sm:$0xff]
    %v59 = vld [vmem:[#allocation3 + $0x44] sm:$0xf]
    %v60 = vld [vmem:[#allocation3 + $0x48] sm:$0xff]
    %v61 = vld [vmem:[#allocation3 + $0x50] sm:$0xf]
    %v62 = vld [vmem:[#allocation3 + $0x54] sm:$0xff]
    %v63 = vld [vmem:[#allocation3 + $0x5c] sm:$0xf]
    %v64 = vld [vmem:[#allocation3 + $0x60] sm:$0xff]
    %v65 = vld [vmem:[#allocation3 + $0x68] sm:$0xf]
    %v66 = vld [vmem:[#allocation3 + $0x6c] sm:$0xff]
    %v67 = vld [vmem:[#allocation3 + $0x74] sm:$0xf]
    %v68 = vld [vmem:[#allocation3 + $0x78] sm:$0xff]
    %v69 = vld [vmem:[#allocation3 + $0x80] sm:$0xf]
    %v70 = vld [vmem:[#allocation3 + $0x84] sm:$0xff]
    %v71 = vld [vmem:[#allocation3 + $0x8c] sm:$0xf]
    %v72 = vld [vmem:[#allocation3 + $0x90] sm:$0xff]
    %v73 = vld [vmem:[#allocation3 + $0x98] sm:$0xf]
    %v74 = vld [vmem:[#allocation3 + $0x9c] sm:$0xff]
    %v75 = vld [vmem:[#allocation3 + $0xa4] sm:$0xf]
    %v76 = vld [vmem:[#allocation3 + $0xa8] sm:$0xff]
    %v77 = vld [vmem:[#allocation3 + $0xb0] sm:$0xf]
    %v78 = vld [vmem:[#allocation3 + $0xb4] sm:$0xff]
    %v79 = vld [vmem:[#allocation3 + $0xbc] sm:$0xf]
    %v82 = vunpack.c.l.b16 %v46
    %v83 = vunpack.c.l.b16 %v47
    %v84 = vpack.c.b16 %v83, %v82
    %v118 = vunpack.c.l.b16 %v48
    %v119 = vunpack.c.h.b16 %v48
    %v120 = vunpack.c.l.b16 %v49
    %v121 = vunpack.c.l.b16 %v50
    %v122 = vunpack.c.h.b16 %v50
    %v123 = vunpack.c.l.b16 %v51
    %v124 = vunpack.c.l.b16 %v52
    %v125 = vunpack.c.h.b16 %v52
    %v126 = vunpack.c.l.b16 %v53
    %v127 = vunpack.c.l.b16 %v54
    %v128 = vunpack.c.h.b16 %v54
    %v129 = vunpack.c.l.b16 %v55
    %v130 = vunpack.c.l.b16 %v56
    %v131 = vunpack.c.h.b16 %v56
    %v132 = vunpack.c.l.b16 %v57
    %v133 = vunpack.c.l.b16 %v58
    %v134 = vunpack.c.h.b16 %v58
    %v135 = vunpack.c.l.b16 %v59
    %v136 = vunpack.c.l.b16 %v60
    %v137 = vunpack.c.h.b16 %v60
    %v138 = vunpack.c.l.b16 %v61
    %v139 = vunpack.c.l.b16 %v62
    %v140 = vunpack.c.h.b16 %v62
    %v141 = vunpack.c.l.b16 %v63
    %v142 = vunpack.c.l.b16 %v64
    %v143 = vunpack.c.h.b16 %v64
    %v144 = vunpack.c.l.b16 %v65
    %v145 = vunpack.c.l.b16 %v66
    %v146 = vunpack.c.h.b16 %v66
    %v147 = vunpack.c.l.b16 %v67
    %v148 = vunpack.c.l.b16 %v68
    %v149 = vunpack.c.h.b16 %v68
    %v150 = vunpack.c.l.b16 %v69
    %v151 = vunpack.c.l.b16 %v70
    %v152 = vunpack.c.h.b16 %v70
    %v153 = vunpack.c.l.b16 %v71
    %v154 = vunpack.c.l.b16 %v72
    %v155 = vunpack.c.h.b16 %v72
    %v156 = vunpack.c.l.b16 %v73
    %v157 = vunpack.c.l.b16 %v74
    %v158 = vunpack.c.h.b16 %v74
    %v159 = vunpack.c.l.b16 %v75
    %v160 = vunpack.c.l.b16 %v76
    %v161 = vunpack.c.h.b16 %v76
    %v162 = vunpack.c.l.b16 %v77
    %v163 = vunpack.c.l.b16 %v78
    %v164 = vunpack.c.h.b16 %v78
    %v165 = vunpack.c.l.b16 %v79
    %v166 = vpack.c.b16 %v121, %v118
    %v167 = vpack.c.b16 %v122, %v119
    %v168 = vpack.c.b16 %v123, %v120
    %v169 = vpack.c.b16 %v127, %v124
    %v170 = vpack.c.b16 %v128, %v125
    %v171 = vpack.c.b16 %v129, %v126
    %v172 = vpack.c.b16 %v133, %v130
    %v173 = vpack.c.b16 %v134, %v131
    %v174 = vpack.c.b16 %v135, %v132
    %v175 = vpack.c.b16 %v139, %v136
    %v176 = vpack.c.b16 %v140, %v137
    %v177 = vpack.c.b16 %v141, %v138
    %v178 = vpack.c.b16 %v145, %v142
    %v179 = vpack.c.b16 %v146, %v143
    %v180 = vpack.c.b16 %v147, %v144
    %v181 = vpack.c.b16 %v151, %v148
    %v182 = vpack.c.b16 %v152, %v149
    %v183 = vpack.c.b16 %v153, %v150
    %v184 = vpack.c.b16 %v157, %v154
    %v185 = vpack.c.b16 %v158, %v155
    %v186 = vpack.c.b16 %v159, %v156
    %v187 = vpack.c.b16 %v163, %v160
    %v188 = vpack.c.b16 %v164, %v161
    %v189 = vpack.c.b16 %v165, %v162
    %214 = vmatpush.bf16.msra.mxu0 %v187
    %215 = vmatpush.bf16.msra.mxu0 %v184
    %216 = vmatpush.bf16.msra.mxu0 %v181
    %217 = vmatpush.bf16.msra.mxu0 %v178
    %218 = vmatpush.bf16.msra.mxu0 %v175
    %219 = vmatpush.bf16.msra.mxu0 %v172
    %220 = vmatpush.bf16.msra.mxu0 %v169
    %221 = vmatpush.bf16.msra.mxu0 %v166
    %222 = vmatmul.bf16.gmra.mxu0 %v84
    %v223 = vpop.f32.mrf.mxu0
    %v224 = vadd.f32 0.0, %v223
    %v225 = vpop.f32.mrf.mxu0
    %v226 = vadd.f32 0.0, %v225
    %227 = vdwg.mxu0
    %228 = vmatpush.bf16.msra.mxu0 %v188
    %229 = vmatpush.bf16.msra.mxu0 %v185
    %230 = vmatpush.bf16.msra.mxu0 %v182
    %231 = vmatpush.bf16.msra.mxu0 %v179
    %232 = vmatpush.bf16.msra.mxu0 %v176
    %233 = vmatpush.bf16.msra.mxu0 %v173
    %234 = vmatpush.bf16.msra.mxu0 %v170
    %235 = vmatpush.bf16.msra.mxu0 %v167
    %236 = vmatmul.bf16.gmra.mxu0 %v84
    %v237 = vpop.f32.mrf.mxu0
    %v238 = vadd.f32 0.0, %v237
    %v239 = vpop.f32.mrf.mxu0
    %v240 = vadd.f32 0.0, %v239
    %241 = vdwg.mxu0
    %242 = vmatpush.bf16.msra.mxu0 %v189
    %243 = vmatpush.bf16.msra.mxu0 %v186
    %244 = vmatpush.bf16.msra.mxu0 %v183
    %245 = vmatpush.bf16.msra.mxu0 %v180
    %246 = vmatpush.bf16.msra.mxu0 %v177
    %247 = vmatpush.bf16.msra.mxu0 %v174
    %248 = vmatpush.bf16.msra.mxu0 %v171
    %249 = vmatpush.bf16.msra.mxu0 %v168
    %250 = vmatmul.bf16.gmra.mxu0 %v84
    %v251 = vpop.f32.mrf.mxu0
    %v252 = vadd.f32 0.0, %v251
    %v253 = vpop.f32.mrf.mxu0
    %v254 = vadd.f32 0.0, %v253
    %255 = vdwg.mxu0
    %v256 = vadd.f32 %v40, %v224
    %v257 = vadd.f32 %v41, %v238
    %v258 = vadd.f32 %v42, %v252
    %v259 = vadd.f32 %v43, %v226
    %v260 = vadd.f32 %v44, %v240
    %v261 = vadd.f32 %v45, %v254
    %262 = vst [vmem:[#allocation2] sm:$0xff] %v256
    %263 = vst [vmem:[#allocation2 + $0x8] sm:$0xff] %v257
    %264 = vst [vmem:[#allocation2 + $0x10] sm:$0xff] %v258
    %265 = vst [vmem:[#allocation2 + $0x18] sm:$0xff] %v259
    %266 = vst [vmem:[#allocation2 + $0x20] sm:$0xff] %v260
    %267 = vst [vmem:[#allocation2 + $0x28] sm:$0xff] %v261
    // Predicated region
    $region22: #{_lambda_.16} parent=1 // pred_check
      %p268 = pneg %p30
    $region23: #{_lambda_.16} parent=1 // pred_check_branch
      %270 = sbr.rel (%p268) target = $region25
    $region24: #{_lambda_.16} parent=1 // pred_region
      %v271 = vld [vmem:[#allocation2] sm:$0xff]
      %v272 = vld [vmem:[#allocation2 + $0x8] sm:$0xff]
      %v273 = vld [vmem:[#allocation2 + $0x10] sm:$0xff]
      %v274 = vld [vmem:[#allocation2 + $0x18] sm:$0xff]
      %v275 = vld [vmem:[#allocation2 + $0x20] sm:$0xff]
      %v276 = vld [vmem:[#allocation2 + $0x28] sm:$0xff]
      %v277 = vld [vmem:[%s2] sm:$0x7]
      %v279 = vperm.slane %v277, 0
      %v280 = vperm.slane %v277, 1
      %v281 = vperm.slane %v277, 2
      %v285 = vadd.f32 %v271, %v279
      %v286 = vadd.f32 %v272, %v280
      %v287 = vadd.f32 %v273, %v281
      %v288 = vadd.f32 %v274, %v279
      %v289 = vadd.f32 %v275, %v280
      %v290 = vadd.f32 %v276, %v281
      %v291 = vpack.c.bf16 %v286, %v285
      %v292 = vpack.c.bf16 %v287, %v287
      %v293 = vpack.c.bf16 %v289, %v288
      %v294 = vpack.c.bf16 %v290, %v290
      %295 = vst [vmem:[%s3] sm:$0xff] %v291
      %296 = vst [vmem:[%s3 + $0x8] sm:$0xf] %v292
      %297 = vst [vmem:[%s3 + $0xc] sm:$0xff] %v293
      %298 = vst [vmem:[%s3 + $0x14] sm:$0xf] %v294
    $region25: #{_lambda_.16} parent=1 // pred_fallthru
      _
    // Predicated region
    $region26: #{_lambda_.16} parent=1 // pred_check
      _
    $region27: #{_lambda_.16} parent=1 // pred_check_branch
      %300 = sbr.rel (0) target = $region29
    $region28: #{_lambda_.16} parent=1 // pred_region
      _
    $region29: #{_lambda_.16} parent=1 // pred_fallthru
      _
    // Predicated region
    $region30: #{_lambda_.16} parent=1 // pred_check
      _
    $region31: #{_lambda_.16} parent=1 // pred_check_branch
      %302 = sbr.rel (0) target = $region33
    $region32: #{_lambda_.16} parent=1 // pred_region
      _
    $region33: #{_lambda_.16} parent=1 // pred_fallthru
      _
    %303 = vsyncpa [#allocation4], 1

// kernel: _lambda_.17
$region0: #{_lambda_.17}
  #allocation0 [shape = 'u32[]', space=smem, size = 0x4, offset = 0x4, fixed_abs, tag = 'smem constant byte address 0x4 - core index']
  #allocation1 [shape = 'u32[72,128]{1,0:T(1,128)}', space=vmem, size = 0x9000, scoped, tag = 'internal scratch']
  %s0 = inlined_call_operand.vmem [shape: bf16[2,8,384], index: 0, kind: input, shape index: {}]
  %s1 = inlined_call_operand.vmem [shape: bf16[2,8,128], index: 1, kind: input, shape index: {}]
  %s2 = inlined_call_operand.vmem [shape: bf16[128,128], index: 2, kind: input, shape index: {}]
  %s3 = inlined_call_operand.vmem [shape: f32[1,128], index: 3, kind: input, shape index: {}]
  %s4 = inlined_call_operand.vmem [shape: f32[1,128], index: 4, kind: input, shape index: {}]
  %s5 = inlined_call_operand.vmem [shape: f32[1,128], index: 5, kind: input, shape index: {}]
  %s6 = inlined_call_operand.vmem [shape: bf16[2,8,128], index: 6, kind: output, shape index: {}]
  %s7 = sld [smem:[#allocation0]]
  $region57: #{_lambda_.17} parent=0
    _
  %s9 = ssub.s32 1, %s7
  %s10 = scalar_select 0, %s9, %s7
  loop: start=0, step=1, limit=4
  $region2: #{_lambda_.17} parent=0 // loop_pre_header
    _
  $region3: #{_lambda_.17} parent=0 // loop_header
    %s12 = sphi 0, %s16
    %p13 = scmp.ge.s32.totalorder %s12, 4
    %s22 = sphi 0, %s24
    %s25 = sphi 0, %s22
    %s26 = sphi 0, %s25
    %s42 = sphi 0, %s26
    %s48 = sphi 0, %s50
    %s51 = sphi 0, %s48
    %s52 = sphi 0, %s51
    %s68 = sphi 0, %s52
    %s72 = sphi 0, %s72
    %s74 = sphi 0, %s72
    %s75 = sphi 0, %s74
    %s89 = sphi 0, %s75
    %s93 = sphi 0, %s93
    %s95 = sphi 0, %s93
    %s96 = sphi 0, %s95
    %s110 = sphi 0, %s96
    %s114 = sphi 0, %s114
    %s116 = sphi 0, %s114
    %s117 = sphi 0, %s116
    %s131 = sphi 0, %s117
    %s135 = sphi 0, %s135
    %s137 = sphi 0, %s135
    %s138 = sphi 0, %s137
    %s152 = sphi 0, %s138
    %s158 = sphi 0, %s160
    %s161 = sphi 0, %s158
    %s162 = sphi 0, %s161
    %s178 = sphi 0, %s162
  $region4: #{_lambda_.17} parent=0 // loop_header_branch
    %15 = sbr.rel (%p13) target = $region8
  $region5: #{_lambda_.17} parent=0 // loop_body
    %s17 = ssub.s32 %s12, 1
    %s18 = ssub.s32 %s12, 2
    %s19 = sadd.s32 %s12, 1
    %s20 = ssub.s32 %s12, %s19
    %p21 = scmp.eq.s32.totalorder %s20, 0
    %s23 = sadd.s32 %s22, 1
    %s24 = scalar_select %p21, %s22, %s23
    %p27 = pneg %p21
    %p28 = scmp.eq.s32.totalorder %s12, 1
    %p29 = por %p27, %p28
    %p30 = scmp.ne.s32.totalorder %s22, %s25
    %p31 = scmp.eq.s32.totalorder %s12, 0
    %p32 = por %p30, %p31
    %p33 = scmp.ne.s32.totalorder %s22, %s25
    %p34 = scmp.eq.s32.totalorder %s17, 1
    %p35 = por %p33, %p34
    %p36 = scmp.ne.s32.totalorder %s25, %s26
    %p37 = scmp.eq.s32.totalorder %s17, 0
    %p38 = por %p36, %p37
    %p39 = scmp.ne.s32.totalorder %s25, %s26
    %p40 = scmp.eq.s32.totalorder %s18, 1
    %p41 = por %p39, %p40
    %p43 = scmp.ne.s32.totalorder %s26, %s42
    %p44 = scmp.eq.s32.totalorder %s18, 0
    %p45 = por %p43, %p44
    %s46 = ssub.s32 %s12, %s19
    %p47 = scmp.eq.s32.totalorder %s46, 0
    %s49 = sadd.s32 %s48, 1
    %s50 = scalar_select %p47, %s48, %s49
    %p53 = pneg %p47
    %p54 = scmp.eq.s32.totalorder %s12, 1
    %p55 = por %p53, %p54
    %p56 = scmp.ne.s32.totalorder %s48, %s51
    %p57 = scmp.eq.s32.totalorder %s12, 0
    %p58 = por %p56, %p57
    %p59 = scmp.ne.s32.totalorder %s48, %s51
    %p60 = scmp.eq.s32.totalorder %s17, 1
    %p61 = por %p59, %p60
    %p62 = scmp.ne.s32.totalorder %s51, %s52
    %p63 = scmp.eq.s32.totalorder %s17, 0
    %p64 = por %p62, %p63
    %p65 = scmp.ne.s32.totalorder %s51, %s52
    %p66 = scmp.eq.s32.totalorder %s18, 1
    %p67 = por %p65, %p66
    %p69 = scmp.ne.s32.totalorder %s52, %s68
    %p70 = scmp.eq.s32.totalorder %s18, 0
    %p71 = por %p69, %p70
    %s73 = sadd.s32 %s72, 1
    %p76 = scmp.eq.s32.totalorder %s12, 1
    %p77 = scmp.ne.s32.totalorder %s72, %s74
    %p78 = scmp.eq.s32.totalorder %s12, 0
    %p79 = por %p77, %p78
    %p80 = scmp.ne.s32.totalorder %s72, %s74
    %p81 = scmp.eq.s32.totalorder %s17, 1
    %p82 = por %p80, %p81
    %p83 = scmp.ne.s32.totalorder %s74, %s75
    %p84 = scmp.eq.s32.totalorder %s17, 0
    %p85 = por %p83, %p84
    %p86 = scmp.ne.s32.totalorder %s74, %s75
    %p87 = scmp.eq.s32.totalorder %s18, 1
    %p88 = por %p86, %p87
    %p90 = scmp.ne.s32.totalorder %s75, %s89
    %p91 = scmp.eq.s32.totalorder %s18, 0
    %p92 = por %p90, %p91
    %s94 = sadd.s32 %s93, 1
    %p97 = scmp.eq.s32.totalorder %s12, 1
    %p98 = scmp.ne.s32.totalorder %s93, %s95
    %p99 = scmp.eq.s32.totalorder %s12, 0
    %p100 = por %p98, %p99
    %p101 = scmp.ne.s32.totalorder %s93, %s95
    %p102 = scmp.eq.s32.totalorder %s17, 1
    %p103 = por %p101, %p102
    %p104 = scmp.ne.s32.totalorder %s95, %s96
    %p105 = scmp.eq.s32.totalorder %s17, 0
    %p106 = por %p104, %p105
    %p107 = scmp.ne.s32.totalorder %s95, %s96
    %p108 = scmp.eq.s32.totalorder %s18, 1
    %p109 = por %p107, %p108
    %p111 = scmp.ne.s32.totalorder %s96, %s110
    %p112 = scmp.eq.s32.totalorder %s18, 0
    %p113 = por %p111, %p112
    %s115 = sadd.s32 %s114, 1
    %p118 = scmp.eq.s32.totalorder %s12, 1
    %p119 = scmp.ne.s32.totalorder %s114, %s116
    %p120 = scmp.eq.s32.totalorder %s12, 0
    %p121 = por %p119, %p120
    %p122 = scmp.ne.s32.totalorder %s114, %s116
    %p123 = scmp.eq.s32.totalorder %s17, 1
    %p124 = por %p122, %p123
    %p125 = scmp.ne.s32.totalorder %s116, %s117
    %p126 = scmp.eq.s32.totalorder %s17, 0
    %p127 = por %p125, %p126
    %p128 = scmp.ne.s32.totalorder %s116, %s117
    %p129 = scmp.eq.s32.totalorder %s18, 1
    %p130 = por %p128, %p129
    %p132 = scmp.ne.s32.totalorder %s117, %s131
    %p133 = scmp.eq.s32.totalorder %s18, 0
    %p134 = por %p132, %p133
    %s136 = sadd.s32 %s135, 1
    %p139 = scmp.eq.s32.totalorder %s12, 1
    %p140 = scmp.ne.s32.totalorder %s135, %s137
    %p141 = scmp.eq.s32.totalorder %s12, 0
    %p142 = por %p140, %p141
    %p143 = scmp.ne.s32.totalorder %s135, %s137
    %p144 = scmp.eq.s32.totalorder %s17, 1
    %p145 = por %p143, %p144
    %p146 = scmp.ne.s32.totalorder %s137, %s138
    %p147 = scmp.eq.s32.totalorder %s17, 0
    %p148 = por %p146, %p147
    %p149 = scmp.ne.s32.totalorder %s137, %s138
    %p150 = scmp.eq.s32.totalorder %s18, 1
    %p151 = por %p149, %p150
    %p153 = scmp.ne.s32.totalorder %s138, %s152
    %p154 = scmp.eq.s32.totalorder %s18, 0
    %p155 = por %p153, %p154
    %s156 = ssub.s32 %s12, %s19
    %p157 = scmp.eq.s32.totalorder %s156, 0
    %s159 = sadd.s32 %s158, 1
    %s160 = scalar_select %p157, %s158, %s159
    %p163 = pneg %p157
    %p164 = scmp.eq.s32.totalorder %s12, 1
    %p165 = por %p163, %p164
    %p166 = scmp.ne.s32.totalorder %s158, %s161
    %p167 = scmp.eq.s32.totalorder %s12, 0
    %p168 = por %p166, %p167
    %p169 = scmp.ne.s32.totalorder %s158, %s161
    %p170 = scmp.eq.s32.totalorder %s17, 1
    %p171 = por %p169, %p170
    %p172 = scmp.ne.s32.totalorder %s161, %s162
    %p173 = scmp.eq.s32.totalorder %s17, 0
    %p174 = por %p172, %p173
    %p175 = scmp.ne.s32.totalorder %s161, %s162
    %p176 = scmp.eq.s32.totalorder %s18, 1
    %p177 = por %p175, %p176
    %p179 = scmp.ne.s32.totalorder %s162, %s178
    %p180 = scmp.eq.s32.totalorder %s18, 0
    %p181 = por %p179, %p180
    %p182 = scmp.le.s32.totalorder 1, %s12
    %p183 = scmp.lt.s32.totalorder %s12, 3
    %p184 = pnand %p182, %p183
    %p185 = pneg %p184
    // Predicated region
    $region9: #{_lambda_.17} parent=5 // pred_check
      _
    $region10: #{_lambda_.17} parent=5 // pred_check_branch
      %187 = sbr.rel (%p184) target = $region12
    $region11: #{_lambda_.17} parent=5 // pred_region
      %s188 = ssub.s32 %s12, 1
      // Predicated region
      $region13: #{_lambda_.17} parent=11 // pred_check
        %p189 = pneg %p85
      $region14: #{_lambda_.17} parent=11 // pred_check_branch
        %191 = sbr.rel (%p189) target = $region16
      $region15: #{_lambda_.17} parent=11 // pred_region
        _
      $region16: #{_lambda_.17} parent=11 // pred_fallthru
        _
      // Predicated region
      $region17: #{_lambda_.17} parent=11 // pred_check
        %p192 = pneg %p106
      $region18: #{_lambda_.17} parent=11 // pred_check_branch
        %194 = sbr.rel (%p192) target = $region20
      $region19: #{_lambda_.17} parent=11 // pred_region
        _
      $region20: #{_lambda_.17} parent=11 // pred_fallthru
        _
      // Predicated region
      $region21: #{_lambda_.17} parent=11 // pred_check
        %p195 = pneg %p127
      $region22: #{_lambda_.17} parent=11 // pred_check_branch
        %197 = sbr.rel (%p195) target = $region24
      $region23: #{_lambda_.17} parent=11 // pred_region
        _
      $region24: #{_lambda_.17} parent=11 // pred_fallthru
        _
      // Predicated region
      $region25: #{_lambda_.17} parent=11 // pred_check
        %p198 = pneg %p148
      $region26: #{_lambda_.17} parent=11 // pred_check_branch
        %200 = sbr.rel (%p198) target = $region28
      $region27: #{_lambda_.17} parent=11 // pred_region
        _
      $region28: #{_lambda_.17} parent=11 // pred_fallthru
        _
    $region12: #{_lambda_.17} parent=5 // pred_fallthru
      _
    %p201 = scmp.lt.s32.totalorder %s12, 2
    // Predicated region
    $region29: #{_lambda_.17} parent=5 // pred_check
      %p202 = pneg %p201
    $region30: #{_lambda_.17} parent=5 // pred_check_branch
      %204 = sbr.rel (%p202) target = $region32
    $region31: #{_lambda_.17} parent=5 // pred_region
      // Predicated region
      $region33: #{_lambda_.17} parent=31 // pred_check
        %p205 = pneg %p32
      $region34: #{_lambda_.17} parent=31 // pred_check_branch
        %207 = sbr.rel (%p205) target = $region36
      $region35: #{_lambda_.17} parent=31 // pred_region
        %p208 = scmp.lt.s32.totalorder %s12, 1
        %s209 = scalar_select %p208, %s12, 1
        %s210 = smul.addr %s209, 3
        %s211 = smul.addr %s210, 4
        %s212 = scalar_lea.vmem %s0, %s211
      $region36: #{_lambda_.17} parent=31 // pred_fallthru
        _
      // Predicated region
      $region37: #{_lambda_.17} parent=31 // pred_check
        %p213 = pneg %p58
      $region38: #{_lambda_.17} parent=31 // pred_check_branch
        %215 = sbr.rel (%p213) target = $region40
      $region39: #{_lambda_.17} parent=31 // pred_region
        %p216 = scmp.lt.s32.totalorder %s12, 1
        %s217 = scalar_select %p216, %s12, 1
        %s218 = smul.addr %s217, 4
        %s219 = scalar_lea.vmem %s1, %s218
      $region40: #{_lambda_.17} parent=31 // pred_fallthru
        _
    $region32: #{_lambda_.17} parent=5 // pred_fallthru
      _
    %p220 = scmp.le.s32.totalorder 1, %s12
    %p221 = scmp.lt.s32.totalorder %s12, 3
    %p222 = pnand %p220, %p221
    %p223 = pneg %p222
    // Predicated region
    $region41: #{_lambda_.17} parent=5 // pred_check
      _
    $region42: #{_lambda_.17} parent=5 // pred_check_branch
      %225 = sbr.rel (%p222) target = $region44
    $region43: #{_lambda_.17} parent=5 // pred_region
      %s226 = ssub.s32 %s12, 1
      %p227 = scmp.lt.s32.totalorder %s17, 1
      %s228 = scalar_select %p227, %s17, 1
      %s229 = smul.addr %s228, 3
      %s230 = smul.addr %s229, 4
      %s231 = scalar_lea.vmem %s0, %s230
      %p232 = pneg %p38
      %p233 = pneg %p35
      %p234 = scmp.lt.s32.totalorder %s17, 1
      %s235 = scalar_select %p234, %s17, 1
      %s236 = smul.addr %s235, 4
      %s237 = scalar_lea.vmem %s1, %s236
      %p238 = pneg %p64
      %p239 = pneg %p61
      %p240 = pneg %p85
      %p241 = pneg %p82
      %p242 = pneg %p106
      %p243 = pneg %p103
      %p244 = pneg %p127
      %p245 = pneg %p124
      %p246 = pneg %p148
      %p247 = pneg %p145
      %p248 = pneg %p174
      %p249 = pneg %p171
      %p250 = scmp.lt.s32.totalorder %s17, 1
      %s251 = scalar_select %p250, %s17, 1
      %s252 = smul.addr %s251, 4
      %s253 = scalar_lea.vmem %s6, %s252
      %p254 = scmp.lt.s32.totalorder %s17, 1
      %s255 = scalar_select %p254, %s17, 1
      %s256 = smul.addr %s255, 3
      %s257 = smul.addr %s256, 4
      %s258 = scalar_lea.vmem %s0, %s257
      %p259 = scmp.lt.s32.totalorder %s17, 1
      %s260 = scalar_select %p259, %s17, 1
      %s261 = smul.addr %s260, 4
      %s262 = scalar_lea.vmem %s1, %s261
      %p263 = scmp.lt.s32.totalorder %s17, 1
      %s264 = scalar_select %p263, %s17, 1
      %s265 = smul.addr %s264, 4
      %s266 = scalar_lea.vmem %s6, %s265
      %v268 = vld [vmem:[%s258] sm:$0xff]
      %v269 = vld [vmem:[%s258 + $0x8] sm:$0xf]
      %v270 = vld [vmem:[%s262] sm:$0xf]
      %v271 = vlaneseq
      %v272 = vshrl.u32 %v271, 7
      %v273 = vlaneseq
      %v274 = vand.u32 %v273, 127
      %vm275 = vcmp.ge.s32.totalorder %v272, %v274
      %v276 = vsel %vm275, 0.0, -1e+30
      %v278 = vunpack.c.h.b16 %v268
      %v279 = vpack.c.b16 %v278, %v278
      %vm280 = vcmask 261120
      %v282 = vsel %vm280, %v268, 0
      %v285 = vsel %vm280, %v279, 0
      %287 = vmatpush.bf16.xpose.msra.mxu0 0
      %288 = vmatpush.bf16.xpose.msra.mxu0 0
      %289 = vmatpush.bf16.xpose.msra.mxu0 0
      %290 = vmatpush.bf16.xpose.msra.mxu0 0
      %291 = vmatpush.bf16.xpose.msra.mxu0 0
      %292 = vmatpush.bf16.xpose.msra.mxu0 0
      %293 = vmatpush.bf16.xpose.msra.mxu0 0
      %294 = vmatpush.bf16.xpose.msra.mxu0 %v285
      %295 = vmatmul.bf16.gmra.mxu0 %v282
      %v296 = vpop.f32.mrf.mxu0
      %v297 = vadd.f32 %v276, %v296
      %v298 = vpop.f32.mrf.mxu0
      %299 = vdwg.mxu0
      %vm300 = vcmask 64512
      %v301 = vsel %vm300, %v297, -inf
      %302 = vmax.xlane.f32.xlu0 %v301
      %v303 = vpop.xlane.xlu0 %302
      %v304 = vsub.f32 %v297, %v303
      %v305 = vmul.f32 %v304, 1.442695
      %v306 = vpow.pop %v305
      %v307 = vsel %vm300, %v306, 0.0
      %308 = vadd.xlane.f32.xlu0 %v307
      %v309 = vpop.xlane.xlu0 %308
      %v310 = vrcp.pop %v309
      %v311 = vmul.f32 %v306, %v310
      %v312 = vpack.c.bf16 %v311, %v311
      %v314 = vsel %vm300, %v312, 0
      %vm316 = vcmask 1043456
      %v318 = vsel %vm316, %v269, 0
      %320 = vmatpush.bf16.msra.mxu0 0
      %321 = vmatpush.bf16.msra.mxu0 0
      %322 = vmatpush.bf16.msra.mxu0 0
      %323 = vmatpush.bf16.msra.mxu0 0
      %324 = vmatpush.bf16.msra.mxu0 0
      %325 = vmatpush.bf16.msra.mxu0 0
      %326 = vmatpush.bf16.msra.mxu0 0
      %327 = vmatpush.bf16.msra.mxu0 %v318
      %328 = vmatmul.bf16.gmra.mxu0 %v314
      %v329 = vpop.f32.mrf.mxu0
      %v330 = vadd.f32 0.0, %v329
      %v331 = vpop.f32.mrf.mxu0
      %332 = vdwg.mxu0
      %v333 = vpack.c.bf16 %v330, %v330
      %v334 = vld [vmem:[%s2] sm:$0xf]
      %v335 = vld [vmem:[%s2 + $0x4] sm:$0xf]
      %v336 = vld [vmem:[%s2 + $0x8] sm:$0xf]
      %v337 = vld [vmem:[%s2 + $0xc] sm:$0xf]
      %v338 = vunpack.c.l.b16 %v268
      %v339 = vpack.c.b16 %v338, %v338
      %340 = vrot.lane.b32.xlu0 %v339, 96
      %v341 = vpop.permute.xlu0 %340
      %342 = vrot.lane.b32.xlu0 %v279, 96
      %v343 = vpop.permute.xlu0 %342
      %v345 = vsel %vm280, %v341, 0
      %v348 = vsel %vm280, %v343, 0
      %350 = vmatpush.bf16.xpose.msra.mxu0 0
      %351 = vmatpush.bf16.xpose.msra.mxu0 0
      %352 = vmatpush.bf16.xpose.msra.mxu0 0
      %353 = vmatpush.bf16.xpose.msra.mxu0 0
      %354 = vmatpush.bf16.xpose.msra.mxu0 0
      %355 = vmatpush.bf16.xpose.msra.mxu0 0
      %356 = vmatpush.bf16.xpose.msra.mxu0 0
      %357 = vmatpush.bf16.xpose.msra.mxu0 %v348
      %358 = vmatmul.bf16.gmra.mxu0 %v345
      %v359 = vpop.f32.mrf.mxu0
      %v360 = vadd.f32 %v276, %v359
      %v361 = vpop.f32.mrf.mxu0
      %362 = vdwg.mxu0
      %v363 = vsel %vm300, %v360, -inf
      %364 = vmax.xlane.f32.xlu0 %v363
      %v365 = vpop.xlane.xlu0 %364
      %v366 = vsub.f32 %v360, %v365
      %v367 = vmul.f32 %v366, 1.442695
      %v368 = vpow.pop %v367
      %v369 = vsel %vm300, %v368, 0.0
      %370 = vadd.xlane.f32.xlu0 %v369
      %v371 = vpop.xlane.xlu0 %370
      %v372 = vrcp.pop %v371
      %v373 = vmul.f32 %v368, %v372
      %v374 = vpack.c.bf16 %v373, %v373
      %v376 = vunpack.c.l.b16 %v269
      %v377 = vpack.c.b16 %v376, %v376
      %378 = vrot.lane.b32.xlu0 %v377, 96
      %v379 = vpop.permute.xlu0 %378
      %v381 = vsel %vm300, %v374, 0
      %v384 = vsel %vm316, %v379, 0
      %386 = vmatpush.bf16.msra.mxu0 0
      %387 = vmatpush.bf16.msra.mxu0 0
      %388 = vmatpush.bf16.msra.mxu0 0
      %389 = vmatpush.bf16.msra.mxu0 0
      %390 = vmatpush.bf16.msra.mxu0 0
      %391 = vmatpush.bf16.msra.mxu0 0
      %392 = vmatpush.bf16.msra.mxu0 0
      %393 = vmatpush.bf16.msra.mxu0 %v384
      %394 = vmatmul.bf16.gmra.mxu0 %v381
      %v395 = vpop.f32.mrf.mxu0
      %v396 = vadd.f32 0.0, %v395
      %v397 = vpop.f32.mrf.mxu0
      %398 = vdwg.mxu0
      %v399 = vpack.c.bf16 %v396, %v396
      %v400 = vld [vmem:[%s2 + $0x10] sm:$0xf]
      %v401 = vld [vmem:[%s2 + $0x14] sm:$0xf]
      %v402 = vld [vmem:[%s2 + $0x18] sm:$0xf]
      %v403 = vld [vmem:[%s2 + $0x1c] sm:$0xf]
      %v408 = vunpack.c.l.b16 %v400
      %v409 = vunpack.c.l.b16 %v401
      %v410 = vunpack.c.l.b16 %v402
      %v411 = vunpack.c.l.b16 %v403
      %v412 = vpack.c.b16 %v409, %v408
      %v413 = vpack.c.b16 %v411, %v410
      %v417 = vsel %vm280, %v399, 0
      %419 = vmatpush.bf16.msra.mxu0 0
      %420 = vmatpush.bf16.msra.mxu0 0
      %421 = vmatpush.bf16.msra.mxu0 0
      %422 = vmatpush.bf16.msra.mxu0 0
      %423 = vmatpush.bf16.msra.mxu0 0
      %424 = vmatpush.bf16.msra.mxu0 0
      %425 = vmatpush.bf16.msra.mxu0 %v413
      %426 = vmatpush.bf16.msra.mxu0 %v412
      %427 = vmatmul.bf16.gmra.mxu0 %v417
      %v428 = vpop.f32.mrf.mxu0
      %v429 = vadd.f32 0.0, %v428
      %v430 = vpop.f32.mrf.mxu0
      %431 = vdwg.mxu0
      %v436 = vunpack.c.l.b16 %v334
      %v437 = vunpack.c.l.b16 %v335
      %v438 = vunpack.c.l.b16 %v336
      %v439 = vunpack.c.l.b16 %v337
      %v440 = vpack.c.b16 %v437, %v436
      %v441 = vpack.c.b16 %v439, %v438
      %v445 = vsel %vm280, %v333, 0
      %447 = vmatpush.bf16.msra.mxu0 0
      %448 = vmatpush.bf16.msra.mxu0 0
      %449 = vmatpush.bf16.msra.mxu0 0
      %450 = vmatpush.bf16.msra.mxu0 0
      %451 = vmatpush.bf16.msra.mxu0 0
      %452 = vmatpush.bf16.msra.mxu0 0
      %453 = vmatpush.bf16.msra.mxu0 %v441
      %454 = vmatpush.bf16.msra.mxu0 %v440
      %455 = vmatmul.bf16.gmra.mxu0 %v445
      %v456 = vpop.f32.mrf.mxu0
      %v457 = vadd.f32 %v429, %v456
      %v458 = vpop.f32.mrf.mxu0
      %459 = vdwg.mxu0
      %460 = vrot.lane.b32.xlu0 %v339, 64
      %v461 = vpop.permute.xlu0 %460
      %462 = vrot.lane.b32.xlu0 %v279, 64
      %v463 = vpop.permute.xlu0 %462
      %v465 = vsel %vm280, %v461, 0
      %v468 = vsel %vm280, %v463, 0
      %470 = vmatpush.bf16.xpose.msra.mxu0 0
      %471 = vmatpush.bf16.xpose.msra.mxu0 0
      %472 = vmatpush.bf16.xpose.msra.mxu0 0
      %473 = vmatpush.bf16.xpose.msra.mxu0 0
      %474 = vmatpush.bf16.xpose.msra.mxu0 0
      %475 = vmatpush.bf16.xpose.msra.mxu0 0
      %476 = vmatpush.bf16.xpose.msra.mxu0 0
      %477 = vmatpush.bf16.xpose.msra.mxu0 %v468
      %478 = vmatmul.bf16.gmra.mxu0 %v465
      %v479 = vpop.f32.mrf.mxu0
      %v480 = vadd.f32 %v276, %v479
      %v481 = vpop.f32.mrf.mxu0
      %482 = vdwg.mxu0
      %v483 = vsel %vm300, %v480, -inf
      %484 = vmax.xlane.f32.xlu0 %v483
      %v485 = vpop.xlane.xlu0 %484
      %v486 = vsub.f32 %v480, %v485
      %v487 = vmul.f32 %v486, 1.442695
      %v488 = vpow.pop %v487
      %v489 = vsel %vm300, %v488, 0.0
      %490 = vadd.xlane.f32.xlu0 %v489
      %v491 = vpop.xlane.xlu0 %490
      %v492 = vrcp.pop %v491
      %v493 = vmul.f32 %v488, %v492
      %v494 = vpack.c.bf16 %v493, %v493
      %495 = vrot.lane.b32.xlu0 %v377, 64
      %v496 = vpop.permute.xlu0 %495
      %v498 = vsel %vm300, %v494, 0
      %v501 = vsel %vm316, %v496, 0
      %503 = vmatpush.bf16.msra.mxu0 0
      %504 = vmatpush.bf16.msra.mxu0 0
      %505 = vmatpush.bf16.msra.mxu0 0
      %506 = vmatpush.bf16.msra.mxu0 0
      %507 = vmatpush.bf16.msra.mxu0 0
      %508 = vmatpush.bf16.msra.mxu0 0
      %509 = vmatpush.bf16.msra.mxu0 0
      %510 = vmatpush.bf16.msra.mxu0 %v501
      %511 = vmatmul.bf16.gmra.mxu0 %v498
      %v512 = vpop.f32.mrf.mxu0
      %v513 = vadd.f32 0.0, %v512
      %v514 = vpop.f32.mrf.mxu0
      %515 = vdwg.mxu0
      %v516 = vpack.c.bf16 %v513, %v513
      %v517 = vld [vmem:[%s2 + $0x20] sm:$0xf]
      %v518 = vld [vmem:[%s2 + $0x24] sm:$0xf]
      %v519 = vld [vmem:[%s2 + $0x28] sm:$0xf]
      %v520 = vld [vmem:[%s2 + $0x2c] sm:$0xf]
      %v525 = vunpack.c.l.b16 %v517
      %v526 = vunpack.c.l.b16 %v518
      %v527 = vunpack.c.l.b16 %v519
      %v528 = vunpack.c.l.b16 %v520
      %v529 = vpack.c.b16 %v526, %v525
      %v530 = vpack.c.b16 %v528, %v527
      %v534 = vsel %vm280, %v516, 0
      %536 = vmatpush.bf16.msra.mxu0 0
      %537 = vmatpush.bf16.msra.mxu0 0
      %538 = vmatpush.bf16.msra.mxu0 0
      %539 = vmatpush.bf16.msra.mxu0 0
      %540 = vmatpush.bf16.msra.mxu0 0
      %541 = vmatpush.bf16.msra.mxu0 0
      %542 = vmatpush.bf16.msra.mxu0 %v530
      %543 = vmatpush.bf16.msra.mxu0 %v529
      %544 = vmatmul.bf16.gmra.mxu0 %v534
      %v545 = vpop.f32.mrf.mxu0
      %v546 = vadd.f32 0.0, %v545
      %v547 = vpop.f32.mrf.mxu0
      %548 = vdwg.mxu0
      %v549 = vadd.f32 %v457, %v546
      %550 = vrot.lane.b32.xlu0 %v339, 32
      %v551 = vpop.permute.xlu0 %550
      %552 = vrot.lane.b32.xlu0 %v279, 32
      %v553 = vpop.permute.xlu0 %552
      %v555 = vsel %vm280, %v551, 0
      %v558 = vsel %vm280, %v553, 0
      %560 = vmatpush.bf16.xpose.msra.mxu0 0
      %561 = vmatpush.bf16.xpose.msra.mxu0 0
      %562 = vmatpush.bf16.xpose.msra.mxu0 0
      %563 = vmatpush.bf16.xpose.msra.mxu0 0
      %564 = vmatpush.bf16.xpose.msra.mxu0 0
      %565 = vmatpush.bf16.xpose.msra.mxu0 0
      %566 = vmatpush.bf16.xpose.msra.mxu0 0
      %567 = vmatpush.bf16.xpose.msra.mxu0 %v558
      %568 = vmatmul.bf16.gmra.mxu0 %v555
      %v569 = vpop.f32.mrf.mxu0
      %v570 = vadd.f32 %v276, %v569
      %v571 = vpop.f32.mrf.mxu0
      %572 = vdwg.mxu0
      %v573 = vsel %vm300, %v570, -inf
      %574 = vmax.xlane.f32.xlu0 %v573
      %v575 = vpop.xlane.xlu0 %574
      %v576 = vsub.f32 %v570, %v575
      %v577 = vmul.f32 %v576, 1.442695
      %v578 = vpow.pop %v577
      %v579 = vsel %vm300, %v578, 0.0
      %580 = vadd.xlane.f32.xlu0 %v579
      %v581 = vpop.xlane.xlu0 %580
      %v582 = vrcp.pop %v581
      %v583 = vmul.f32 %v578, %v582
      %v584 = vpack.c.bf16 %v583, %v583
      %585 = vrot.lane.b32.xlu0 %v377, 32
      %v586 = vpop.permute.xlu0 %585
      %v588 = vsel %vm300, %v584, 0
      %v591 = vsel %vm316, %v586, 0
      %593 = vmatpush.bf16.msra.mxu0 0
      %594 = vmatpush.bf16.msra.mxu0 0
      %595 = vmatpush.bf16.msra.mxu0 0
      %596 = vmatpush.bf16.msra.mxu0 0
      %597 = vmatpush.bf16.msra.mxu0 0
      %598 = vmatpush.bf16.msra.mxu0 0
      %599 = vmatpush.bf16.msra.mxu0 0
      %600 = vmatpush.bf16.msra.mxu0 %v591
      %601 = vmatmul.bf16.gmra.mxu0 %v588
      %v602 = vpop.f32.mrf.mxu0
      %v603 = vadd.f32 0.0, %v602
      %v604 = vpop.f32.mrf.mxu0
      %605 = vdwg.mxu0
      %v606 = vpack.c.bf16 %v603, %v603
      %v607 = vld [vmem:[%s2 + $0x30] sm:$0xf]
      %v608 = vld [vmem:[%s2 + $0x34] sm:$0xf]
      %v609 = vld [vmem:[%s2 + $0x38] sm:$0xf]
      %v610 = vld [vmem:[%s2 + $0x3c] sm:$0xf]
      %v615 = vunpack.c.l.b16 %v607
      %v616 = vunpack.c.l.b16 %v608
      %v617 = vunpack.c.l.b16 %v609
      %v618 = vunpack.c.l.b16 %v610
      %v619 = vpack.c.b16 %v616, %v615
      %v620 = vpack.c.b16 %v618, %v617
      %v624 = vsel %vm280, %v606, 0
      %626 = vmatpush.bf16.msra.mxu0 0
      %627 = vmatpush.bf16.msra.mxu0 0
      %628 = vmatpush.bf16.msra.mxu0 0
      %629 = vmatpush.bf16.msra.mxu0 0
      %630 = vmatpush.bf16.msra.mxu0 0
      %631 = vmatpush.bf16.msra.mxu0 0
      %632 = vmatpush.bf16.msra.mxu0 %v620
      %633 = vmatpush.bf16.msra.mxu0 %v619
      %634 = vmatmul.bf16.gmra.mxu0 %v624
      %v635 = vpop.f32.mrf.mxu0
      %v636 = vadd.f32 0.0, %v635
      %v637 = vpop.f32.mrf.mxu0
      %638 = vdwg.mxu0
      %v639 = vadd.f32 %v549, %v636
      %v640 = vld [vmem:[%s3] sm:$0x1]
      %v642 = vperm.slane %v640, 0
      %v644 = vadd.f32 %v639, %v642
      %v645 = vunpack.c.l.bf16 %v270
      %v646 = vadd.f32 %v644, %v645
      %647 = vadd.xlane.f32.xlu0 %v646
      %v648 = vpop.xlane.xlu0 %647
      %v649 = vrcp.pop 128.0
      %v650 = vmul.f32 128.0, %v649
      %v651 = vsub.f32 1.0, %v650
      %v652 = vmul.f32 %v649, %v651
      %v653 = vadd.f32 %v649, %v652
      %vm654 = vweird.f32 %v649
      %v655 = vsel %vm654, %v649, %v653
      %v656 = vmul.f32 %v648, %v655
      %v657 = vsub.f32 %v646, %v656
      %v658 = vmul.f32 %v657, %v657
      %659 = vadd.xlane.f32.xlu0 %v658
      %v660 = vpop.xlane.xlu0 %659
      %v661 = vmul.f32 %v660, %v655
      %v662 = vadd.f32 %v661, 1e-05
      %v663 = vrsqrt.pop %v662
      %v664 = vmul.f32 %v663, %v662
      %v665 = vmul.f32 %v664, %v663
      %v666 = vmul.f32 0.5, %v665
      %v667 = vsub.f32 1.5, %v666
      %v668 = vmul.f32 %v663, %v667
      %vm669 = vweird.f32 %v662
      %vm670 = vweird.f32 %v663
      %vm671 = vmor %vm669, %vm670
      %v672 = vsel %vm671, %v663, %v668
      %v673 = vmul.f32 %v657, %v672
      %v674 = vld [vmem:[%s4] sm:$0x1]
      %v676 = vperm.slane %v674, 0
      %v678 = vmul.f32 %v673, %v676
      %v679 = vld [vmem:[%s5] sm:$0x1]
      %v681 = vperm.slane %v679, 0
      %v683 = vadd.f32 %v678, %v681
      %v684 = vpack.c.bf16 %v683, %v683
      %685 = vst [vmem:[%s266] sm:$0xf] %v684
      %p686 = scmp.lt.s32.totalorder %s17, 1
      %s687 = scalar_select %p686, %s17, 1
      %s688 = smul.addr %s687, 4
      %s689 = scalar_lea.vmem %s6, %s688
      // Predicated region
      $region45: #{_lambda_.17} parent=43 // pred_check
        %p690 = pneg %p171
      $region46: #{_lambda_.17} parent=43 // pred_check_branch
        %692 = sbr.rel (%p690) target = $region48
      $region47: #{_lambda_.17} parent=43 // pred_region
        _
      $region48: #{_lambda_.17} parent=43 // pred_fallthru
        _
    $region44: #{_lambda_.17} parent=5 // pred_fallthru
      _
    %p693 = scmp.le.s32.totalorder 2, %s12
    // Predicated region
    $region49: #{_lambda_.17} parent=5 // pred_check
      %p694 = pneg %p693
    $region50: #{_lambda_.17} parent=5 // pred_check_branch
      %696 = sbr.rel (%p694) target = $region52
    $region51: #{_lambda_.17} parent=5 // pred_region
      %s697 = ssub.s32 %s12, 2
      // Predicated region
      $region53: #{_lambda_.17} parent=51 // pred_check
        %p698 = pneg %p177
      $region54: #{_lambda_.17} parent=51 // pred_check_branch
        %700 = sbr.rel (%p698) target = $region56
      $region55: #{_lambda_.17} parent=51 // pred_region
        %p701 = scmp.lt.s32.totalorder %s18, 1
        %s702 = scalar_select %p701, %s18, 1
        %s703 = smul.addr %s702, 4
        %s704 = scalar_lea.vmem %s6, %s703
      $region56: #{_lambda_.17} parent=51 // pred_fallthru
        _
    $region52: #{_lambda_.17} parent=5 // pred_fallthru
      _
  $region6: #{_lambda_.17} parent=0 // loop_footer
    %s16 = sadd.s32 1, %s12
  $region7: #{_lambda_.17} parent=0 // loop_footer_branch
    %11 = sbr.rel target = $region3
  $region8: #{_lambda_.17} parent=0 // loop_exit
    _

// kernel: _lambda_.20
$region0: #{_lambda_.20}
  #allocation0 [shape = 'u32[]', space=smem, size = 0x4, offset = 0x4, fixed_abs, tag = 'smem constant byte address 0x4 - core index']
  #allocation1 [shape = 'u32[72,128]{1,0:T(1,128)}', space=vmem, size = 0x9000, scoped, tag = 'internal scratch']
  %s0 = inlined_call_operand.vmem [shape: bf16[2,8,128], index: 0, kind: input, shape index: {}]
  %s1 = inlined_call_operand.vmem [shape: bf16[2,16,256], index: 1, kind: input, shape index: {}]
  %s2 = inlined_call_operand.vmem [shape: bf16[2,8,128], index: 2, kind: input, shape index: {}]
  %s3 = inlined_call_operand.hbm [shape: bf16[128,128], index: 3, kind: input, shape index: {}]
  %s4 = inlined_call_operand.vmem [shape: f32[1,128], index: 4, kind: input, shape index: {}]
  %s5 = inlined_call_operand.vmem [shape: f32[1,128], index: 5, kind: input, shape index: {}]
  %s6 = inlined_call_operand.vmem [shape: f32[1,128], index: 6, kind: input, shape index: {}]
  %s7 = inlined_call_operand.vmem [shape: bf16[2,8,128], index: 7, kind: output, shape index: {}]
  %s8 = sld [smem:[#allocation0]]
  $region65: #{_lambda_.20} parent=0
    _
  %s10 = ssub.s32 1, %s8
  %s11 = scalar_select 0, %s10, %s8
  $region1: #{_lambda_.20} parent=0
    #allocation2 [shape = 'u8[32768]{0}', space=vmem, size = 0x8000, scoped, tag = 'input window, operand 3, single buffered']
    #allocation3 [shape = 's32[2]{0}', space=sflag, size = 0x8, scoped, tag = 'scoped memory for _lambda_.20']
    %12 = vsyncpa [#allocation3], 0
    loop: start=0, step=1, limit=4
    $region2: #{_lambda_.20} parent=1 // loop_pre_header
      _
    $region3: #{_lambda_.20} parent=1 // loop_header
      %s14 = sphi 0, %s18
      %p15 = scmp.ge.s32.totalorder %s14, 4
      %s24 = sphi 0, %s26
      %s27 = sphi 0, %s24
      %s28 = sphi 0, %s27
      %s44 = sphi 0, %s28
      %s50 = sphi 0, %s52
      %s53 = sphi 0, %s50
      %s54 = sphi 0, %s53
      %s70 = sphi 0, %s54
      %s76 = sphi 0, %s78
      %s79 = sphi 0, %s76
      %s80 = sphi 0, %s79
      %s96 = sphi 0, %s80
      %s100 = sphi 0, %s100
      %s102 = sphi 0, %s100
      %s103 = sphi 0, %s102
      %s117 = sphi 0, %s103
      %s121 = sphi 0, %s121
      %s123 = sphi 0, %s121
      %s124 = sphi 0, %s123
      %s138 = sphi 0, %s124
      %s142 = sphi 0, %s142
      %s144 = sphi 0, %s142
      %s145 = sphi 0, %s144
      %s159 = sphi 0, %s145
      %s163 = sphi 0, %s163
      %s165 = sphi 0, %s163
      %s166 = sphi 0, %s165
      %s180 = sphi 0, %s166
      %s186 = sphi 0, %s188
      %s189 = sphi 0, %s186
      %s190 = sphi 0, %s189
      %s206 = sphi 0, %s190
    $region4: #{_lambda_.20} parent=1 // loop_header_branch
      %17 = sbr.rel (%p15) target = $region8
    $region5: #{_lambda_.20} parent=1 // loop_body
      %s19 = ssub.s32 %s14, 1
      %s20 = ssub.s32 %s14, 2
      %s21 = sadd.s32 %s14, 1
      %s22 = ssub.s32 %s14, %s21
      %p23 = scmp.eq.s32.totalorder %s22, 0
      %s25 = sadd.s32 %s24, 1
      %s26 = scalar_select %p23, %s24, %s25
      %p29 = pneg %p23
      %p30 = scmp.eq.s32.totalorder %s14, 1
      %p31 = por %p29, %p30
      %p32 = scmp.ne.s32.totalorder %s24, %s27
      %p33 = scmp.eq.s32.totalorder %s14, 0
      %p34 = por %p32, %p33
      %p35 = scmp.ne.s32.totalorder %s24, %s27
      %p36 = scmp.eq.s32.totalorder %s19, 1
      %p37 = por %p35, %p36
      %p38 = scmp.ne.s32.totalorder %s27, %s28
      %p39 = scmp.eq.s32.totalorder %s19, 0
      %p40 = por %p38, %p39
      %p41 = scmp.ne.s32.totalorder %s27, %s28
      %p42 = scmp.eq.s32.totalorder %s20, 1
      %p43 = por %p41, %p42
      %p45 = scmp.ne.s32.totalorder %s28, %s44
      %p46 = scmp.eq.s32.totalorder %s20, 0
      %p47 = por %p45, %p46
      %s48 = ssub.s32 %s14, %s21
      %p49 = scmp.eq.s32.totalorder %s48, 0
      %s51 = sadd.s32 %s50, 1
      %s52 = scalar_select %p49, %s50, %s51
      %p55 = pneg %p49
      %p56 = scmp.eq.s32.totalorder %s14, 1
      %p57 = por %p55, %p56
      %p58 = scmp.ne.s32.totalorder %s50, %s53
      %p59 = scmp.eq.s32.totalorder %s14, 0
      %p60 = por %p58, %p59
      %p61 = scmp.ne.s32.totalorder %s50, %s53
      %p62 = scmp.eq.s32.totalorder %s19, 1
      %p63 = por %p61, %p62
      %p64 = scmp.ne.s32.totalorder %s53, %s54
      %p65 = scmp.eq.s32.totalorder %s19, 0
      %p66 = por %p64, %p65
      %p67 = scmp.ne.s32.totalorder %s53, %s54
      %p68 = scmp.eq.s32.totalorder %s20, 1
      %p69 = por %p67, %p68
      %p71 = scmp.ne.s32.totalorder %s54, %s70
      %p72 = scmp.eq.s32.totalorder %s20, 0
      %p73 = por %p71, %p72
      %s74 = ssub.s32 %s14, %s21
      %p75 = scmp.eq.s32.totalorder %s74, 0
      %s77 = sadd.s32 %s76, 1
      %s78 = scalar_select %p75, %s76, %s77
      %p81 = pneg %p75
      %p82 = scmp.eq.s32.totalorder %s14, 1
      %p83 = por %p81, %p82
      %p84 = scmp.ne.s32.totalorder %s76, %s79
      %p85 = scmp.eq.s32.totalorder %s14, 0
      %p86 = por %p84, %p85
      %p87 = scmp.ne.s32.totalorder %s76, %s79
      %p88 = scmp.eq.s32.totalorder %s19, 1
      %p89 = por %p87, %p88
      %p90 = scmp.ne.s32.totalorder %s79, %s80
      %p91 = scmp.eq.s32.totalorder %s19, 0
      %p92 = por %p90, %p91
      %p93 = scmp.ne.s32.totalorder %s79, %s80
      %p94 = scmp.eq.s32.totalorder %s20, 1
      %p95 = por %p93, %p94
      %p97 = scmp.ne.s32.totalorder %s80, %s96
      %p98 = scmp.eq.s32.totalorder %s20, 0
      %p99 = por %p97, %p98
      %s101 = sadd.s32 %s100, 1
      %p104 = scmp.eq.s32.totalorder %s14, 1
      %p105 = scmp.ne.s32.totalorder %s100, %s102
      %p106 = scmp.eq.s32.totalorder %s14, 0
      %p107 = por %p105, %p106
      %p108 = scmp.ne.s32.totalorder %s100, %s102
      %p109 = scmp.eq.s32.totalorder %s19, 1
      %p110 = por %p108, %p109
      %p111 = scmp.ne.s32.totalorder %s102, %s103
      %p112 = scmp.eq.s32.totalorder %s19, 0
      %p113 = por %p111, %p112
      %p114 = scmp.ne.s32.totalorder %s102, %s103
      %p115 = scmp.eq.s32.totalorder %s20, 1
      %p116 = por %p114, %p115
      %p118 = scmp.ne.s32.totalorder %s103, %s117
      %p119 = scmp.eq.s32.totalorder %s20, 0
      %p120 = por %p118, %p119
      %s122 = sadd.s32 %s121, 1
      %p125 = scmp.eq.s32.totalorder %s14, 1
      %p126 = scmp.ne.s32.totalorder %s121, %s123
      %p127 = scmp.eq.s32.totalorder %s14, 0
      %p128 = por %p126, %p127
      %p129 = scmp.ne.s32.totalorder %s121, %s123
      %p130 = scmp.eq.s32.totalorder %s19, 1
      %p131 = por %p129, %p130
      %p132 = scmp.ne.s32.totalorder %s123, %s124
      %p133 = scmp.eq.s32.totalorder %s19, 0
      %p134 = por %p132, %p133
      %p135 = scmp.ne.s32.totalorder %s123, %s124
      %p136 = scmp.eq.s32.totalorder %s20, 1
      %p137 = por %p135, %p136
      %p139 = scmp.ne.s32.totalorder %s124, %s138
      %p140 = scmp.eq.s32.totalorder %s20, 0
      %p141 = por %p139, %p140
      %s143 = sadd.s32 %s142, 1
      %p146 = scmp.eq.s32.totalorder %s14, 1
      %p147 = scmp.ne.s32.totalorder %s142, %s144
      %p148 = scmp.eq.s32.totalorder %s14, 0
      %p149 = por %p147, %p148
      %p150 = scmp.ne.s32.totalorder %s142, %s144
      %p151 = scmp.eq.s32.totalorder %s19, 1
      %p152 = por %p150, %p151
      %p153 = scmp.ne.s32.totalorder %s144, %s145
      %p154 = scmp.eq.s32.totalorder %s19, 0
      %p155 = por %p153, %p154
      %p156 = scmp.ne.s32.totalorder %s144, %s145
      %p157 = scmp.eq.s32.totalorder %s20, 1
      %p158 = por %p156, %p157
      %p160 = scmp.ne.s32.totalorder %s145, %s159
      %p161 = scmp.eq.s32.totalorder %s20, 0
      %p162 = por %p160, %p161
      %s164 = sadd.s32 %s163, 1
      %p167 = scmp.eq.s32.totalorder %s14, 1
      %p168 = scmp.ne.s32.totalorder %s163, %s165
      %p169 = scmp.eq.s32.totalorder %s14, 0
      %p170 = por %p168, %p169
      %p171 = scmp.ne.s32.totalorder %s163, %s165
      %p172 = scmp.eq.s32.totalorder %s19, 1
      %p173 = por %p171, %p172
      %p174 = scmp.ne.s32.totalorder %s165, %s166
      %p175 = scmp.eq.s32.totalorder %s19, 0
      %p176 = por %p174, %p175
      %p177 = scmp.ne.s32.totalorder %s165, %s166
      %p178 = scmp.eq.s32.totalorder %s20, 1
      %p179 = por %p177, %p178
      %p181 = scmp.ne.s32.totalorder %s166, %s180
      %p182 = scmp.eq.s32.totalorder %s20, 0
      %p183 = por %p181, %p182
      %s184 = ssub.s32 %s14, %s21
      %p185 = scmp.eq.s32.totalorder %s184, 0
      %s187 = sadd.s32 %s186, 1
      %s188 = scalar_select %p185, %s186, %s187
      %p191 = pneg %p185
      %p192 = scmp.eq.s32.totalorder %s14, 1
      %p193 = por %p191, %p192
      %p194 = scmp.ne.s32.totalorder %s186, %s189
      %p195 = scmp.eq.s32.totalorder %s14, 0
      %p196 = por %p194, %p195
      %p197 = scmp.ne.s32.totalorder %s186, %s189
      %p198 = scmp.eq.s32.totalorder %s19, 1
      %p199 = por %p197, %p198
      %p200 = scmp.ne.s32.totalorder %s189, %s190
      %p201 = scmp.eq.s32.totalorder %s19, 0
      %p202 = por %p200, %p201
      %p203 = scmp.ne.s32.totalorder %s189, %s190
      %p204 = scmp.eq.s32.totalorder %s20, 1
      %p205 = por %p203, %p204
      %p207 = scmp.ne.s32.totalorder %s190, %s206
      %p208 = scmp.eq.s32.totalorder %s20, 0
      %p209 = por %p207, %p208
      %p210 = scmp.le.s32.totalorder 1, %s14
      %p211 = scmp.lt.s32.totalorder %s14, 3
      %p212 = pnand %p210, %p211
      %p213 = pneg %p212
      // Predicated region
      $region9: #{_lambda_.20} parent=5 // pred_check
        _
      $region10: #{_lambda_.20} parent=5 // pred_check_branch
        %215 = sbr.rel (%p212) target = $region12
      $region11: #{_lambda_.20} parent=5 // pred_region
        %s216 = ssub.s32 %s14, 1
        // Predicated region
        $region13: #{_lambda_.20} parent=11 // pred_check
          %p217 = pneg %p113
        $region14: #{_lambda_.20} parent=11 // pred_check_branch
          %219 = sbr.rel (%p217) target = $region16
        $region15: #{_lambda_.20} parent=11 // pred_region
          %221 = vsyncadd [#allocation3], 0
          %s222 = sshll.u32 %s3, 4
          %s223 = int_to_ptr.hbm [resolvable:$true] %s222
          %s224 = sshll.u32 [#allocation2], 4
          %s225 = int_to_ptr.vmem [resolvable:$true] %s224
          %230 = dma.hbm_to_vmem [thread:$0]  %s223, 1024, %s225, [#allocation3], 64, 64, 4
        $region16: #{_lambda_.20} parent=11 // pred_fallthru
          _
        // Predicated region
        $region17: #{_lambda_.20} parent=11 // pred_check
          %p231 = pneg %p134
        $region18: #{_lambda_.20} parent=11 // pred_check_branch
          %233 = sbr.rel (%p231) target = $region20
        $region19: #{_lambda_.20} parent=11 // pred_region
          _
        $region20: #{_lambda_.20} parent=11 // pred_fallthru
          _
        // Predicated region
        $region21: #{_lambda_.20} parent=11 // pred_check
          %p234 = pneg %p155
        $region22: #{_lambda_.20} parent=11 // pred_check_branch
          %236 = sbr.rel (%p234) target = $region24
        $region23: #{_lambda_.20} parent=11 // pred_region
          _
        $region24: #{_lambda_.20} parent=11 // pred_fallthru
          _
        // Predicated region
        $region25: #{_lambda_.20} parent=11 // pred_check
          %p237 = pneg %p176
        $region26: #{_lambda_.20} parent=11 // pred_check_branch
          %239 = sbr.rel (%p237) target = $region28
        $region27: #{_lambda_.20} parent=11 // pred_region
          _
        $region28: #{_lambda_.20} parent=11 // pred_fallthru
          _
      $region12: #{_lambda_.20} parent=5 // pred_fallthru
        _
      %p240 = scmp.lt.s32.totalorder %s14, 2
      // Predicated region
      $region29: #{_lambda_.20} parent=5 // pred_check
        %p241 = pneg %p240
      $region30: #{_lambda_.20} parent=5 // pred_check_branch
        %243 = sbr.rel (%p241) target = $region32
      $region31: #{_lambda_.20} parent=5 // pred_region
        // Predicated region
        $region33: #{_lambda_.20} parent=31 // pred_check
          %p244 = pneg %p34
        $region34: #{_lambda_.20} parent=31 // pred_check_branch
          %246 = sbr.rel (%p244) target = $region36
        $region35: #{_lambda_.20} parent=31 // pred_region
          %p247 = scmp.lt.s32.totalorder %s14, 1
          %s248 = scalar_select %p247, %s14, 1
          %s249 = smul.addr %s248, 4
          %s250 = scalar_lea.vmem %s0, %s249
        $region36: #{_lambda_.20} parent=31 // pred_fallthru
          _
        // Predicated region
        $region37: #{_lambda_.20} parent=31 // pred_check
          %p251 = pneg %p60
        $region38: #{_lambda_.20} parent=31 // pred_check_branch
          %253 = sbr.rel (%p251) target = $region40
        $region39: #{_lambda_.20} parent=31 // pred_region
          %p254 = scmp.lt.s32.totalorder %s14, 1
          %s255 = scalar_select %p254, %s14, 1
          %s256 = smul.addr %s255, 4
          %s257 = smul.addr %s256, 4
          %s258 = scalar_lea.vmem %s1, %s257
        $region40: #{_lambda_.20} parent=31 // pred_fallthru
          _
        // Predicated region
        $region41: #{_lambda_.20} parent=31 // pred_check
          %p259 = pneg %p86
        $region42: #{_lambda_.20} parent=31 // pred_check_branch
          %261 = sbr.rel (%p259) target = $region44
        $region43: #{_lambda_.20} parent=31 // pred_region
          %p262 = scmp.lt.s32.totalorder %s14, 1
          %s263 = scalar_select %p262, %s14, 1
          %s264 = smul.addr %s263, 4
          %s265 = scalar_lea.vmem %s2, %s264
        $region44: #{_lambda_.20} parent=31 // pred_fallthru
          _
      $region32: #{_lambda_.20} parent=5 // pred_fallthru
        _
      %p266 = scmp.le.s32.totalorder 1, %s14
      %p267 = scmp.lt.s32.totalorder %s14, 3
      %p268 = pnand %p266, %p267
      %p269 = pneg %p268
      // Predicated region
      $region45: #{_lambda_.20} parent=5 // pred_check
        _
      $region46: #{_lambda_.20} parent=5 // pred_check_branch
        %271 = sbr.rel (%p268) target = $region48
      $region47: #{_lambda_.20} parent=5 // pred_region
        %s272 = ssub.s32 %s14, 1
        // Predicated region
        $region49: #{_lambda_.20} parent=47 // pred_check
          %p273 = pneg %p113
        $region50: #{_lambda_.20} parent=47 // pred_check_branch
          %275 = sbr.rel (%p273) target = $region52
        $region51: #{_lambda_.20} parent=47 // pred_region
          %277 = dma.done [#allocation3], 1024
        $region52: #{_lambda_.20} parent=47 // pred_fallthru
          _
        %p278 = scmp.lt.s32.totalorder %s19, 1
        %s279 = scalar_select %p278, %s19, 1
        %s280 = smul.addr %s279, 4
        %s281 = scalar_lea.vmem %s0, %s280
        %p282 = pneg %p40
        %p283 = pneg %p37
        %p284 = scmp.lt.s32.totalorder %s19, 1
        %s285 = scalar_select %p284, %s19, 1
        %s286 = smul.addr %s285, 4
        %s287 = smul.addr %s286, 4
        %s288 = scalar_lea.vmem %s1, %s287
        %p289 = pneg %p66
        %p290 = pneg %p63
        %p291 = scmp.lt.s32.totalorder %s19, 1
        %s292 = scalar_select %p291, %s19, 1
        %s293 = smul.addr %s292, 4
        %s294 = scalar_lea.vmem %s2, %s293
        %p295 = pneg %p92
        %p296 = pneg %p89
        %p297 = pneg %p113
        %p298 = pneg %p110
        %p299 = pneg %p134
        %p300 = pneg %p131
        %p301 = pneg %p155
        %p302 = pneg %p152
        %p303 = pneg %p176
        %p304 = pneg %p173
        %p305 = pneg %p202
        %p306 = pneg %p199
        %p307 = scmp.lt.s32.totalorder %s19, 1
        %s308 = scalar_select %p307, %s19, 1
        %s309 = smul.addr %s308, 4
        %s310 = scalar_lea.vmem %s7, %s309
        %p311 = scmp.lt.s32.totalorder %s19, 1
        %s312 = scalar_select %p311, %s19, 1
        %s313 = smul.addr %s312, 4
        %s314 = scalar_lea.vmem %s0, %s313
        %p315 = scmp.lt.s32.totalorder %s19, 1
        %s316 = scalar_select %p315, %s19, 1
        %s317 = smul.addr %s316, 4
        %s318 = smul.addr %s317, 4
        %s319 = scalar_lea.vmem %s1, %s318
        %p320 = scmp.lt.s32.totalorder %s19, 1
        %s321 = scalar_select %p320, %s19, 1
        %s322 = smul.addr %s321, 4
        %s323 = scalar_lea.vmem %s2, %s322
        %p324 = scmp.lt.s32.totalorder %s19, 1
        %s325 = scalar_select %p324, %s19, 1
        %s326 = smul.addr %s325, 4
        %s327 = scalar_lea.vmem %s7, %s326
        %v329 = vld [vmem:[%s319] sm:$0xff]
        %v330 = vld [vmem:[%s319 + $0x8] sm:$0xff]
        %v331 = vld [vmem:[%s314] sm:$0xf]
        %v332 = vld [vmem:[%s323] sm:$0xf]
        %v335 = vunpack.c.l.b16 %v329
        %v336 = vunpack.c.l.b16 %v330
        %v337 = vpack.c.b16 %v336, %v335
        %vm338 = vcmask 261120
        %v340 = vsel %vm338, %v331, 0
        %v343 = vsel %vm338, %v337, 0
        %345 = vmatpush.bf16.xpose.msra.mxu0 0
        %346 = vmatpush.bf16.xpose.msra.mxu0 0
        %347 = vmatpush.bf16.xpose.msra.mxu0 0
        %348 = vmatpush.bf16.xpose.msra.mxu0 0
        %349 = vmatpush.bf16.xpose.msra.mxu0 0
        %350 = vmatpush.bf16.xpose.msra.mxu0 0
        %351 = vmatpush.bf16.xpose.msra.mxu0 0
        %352 = vmatpush.bf16.xpose.msra.mxu0 %v343
        %353 = vmatmul.bf16.gmra.mxu0 %v340
        %v354 = vpop.f32.mrf.mxu0
        %v355 = vadd.f32 0.0, %v354
        %v356 = vpop.f32.mrf.mxu0
        %357 = vdwg.mxu0
        %vm358 = vcmask 130048
        %v359 = vsel %vm358, %v355, -inf
        %360 = vmax.xlane.f32.xlu0 %v359
        %v361 = vpop.xlane.xlu0 %360
        %v362 = vsub.f32 %v355, %v361
        %v363 = vmul.f32 %v362, 1.442695
        %v364 = vpow.pop %v363
        %v365 = vsel %vm358, %v364, 0.0
        %366 = vadd.xlane.f32.xlu0 %v365
        %v367 = vpop.xlane.xlu0 %366
        %v368 = vrcp.pop %v367
        %v369 = vmul.f32 %v364, %v368
        %v370 = vpack.c.bf16 %v369, %v369
        %v371 = vunpack.c.h.b16 %v329
        %v372 = vunpack.c.h.b16 %v330
        %v373 = vpack.c.b16 %v372, %v371
        %v376 = vsel %vm358, %v370, 0
        %378 = vmatpush.bf16.msra.mxu0 0
        %379 = vmatpush.bf16.msra.mxu0 0
        %380 = vmatpush.bf16.msra.mxu0 0
        %381 = vmatpush.bf16.msra.mxu0 0
        %382 = vmatpush.bf16.msra.mxu0 0
        %383 = vmatpush.bf16.msra.mxu0 0
        %384 = vmatpush.bf16.msra.mxu0 0
        %385 = vmatpush.bf16.msra.mxu0 %v373
        %386 = vmatmul.bf16.gmra.mxu0 %v376
        %v387 = vpop.f32.mrf.mxu0
        %v388 = vadd.f32 0.0, %v387
        %v389 = vpop.f32.mrf.mxu0
        %390 = vdwg.mxu0
        %v391 = vpack.c.bf16 %v388, %v388
        %v392 = vld [vmem:[#allocation2] sm:$0xf]
        %v393 = vld [vmem:[#allocation2 + $0x4] sm:$0xf]
        %v394 = vld [vmem:[#allocation2 + $0x8] sm:$0xf]
        %v395 = vld [vmem:[#allocation2 + $0xc] sm:$0xf]
        %v397 = vunpack.c.l.b16 %v331
        %v398 = vpack.c.b16 %v397, %v397
        %399 = vrot.lane.b32.xlu0 %v398, 96
        %v400 = vpop.permute.xlu0 %399
        %401 = vrot.lane.b32.xlu0 %v337, 96
        %v402 = vpop.permute.xlu0 %401
        %v404 = vsel %vm338, %v400, 0
        %v407 = vsel %vm338, %v402, 0
        %409 = vmatpush.bf16.xpose.msra.mxu0 0
        %410 = vmatpush.bf16.xpose.msra.mxu0 0
        %411 = vmatpush.bf16.xpose.msra.mxu0 0
        %412 = vmatpush.bf16.xpose.msra.mxu0 0
        %413 = vmatpush.bf16.xpose.msra.mxu0 0
        %414 = vmatpush.bf16.xpose.msra.mxu0 0
        %415 = vmatpush.bf16.xpose.msra.mxu0 0
        %416 = vmatpush.bf16.xpose.msra.mxu0 %v407
        %417 = vmatmul.bf16.gmra.mxu0 %v404
        %v418 = vpop.f32.mrf.mxu0
        %v419 = vadd.f32 0.0, %v418
        %v420 = vpop.f32.mrf.mxu0
        %421 = vdwg.mxu0
        %v422 = vsel %vm358, %v419, -inf
        %423 = vmax.xlane.f32.xlu0 %v422
        %v424 = vpop.xlane.xlu0 %423
        %v425 = vsub.f32 %v419, %v424
        %v426 = vmul.f32 %v425, 1.442695
        %v427 = vpow.pop %v426
        %v428 = vsel %vm358, %v427, 0.0
        %429 = vadd.xlane.f32.xlu0 %v428
        %v430 = vpop.xlane.xlu0 %429
        %v431 = vrcp.pop %v430
        %v432 = vmul.f32 %v427, %v431
        %v433 = vpack.c.bf16 %v432, %v432
        %434 = vrot.lane.b32.xlu0 %v373, 96
        %v435 = vpop.permute.xlu0 %434
        %v438 = vsel %vm358, %v433, 0
        %440 = vmatpush.bf16.msra.mxu0 0
        %441 = vmatpush.bf16.msra.mxu0 0
        %442 = vmatpush.bf16.msra.mxu0 0
        %443 = vmatpush.bf16.msra.mxu0 0
        %444 = vmatpush.bf16.msra.mxu0 0
        %445 = vmatpush.bf16.msra.mxu0 0
        %446 = vmatpush.bf16.msra.mxu0 0
        %447 = vmatpush.bf16.msra.mxu0 %v435
        %448 = vmatmul.bf16.gmra.mxu0 %v438
        %v449 = vpop.f32.mrf.mxu0
        %v450 = vadd.f32 0.0, %v449
        %v451 = vpop.f32.mrf.mxu0
        %452 = vdwg.mxu0
        %v453 = vpack.c.bf16 %v450, %v450
        %v454 = vld [vmem:[#allocation2 + $0x10] sm:$0xf]
        %v455 = vld [vmem:[#allocation2 + $0x14] sm:$0xf]
        %v456 = vld [vmem:[#allocation2 + $0x18] sm:$0xf]
        %v457 = vld [vmem:[#allocation2 + $0x1c] sm:$0xf]
        %v462 = vunpack.c.l.b16 %v454
        %v463 = vunpack.c.l.b16 %v455
        %v464 = vunpack.c.l.b16 %v456
        %v465 = vunpack.c.l.b16 %v457
        %v466 = vpack.c.b16 %v463, %v462
        %v467 = vpack.c.b16 %v465, %v464
        %v471 = vsel %vm338, %v453, 0
        %473 = vmatpush.bf16.msra.mxu0 0
        %474 = vmatpush.bf16.msra.mxu0 0
        %475 = vmatpush.bf16.msra.mxu0 0
        %476 = vmatpush.bf16.msra.mxu0 0
        %477 = vmatpush.bf16.msra.mxu0 0
        %478 = vmatpush.bf16.msra.mxu0 0
        %479 = vmatpush.bf16.msra.mxu0 %v467
        %480 = vmatpush.bf16.msra.mxu0 %v466
        %481 = vmatmul.bf16.gmra.mxu0 %v471
        %v482 = vpop.f32.mrf.mxu0
        %v483 = vadd.f32 0.0, %v482
        %v484 = vpop.f32.mrf.mxu0
        %485 = vdwg.mxu0
        %v490 = vunpack.c.l.b16 %v392
        %v491 = vunpack.c.l.b16 %v393
        %v492 = vunpack.c.l.b16 %v394
        %v493 = vunpack.c.l.b16 %v395
        %v494 = vpack.c.b16 %v491, %v490
        %v495 = vpack.c.b16 %v493, %v492
        %v499 = vsel %vm338, %v391, 0
        %501 = vmatpush.bf16.msra.mxu0 0
        %502 = vmatpush.bf16.msra.mxu0 0
        %503 = vmatpush.bf16.msra.mxu0 0
        %504 = vmatpush.bf16.msra.mxu0 0
        %505 = vmatpush.bf16.msra.mxu0 0
        %506 = vmatpush.bf16.msra.mxu0 0
        %507 = vmatpush.bf16.msra.mxu0 %v495
        %508 = vmatpush.bf16.msra.mxu0 %v494
        %509 = vmatmul.bf16.gmra.mxu0 %v499
        %v510 = vpop.f32.mrf.mxu0
        %v511 = vadd.f32 %v483, %v510
        %v512 = vpop.f32.mrf.mxu0
        %513 = vdwg.mxu0
        %514 = vrot.lane.b32.xlu0 %v398, 64
        %v515 = vpop.permute.xlu0 %514
        %516 = vrot.lane.b32.xlu0 %v337, 64
        %v517 = vpop.permute.xlu0 %516
        %v519 = vsel %vm338, %v515, 0
        %v522 = vsel %vm338, %v517, 0
        %524 = vmatpush.bf16.xpose.msra.mxu0 0
        %525 = vmatpush.bf16.xpose.msra.mxu0 0
        %526 = vmatpush.bf16.xpose.msra.mxu0 0
        %527 = vmatpush.bf16.xpose.msra.mxu0 0
        %528 = vmatpush.bf16.xpose.msra.mxu0 0
        %529 = vmatpush.bf16.xpose.msra.mxu0 0
        %530 = vmatpush.bf16.xpose.msra.mxu0 0
        %531 = vmatpush.bf16.xpose.msra.mxu0 %v522
        %532 = vmatmul.bf16.gmra.mxu0 %v519
        %v533 = vpop.f32.mrf.mxu0
        %v534 = vadd.f32 0.0, %v533
        %v535 = vpop.f32.mrf.mxu0
        %536 = vdwg.mxu0
        %v537 = vsel %vm358, %v534, -inf
        %538 = vmax.xlane.f32.xlu0 %v537
        %v539 = vpop.xlane.xlu0 %538
        %v540 = vsub.f32 %v534, %v539
        %v541 = vmul.f32 %v540, 1.442695
        %v542 = vpow.pop %v541
        %v543 = vsel %vm358, %v542, 0.0
        %544 = vadd.xlane.f32.xlu0 %v543
        %v545 = vpop.xlane.xlu0 %544
        %v546 = vrcp.pop %v545
        %v547 = vmul.f32 %v542, %v546
        %v548 = vpack.c.bf16 %v547, %v547
        %549 = vrot.lane.b32.xlu0 %v373, 64
        %v550 = vpop.permute.xlu0 %549
        %v553 = vsel %vm358, %v548, 0
        %555 = vmatpush.bf16.msra.mxu0 0
        %556 = vmatpush.bf16.msra.mxu0 0
        %557 = vmatpush.bf16.msra.mxu0 0
        %558 = vmatpush.bf16.msra.mxu0 0
        %559 = vmatpush.bf16.msra.mxu0 0
        %560 = vmatpush.bf16.msra.mxu0 0
        %561 = vmatpush.bf16.msra.mxu0 0
        %562 = vmatpush.bf16.msra.mxu0 %v550
        %563 = vmatmul.bf16.gmra.mxu0 %v553
        %v564 = vpop.f32.mrf.mxu0
        %v565 = vadd.f32 0.0, %v564
        %v566 = vpop.f32.mrf.mxu0
        %567 = vdwg.mxu0
        %v568 = vpack.c.bf16 %v565, %v565
        %v569 = vld [vmem:[#allocation2 + $0x20] sm:$0xf]
        %v570 = vld [vmem:[#allocation2 + $0x24] sm:$0xf]
        %v571 = vld [vmem:[#allocation2 + $0x28] sm:$0xf]
        %v572 = vld [vmem:[#allocation2 + $0x2c] sm:$0xf]
        %v577 = vunpack.c.l.b16 %v569
        %v578 = vunpack.c.l.b16 %v570
        %v579 = vunpack.c.l.b16 %v571
        %v580 = vunpack.c.l.b16 %v572
        %v581 = vpack.c.b16 %v578, %v577
        %v582 = vpack.c.b16 %v580, %v579
        %v586 = vsel %vm338, %v568, 0
        %588 = vmatpush.bf16.msra.mxu0 0
        %589 = vmatpush.bf16.msra.mxu0 0
        %590 = vmatpush.bf16.msra.mxu0 0
        %591 = vmatpush.bf16.msra.mxu0 0
        %592 = vmatpush.bf16.msra.mxu0 0
        %593 = vmatpush.bf16.msra.mxu0 0
        %594 = vmatpush.bf16.msra.mxu0 %v582
        %595 = vmatpush.bf16.msra.mxu0 %v581
        %596 = vmatmul.bf16.gmra.mxu0 %v586
        %v597 = vpop.f32.mrf.mxu0
        %v598 = vadd.f32 0.0, %v597
        %v599 = vpop.f32.mrf.mxu0
        %600 = vdwg.mxu0
        %v601 = vadd.f32 %v511, %v598
        %602 = vrot.lane.b32.xlu0 %v398, 32
        %v603 = vpop.permute.xlu0 %602
        %604 = vrot.lane.b32.xlu0 %v337, 32
        %v605 = vpop.permute.xlu0 %604
        %v607 = vsel %vm338, %v603, 0
        %v610 = vsel %vm338, %v605, 0
        %612 = vmatpush.bf16.xpose.msra.mxu0 0
        %613 = vmatpush.bf16.xpose.msra.mxu0 0
        %614 = vmatpush.bf16.xpose.msra.mxu0 0
        %615 = vmatpush.bf16.xpose.msra.mxu0 0
        %616 = vmatpush.bf16.xpose.msra.mxu0 0
        %617 = vmatpush.bf16.xpose.msra.mxu0 0
        %618 = vmatpush.bf16.xpose.msra.mxu0 0
        %619 = vmatpush.bf16.xpose.msra.mxu0 %v610
        %620 = vmatmul.bf16.gmra.mxu0 %v607
        %v621 = vpop.f32.mrf.mxu0
        %v622 = vadd.f32 0.0, %v621
        %v623 = vpop.f32.mrf.mxu0
        %624 = vdwg.mxu0
        %v625 = vsel %vm358, %v622, -inf
        %626 = vmax.xlane.f32.xlu0 %v625
        %v627 = vpop.xlane.xlu0 %626
        %v628 = vsub.f32 %v622, %v627
        %v629 = vmul.f32 %v628, 1.442695
        %v630 = vpow.pop %v629
        %v631 = vsel %vm358, %v630, 0.0
        %632 = vadd.xlane.f32.xlu0 %v631
        %v633 = vpop.xlane.xlu0 %632
        %v634 = vrcp.pop %v633
        %v635 = vmul.f32 %v630, %v634
        %v636 = vpack.c.bf16 %v635, %v635
        %637 = vrot.lane.b32.xlu0 %v373, 32
        %v638 = vpop.permute.xlu0 %637
        %v641 = vsel %vm358, %v636, 0
        %643 = vmatpush.bf16.msra.mxu0 0
        %644 = vmatpush.bf16.msra.mxu0 0
        %645 = vmatpush.bf16.msra.mxu0 0
        %646 = vmatpush.bf16.msra.mxu0 0
        %647 = vmatpush.bf16.msra.mxu0 0
        %648 = vmatpush.bf16.msra.mxu0 0
        %649 = vmatpush.bf16.msra.mxu0 0
        %650 = vmatpush.bf16.msra.mxu0 %v638
        %651 = vmatmul.bf16.gmra.mxu0 %v641
        %v652 = vpop.f32.mrf.mxu0
        %v653 = vadd.f32 0.0, %v652
        %v654 = vpop.f32.mrf.mxu0
        %655 = vdwg.mxu0
        %v656 = vpack.c.bf16 %v653, %v653
        %v657 = vld [vmem:[#allocation2 + $0x30] sm:$0xf]
        %v658 = vld [vmem:[#allocation2 + $0x34] sm:$0xf]
        %v659 = vld [vmem:[#allocation2 + $0x38] sm:$0xf]
        %v660 = vld [vmem:[#allocation2 + $0x3c] sm:$0xf]
        %v665 = vunpack.c.l.b16 %v657
        %v666 = vunpack.c.l.b16 %v658
        %v667 = vunpack.c.l.b16 %v659
        %v668 = vunpack.c.l.b16 %v660
        %v669 = vpack.c.b16 %v666, %v665
        %v670 = vpack.c.b16 %v668, %v667
        %v674 = vsel %vm338, %v656, 0
        %676 = vmatpush.bf16.msra.mxu0 0
        %677 = vmatpush.bf16.msra.mxu0 0
        %678 = vmatpush.bf16.msra.mxu0 0
        %679 = vmatpush.bf16.msra.mxu0 0
        %680 = vmatpush.bf16.msra.mxu0 0
        %681 = vmatpush.bf16.msra.mxu0 0
        %682 = vmatpush.bf16.msra.mxu0 %v670
        %683 = vmatpush.bf16.msra.mxu0 %v669
        %684 = vmatmul.bf16.gmra.mxu0 %v674
        %v685 = vpop.f32.mrf.mxu0
        %v686 = vadd.f32 0.0, %v685
        %v687 = vpop.f32.mrf.mxu0
        %688 = vdwg.mxu0
        %v689 = vadd.f32 %v601, %v686
        %v690 = vld [vmem:[%s4] sm:$0x1]
        %v692 = vperm.slane %v690, 0
        %v694 = vadd.f32 %v689, %v692
        %v695 = vunpack.c.l.bf16 %v332
        %v696 = vadd.f32 %v694, %v695
        %697 = vadd.xlane.f32.xlu0 %v696
        %v698 = vpop.xlane.xlu0 %697
        %v699 = vrcp.pop 128.0
        %v700 = vmul.f32 128.0, %v699
        %v701 = vsub.f32 1.0, %v700
        %v702 = vmul.f32 %v699, %v701
        %v703 = vadd.f32 %v699, %v702
        %vm704 = vweird.f32 %v699
        %v705 = vsel %vm704, %v699, %v703
        %v706 = vmul.f32 %v698, %v705
        %v707 = vsub.f32 %v696, %v706
        %v708 = vmul.f32 %v707, %v707
        %709 = vadd.xlane.f32.xlu0 %v708
        %v710 = vpop.xlane.xlu0 %709
        %v711 = vmul.f32 %v710, %v705
        %v712 = vadd.f32 %v711, 1e-05
        %v713 = vrsqrt.pop %v712
        %v714 = vmul.f32 %v713, %v712
        %v715 = vmul.f32 %v714, %v713
        %v716 = vmul.f32 0.5, %v715
        %v717 = vsub.f32 1.5, %v716
        %v718 = vmul.f32 %v713, %v717
        %vm719 = vweird.f32 %v712
        %vm720 = vweird.f32 %v713
        %vm721 = vmor %vm719, %vm720
        %v722 = vsel %vm721, %v713, %v718
        %v723 = vmul.f32 %v707, %v722
        %v724 = vld [vmem:[%s5] sm:$0x1]
        %v726 = vperm.slane %v724, 0
        %v728 = vmul.f32 %v723, %v726
        %v729 = vld [vmem:[%s6] sm:$0x1]
        %v731 = vperm.slane %v729, 0
        %v733 = vadd.f32 %v728, %v731
        %v734 = vpack.c.bf16 %v733, %v733
        %735 = vst [vmem:[%s327] sm:$0xf] %v734
        %p736 = scmp.lt.s32.totalorder %s19, 1
        %s737 = scalar_select %p736, %s19, 1
        %s738 = smul.addr %s737, 4
        %s739 = scalar_lea.vmem %s7, %s738
        // Predicated region
        $region53: #{_lambda_.20} parent=47 // pred_check
          %p740 = pneg %p199
        $region54: #{_lambda_.20} parent=47 // pred_check_branch
          %742 = sbr.rel (%p740) target = $region56
        $region55: #{_lambda_.20} parent=47 // pred_region
          _
        $region56: #{_lambda_.20} parent=47 // pred_fallthru
          _
      $region48: #{_lambda_.20} parent=5 // pred_fallthru
        _
      %p743 = scmp.le.s32.totalorder 2, %s14
      // Predicated region
      $region57: #{_lambda_.20} parent=5 // pred_check
        %p744 = pneg %p743
      $region58: #{_lambda_.20} parent=5 // pred_check_branch
        %746 = sbr.rel (%p744) target = $region60
      $region59: #{_lambda_.20} parent=5 // pred_region
        %s747 = ssub.s32 %s14, 2
        // Predicated region
        $region61: #{_lambda_.20} parent=59 // pred_check
          %p748 = pneg %p205
        $region62: #{_lambda_.20} parent=59 // pred_check_branch
          %750 = sbr.rel (%p748) target = $region64
        $region63: #{_lambda_.20} parent=59 // pred_region
          %p751 = scmp.lt.s32.totalorder %s20, 1
          %s752 = scalar_select %p751, %s20, 1
          %s753 = smul.addr %s752, 4
          %s754 = scalar_lea.vmem %s7, %s753
        $region64: #{_lambda_.20} parent=59 // pred_fallthru
          _
      $region60: #{_lambda_.20} parent=5 // pred_fallthru
        _
    $region6: #{_lambda_.20} parent=1 // loop_footer
      %s18 = sadd.s32 1, %s14
    $region7: #{_lambda_.20} parent=1 // loop_footer_branch
      %13 = sbr.rel target = $region3
    $region8: #{_lambda_.20} parent=1 // loop_exit
      _
    %755 = vsyncpa [#allocation3], 1
    %s756 = scalar_lea.sflag [#allocation3], 1
    %757 = vsyncpa %s756, 1

// kernel: _lambda_.22
$region0: #{_lambda_.22}
  #allocation0 [shape = 'u32[]', space=smem, size = 0x4, offset = 0x4, fixed_abs, tag = 'smem constant byte address 0x4 - core index']
  #allocation1 [shape = 'u32[72,128]{1,0:T(1,128)}', space=vmem, size = 0x9000, scoped, tag = 'internal scratch']
  #allocation2 [shape = 'f32[16,128]{1,0:T(8,128)}', space=vmem, size = 0x2000, scoped, tag = 'scratch operand']
  %s0 = inlined_call_operand.vmem [shape: bf16[16,256], index: 0, kind: input, shape index: {}]
  %s1 = inlined_call_operand.hbm [shape: bf16[256,128], index: 1, kind: input, shape index: {}]
  %s2 = inlined_call_operand.vmem [shape: f32[1,128], index: 2, kind: input, shape index: {}]
  %s3 = inlined_call_operand.vmem [shape: bf16[16,128], index: 3, kind: input, shape index: {}]
  %s4 = inlined_call_operand.vmem [shape: f32[1,128], index: 4, kind: input, shape index: {}]
  %s5 = inlined_call_operand.vmem [shape: f32[1,128], index: 5, kind: input, shape index: {}]
  %s6 = inlined_call_operand.vmem [shape: bf16[16,128], index: 6, kind: output, shape index: {}]
  %s7 = sld [smem:[#allocation0]]
  $region46: #{_lambda_.22} parent=0
    _
  %s9 = ssub.s32 1, %s7
  %s10 = scalar_select 0, %s9, %s7
  $region1: #{_lambda_.22} parent=0
    #allocation3 [shape = 'u8[65536]{0}', space=vmem, size = 0x10000, scoped, tag = 'input window, operand 1, single buffered']
    #allocation4 [shape = 's32[1]{0}', space=sflag, size = 0x4, scoped, tag = 'scoped memory for _lambda_.22']
    %11 = vsyncpa [#allocation4], 0
    // Predicated region
    $region2: #{_lambda_.22} parent=1 // pred_check
      _
    $region3: #{_lambda_.22} parent=1 // pred_check_branch
      %13 = sbr.rel (0) target = $region5
    $region4: #{_lambda_.22} parent=1 // pred_region
      _
    $region5: #{_lambda_.22} parent=1 // pred_fallthru
      _
    // Predicated region
    $region6: #{_lambda_.22} parent=1 // pred_check
      _
    $region7: #{_lambda_.22} parent=1 // pred_check_branch
      %15 = sbr.rel (0) target = $region9
    $region8: #{_lambda_.22} parent=1 // pred_region
      %17 = vsyncadd [#allocation4], 0
      %s18 = sshll.u32 %s1, 4
      %s19 = int_to_ptr.hbm [resolvable:$true] %s18
      %s20 = sshll.u32 [#allocation3], 4
      %s21 = int_to_ptr.vmem [resolvable:$true] %s20
      %26 = dma.hbm_to_vmem [thread:$0]  %s19, 2048, %s21, [#allocation4], 64, 64, 4
    $region9: #{_lambda_.22} parent=1 // pred_fallthru
      _
    // Predicated region
    $region10: #{_lambda_.22} parent=1 // pred_check
      _
    $region11: #{_lambda_.22} parent=1 // pred_check_branch
      %28 = sbr.rel (0) target = $region13
    $region12: #{_lambda_.22} parent=1 // pred_region
      _
    $region13: #{_lambda_.22} parent=1 // pred_fallthru
      _
    // Predicated region
    $region14: #{_lambda_.22} parent=1 // pred_check
      _
    $region15: #{_lambda_.22} parent=1 // pred_check_branch
      %30 = sbr.rel (0) target = $region17
    $region16: #{_lambda_.22} parent=1 // pred_region
      _
    $region17: #{_lambda_.22} parent=1 // pred_fallthru
      _
    // Predicated region
    $region18: #{_lambda_.22} parent=1 // pred_check
      _
    $region19: #{_lambda_.22} parent=1 // pred_check_branch
      %32 = sbr.rel (0) target = $region21
    $region20: #{_lambda_.22} parent=1 // pred_region
      _
    $region21: #{_lambda_.22} parent=1 // pred_fallthru
      _
    // Predicated region
    $region22: #{_lambda_.22} parent=1 // pred_check
      _
    $region23: #{_lambda_.22} parent=1 // pred_check_branch
      %34 = sbr.rel (0) target = $region25
    $region24: #{_lambda_.22} parent=1 // pred_region
      _
    $region25: #{_lambda_.22} parent=1 // pred_fallthru
      _
    // Predicated region
    $region26: #{_lambda_.22} parent=1 // pred_check
      _
    $region27: #{_lambda_.22} parent=1 // pred_check_branch
      %36 = sbr.rel (0) target = $region29
    $region28: #{_lambda_.22} parent=1 // pred_region
      %38 = dma.done [#allocation4], 2048
    $region29: #{_lambda_.22} parent=1 // pred_fallthru
      _
    %p39 = scmp.eq.s32.totalorder 0, 0
    // Predicated region
    $region30: #{_lambda_.22} parent=1 // pred_check
      %p40 = pneg %p39
    $region31: #{_lambda_.22} parent=1 // pred_check_branch
      %42 = sbr.rel (%p40) target = $region33
    $region32: #{_lambda_.22} parent=1 // pred_region
      %43 = vst [vmem:[#allocation2] sm:$0xff] 0.0
      %44 = vst [vmem:[#allocation2 + $0x8] sm:$0xff] 0.0
    $region33: #{_lambda_.22} parent=1 // pred_fallthru
      _
    %v45 = vld [vmem:[#allocation2] sm:$0xff]
    %v46 = vld [vmem:[#allocation2 + $0x8] sm:$0xff]
    %v47 = vld [vmem:[%s0] sm:$0xff]
    %v48 = vld [vmem:[%s0 + $0x8] sm:$0xff]
    %v49 = vld [vmem:[#allocation3] sm:$0xf]
    %v50 = vld [vmem:[#allocation3 + $0x4] sm:$0xf]
    %v51 = vld [vmem:[#allocation3 + $0x8] sm:$0xf]
    %v52 = vld [vmem:[#allocation3 + $0xc] sm:$0xf]
    %v53 = vld [vmem:[#allocation3 + $0x10] sm:$0xf]
    %v54 = vld [vmem:[#allocation3 + $0x14] sm:$0xf]
    %v55 = vld [vmem:[#allocation3 + $0x18] sm:$0xf]
    %v56 = vld [vmem:[#allocation3 + $0x1c] sm:$0xf]
    %v57 = vld [vmem:[#allocation3 + $0x20] sm:$0xf]
    %v58 = vld [vmem:[#allocation3 + $0x24] sm:$0xf]
    %v59 = vld [vmem:[#allocation3 + $0x28] sm:$0xf]
    %v60 = vld [vmem:[#allocation3 + $0x2c] sm:$0xf]
    %v61 = vld [vmem:[#allocation3 + $0x30] sm:$0xf]
    %v62 = vld [vmem:[#allocation3 + $0x34] sm:$0xf]
    %v63 = vld [vmem:[#allocation3 + $0x38] sm:$0xf]
    %v64 = vld [vmem:[#allocation3 + $0x3c] sm:$0xf]
    %v65 = vld [vmem:[#allocation3 + $0x40] sm:$0xf]
    %v66 = vld [vmem:[#allocation3 + $0x44] sm:$0xf]
    %v67 = vld [vmem:[#allocation3 + $0x48] sm:$0xf]
    %v68 = vld [vmem:[#allocation3 + $0x4c] sm:$0xf]
    %v69 = vld [vmem:[#allocation3 + $0x50] sm:$0xf]
    %v70 = vld [vmem:[#allocation3 + $0x54] sm:$0xf]
    %v71 = vld [vmem:[#allocation3 + $0x58] sm:$0xf]
    %v72 = vld [vmem:[#allocation3 + $0x5c] sm:$0xf]
    %v73 = vld [vmem:[#allocation3 + $0x60] sm:$0xf]
    %v74 = vld [vmem:[#allocation3 + $0x64] sm:$0xf]
    %v75 = vld [vmem:[#allocation3 + $0x68] sm:$0xf]
    %v76 = vld [vmem:[#allocation3 + $0x6c] sm:$0xf]
    %v77 = vld [vmem:[#allocation3 + $0x70] sm:$0xf]
    %v78 = vld [vmem:[#allocation3 + $0x74] sm:$0xf]
    %v79 = vld [vmem:[#allocation3 + $0x78] sm:$0xf]
    %v80 = vld [vmem:[#allocation3 + $0x7c] sm:$0xf]
    %v83 = vunpack.c.l.b16 %v47
    %v84 = vunpack.c.h.b16 %v47
    %v85 = vunpack.c.l.b16 %v48
    %v86 = vunpack.c.h.b16 %v48
    %v87 = vpack.c.b16 %v85, %v83
    %v88 = vpack.c.b16 %v86, %v84
    %v123 = vunpack.c.l.b16 %v49
    %v124 = vunpack.c.l.b16 %v50
    %v125 = vunpack.c.l.b16 %v51
    %v126 = vunpack.c.l.b16 %v52
    %v127 = vunpack.c.l.b16 %v53
    %v128 = vunpack.c.l.b16 %v54
    %v129 = vunpack.c.l.b16 %v55
    %v130 = vunpack.c.l.b16 %v56
    %v131 = vunpack.c.l.b16 %v57
    %v132 = vunpack.c.l.b16 %v58
    %v133 = vunpack.c.l.b16 %v59
    %v134 = vunpack.c.l.b16 %v60
    %v135 = vunpack.c.l.b16 %v61
    %v136 = vunpack.c.l.b16 %v62
    %v137 = vunpack.c.l.b16 %v63
    %v138 = vunpack.c.l.b16 %v64
    %v139 = vunpack.c.l.b16 %v65
    %v140 = vunpack.c.l.b16 %v66
    %v141 = vunpack.c.l.b16 %v67
    %v142 = vunpack.c.l.b16 %v68
    %v143 = vunpack.c.l.b16 %v69
    %v144 = vunpack.c.l.b16 %v70
    %v145 = vunpack.c.l.b16 %v71
    %v146 = vunpack.c.l.b16 %v72
    %v147 = vunpack.c.l.b16 %v73
    %v148 = vunpack.c.l.b16 %v74
    %v149 = vunpack.c.l.b16 %v75
    %v150 = vunpack.c.l.b16 %v76
    %v151 = vunpack.c.l.b16 %v77
    %v152 = vunpack.c.l.b16 %v78
    %v153 = vunpack.c.l.b16 %v79
    %v154 = vunpack.c.l.b16 %v80
    %v155 = vpack.c.b16 %v124, %v123
    %v156 = vpack.c.b16 %v126, %v125
    %v157 = vpack.c.b16 %v128, %v127
    %v158 = vpack.c.b16 %v130, %v129
    %v159 = vpack.c.b16 %v132, %v131
    %v160 = vpack.c.b16 %v134, %v133
    %v161 = vpack.c.b16 %v136, %v135
    %v162 = vpack.c.b16 %v138, %v137
    %v163 = vpack.c.b16 %v140, %v139
    %v164 = vpack.c.b16 %v142, %v141
    %v165 = vpack.c.b16 %v144, %v143
    %v166 = vpack.c.b16 %v146, %v145
    %v167 = vpack.c.b16 %v148, %v147
    %v168 = vpack.c.b16 %v150, %v149
    %v169 = vpack.c.b16 %v152, %v151
    %v170 = vpack.c.b16 %v154, %v153
    %187 = vmatpush.bf16.msra.mxu0 %v162
    %188 = vmatpush.bf16.msra.mxu0 %v161
    %189 = vmatpush.bf16.msra.mxu0 %v160
    %190 = vmatpush.bf16.msra.mxu0 %v159
    %191 = vmatpush.bf16.msra.mxu0 %v158
    %192 = vmatpush.bf16.msra.mxu0 %v157
    %193 = vmatpush.bf16.msra.mxu0 %v156
    %194 = vmatpush.bf16.msra.mxu0 %v155
    %195 = vmatmul.bf16.gmra.mxu0 %v87
    %v196 = vpop.f32.mrf.mxu0
    %v197 = vadd.f32 0.0, %v196
    %v198 = vpop.f32.mrf.mxu0
    %v199 = vadd.f32 0.0, %v198
    %200 = vdwg.mxu0
    %201 = vmatpush.bf16.msra.mxu0 %v170
    %202 = vmatpush.bf16.msra.mxu0 %v169
    %203 = vmatpush.bf16.msra.mxu0 %v168
    %204 = vmatpush.bf16.msra.mxu0 %v167
    %205 = vmatpush.bf16.msra.mxu0 %v166
    %206 = vmatpush.bf16.msra.mxu0 %v165
    %207 = vmatpush.bf16.msra.mxu0 %v164
    %208 = vmatpush.bf16.msra.mxu0 %v163
    %209 = vmatmul.bf16.gmra.mxu0 %v88
    %v210 = vpop.f32.mrf.mxu0
    %v211 = vadd.f32 %v197, %v210
    %v212 = vpop.f32.mrf.mxu0
    %v213 = vadd.f32 %v199, %v212
    %214 = vdwg.mxu0
    %v215 = vadd.f32 %v45, %v211
    %v216 = vadd.f32 %v46, %v213
    %217 = vst [vmem:[#allocation2] sm:$0xff] %v215
    %218 = vst [vmem:[#allocation2 + $0x8] sm:$0xff] %v216
    // Predicated region
    $region34: #{_lambda_.22} parent=1 // pred_check
      %p219 = pneg %p39
    $region35: #{_lambda_.22} parent=1 // pred_check_branch
      %221 = sbr.rel (%p219) target = $region37
    $region36: #{_lambda_.22} parent=1 // pred_region
      %v222 = vld [vmem:[#allocation2] sm:$0xff]
      %v223 = vld [vmem:[#allocation2 + $0x8] sm:$0xff]
      %v224 = vld [vmem:[%s2] sm:$0x1]
      %v226 = vperm.slane %v224, 0
      %v228 = vadd.f32 %v222, %v226
      %v229 = vadd.f32 %v223, %v226
      %v230 = vld [vmem:[%s3] sm:$0xf]
      %v231 = vld [vmem:[%s3 + $0x4] sm:$0xf]
      %v232 = vunpack.c.l.bf16 %v230
      %v233 = vunpack.c.l.bf16 %v231
      %v234 = vadd.f32 %v228, %v232
      %v235 = vadd.f32 %v229, %v233
      %236 = vadd.xlane.f32.xlu0 %v234
      %v237 = vpop.xlane.xlu0 %236
      %238 = vadd.xlane.f32.xlu0 %v235
      %v239 = vpop.xlane.xlu0 %238
      %v240 = vrcp.pop 128.0
      %v241 = vmul.f32 128.0, %v240
      %v242 = vsub.f32 1.0, %v241
      %v243 = vmul.f32 %v240, %v242
      %v244 = vadd.f32 %v240, %v243
      %vm245 = vweird.f32 %v240
      %v246 = vsel %vm245, %v240, %v244
      %v247 = vmul.f32 %v237, %v246
      %v248 = vmul.f32 %v239, %v246
      %v249 = vsub.f32 %v234, %v247
      %v250 = vsub.f32 %v235, %v248
      %v251 = vmul.f32 %v249, %v249
      %v252 = vmul.f32 %v250, %v250
      %253 = vadd.xlane.f32.xlu0 %v251
      %v254 = vpop.xlane.xlu0 %253
      %255 = vadd.xlane.f32.xlu0 %v252
      %v256 = vpop.xlane.xlu0 %255
      %v257 = vmul.f32 %v254, %v246
      %v258 = vmul.f32 %v256, %v246
      %v259 = vadd.f32 %v257, 1e-05
      %v260 = vadd.f32 %v258, 1e-05
      %v261 = vrsqrt.pop %v259
      %v262 = vmul.f32 %v261, %v259
      %v263 = vmul.f32 %v262, %v261
      %v264 = vmul.f32 0.5, %v263
      %v265 = vsub.f32 1.5, %v264
      %v266 = vmul.f32 %v261, %v265
      %vm267 = vweird.f32 %v259
      %vm268 = vweird.f32 %v261
      %vm269 = vmor %vm267, %vm268
      %v270 = vsel %vm269, %v261, %v266
      %v271 = vrsqrt.pop %v260
      %v272 = vmul.f32 %v271, %v260
      %v273 = vmul.f32 %v272, %v271
      %v274 = vmul.f32 0.5, %v273
      %v275 = vsub.f32 1.5, %v274
      %v276 = vmul.f32 %v271, %v275
      %vm277 = vweird.f32 %v260
      %vm278 = vweird.f32 %v271
      %vm279 = vmor %vm277, %vm278
      %v280 = vsel %vm279, %v271, %v276
      %v281 = vmul.f32 %v249, %v270
      %v282 = vmul.f32 %v250, %v280
      %v283 = vld [vmem:[%s4] sm:$0x1]
      %v285 = vperm.slane %v283, 0
      %v287 = vmul.f32 %v281, %v285
      %v288 = vmul.f32 %v282, %v285
      %v289 = vld [vmem:[%s5] sm:$0x1]
      %v291 = vperm.slane %v289, 0
      %v293 = vadd.f32 %v287, %v291
      %v294 = vadd.f32 %v288, %v291
      %v295 = vpack.c.bf16 %v293, %v293
      %v296 = vpack.c.bf16 %v294, %v294
      %297 = vst [vmem:[%s6] sm:$0xf] %v295
      %298 = vst [vmem:[%s6 + $0x4] sm:$0xf] %v296
    $region37: #{_lambda_.22} parent=1 // pred_fallthru
      _
    // Predicated region
    $region38: #{_lambda_.22} parent=1 // pred_check
      _
    $region39: #{_lambda_.22} parent=1 // pred_check_branch
      %300 = sbr.rel (0) target = $region41
    $region40: #{_lambda_.22} parent=1 // pred_region
      _
    $region41: #{_lambda_.22} parent=1 // pred_fallthru
      _
    // Predicated region
    $region42: #{_lambda_.22} parent=1 // pred_check
      _
    $region43: #{_lambda_.22} parent=1 // pred_check_branch
      %302 = sbr.rel (0) target = $region45
    $region44: #{_lambda_.22} parent=1 // pred_region
      _
    $region45: #{_lambda_.22} parent=1 // pred_fallthru
      _
    %303 = vsyncpa [#allocation4], 1

// kernel: _lambda_.21
$region0: #{_lambda_.21}
  #allocation0 [shape = 'u32[]', space=smem, size = 0x4, offset = 0x4, fixed_abs, tag = 'smem constant byte address 0x4 - core index']
  #allocation1 [shape = 'u32[72,128]{1,0:T(1,128)}', space=vmem, size = 0x9000, scoped, tag = 'internal scratch']
  #allocation2 [shape = 'f32[16,256]{1,0:T(8,128)}', space=vmem, size = 0x4000, scoped, tag = 'scratch operand']
  %s0 = inlined_call_operand.vmem [shape: bf16[16,128], index: 0, kind: input, shape index: {}]
  %s1 = inlined_call_operand.hbm [shape: bf16[128,256], index: 1, kind: input, shape index: {}]
  %s2 = inlined_call_operand.vmem [shape: f32[1,256], index: 2, kind: input, shape index: {}]
  %s3 = inlined_call_operand.vmem [shape: bf16[16,256], index: 3, kind: output, shape index: {}]
  %s4 = sld [smem:[#allocation0]]
  $region34: #{_lambda_.21} parent=0
    _
  %s6 = ssub.s32 1, %s4
  %s7 = scalar_select 0, %s6, %s4
  $region1: #{_lambda_.21} parent=0
    #allocation3 [shape = 'u8[65536]{0}', space=vmem, size = 0x10000, scoped, tag = 'input window, operand 1, single buffered']
    #allocation4 [shape = 's32[1]{0}', space=sflag, size = 0x4, scoped, tag = 'scoped memory for _lambda_.21']
    %8 = vsyncpa [#allocation4], 0
    // Predicated region
    $region2: #{_lambda_.21} parent=1 // pred_check
      _
    $region3: #{_lambda_.21} parent=1 // pred_check_branch
      %10 = sbr.rel (0) target = $region5
    $region4: #{_lambda_.21} parent=1 // pred_region
      _
    $region5: #{_lambda_.21} parent=1 // pred_fallthru
      _
    // Predicated region
    $region6: #{_lambda_.21} parent=1 // pred_check
      _
    $region7: #{_lambda_.21} parent=1 // pred_check_branch
      %12 = sbr.rel (0) target = $region9
    $region8: #{_lambda_.21} parent=1 // pred_region
      %14 = vsyncadd [#allocation4], 0
      %s15 = sshll.u32 %s1, 4
      %s16 = int_to_ptr.hbm [resolvable:$true] %s15
      %s17 = sshll.u32 [#allocation3], 4
      %s18 = int_to_ptr.vmem [resolvable:$true] %s17
      %23 = dma.hbm_to_vmem [thread:$0]  %s16, 2048, %s18, [#allocation4], 128, 128, 8
    $region9: #{_lambda_.21} parent=1 // pred_fallthru
      _
    // Predicated region
    $region10: #{_lambda_.21} parent=1 // pred_check
      _
    $region11: #{_lambda_.21} parent=1 // pred_check_branch
      %25 = sbr.rel (0) target = $region13
    $region12: #{_lambda_.21} parent=1 // pred_region
      _
    $region13: #{_lambda_.21} parent=1 // pred_fallthru
      _
    // Predicated region
    $region14: #{_lambda_.21} parent=1 // pred_check
      _
    $region15: #{_lambda_.21} parent=1 // pred_check_branch
      %27 = sbr.rel (0) target = $region17
    $region16: #{_lambda_.21} parent=1 // pred_region
      %29 = dma.done [#allocation4], 2048
    $region17: #{_lambda_.21} parent=1 // pred_fallthru
      _
    %p30 = scmp.eq.s32.totalorder 0, 0
    // Predicated region
    $region18: #{_lambda_.21} parent=1 // pred_check
      %p31 = pneg %p30
    $region19: #{_lambda_.21} parent=1 // pred_check_branch
      %33 = sbr.rel (%p31) target = $region21
    $region20: #{_lambda_.21} parent=1 // pred_region
      %34 = vst [vmem:[#allocation2] sm:$0xff] 0.0
      %35 = vst [vmem:[#allocation2 + $0x8] sm:$0xff] 0.0
      %36 = vst [vmem:[#allocation2 + $0x10] sm:$0xff] 0.0
      %37 = vst [vmem:[#allocation2 + $0x18] sm:$0xff] 0.0
    $region21: #{_lambda_.21} parent=1 // pred_fallthru
      _
    %v38 = vld [vmem:[#allocation2] sm:$0xff]
    %v39 = vld [vmem:[#allocation2 + $0x8] sm:$0xff]
    %v40 = vld [vmem:[#allocation2 + $0x10] sm:$0xff]
    %v41 = vld [vmem:[#allocation2 + $0x18] sm:$0xff]
    %v42 = vld [vmem:[%s0] sm:$0xf]
    %v43 = vld [vmem:[%s0 + $0x4] sm:$0xf]
    %v44 = vld [vmem:[#allocation3] sm:$0xff]
    %v45 = vld [vmem:[#allocation3 + $0x8] sm:$0xff]
    %v46 = vld [vmem:[#allocation3 + $0x10] sm:$0xff]
    %v47 = vld [vmem:[#allocation3 + $0x18] sm:$0xff]
    %v48 = vld [vmem:[#allocation3 + $0x20] sm:$0xff]
    %v49 = vld [vmem:[#allocation3 + $0x28] sm:$0xff]
    %v50 = vld [vmem:[#allocation3 + $0x30] sm:$0xff]
    %v51 = vld [vmem:[#allocation3 + $0x38] sm:$0xff]
    %v52 = vld [vmem:[#allocation3 + $0x40] sm:$0xff]
    %v53 = vld [vmem:[#allocation3 + $0x48] sm:$0xff]
    %v54 = vld [vmem:[#allocation3 + $0x50] sm:$0xff]
    %v55 = vld [vmem:[#allocation3 + $0x58] sm:$0xff]
    %v56 = vld [vmem:[#allocation3 + $0x60] sm:$0xff]
    %v57 = vld [vmem:[#allocation3 + $0x68] sm:$0xff]
    %v58 = vld [vmem:[#allocation3 + $0x70] sm:$0xff]
    %v59 = vld [vmem:[#allocation3 + $0x78] sm:$0xff]
    %v62 = vunpack.c.l.b16 %v42
    %v63 = vunpack.c.l.b16 %v43
    %v64 = vpack.c.b16 %v63, %v62
    %v82 = vunpack.c.l.b16 %v44
    %v83 = vunpack.c.h.b16 %v44
    %v84 = vunpack.c.l.b16 %v45
    %v85 = vunpack.c.h.b16 %v45
    %v86 = vunpack.c.l.b16 %v46
    %v87 = vunpack.c.h.b16 %v46
    %v88 = vunpack.c.l.b16 %v47
    %v89 = vunpack.c.h.b16 %v47
    %v90 = vunpack.c.l.b16 %v48
    %v91 = vunpack.c.h.b16 %v48
    %v92 = vunpack.c.l.b16 %v49
    %v93 = vunpack.c.h.b16 %v49
    %v94 = vunpack.c.l.b16 %v50
    %v95 = vunpack.c.h.b16 %v50
    %v96 = vunpack.c.l.b16 %v51
    %v97 = vunpack.c.h.b16 %v51
    %v98 = vunpack.c.l.b16 %v52
    %v99 = vunpack.c.h.b16 %v52
    %v100 = vunpack.c.l.b16 %v53
    %v101 = vunpack.c.h.b16 %v53
    %v102 = vunpack.c.l.b16 %v54
    %v103 = vunpack.c.h.b16 %v54
    %v104 = vunpack.c.l.b16 %v55
    %v105 = vunpack.c.h.b16 %v55
    %v106 = vunpack.c.l.b16 %v56
    %v107 = vunpack.c.h.b16 %v56
    %v108 = vunpack.c.l.b16 %v57
    %v109 = vunpack.c.h.b16 %v57
    %v110 = vunpack.c.l.b16 %v58
    %v111 = vunpack.c.h.b16 %v58
    %v112 = vunpack.c.l.b16 %v59
    %v113 = vunpack.c.h.b16 %v59
    %v114 = vpack.c.b16 %v84, %v82
    %v115 = vpack.c.b16 %v85, %v83
    %v116 = vpack.c.b16 %v88, %v86
    %v117 = vpack.c.b16 %v89, %v87
    %v118 = vpack.c.b16 %v92, %v90
    %v119 = vpack.c.b16 %v93, %v91
    %v120 = vpack.c.b16 %v96, %v94
    %v121 = vpack.c.b16 %v97, %v95
    %v122 = vpack.c.b16 %v100, %v98
    %v123 = vpack.c.b16 %v101, %v99
    %v124 = vpack.c.b16 %v104, %v102
    %v125 = vpack.c.b16 %v105, %v103
    %v126 = vpack.c.b16 %v108, %v106
    %v127 = vpack.c.b16 %v109, %v107
    %v128 = vpack.c.b16 %v112, %v110
    %v129 = vpack.c.b16 %v113, %v111
    %146 = vmatpush.bf16.msra.mxu0 %v128
    %147 = vmatpush.bf16.msra.mxu0 %v126
    %148 = vmatpush.bf16.msra.mxu0 %v124
    %149 = vmatpush.bf16.msra.mxu0 %v122
    %150 = vmatpush.bf16.msra.mxu0 %v120
    %151 = vmatpush.bf16.msra.mxu0 %v118
    %152 = vmatpush.bf16.msra.mxu0 %v116
    %153 = vmatpush.bf16.msra.mxu0 %v114
    %154 = vmatmul.bf16.gmra.mxu0 %v64
    %v155 = vpop.f32.mrf.mxu0
    %v156 = vadd.f32 0.0, %v155
    %v157 = vpop.f32.mrf.mxu0
    %v158 = vadd.f32 0.0, %v157
    %159 = vdwg.mxu0
    %160 = vmatpush.bf16.msra.mxu0 %v129
    %161 = vmatpush.bf16.msra.mxu0 %v127
    %162 = vmatpush.bf16.msra.mxu0 %v125
    %163 = vmatpush.bf16.msra.mxu0 %v123
    %164 = vmatpush.bf16.msra.mxu0 %v121
    %165 = vmatpush.bf16.msra.mxu0 %v119
    %166 = vmatpush.bf16.msra.mxu0 %v117
    %167 = vmatpush.bf16.msra.mxu0 %v115
    %168 = vmatmul.bf16.gmra.mxu0 %v64
    %v169 = vpop.f32.mrf.mxu0
    %v170 = vadd.f32 0.0, %v169
    %v171 = vpop.f32.mrf.mxu0
    %v172 = vadd.f32 0.0, %v171
    %173 = vdwg.mxu0
    %v174 = vadd.f32 %v38, %v156
    %v175 = vadd.f32 %v39, %v170
    %v176 = vadd.f32 %v40, %v158
    %v177 = vadd.f32 %v41, %v172
    %178 = vst [vmem:[#allocation2] sm:$0xff] %v174
    %179 = vst [vmem:[#allocation2 + $0x8] sm:$0xff] %v175
    %180 = vst [vmem:[#allocation2 + $0x10] sm:$0xff] %v176
    %181 = vst [vmem:[#allocation2 + $0x18] sm:$0xff] %v177
    // Predicated region
    $region22: #{_lambda_.21} parent=1 // pred_check
      %p182 = pneg %p30
    $region23: #{_lambda_.21} parent=1 // pred_check_branch
      %184 = sbr.rel (%p182) target = $region25
    $region24: #{_lambda_.21} parent=1 // pred_region
      %v185 = vld [vmem:[#allocation2] sm:$0xff]
      %v186 = vld [vmem:[#allocation2 + $0x8] sm:$0xff]
      %v187 = vld [vmem:[#allocation2 + $0x10] sm:$0xff]
      %v188 = vld [vmem:[#allocation2 + $0x18] sm:$0xff]
      %v189 = vld [vmem:[%s2] sm:$0x3]
      %v191 = vperm.slane %v189, 0
      %v192 = vperm.slane %v189, 1
      %v195 = vadd.f32 %v185, %v191
      %v196 = vadd.f32 %v186, %v192
      %v197 = vadd.f32 %v187, %v191
      %v198 = vadd.f32 %v188, %v192
      %v199 = vmul.f32 %v195, %v195
      %v200 = vmul.f32 %v196, %v196
      %v201 = vmul.f32 %v197, %v197
      %v202 = vmul.f32 %v198, %v198
      %v203 = vmul.f32 %v195, %v199
      %v204 = vmul.f32 %v196, %v200
      %v205 = vmul.f32 %v197, %v201
      %v206 = vmul.f32 %v198, %v202
      %v207 = vmul.f32 %v203, 0.044715
      %v208 = vmul.f32 %v204, 0.044715
      %v209 = vmul.f32 %v205, 0.044715
      %v210 = vmul.f32 %v206, 0.044715
      %v211 = vadd.f32 %v195, %v207
      %v212 = vadd.f32 %v196, %v208
      %v213 = vadd.f32 %v197, %v209
      %v214 = vadd.f32 %v198, %v210
      %v215 = vmul.f32 %v211, 0.7978846
      %v216 = vmul.f32 %v212, 0.7978846
      %v217 = vmul.f32 %v213, 0.7978846
      %v218 = vmul.f32 %v214, 0.7978846
      %v219 = vtanh.pop %v215
      %v220 = vtanh.pop %v216
      %v221 = vtanh.pop %v217
      %v222 = vtanh.pop %v218
      %v223 = vadd.f32 %v219, 1.0
      %v224 = vadd.f32 %v220, 1.0
      %v225 = vadd.f32 %v221, 1.0
      %v226 = vadd.f32 %v222, 1.0
      %v227 = vmul.f32 %v223, 0.5
      %v228 = vmul.f32 %v224, 0.5
      %v229 = vmul.f32 %v225, 0.5
      %v230 = vmul.f32 %v226, 0.5
      %v231 = vmul.f32 %v195, %v227
      %v232 = vmul.f32 %v196, %v228
      %v233 = vmul.f32 %v197, %v229
      %v234 = vmul.f32 %v198, %v230
      %v235 = vpack.c.bf16 %v232, %v231
      %v236 = vpack.c.bf16 %v234, %v233
      %237 = vst [vmem:[%s3] sm:$0xff] %v235
      %238 = vst [vmem:[%s3 + $0x8] sm:$0xff] %v236
    $region25: #{_lambda_.21} parent=1 // pred_fallthru
      _
    // Predicated region
    $region26: #{_lambda_.21} parent=1 // pred_check
      _
    $region27: #{_lambda_.21} parent=1 // pred_check_branch
      %240 = sbr.rel (0) target = $region29
    $region28: #{_lambda_.21} parent=1 // pred_region
      _
    $region29: #{_lambda_.21} parent=1 // pred_fallthru
      _
    // Predicated region
    $region30: #{_lambda_.21} parent=1 // pred_check
      _
    $region31: #{_lambda_.21} parent=1 // pred_check_branch
      %242 = sbr.rel (0) target = $region33
    $region32: #{_lambda_.21} parent=1 // pred_region
      _
    $region33: #{_lambda_.21} parent=1 // pred_fallthru
      _
    %243 = vsyncpa [#allocation4], 1

// kernel: _lambda_.23
$region0: #{_lambda_.23}
  #allocation0 [shape = 'u32[]', space=smem, size = 0x4, offset = 0x4, fixed_abs, tag = 'smem constant byte address 0x4 - core index']
  #allocation1 [shape = 'u32[72,128]{1,0:T(1,128)}', space=vmem, size = 0x9000, scoped, tag = 'internal scratch']
  #allocation2 [shape = 'f32[16,256]{1,0:T(8,128)}', space=vmem, size = 0x4000, scoped, tag = 'scratch operand']
  %s0 = inlined_call_operand.vmem [shape: bf16[16,128], index: 0, kind: input, shape index: {}]
  %s1 = inlined_call_operand.hbm [shape: bf16[128,256], index: 1, kind: input, shape index: {}]
  %s2 = inlined_call_operand.vmem [shape: f32[1,256], index: 2, kind: input, shape index: {}]
  %s3 = inlined_call_operand.hbm [shape: f32[16,256], index: 3, kind: output, shape index: {}]
  %s4 = sld [smem:[#allocation0]]
  $region34: #{_lambda_.23} parent=0
    _
  %s6 = ssub.s32 1, %s4
  %s7 = scalar_select 0, %s6, %s4
  $region1: #{_lambda_.23} parent=0
    #allocation3 [shape = 'u8[65536]{0}', space=vmem, size = 0x10000, scoped, tag = 'input window, operand 1, single buffered']
    #allocation4 [shape = 's32[1]{0}', space=sflag, size = 0x4, scoped, tag = 'scoped memory for _lambda_.23']
    #allocation5 [shape = 's32[1]{0}', space=sflag, size = 0x4, scoped, tag = 'scoped memory for _lambda_.23']
    #allocation6 [shape = 'u8[16384]{0}', space=vmem, size = 0x4000, scoped, tag = 'output window, operand 0, single buffered']
    %8 = vsyncpa [#allocation4], 0
    %9 = vsyncpa [#allocation5], 0
    // Predicated region
    $region2: #{_lambda_.23} parent=1 // pred_check
      _
    $region3: #{_lambda_.23} parent=1 // pred_check_branch
      %11 = sbr.rel (0) target = $region5
    $region4: #{_lambda_.23} parent=1 // pred_region
      _
    $region5: #{_lambda_.23} parent=1 // pred_fallthru
      _
    // Predicated region
    $region6: #{_lambda_.23} parent=1 // pred_check
      _
    $region7: #{_lambda_.23} parent=1 // pred_check_branch
      %13 = sbr.rel (0) target = $region9
    $region8: #{_lambda_.23} parent=1 // pred_region
      %15 = vsyncadd [#allocation4], 0
      %s16 = sshll.u32 %s1, 4
      %s17 = int_to_ptr.hbm [resolvable:$true] %s16
      %s18 = sshll.u32 [#allocation3], 4
      %s19 = int_to_ptr.vmem [resolvable:$true] %s18
      %24 = dma.hbm_to_vmem [thread:$0]  %s17, 2048, %s19, [#allocation4], 128, 128, 8
    $region9: #{_lambda_.23} parent=1 // pred_fallthru
      _
    // Predicated region
    $region10: #{_lambda_.23} parent=1 // pred_check
      _
    $region11: #{_lambda_.23} parent=1 // pred_check_branch
      %26 = sbr.rel (0) target = $region13
    $region12: #{_lambda_.23} parent=1 // pred_region
      _
    $region13: #{_lambda_.23} parent=1 // pred_fallthru
      _
    // Predicated region
    $region14: #{_lambda_.23} parent=1 // pred_check
      _
    $region15: #{_lambda_.23} parent=1 // pred_check_branch
      %28 = sbr.rel (0) target = $region17
    $region16: #{_lambda_.23} parent=1 // pred_region
      %30 = dma.done [#allocation4], 2048
    $region17: #{_lambda_.23} parent=1 // pred_fallthru
      _
    %p31 = scmp.eq.s32.totalorder 0, 0
    // Predicated region
    $region18: #{_lambda_.23} parent=1 // pred_check
      %p32 = pneg %p31
    $region19: #{_lambda_.23} parent=1 // pred_check_branch
      %34 = sbr.rel (%p32) target = $region21
    $region20: #{_lambda_.23} parent=1 // pred_region
      %35 = vst [vmem:[#allocation2] sm:$0xff] 0.0
      %36 = vst [vmem:[#allocation2 + $0x8] sm:$0xff] 0.0
      %37 = vst [vmem:[#allocation2 + $0x10] sm:$0xff] 0.0
      %38 = vst [vmem:[#allocation2 + $0x18] sm:$0xff] 0.0
    $region21: #{_lambda_.23} parent=1 // pred_fallthru
      _
    %v39 = vld [vmem:[#allocation2] sm:$0xff]
    %v40 = vld [vmem:[#allocation2 + $0x8] sm:$0xff]
    %v41 = vld [vmem:[#allocation2 + $0x10] sm:$0xff]
    %v42 = vld [vmem:[#allocation2 + $0x18] sm:$0xff]
    %v43 = vld [vmem:[%s0] sm:$0xf]
    %v44 = vld [vmem:[%s0 + $0x4] sm:$0xf]
    %v45 = vld [vmem:[#allocation3] sm:$0xff]
    %v46 = vld [vmem:[#allocation3 + $0x8] sm:$0xff]
    %v47 = vld [vmem:[#allocation3 + $0x10] sm:$0xff]
    %v48 = vld [vmem:[#allocation3 + $0x18] sm:$0xff]
    %v49 = vld [vmem:[#allocation3 + $0x20] sm:$0xff]
    %v50 = vld [vmem:[#allocation3 + $0x28] sm:$0xff]
    %v51 = vld [vmem:[#allocation3 + $0x30] sm:$0xff]
    %v52 = vld [vmem:[#allocation3 + $0x38] sm:$0xff]
    %v53 = vld [vmem:[#allocation3 + $0x40] sm:$0xff]
    %v54 = vld [vmem:[#allocation3 + $0x48] sm:$0xff]
    %v55 = vld [vmem:[#allocation3 + $0x50] sm:$0xff]
    %v56 = vld [vmem:[#allocation3 + $0x58] sm:$0xff]
    %v57 = vld [vmem:[#allocation3 + $0x60] sm:$0xff]
    %v58 = vld [vmem:[#allocation3 + $0x68] sm:$0xff]
    %v59 = vld [vmem:[#allocation3 + $0x70] sm:$0xff]
    %v60 = vld [vmem:[#allocation3 + $0x78] sm:$0xff]
    %v63 = vunpack.c.l.b16 %v43
    %v64 = vunpack.c.l.b16 %v44
    %v65 = vpack.c.b16 %v64, %v63
    %v83 = vunpack.c.l.b16 %v45
    %v84 = vunpack.c.h.b16 %v45
    %v85 = vunpack.c.l.b16 %v46
    %v86 = vunpack.c.h.b16 %v46
    %v87 = vunpack.c.l.b16 %v47
    %v88 = vunpack.c.h.b16 %v47
    %v89 = vunpack.c.l.b16 %v48
    %v90 = vunpack.c.h.b16 %v48
    %v91 = vunpack.c.l.b16 %v49
    %v92 = vunpack.c.h.b16 %v49
    %v93 = vunpack.c.l.b16 %v50
    %v94 = vunpack.c.h.b16 %v50
    %v95 = vunpack.c.l.b16 %v51
    %v96 = vunpack.c.h.b16 %v51
    %v97 = vunpack.c.l.b16 %v52
    %v98 = vunpack.c.h.b16 %v52
    %v99 = vunpack.c.l.b16 %v53
    %v100 = vunpack.c.h.b16 %v53
    %v101 = vunpack.c.l.b16 %v54
    %v102 = vunpack.c.h.b16 %v54
    %v103 = vunpack.c.l.b16 %v55
    %v104 = vunpack.c.h.b16 %v55
    %v105 = vunpack.c.l.b16 %v56
    %v106 = vunpack.c.h.b16 %v56
    %v107 = vunpack.c.l.b16 %v57
    %v108 = vunpack.c.h.b16 %v57
    %v109 = vunpack.c.l.b16 %v58
    %v110 = vunpack.c.h.b16 %v58
    %v111 = vunpack.c.l.b16 %v59
    %v112 = vunpack.c.h.b16 %v59
    %v113 = vunpack.c.l.b16 %v60
    %v114 = vunpack.c.h.b16 %v60
    %v115 = vpack.c.b16 %v85, %v83
    %v116 = vpack.c.b16 %v86, %v84
    %v117 = vpack.c.b16 %v89, %v87
    %v118 = vpack.c.b16 %v90, %v88
    %v119 = vpack.c.b16 %v93, %v91
    %v120 = vpack.c.b16 %v94, %v92
    %v121 = vpack.c.b16 %v97, %v95
    %v122 = vpack.c.b16 %v98, %v96
    %v123 = vpack.c.b16 %v101, %v99
    %v124 = vpack.c.b16 %v102, %v100
    %v125 = vpack.c.b16 %v105, %v103
    %v126 = vpack.c.b16 %v106, %v104
    %v127 = vpack.c.b16 %v109, %v107
    %v128 = vpack.c.b16 %v110, %v108
    %v129 = vpack.c.b16 %v113, %v111
    %v130 = vpack.c.b16 %v114, %v112
    %147 = vmatpush.bf16.msra.mxu0 %v129
    %148 = vmatpush.bf16.msra.mxu0 %v127
    %149 = vmatpush.bf16.msra.mxu0 %v125
    %150 = vmatpush.bf16.msra.mxu0 %v123
    %151 = vmatpush.bf16.msra.mxu0 %v121
    %152 = vmatpush.bf16.msra.mxu0 %v119
    %153 = vmatpush.bf16.msra.mxu0 %v117
    %154 = vmatpush.bf16.msra.mxu0 %v115
    %155 = vmatmul.bf16.gmra.mxu0 %v65
    %v156 = vpop.f32.mrf.mxu0
    %v157 = vadd.f32 0.0, %v156
    %v158 = vpop.f32.mrf.mxu0
    %v159 = vadd.f32 0.0, %v158
    %160 = vdwg.mxu0
    %161 = vmatpush.bf16.msra.mxu0 %v130
    %162 = vmatpush.bf16.msra.mxu0 %v128
    %163 = vmatpush.bf16.msra.mxu0 %v126
    %164 = vmatpush.bf16.msra.mxu0 %v124
    %165 = vmatpush.bf16.msra.mxu0 %v122
    %166 = vmatpush.bf16.msra.mxu0 %v120
    %167 = vmatpush.bf16.msra.mxu0 %v118
    %168 = vmatpush.bf16.msra.mxu0 %v116
    %169 = vmatmul.bf16.gmra.mxu0 %v65
    %v170 = vpop.f32.mrf.mxu0
    %v171 = vadd.f32 0.0, %v170
    %v172 = vpop.f32.mrf.mxu0
    %v173 = vadd.f32 0.0, %v172
    %174 = vdwg.mxu0
    %v175 = vadd.f32 %v39, %v157
    %v176 = vadd.f32 %v40, %v171
    %v177 = vadd.f32 %v41, %v159
    %v178 = vadd.f32 %v42, %v173
    %179 = vst [vmem:[#allocation2] sm:$0xff] %v175
    %180 = vst [vmem:[#allocation2 + $0x8] sm:$0xff] %v176
    %181 = vst [vmem:[#allocation2 + $0x10] sm:$0xff] %v177
    %182 = vst [vmem:[#allocation2 + $0x18] sm:$0xff] %v178
    // Predicated region
    $region22: #{_lambda_.23} parent=1 // pred_check
      %p183 = pneg %p31
    $region23: #{_lambda_.23} parent=1 // pred_check_branch
      %185 = sbr.rel (%p183) target = $region25
    $region24: #{_lambda_.23} parent=1 // pred_region
      %v186 = vld [vmem:[#allocation2] sm:$0xff]
      %v187 = vld [vmem:[#allocation2 + $0x8] sm:$0xff]
      %v188 = vld [vmem:[#allocation2 + $0x10] sm:$0xff]
      %v189 = vld [vmem:[#allocation2 + $0x18] sm:$0xff]
      %v190 = vld [vmem:[%s2] sm:$0x3]
      %v192 = vperm.slane %v190, 0
      %v193 = vperm.slane %v190, 1
      %v196 = vadd.f32 %v186, %v192
      %v197 = vadd.f32 %v187, %v193
      %v198 = vadd.f32 %v188, %v192
      %v199 = vadd.f32 %v189, %v193
      %200 = vst [vmem:[#allocation6] sm:$0xff] %v196
      %201 = vst [vmem:[#allocation6 + $0x8] sm:$0xff] %v197
      %202 = vst [vmem:[#allocation6 + $0x10] sm:$0xff] %v198
      %203 = vst [vmem:[#allocation6 + $0x18] sm:$0xff] %v199
    $region25: #{_lambda_.23} parent=1 // pred_fallthru
      _
    // Predicated region
    $region26: #{_lambda_.23} parent=1 // pred_check
      _
    $region27: #{_lambda_.23} parent=1 // pred_check_branch
      %205 = sbr.rel (0) target = $region29
    $region28: #{_lambda_.23} parent=1 // pred_region
      %207 = vsyncadd [#allocation5], 0
      %s208 = sshll.u32 [#allocation6], 4
      %s209 = int_to_ptr.vmem [resolvable:$true] %s208
      %s210 = sshll.u32 %s3, 4
      %s211 = int_to_ptr.hbm [resolvable:$true] %s210
      %216 = dma.vmem_to_hbm [thread:$0]  %s209, 512, %s211, [#allocation5], 256, 256, 16
    $region29: #{_lambda_.23} parent=1 // pred_fallthru
      _
    // Predicated region
    $region30: #{_lambda_.23} parent=1 // pred_check
      _
    $region31: #{_lambda_.23} parent=1 // pred_check_branch
      %218 = sbr.rel (0) target = $region33
    $region32: #{_lambda_.23} parent=1 // pred_region
      %220 = dma.done [#allocation5], 512
    $region33: #{_lambda_.23} parent=1 // pred_fallthru
      _
    %221 = vsyncpa [#allocation4], 1
    %222 = vsyncpa [#allocation5], 1

</llo_original>
